<compile_context>
chip_gen: v5e
topology: v5e:2x2
jax: 0.10.0
libtpu: 0.0.40
codegen_flags: <defaults>
</compile_context>

<pallas_src>
import functools
import math

import jax
import jax.numpy as jnp
from jax import lax
from jax.experimental import pallas as pl
from jax.experimental.pallas import tpu as pltpu


def _round_up(n, m):
    return ((n + m - 1) // m) * m


# ---------------------------------------------------------------------------
# Fused kernel: B-spline bases (Cox-de Boor) + SiLU + single combined matmul.
# ---------------------------------------------------------------------------
def _kan_kernel(xt_ref, gb_ref, rlb_ref, rrb_ref, wt_ref, out_ref, feats_ref,
                *, spline_order, num_knots, feat_chunk):
    S = spline_order
    G = num_knots
    IN_p, TB = xt_ref.shape
    FC = feat_chunk
    K = G - 1 - S
    fdt = feats_ref.dtype
    n_tok_chunks = TB // 128
    n_feat_chunks = IN_p // FC

    # Row offset of each recursion level inside the reciprocal tables.
    lvl_off = []
    off = 0
    for k in range(1, S + 1):
        lvl_off.append(off)
        off += G - 1 - k

    def tok_body(c, carry):
        tok = pl.multiple_of(c * 128, 128)
        for fc in range(n_feat_chunks):
            f0 = fc * FC
            x = xt_ref[pl.ds(f0, FC), pl.ds(tok, 128)]      # (FC, 128) f32

            def g(m):        # knot m for this feature chunk, lane-broadcast
                return gb_ref[pl.ds(m * IN_p + f0, FC), :]

            def rl(k, j):
                return rlb_ref[pl.ds((lvl_off[k - 1] + j) * IN_p + f0, FC), :]

            def rr(k, j):
                return rrb_ref[pl.ds((lvl_off[k - 1] + j) * IN_p + f0, FC), :]

            # Order-0 bases: half-open interval indicators (torch semantics).
            b = []
            d_prev = x - g(0)
            for j in range(G - 1):
                d_next = x - g(j + 1)
                b.append(jnp.logical_and(d_prev >= 0.0, d_next < 0.0)
                         .astype(jnp.float32))
                d_prev = d_next

            # Cox-de Boor recursion: hoisted reciprocals (pure VPU mul/add),
            # in-place forward update keeps the live vreg set small.
            for k in range(1, S + 1):
                for j in range(G - 1 - k):
                    left = (x - g(j)) * rl(k, j) * b[j]
                    right = (x - g(j + k + 1)) * rr(k, j) * b[j + 1]
                    b[j] = left + right
                del b[G - 1 - k:]
            # len(b) == K

            sx = x * jax.nn.sigmoid(x)                       # SiLU (EUP exp)

            # Sublane-stacked feature slab in VMEM (aligned vst, no lane concat)
            feats_ref[pl.ds(f0, FC), pl.ds(tok, 128)] = sx.astype(fdt)
            for j in range(K):
                feats_ref[pl.ds((j + 1) * IN_p + f0, FC), pl.ds(tok, 128)] = (
                    b[j].astype(fdt))
        return carry

    lax.fori_loop(0, n_tok_chunks, tok_body, 0)

    # One deep-contraction MXU matmul; lane-dense (OUT_p, TB) output store.
    out = jnp.dot(wt_ref[...], feats_ref[...],
                  preferred_element_type=jnp.float32)
    out_ref[...] = out.astype(out_ref.dtype)


# ---------------------------------------------------------------------------
# Wrapper
# ---------------------------------------------------------------------------
def kan_linear_forward(x, grid, base_weight, spline_weight, spline_scaler, *,
                       spline_order, token_tile=512, matmul_dtype=None):
    out_features, in_features = base_weight.shape
    K = spline_weight.shape[-1]                 # grid_size + spline_order
    G = grid.shape[1]                           # grid_size + 2*spline_order + 1
    assert G - 1 - spline_order == K

    orig_shape = x.shape
    out_dtype = x.dtype
    xf = x.reshape(-1, in_features).astype(jnp.float32)
    B = xf.shape[0]

    IN_p = _round_up(in_features, 8)
    OUT_p = _round_up(out_features, 8)
    FC = 16 if IN_p % 16 == 0 else 8            # feature chunk (sublane groups)
    CD = (K + 1) * IN_p
    L = sum(G - 1 - k for k in range(1, spline_order + 1))

    # --- grid-only precomputation, hoisted out of the kernel ----------------
    gridf = grid.astype(jnp.float32)
    if IN_p != in_features:                     # replicate a valid grid row
        gridf = jnp.concatenate(
            [gridf, jnp.broadcast_to(gridf[-1:], (IN_p - in_features, G))], 0)
    # gb[m*IN_p + f, :] = grid[f, m], broadcast over one 128-lane group.
    gb = jnp.broadcast_to(gridf.T.reshape(G * IN_p, 1), (G * IN_p, 128))

    rl_rows, rr_rows = [], []
    for k in range(1, spline_order + 1):
        dl = gridf[:, k:-1] - gridf[:, :-(k + 1)]            # (IN_p, G-1-k)
        dr = gridf[:, k + 1:] - gridf[:, 1:-k]               # (IN_p, G-1-k)
        inv_l = jnp.where(dl != 0, 1.0 / dl, 0.0)   # guard repeated knots
        inv_r = jnp.where(dr != 0, 1.0 / dr, 0.0)
        rl_rows.append(inv_l.T.reshape(-1, 1))               # row = j*IN_p + f
        rr_rows.append((-inv_r).T.reshape(-1, 1))
    rlb = jnp.broadcast_to(jnp.concatenate(rl_rows, 0), (L * IN_p, 128))
    rrb = jnp.broadcast_to(jnp.concatenate(rr_rows, 0), (L * IN_p, 128))

    # --- combined transposed weight: columns = [base | spline piece 0..K-1] -
    scaled = (spline_weight * spline_scaler[..., None]).astype(jnp.float32)
    pieces = [base_weight.astype(jnp.float32)] + [scaled[:, :, j]
                                                  for j in range(K)]
    pieces = [jnp.pad(p, ((0, OUT_p - out_features), (0, IN_p - in_features)))
              for p in pieces]
    wt = jnp.concatenate(pieces, axis=1)                     # (OUT_p, CD)
    if matmul_dtype is not None:
        wt = wt.astype(matmul_dtype)   # bf16 recommended on v6e/v7x MXU
    feat_dtype = wt.dtype

    # --- token tile selection + VMEM budget ---------------------------------
    TB = min(_round_up(max(token_tile, 128), 128), _round_up(B, 128))
    # Prefer >= 2 grid steps so both v7x TensorCores get work (one extra step
    # is a negligible ~0.35us on single-TC v5e/v6e).
    if B > 128 and _round_up(B, TB) // TB < 2:
        TB = _round_up((B + 1) // 2, 128)

    const_bytes = 4 * (gb.size + rlb.size + rrb.size)
    w_bytes = wt.size * wt.dtype.itemsize
    feat_isz = jnp.dtype(feat_dtype).itemsize
    out_isz = jnp.dtype(out_dtype).itemsize

    def vmem_est(tb):
        return (2 * const_bytes + 2 * w_bytes          # double-buffered operands
                + 2 * IN_p * tb * 4 + 2 * OUT_p * tb * out_isz
                + CD * tb * feat_isz                   # feats scratch
                + (2 << 20))                           # internal / spill headroom

    try:
        phys_vmem = pltpu.get_tpu_info().vmem_capacity_bytes
    except Exception:
        phys_vmem = 64 << 20                           # assume v7x (smallest VMEM)
    cap = phys_vmem - (16 << 20)                       # ~48 MiB v7x, ~112 MiB v5e/v6e
    while TB > 128 and vmem_est(TB) > cap:
        TB = _round_up(TB // 2, 128)                   # shrink TB, don't raise cap

    padded_B = _round_up(B, TB)
    if padded_B != B or IN_p != in_features:
        xf = jnp.pad(xf, ((0, padded_B - B), (0, IN_p - in_features)))
    xt = xf.T                                          # (IN_p, padded_B)

    ckw = {}
    est = vmem_est(TB)
    if est > (16 << 20):                               # above conservative default
        ckw["vmem_limit_bytes"] = int(min(max(est * 5 // 4, 32 << 20), cap))

    n_steps = padded_B // TB

    out_t = pl.pallas_call(
        functools.partial(_kan_kernel, spline_order=spline_order,
                          num_knots=G, feat_chunk=FC),
        out_shape=jax.ShapeDtypeStruct((OUT_p, padded_B), out_dtype),
        grid=(n_steps,),
        in_specs=[
            pl.BlockSpec((IN_p, TB), lambda i: (0, i)),
            pl.BlockSpec((G * IN_p, 128), lambda i: (0, 0)),
            pl.BlockSpec((L * IN_p, 128), lambda i: (0, 0)),
            pl.BlockSpec((L * IN_p, 128), lambda i: (0, 0)),
            pl.BlockSpec((OUT_p, CD), lambda i: (0, 0)),
        ],
        out_specs=pl.BlockSpec((OUT_p, TB), lambda i: (0, i)),
        scratch_shapes=[pltpu.VMEM((CD, TB), feat_dtype)],
        compiler_params=pltpu.CompilerParams(
            dimension_semantics=("parallel",), **ckw),
    )(xt, gb, rlb, rrb, wt)

    out = out_t[:out_features, :B].T                   # transpose back outside
    return out.reshape(*orig_shape[:-1], out_features)


# ---------------------------------------------------------------------------
# Pure-JAX reference (mirrors the PyTorch forward exactly)
# ---------------------------------------------------------------------------
def kan_linear_ref(x, grid, base_weight, spline_weight, spline_scaler,
                   *, spline_order):
    out_features, in_features = base_weight.shape
    orig_shape = x.shape
    xf = x.reshape(-1, in_features)
    xb = xf[:, :, None]
    g = grid[None, :, :]
    bases = jnp.logical_and(xb >= g[:, :, :-1], xb < g[:, :, 1:]).astype(xf.dtype)
    for k in range(1, spline_order + 1):
        bases = ((xb - g[:, :, :-(k + 1)]) / (g[:, :, k:-1] - g[:, :, :-(k + 1)])
                 * bases[:, :, :-1]
                 + (g[:, :, k + 1:] - xb) / (g[:, :, k + 1:] - g[:, :, 1:-k])
                 * bases[:, :, 1:])
    hp = jax.lax.Precision.HIGHEST
    base_out = jnp.dot(jax.nn.silu(xf), base_weight.T, precision=hp)
    sw = (spline_weight * spline_scaler[..., None]).reshape(out_features, -1)
    spline_out = jnp.dot(bases.reshape(xf.shape[0], -1), sw.T, precision=hp)
    out = base_out + spline_out
    return out.reshape(*orig_shape[:-1], out_features)


# ---------------------------------------------------------------------------
if __name__ == "__main__":
    # KANLinear hyperparameters (defaults from the module)
    in_features = 32
    out_features = 32
    grid_size = 10
    spline_order = 5
    grid_range = (-1.0, 1.0)
    K = grid_size + spline_order                      # 15
    G = grid_size + 2 * spline_order + 1              # 21

    # grid buffer: arange(-spline_order, grid_size+spline_order+1)*h + lo
    h = (grid_range[1] - grid_range[0]) / grid_size
    grid_1d = (jnp.arange(-spline_order, grid_size + spline_order + 1,
                          dtype=jnp.float32) * h + grid_range[0])
    grid_buf = jnp.broadcast_to(grid_1d, (in_features, G))

    # deterministic parameter init (shapes from __init__)
    # TODO(synk): curve2coeff (lstsq-based) init is not replicated; parameters
    # are drawn uniformly with kaiming-style bounds instead.
    key = jax.random.PRNGKey(0)
    k1, k2, k3, k4, k5 = jax.random.split(key, 5)
    bound_base = math.sqrt(6.0 / ((1.0 + 5.0) * in_features))
    base_weight = jax.random.uniform(k1, (out_features, in_features),
                                     jnp.float32, -bound_base, bound_base)
    spline_weight = (jax.random.uniform(k2, (out_features, in_features, K),
                                        jnp.float32) - 0.5) * 0.1
    spline_scaler = jax.random.uniform(k3, (out_features, in_features),
                                       jnp.float32, -bound_base, bound_base)

    # Tolerance note: the recursion is exact f32; the 1e-2 bound only covers
    # MXU default-precision differences between the in-kernel dot and the
    # (HIGHEST-precision) reference matmuls.
    TOL = 1e-2

    # example input 1: (batch=2, seq=8, in_features=32) channels-last
    x = jax.random.normal(k4, (2, 8, in_features), jnp.float32)
    out = kan_linear_forward(x, grid_buf, base_weight, spline_weight,
                             spline_scaler, spline_order=spline_order)
    out = jax.block_until_ready(out)
    ref = kan_linear_ref(x, grid_buf, base_weight, spline_weight,
                         spline_scaler, spline_order=spline_order)
    ref = jax.block_until_ready(ref)
    assert out.shape == (2, 8, out_features), out.shape
    assert jnp.allclose(out, ref, rtol=TOL, atol=TOL), (
        float(jnp.max(jnp.abs(out - ref))))

    # example input 2: exercises padding of the last tile + multi-step grid
    x2 = jax.random.normal(k5, (3, 50, in_features), jnp.float32)
    out2 = kan_linear_forward(x2, grid_buf, base_weight, spline_weight,
                              spline_scaler, spline_order=spline_order)
    out2 = jax.block_until_ready(out2)
    ref2 = kan_linear_ref(x2, grid_buf, base_weight, spline_weight,
                          spline_scaler, spline_order=spline_order)
    assert jnp.allclose(out2, ref2, rtol=TOL, atol=TOL), (
        float(jnp.max(jnp.abs(out2 - ref2))))

    # bf16 matmul operands (v6e/v7x MXU fast path); recursion stays f32
    out_bf16 = kan_linear_forward(x, grid_buf, base_weight, spline_weight,
                                  spline_scaler, spline_order=spline_order,
                                  matmul_dtype=jnp.bfloat16)
    out_bf16 = jax.block_until_ready(out_bf16)
    assert jnp.allclose(out_bf16, ref, rtol=5e-2, atol=5e-2), (
        float(jnp.max(jnp.abs(out_bf16 - ref))))

    print("KERNEL_OK")
</pallas_src>

<mosaic_0001>
module attributes {stable_mosaic.version = 11 : i64} {
  func.func @_kan_kernel(%arg0: i32, %arg1: memref<32x128xf32, #tpu.memory_space<vmem>>, %arg2: memref<672x128xf32, #tpu.memory_space<vmem>>, %arg3: memref<2720x128xf32, #tpu.memory_space<vmem>>, %arg4: memref<2720x128xf32, #tpu.memory_space<vmem>>, %arg5: memref<32x512xf32, #tpu.memory_space<vmem>>, %arg6: memref<32x128xf32, #tpu.memory_space<vmem>>, %arg7: memref<512x128xf32, #tpu.memory_space<vmem>>) attributes {dimension_semantics = [#tpu.dimension_semantics<parallel>], iteration_bounds = array<i64: 1>, scalar_prefetch = 0 : i64, scratch_operands = 1 : i64, tpu.core_type = #tpu.core_type<tc>, window_params = [{transform_indices = @transform_0, window_bounds = array<i64: 32, 128>}, {pipeline_mode = #tpu.pipeline_mode<synchronous>, transform_indices = @transform_1, window_bounds = array<i64: 672, 128>}, {pipeline_mode = #tpu.pipeline_mode<synchronous>, transform_indices = @transform_2, window_bounds = array<i64: 2720, 128>}, {pipeline_mode = #tpu.pipeline_mode<synchronous>, transform_indices = @transform_3, window_bounds = array<i64: 2720, 128>}, {pipeline_mode = #tpu.pipeline_mode<synchronous>, transform_indices = @transform_4, window_bounds = array<i64: 32, 512>}, {transform_indices = @transform_5, window_bounds = array<i64: 32, 128>}]} {
    %c0_i32 = arith.constant 0 : i32
    %c128_i32 = arith.constant 128 : i32
    %0 = arith.muli %c0_i32, %c128_i32 : i32
    %1 = tpu.assume_multiple %0, 128 : i32
    %c0 = arith.constant 0 : index
    %2 = arith.index_cast %1 : i32 to index
    %3 = vector.load %arg1[%c0, %2] : memref<32x128xf32, #tpu.memory_space<vmem>>, vector<16x128xf32>
    %c0_0 = arith.constant 0 : index
    %c0_1 = arith.constant 0 : index
    %4 = vector.load %arg2[%c0_0, %c0_1] : memref<672x128xf32, #tpu.memory_space<vmem>>, vector<16x128xf32>
    %5 = arith.subf %3, %4 : vector<16x128xf32>
    %c32 = arith.constant 32 : index
    %c0_2 = arith.constant 0 : index
    %6 = vector.load %arg2[%c32, %c0_2] : memref<672x128xf32, #tpu.memory_space<vmem>>, vector<16x128xf32>
    %7 = arith.subf %3, %6 : vector<16x128xf32>
    %cst = arith.constant 0.000000e+00 : f32
    %8 = vector.broadcast %cst : f32 to vector<16x128xf32>
    %9 = arith.cmpf oge, %5, %8 : vector<16x128xf32>
    %cst_3 = arith.constant 0.000000e+00 : f32
    %10 = vector.broadcast %cst_3 : f32 to vector<16x128xf32>
    %11 = arith.cmpf olt, %7, %10 : vector<16x128xf32>
    %12 = arith.andi %9, %11 : vector<16x128xi1>
    %13 = arith.extui %12 : vector<16x128xi1> to vector<16x128xi32>
    %14 = arith.sitofp %13 : vector<16x128xi32> to vector<16x128xf32>
    %c64 = arith.constant 64 : index
    %c0_4 = arith.constant 0 : index
    %15 = vector.load %arg2[%c64, %c0_4] : memref<672x128xf32, #tpu.memory_space<vmem>>, vector<16x128xf32>
    %16 = arith.subf %3, %15 : vector<16x128xf32>
    %cst_5 = arith.constant 0.000000e+00 : f32
    %17 = vector.broadcast %cst_5 : f32 to vector<16x128xf32>
    %18 = arith.cmpf oge, %7, %17 : vector<16x128xf32>
    %cst_6 = arith.constant 0.000000e+00 : f32
    %19 = vector.broadcast %cst_6 : f32 to vector<16x128xf32>
    %20 = arith.cmpf olt, %16, %19 : vector<16x128xf32>
    %21 = arith.andi %18, %20 : vector<16x128xi1>
    %22 = arith.extui %21 : vector<16x128xi1> to vector<16x128xi32>
    %23 = arith.sitofp %22 : vector<16x128xi32> to vector<16x128xf32>
    %c96 = arith.constant 96 : index
    %c0_7 = arith.constant 0 : index
    %24 = vector.load %arg2[%c96, %c0_7] : memref<672x128xf32, #tpu.memory_space<vmem>>, vector<16x128xf32>
    %25 = arith.subf %3, %24 : vector<16x128xf32>
    %cst_8 = arith.constant 0.000000e+00 : f32
    %26 = vector.broadcast %cst_8 : f32 to vector<16x128xf32>
    %27 = arith.cmpf oge, %16, %26 : vector<16x128xf32>
    %cst_9 = arith.constant 0.000000e+00 : f32
    %28 = vector.broadcast %cst_9 : f32 to vector<16x128xf32>
    %29 = arith.cmpf olt, %25, %28 : vector<16x128xf32>
    %30 = arith.andi %27, %29 : vector<16x128xi1>
    %31 = arith.extui %30 : vector<16x128xi1> to vector<16x128xi32>
    %32 = arith.sitofp %31 : vector<16x128xi32> to vector<16x128xf32>
    %c128 = arith.constant 128 : index
    %c0_10 = arith.constant 0 : index
    %33 = vector.load %arg2[%c128, %c0_10] : memref<672x128xf32, #tpu.memory_space<vmem>>, vector<16x128xf32>
    %34 = arith.subf %3, %33 : vector<16x128xf32>
    %cst_11 = arith.constant 0.000000e+00 : f32
    %35 = vector.broadcast %cst_11 : f32 to vector<16x128xf32>
    %36 = arith.cmpf oge, %25, %35 : vector<16x128xf32>
    %cst_12 = arith.constant 0.000000e+00 : f32
    %37 = vector.broadcast %cst_12 : f32 to vector<16x128xf32>
    %38 = arith.cmpf olt, %34, %37 : vector<16x128xf32>
    %39 = arith.andi %36, %38 : vector<16x128xi1>
    %40 = arith.extui %39 : vector<16x128xi1> to vector<16x128xi32>
    %41 = arith.sitofp %40 : vector<16x128xi32> to vector<16x128xf32>
    %c160 = arith.constant 160 : index
    %c0_13 = arith.constant 0 : index
    %42 = vector.load %arg2[%c160, %c0_13] : memref<672x128xf32, #tpu.memory_space<vmem>>, vector<16x128xf32>
    %43 = arith.subf %3, %42 : vector<16x128xf32>
    %cst_14 = arith.constant 0.000000e+00 : f32
    %44 = vector.broadcast %cst_14 : f32 to vector<16x128xf32>
    %45 = arith.cmpf oge, %34, %44 : vector<16x128xf32>
    %cst_15 = arith.constant 0.000000e+00 : f32
    %46 = vector.broadcast %cst_15 : f32 to vector<16x128xf32>
    %47 = arith.cmpf olt, %43, %46 : vector<16x128xf32>
    %48 = arith.andi %45, %47 : vector<16x128xi1>
    %49 = arith.extui %48 : vector<16x128xi1> to vector<16x128xi32>
    %50 = arith.sitofp %49 : vector<16x128xi32> to vector<16x128xf32>
    %c192 = arith.constant 192 : index
    %c0_16 = arith.constant 0 : index
    %51 = vector.load %arg2[%c192, %c0_16] : memref<672x128xf32, #tpu.memory_space<vmem>>, vector<16x128xf32>
    %52 = arith.subf %3, %51 : vector<16x128xf32>
    %cst_17 = arith.constant 0.000000e+00 : f32
    %53 = vector.broadcast %cst_17 : f32 to vector<16x128xf32>
    %54 = arith.cmpf oge, %43, %53 : vector<16x128xf32>
    %cst_18 = arith.constant 0.000000e+00 : f32
    %55 = vector.broadcast %cst_18 : f32 to vector<16x128xf32>
    %56 = arith.cmpf olt, %52, %55 : vector<16x128xf32>
    %57 = arith.andi %54, %56 : vector<16x128xi1>
    %58 = arith.extui %57 : vector<16x128xi1> to vector<16x128xi32>
    %59 = arith.sitofp %58 : vector<16x128xi32> to vector<16x128xf32>
    %c224 = arith.constant 224 : index
    %c0_19 = arith.constant 0 : index
    %60 = vector.load %arg2[%c224, %c0_19] : memref<672x128xf32, #tpu.memory_space<vmem>>, vector<16x128xf32>
    %61 = arith.subf %3, %60 : vector<16x128xf32>
    %cst_20 = arith.constant 0.000000e+00 : f32
    %62 = vector.broadcast %cst_20 : f32 to vector<16x128xf32>
    %63 = arith.cmpf oge, %52, %62 : vector<16x128xf32>
    %cst_21 = arith.constant 0.000000e+00 : f32
    %64 = vector.broadcast %cst_21 : f32 to vector<16x128xf32>
    %65 = arith.cmpf olt, %61, %64 : vector<16x128xf32>
    %66 = arith.andi %63, %65 : vector<16x128xi1>
    %67 = arith.extui %66 : vector<16x128xi1> to vector<16x128xi32>
    %68 = arith.sitofp %67 : vector<16x128xi32> to vector<16x128xf32>
    %c256 = arith.constant 256 : index
    %c0_22 = arith.constant 0 : index
    %69 = vector.load %arg2[%c256, %c0_22] : memref<672x128xf32, #tpu.memory_space<vmem>>, vector<16x128xf32>
    %70 = arith.subf %3, %69 : vector<16x128xf32>
    %cst_23 = arith.constant 0.000000e+00 : f32
    %71 = vector.broadcast %cst_23 : f32 to vector<16x128xf32>
    %72 = arith.cmpf oge, %61, %71 : vector<16x128xf32>
    %cst_24 = arith.constant 0.000000e+00 : f32
    %73 = vector.broadcast %cst_24 : f32 to vector<16x128xf32>
    %74 = arith.cmpf olt, %70, %73 : vector<16x128xf32>
    %75 = arith.andi %72, %74 : vector<16x128xi1>
    %76 = arith.extui %75 : vector<16x128xi1> to vector<16x128xi32>
    %77 = arith.sitofp %76 : vector<16x128xi32> to vector<16x128xf32>
    %c288 = arith.constant 288 : index
    %c0_25 = arith.constant 0 : index
    %78 = vector.load %arg2[%c288, %c0_25] : memref<672x128xf32, #tpu.memory_space<vmem>>, vector<16x128xf32>
    %79 = arith.subf %3, %78 : vector<16x128xf32>
    %cst_26 = arith.constant 0.000000e+00 : f32
    %80 = vector.broadcast %cst_26 : f32 to vector<16x128xf32>
    %81 = arith.cmpf oge, %70, %80 : vector<16x128xf32>
    %cst_27 = arith.constant 0.000000e+00 : f32
    %82 = vector.broadcast %cst_27 : f32 to vector<16x128xf32>
    %83 = arith.cmpf olt, %79, %82 : vector<16x128xf32>
    %84 = arith.andi %81, %83 : vector<16x128xi1>
    %85 = arith.extui %84 : vector<16x128xi1> to vector<16x128xi32>
    %86 = arith.sitofp %85 : vector<16x128xi32> to vector<16x128xf32>
    %c320 = arith.constant 320 : index
    %c0_28 = arith.constant 0 : index
    %87 = vector.load %arg2[%c320, %c0_28] : memref<672x128xf32, #tpu.memory_space<vmem>>, vector<16x128xf32>
    %88 = arith.subf %3, %87 : vector<16x128xf32>
    %cst_29 = arith.constant 0.000000e+00 : f32
    %89 = vector.broadcast %cst_29 : f32 to vector<16x128xf32>
    %90 = arith.cmpf oge, %79, %89 : vector<16x128xf32>
    %cst_30 = arith.constant 0.000000e+00 : f32
    %91 = vector.broadcast %cst_30 : f32 to vector<16x128xf32>
    %92 = arith.cmpf olt, %88, %91 : vector<16x128xf32>
    %93 = arith.andi %90, %92 : vector<16x128xi1>
    %94 = arith.extui %93 : vector<16x128xi1> to vector<16x128xi32>
    %95 = arith.sitofp %94 : vector<16x128xi32> to vector<16x128xf32>
    %c352 = arith.constant 352 : index
    %c0_31 = arith.constant 0 : index
    %96 = vector.load %arg2[%c352, %c0_31] : memref<672x128xf32, #tpu.memory_space<vmem>>, vector<16x128xf32>
    %97 = arith.subf %3, %96 : vector<16x128xf32>
    %cst_32 = arith.constant 0.000000e+00 : f32
    %98 = vector.broadcast %cst_32 : f32 to vector<16x128xf32>
    %99 = arith.cmpf oge, %88, %98 : vector<16x128xf32>
    %cst_33 = arith.constant 0.000000e+00 : f32
    %100 = vector.broadcast %cst_33 : f32 to vector<16x128xf32>
    %101 = arith.cmpf olt, %97, %100 : vector<16x128xf32>
    %102 = arith.andi %99, %101 : vector<16x128xi1>
    %103 = arith.extui %102 : vector<16x128xi1> to vector<16x128xi32>
    %104 = arith.sitofp %103 : vector<16x128xi32> to vector<16x128xf32>
    %c384 = arith.constant 384 : index
    %c0_34 = arith.constant 0 : index
    %105 = vector.load %arg2[%c384, %c0_34] : memref<672x128xf32, #tpu.memory_space<vmem>>, vector<16x128xf32>
    %106 = arith.subf %3, %105 : vector<16x128xf32>
    %cst_35 = arith.constant 0.000000e+00 : f32
    %107 = vector.broadcast %cst_35 : f32 to vector<16x128xf32>
    %108 = arith.cmpf oge, %97, %107 : vector<16x128xf32>
    %cst_36 = arith.constant 0.000000e+00 : f32
    %109 = vector.broadcast %cst_36 : f32 to vector<16x128xf32>
    %110 = arith.cmpf olt, %106, %109 : vector<16x128xf32>
    %111 = arith.andi %108, %110 : vector<16x128xi1>
    %112 = arith.extui %111 : vector<16x128xi1> to vector<16x128xi32>
    %113 = arith.sitofp %112 : vector<16x128xi32> to vector<16x128xf32>
    %c416 = arith.constant 416 : index
    %c0_37 = arith.constant 0 : index
    %114 = vector.load %arg2[%c416, %c0_37] : memref<672x128xf32, #tpu.memory_space<vmem>>, vector<16x128xf32>
    %115 = arith.subf %3, %114 : vector<16x128xf32>
    %cst_38 = arith.constant 0.000000e+00 : f32
    %116 = vector.broadcast %cst_38 : f32 to vector<16x128xf32>
    %117 = arith.cmpf oge, %106, %116 : vector<16x128xf32>
    %cst_39 = arith.constant 0.000000e+00 : f32
    %118 = vector.broadcast %cst_39 : f32 to vector<16x128xf32>
    %119 = arith.cmpf olt, %115, %118 : vector<16x128xf32>
    %120 = arith.andi %117, %119 : vector<16x128xi1>
    %121 = arith.extui %120 : vector<16x128xi1> to vector<16x128xi32>
    %122 = arith.sitofp %121 : vector<16x128xi32> to vector<16x128xf32>
    %c448 = arith.constant 448 : index
    %c0_40 = arith.constant 0 : index
    %123 = vector.load %arg2[%c448, %c0_40] : memref<672x128xf32, #tpu.memory_space<vmem>>, vector<16x128xf32>
    %124 = arith.subf %3, %123 : vector<16x128xf32>
    %cst_41 = arith.constant 0.000000e+00 : f32
    %125 = vector.broadcast %cst_41 : f32 to vector<16x128xf32>
    %126 = arith.cmpf oge, %115, %125 : vector<16x128xf32>
    %cst_42 = arith.constant 0.000000e+00 : f32
    %127 = vector.broadcast %cst_42 : f32 to vector<16x128xf32>
    %128 = arith.cmpf olt, %124, %127 : vector<16x128xf32>
    %129 = arith.andi %126, %128 : vector<16x128xi1>
    %130 = arith.extui %129 : vector<16x128xi1> to vector<16x128xi32>
    %131 = arith.sitofp %130 : vector<16x128xi32> to vector<16x128xf32>
    %c480 = arith.constant 480 : index
    %c0_43 = arith.constant 0 : index
    %132 = vector.load %arg2[%c480, %c0_43] : memref<672x128xf32, #tpu.memory_space<vmem>>, vector<16x128xf32>
    %133 = arith.subf %3, %132 : vector<16x128xf32>
    %cst_44 = arith.constant 0.000000e+00 : f32
    %134 = vector.broadcast %cst_44 : f32 to vector<16x128xf32>
    %135 = arith.cmpf oge, %124, %134 : vector<16x128xf32>
    %cst_45 = arith.constant 0.000000e+00 : f32
    %136 = vector.broadcast %cst_45 : f32 to vector<16x128xf32>
    %137 = arith.cmpf olt, %133, %136 : vector<16x128xf32>
    %138 = arith.andi %135, %137 : vector<16x128xi1>
    %139 = arith.extui %138 : vector<16x128xi1> to vector<16x128xi32>
    %140 = arith.sitofp %139 : vector<16x128xi32> to vector<16x128xf32>
    %c512 = arith.constant 512 : index
    %c0_46 = arith.constant 0 : index
    %141 = vector.load %arg2[%c512, %c0_46] : memref<672x128xf32, #tpu.memory_space<vmem>>, vector<16x128xf32>
    %142 = arith.subf %3, %141 : vector<16x128xf32>
    %cst_47 = arith.constant 0.000000e+00 : f32
    %143 = vector.broadcast %cst_47 : f32 to vector<16x128xf32>
    %144 = arith.cmpf oge, %133, %143 : vector<16x128xf32>
    %cst_48 = arith.constant 0.000000e+00 : f32
    %145 = vector.broadcast %cst_48 : f32 to vector<16x128xf32>
    %146 = arith.cmpf olt, %142, %145 : vector<16x128xf32>
    %147 = arith.andi %144, %146 : vector<16x128xi1>
    %148 = arith.extui %147 : vector<16x128xi1> to vector<16x128xi32>
    %149 = arith.sitofp %148 : vector<16x128xi32> to vector<16x128xf32>
    %c544 = arith.constant 544 : index
    %c0_49 = arith.constant 0 : index
    %150 = vector.load %arg2[%c544, %c0_49] : memref<672x128xf32, #tpu.memory_space<vmem>>, vector<16x128xf32>
    %151 = arith.subf %3, %150 : vector<16x128xf32>
    %cst_50 = arith.constant 0.000000e+00 : f32
    %152 = vector.broadcast %cst_50 : f32 to vector<16x128xf32>
    %153 = arith.cmpf oge, %142, %152 : vector<16x128xf32>
    %cst_51 = arith.constant 0.000000e+00 : f32
    %154 = vector.broadcast %cst_51 : f32 to vector<16x128xf32>
    %155 = arith.cmpf olt, %151, %154 : vector<16x128xf32>
    %156 = arith.andi %153, %155 : vector<16x128xi1>
    %157 = arith.extui %156 : vector<16x128xi1> to vector<16x128xi32>
    %158 = arith.sitofp %157 : vector<16x128xi32> to vector<16x128xf32>
    %c576 = arith.constant 576 : index
    %c0_52 = arith.constant 0 : index
    %159 = vector.load %arg2[%c576, %c0_52] : memref<672x128xf32, #tpu.memory_space<vmem>>, vector<16x128xf32>
    %160 = arith.subf %3, %159 : vector<16x128xf32>
    %cst_53 = arith.constant 0.000000e+00 : f32
    %161 = vector.broadcast %cst_53 : f32 to vector<16x128xf32>
    %162 = arith.cmpf oge, %151, %161 : vector<16x128xf32>
    %cst_54 = arith.constant 0.000000e+00 : f32
    %163 = vector.broadcast %cst_54 : f32 to vector<16x128xf32>
    %164 = arith.cmpf olt, %160, %163 : vector<16x128xf32>
    %165 = arith.andi %162, %164 : vector<16x128xi1>
    %166 = arith.extui %165 : vector<16x128xi1> to vector<16x128xi32>
    %167 = arith.sitofp %166 : vector<16x128xi32> to vector<16x128xf32>
    %c608 = arith.constant 608 : index
    %c0_55 = arith.constant 0 : index
    %168 = vector.load %arg2[%c608, %c0_55] : memref<672x128xf32, #tpu.memory_space<vmem>>, vector<16x128xf32>
    %169 = arith.subf %3, %168 : vector<16x128xf32>
    %cst_56 = arith.constant 0.000000e+00 : f32
    %170 = vector.broadcast %cst_56 : f32 to vector<16x128xf32>
    %171 = arith.cmpf oge, %160, %170 : vector<16x128xf32>
    %cst_57 = arith.constant 0.000000e+00 : f32
    %172 = vector.broadcast %cst_57 : f32 to vector<16x128xf32>
    %173 = arith.cmpf olt, %169, %172 : vector<16x128xf32>
    %174 = arith.andi %171, %173 : vector<16x128xi1>
    %175 = arith.extui %174 : vector<16x128xi1> to vector<16x128xi32>
    %176 = arith.sitofp %175 : vector<16x128xi32> to vector<16x128xf32>
    %c640 = arith.constant 640 : index
    %c0_58 = arith.constant 0 : index
    %177 = vector.load %arg2[%c640, %c0_58] : memref<672x128xf32, #tpu.memory_space<vmem>>, vector<16x128xf32>
    %178 = arith.subf %3, %177 : vector<16x128xf32>
    %cst_59 = arith.constant 0.000000e+00 : f32
    %179 = vector.broadcast %cst_59 : f32 to vector<16x128xf32>
    %180 = arith.cmpf oge, %169, %179 : vector<16x128xf32>
    %cst_60 = arith.constant 0.000000e+00 : f32
    %181 = vector.broadcast %cst_60 : f32 to vector<16x128xf32>
    %182 = arith.cmpf olt, %178, %181 : vector<16x128xf32>
    %183 = arith.andi %180, %182 : vector<16x128xi1>
    %184 = arith.extui %183 : vector<16x128xi1> to vector<16x128xi32>
    %185 = arith.sitofp %184 : vector<16x128xi32> to vector<16x128xf32>
    %c0_61 = arith.constant 0 : index
    %c0_62 = arith.constant 0 : index
    %186 = vector.load %arg2[%c0_61, %c0_62] : memref<672x128xf32, #tpu.memory_space<vmem>>, vector<16x128xf32>
    %187 = arith.subf %3, %186 : vector<16x128xf32>
    %c0_63 = arith.constant 0 : index
    %c0_64 = arith.constant 0 : index
    %188 = vector.load %arg3[%c0_63, %c0_64] : memref<2720x128xf32, #tpu.memory_space<vmem>>, vector<16x128xf32>
    %189 = arith.mulf %187, %188 : vector<16x128xf32>
    %190 = arith.mulf %189, %14 : vector<16x128xf32>
    %c64_65 = arith.constant 64 : index
    %c0_66 = arith.constant 0 : index
    %191 = vector.load %arg2[%c64_65, %c0_66] : memref<672x128xf32, #tpu.memory_space<vmem>>, vector<16x128xf32>
    %192 = arith.subf %3, %191 : vector<16x128xf32>
    %c0_67 = arith.constant 0 : index
    %c0_68 = arith.constant 0 : index
    %193 = vector.load %arg4[%c0_67, %c0_68] : memref<2720x128xf32, #tpu.memory_space<vmem>>, vector<16x128xf32>
    %194 = arith.mulf %192, %193 : vector<16x128xf32>
    %195 = arith.mulf %194, %23 : vector<16x128xf32>
    %196 = arith.addf %190, %195 : vector<16x128xf32>
    %c32_69 = arith.constant 32 : index
    %c0_70 = arith.constant 0 : index
    %197 = vector.load %arg2[%c32_69, %c0_70] : memref<672x128xf32, #tpu.memory_space<vmem>>, vector<16x128xf32>
    %198 = arith.subf %3, %197 : vector<16x128xf32>
    %c32_71 = arith.constant 32 : index
    %c0_72 = arith.constant 0 : index
    %199 = vector.load %arg3[%c32_71, %c0_72] : memref<2720x128xf32, #tpu.memory_space<vmem>>, vector<16x128xf32>
    %200 = arith.mulf %198, %199 : vector<16x128xf32>
    %201 = arith.mulf %200, %23 : vector<16x128xf32>
    %c96_73 = arith.constant 96 : index
    %c0_74 = arith.constant 0 : index
    %202 = vector.load %arg2[%c96_73, %c0_74] : memref<672x128xf32, #tpu.memory_space<vmem>>, vector<16x128xf32>
    %203 = arith.subf %3, %202 : vector<16x128xf32>
    %c32_75 = arith.constant 32 : index
    %c0_76 = arith.constant 0 : index
    %204 = vector.load %arg4[%c32_75, %c0_76] : memref<2720x128xf32, #tpu.memory_space<vmem>>, vector<16x128xf32>
    %205 = arith.mulf %203, %204 : vector<16x128xf32>
    %206 = arith.mulf %205, %32 : vector<16x128xf32>
    %207 = arith.addf %201, %206 : vector<16x128xf32>
    %c64_77 = arith.constant 64 : index
    %c0_78 = arith.constant 0 : index
    %208 = vector.load %arg2[%c64_77, %c0_78] : memref<672x128xf32, #tpu.memory_space<vmem>>, vector<16x128xf32>
    %209 = arith.subf %3, %208 : vector<16x128xf32>
    %c64_79 = arith.constant 64 : index
    %c0_80 = arith.constant 0 : index
    %210 = vector.load %arg3[%c64_79, %c0_80] : memref<2720x128xf32, #tpu.memory_space<vmem>>, vector<16x128xf32>
    %211 = arith.mulf %209, %210 : vector<16x128xf32>
    %212 = arith.mulf %211, %32 : vector<16x128xf32>
    %c128_81 = arith.constant 128 : index
    %c0_82 = arith.constant 0 : index
    %213 = vector.load %arg2[%c128_81, %c0_82] : memref<672x128xf32, #tpu.memory_space<vmem>>, vector<16x128xf32>
    %214 = arith.subf %3, %213 : vector<16x128xf32>
    %c64_83 = arith.constant 64 : index
    %c0_84 = arith.constant 0 : index
    %215 = vector.load %arg4[%c64_83, %c0_84] : memref<2720x128xf32, #tpu.memory_space<vmem>>, vector<16x128xf32>
    %216 = arith.mulf %214, %215 : vector<16x128xf32>
    %217 = arith.mulf %216, %41 : vector<16x128xf32>
    %218 = arith.addf %212, %217 : vector<16x128xf32>
    %c96_85 = arith.constant 96 : index
    %c0_86 = arith.constant 0 : index
    %219 = vector.load %arg2[%c96_85, %c0_86] : memref<672x128xf32, #tpu.memory_space<vmem>>, vector<16x128xf32>
    %220 = arith.subf %3, %219 : vector<16x128xf32>
    %c96_87 = arith.constant 96 : index
    %c0_88 = arith.constant 0 : index
    %221 = vector.load %arg3[%c96_87, %c0_88] : memref<2720x128xf32, #tpu.memory_space<vmem>>, vector<16x128xf32>
    %222 = arith.mulf %220, %221 : vector<16x128xf32>
    %223 = arith.mulf %222, %41 : vector<16x128xf32>
    %c160_89 = arith.constant 160 : index
    %c0_90 = arith.constant 0 : index
    %224 = vector.load %arg2[%c160_89, %c0_90] : memref<672x128xf32, #tpu.memory_space<vmem>>, vector<16x128xf32>
    %225 = arith.subf %3, %224 : vector<16x128xf32>
    %c96_91 = arith.constant 96 : index
    %c0_92 = arith.constant 0 : index
    %226 = vector.load %arg4[%c96_91, %c0_92] : memref<2720x128xf32, #tpu.memory_space<vmem>>, vector<16x128xf32>
    %227 = arith.mulf %225, %226 : vector<16x128xf32>
    %228 = arith.mulf %227, %50 : vector<16x128xf32>
    %229 = arith.addf %223, %228 : vector<16x128xf32>
    %c128_93 = arith.constant 128 : index
    %c0_94 = arith.constant 0 : index
    %230 = vector.load %arg2[%c128_93, %c0_94] : memref<672x128xf32, #tpu.memory_space<vmem>>, vector<16x128xf32>
    %231 = arith.subf %3, %230 : vector<16x128xf32>
    %c128_95 = arith.constant 128 : index
    %c0_96 = arith.constant 0 : index
    %232 = vector.load %arg3[%c128_95, %c0_96] : memref<2720x128xf32, #tpu.memory_space<vmem>>, vector<16x128xf32>
    %233 = arith.mulf %231, %232 : vector<16x128xf32>
    %234 = arith.mulf %233, %50 : vector<16x128xf32>
    %c192_97 = arith.constant 192 : index
    %c0_98 = arith.constant 0 : index
    %235 = vector.load %arg2[%c192_97, %c0_98] : memref<672x128xf32, #tpu.memory_space<vmem>>, vector<16x128xf32>
    %236 = arith.subf %3, %235 : vector<16x128xf32>
    %c128_99 = arith.constant 128 : index
    %c0_100 = arith.constant 0 : index
    %237 = vector.load %arg4[%c128_99, %c0_100] : memref<2720x128xf32, #tpu.memory_space<vmem>>, vector<16x128xf32>
    %238 = arith.mulf %236, %237 : vector<16x128xf32>
    %239 = arith.mulf %238, %59 : vector<16x128xf32>
    %240 = arith.addf %234, %239 : vector<16x128xf32>
    %c160_101 = arith.constant 160 : index
    %c0_102 = arith.constant 0 : index
    %241 = vector.load %arg2[%c160_101, %c0_102] : memref<672x128xf32, #tpu.memory_space<vmem>>, vector<16x128xf32>
    %242 = arith.subf %3, %241 : vector<16x128xf32>
    %c160_103 = arith.constant 160 : index
    %c0_104 = arith.constant 0 : index
    %243 = vector.load %arg3[%c160_103, %c0_104] : memref<2720x128xf32, #tpu.memory_space<vmem>>, vector<16x128xf32>
    %244 = arith.mulf %242, %243 : vector<16x128xf32>
    %245 = arith.mulf %244, %59 : vector<16x128xf32>
    %c224_105 = arith.constant 224 : index
    %c0_106 = arith.constant 0 : index
    %246 = vector.load %arg2[%c224_105, %c0_106] : memref<672x128xf32, #tpu.memory_space<vmem>>, vector<16x128xf32>
    %247 = arith.subf %3, %246 : vector<16x128xf32>
    %c160_107 = arith.constant 160 : index
    %c0_108 = arith.constant 0 : index
    %248 = vector.load %arg4[%c160_107, %c0_108] : memref<2720x128xf32, #tpu.memory_space<vmem>>, vector<16x128xf32>
    %249 = arith.mulf %247, %248 : vector<16x128xf32>
    %250 = arith.mulf %249, %68 : vector<16x128xf32>
    %251 = arith.addf %245, %250 : vector<16x128xf32>
    %c192_109 = arith.constant 192 : index
    %c0_110 = arith.constant 0 : index
    %252 = vector.load %arg2[%c192_109, %c0_110] : memref<672x128xf32, #tpu.memory_space<vmem>>, vector<16x128xf32>
    %253 = arith.subf %3, %252 : vector<16x128xf32>
    %c192_111 = arith.constant 192 : index
    %c0_112 = arith.constant 0 : index
    %254 = vector.load %arg3[%c192_111, %c0_112] : memref<2720x128xf32, #tpu.memory_space<vmem>>, vector<16x128xf32>
    %255 = arith.mulf %253, %254 : vector<16x128xf32>
    %256 = arith.mulf %255, %68 : vector<16x128xf32>
    %c256_113 = arith.constant 256 : index
    %c0_114 = arith.constant 0 : index
    %257 = vector.load %arg2[%c256_113, %c0_114] : memref<672x128xf32, #tpu.memory_space<vmem>>, vector<16x128xf32>
    %258 = arith.subf %3, %257 : vector<16x128xf32>
    %c192_115 = arith.constant 192 : index
    %c0_116 = arith.constant 0 : index
    %259 = vector.load %arg4[%c192_115, %c0_116] : memref<2720x128xf32, #tpu.memory_space<vmem>>, vector<16x128xf32>
    %260 = arith.mulf %258, %259 : vector<16x128xf32>
    %261 = arith.mulf %260, %77 : vector<16x128xf32>
    %262 = arith.addf %256, %261 : vector<16x128xf32>
    %c224_117 = arith.constant 224 : index
    %c0_118 = arith.constant 0 : index
    %263 = vector.load %arg2[%c224_117, %c0_118] : memref<672x128xf32, #tpu.memory_space<vmem>>, vector<16x128xf32>
    %264 = arith.subf %3, %263 : vector<16x128xf32>
    %c224_119 = arith.constant 224 : index
    %c0_120 = arith.constant 0 : index
    %265 = vector.load %arg3[%c224_119, %c0_120] : memref<2720x128xf32, #tpu.memory_space<vmem>>, vector<16x128xf32>
    %266 = arith.mulf %264, %265 : vector<16x128xf32>
    %267 = arith.mulf %266, %77 : vector<16x128xf32>
    %c288_121 = arith.constant 288 : index
    %c0_122 = arith.constant 0 : index
    %268 = vector.load %arg2[%c288_121, %c0_122] : memref<672x128xf32, #tpu.memory_space<vmem>>, vector<16x128xf32>
    %269 = arith.subf %3, %268 : vector<16x128xf32>
    %c224_123 = arith.constant 224 : index
    %c0_124 = arith.constant 0 : index
    %270 = vector.load %arg4[%c224_123, %c0_124] : memref<2720x128xf32, #tpu.memory_space<vmem>>, vector<16x128xf32>
    %271 = arith.mulf %269, %270 : vector<16x128xf32>
    %272 = arith.mulf %271, %86 : vector<16x128xf32>
    %273 = arith.addf %267, %272 : vector<16x128xf32>
    %c256_125 = arith.constant 256 : index
    %c0_126 = arith.constant 0 : index
    %274 = vector.load %arg2[%c256_125, %c0_126] : memref<672x128xf32, #tpu.memory_space<vmem>>, vector<16x128xf32>
    %275 = arith.subf %3, %274 : vector<16x128xf32>
    %c256_127 = arith.constant 256 : index
    %c0_128 = arith.constant 0 : index
    %276 = vector.load %arg3[%c256_127, %c0_128] : memref<2720x128xf32, #tpu.memory_space<vmem>>, vector<16x128xf32>
    %277 = arith.mulf %275, %276 : vector<16x128xf32>
    %278 = arith.mulf %277, %86 : vector<16x128xf32>
    %c320_129 = arith.constant 320 : index
    %c0_130 = arith.constant 0 : index
    %279 = vector.load %arg2[%c320_129, %c0_130] : memref<672x128xf32, #tpu.memory_space<vmem>>, vector<16x128xf32>
    %280 = arith.subf %3, %279 : vector<16x128xf32>
    %c256_131 = arith.constant 256 : index
    %c0_132 = arith.constant 0 : index
    %281 = vector.load %arg4[%c256_131, %c0_132] : memref<2720x128xf32, #tpu.memory_space<vmem>>, vector<16x128xf32>
    %282 = arith.mulf %280, %281 : vector<16x128xf32>
    %283 = arith.mulf %282, %95 : vector<16x128xf32>
    %284 = arith.addf %278, %283 : vector<16x128xf32>
    %c288_133 = arith.constant 288 : index
    %c0_134 = arith.constant 0 : index
    %285 = vector.load %arg2[%c288_133, %c0_134] : memref<672x128xf32, #tpu.memory_space<vmem>>, vector<16x128xf32>
    %286 = arith.subf %3, %285 : vector<16x128xf32>
    %c288_135 = arith.constant 288 : index
    %c0_136 = arith.constant 0 : index
    %287 = vector.load %arg3[%c288_135, %c0_136] : memref<2720x128xf32, #tpu.memory_space<vmem>>, vector<16x128xf32>
    %288 = arith.mulf %286, %287 : vector<16x128xf32>
    %289 = arith.mulf %288, %95 : vector<16x128xf32>
    %c352_137 = arith.constant 352 : index
    %c0_138 = arith.constant 0 : index
    %290 = vector.load %arg2[%c352_137, %c0_138] : memref<672x128xf32, #tpu.memory_space<vmem>>, vector<16x128xf32>
    %291 = arith.subf %3, %290 : vector<16x128xf32>
    %c288_139 = arith.constant 288 : index
    %c0_140 = arith.constant 0 : index
    %292 = vector.load %arg4[%c288_139, %c0_140] : memref<2720x128xf32, #tpu.memory_space<vmem>>, vector<16x128xf32>
    %293 = arith.mulf %291, %292 : vector<16x128xf32>
    %294 = arith.mulf %293, %104 : vector<16x128xf32>
    %295 = arith.addf %289, %294 : vector<16x128xf32>
    %c320_141 = arith.constant 320 : index
    %c0_142 = arith.constant 0 : index
    %296 = vector.load %arg2[%c320_141, %c0_142] : memref<672x128xf32, #tpu.memory_space<vmem>>, vector<16x128xf32>
    %297 = arith.subf %3, %296 : vector<16x128xf32>
    %c320_143 = arith.constant 320 : index
    %c0_144 = arith.constant 0 : index
    %298 = vector.load %arg3[%c320_143, %c0_144] : memref<2720x128xf32, #tpu.memory_space<vmem>>, vector<16x128xf32>
    %299 = arith.mulf %297, %298 : vector<16x128xf32>
    %300 = arith.mulf %299, %104 : vector<16x128xf32>
    %c384_145 = arith.constant 384 : index
    %c0_146 = arith.constant 0 : index
    %301 = vector.load %arg2[%c384_145, %c0_146] : memref<672x128xf32, #tpu.memory_space<vmem>>, vector<16x128xf32>
    %302 = arith.subf %3, %301 : vector<16x128xf32>
    %c320_147 = arith.constant 320 : index
    %c0_148 = arith.constant 0 : index
    %303 = vector.load %arg4[%c320_147, %c0_148] : memref<2720x128xf32, #tpu.memory_space<vmem>>, vector<16x128xf32>
    %304 = arith.mulf %302, %303 : vector<16x128xf32>
    %305 = arith.mulf %304, %113 : vector<16x128xf32>
    %306 = arith.addf %300, %305 : vector<16x128xf32>
    %c352_149 = arith.constant 352 : index
    %c0_150 = arith.constant 0 : index
    %307 = vector.load %arg2[%c352_149, %c0_150] : memref<672x128xf32, #tpu.memory_space<vmem>>, vector<16x128xf32>
    %308 = arith.subf %3, %307 : vector<16x128xf32>
    %c352_151 = arith.constant 352 : index
    %c0_152 = arith.constant 0 : index
    %309 = vector.load %arg3[%c352_151, %c0_152] : memref<2720x128xf32, #tpu.memory_space<vmem>>, vector<16x128xf32>
    %310 = arith.mulf %308, %309 : vector<16x128xf32>
    %311 = arith.mulf %310, %113 : vector<16x128xf32>
    %c416_153 = arith.constant 416 : index
    %c0_154 = arith.constant 0 : index
    %312 = vector.load %arg2[%c416_153, %c0_154] : memref<672x128xf32, #tpu.memory_space<vmem>>, vector<16x128xf32>
    %313 = arith.subf %3, %312 : vector<16x128xf32>
    %c352_155 = arith.constant 352 : index
    %c0_156 = arith.constant 0 : index
    %314 = vector.load %arg4[%c352_155, %c0_156] : memref<2720x128xf32, #tpu.memory_space<vmem>>, vector<16x128xf32>
    %315 = arith.mulf %313, %314 : vector<16x128xf32>
    %316 = arith.mulf %315, %122 : vector<16x128xf32>
    %317 = arith.addf %311, %316 : vector<16x128xf32>
    %c384_157 = arith.constant 384 : index
    %c0_158 = arith.constant 0 : index
    %318 = vector.load %arg2[%c384_157, %c0_158] : memref<672x128xf32, #tpu.memory_space<vmem>>, vector<16x128xf32>
    %319 = arith.subf %3, %318 : vector<16x128xf32>
    %c384_159 = arith.constant 384 : index
    %c0_160 = arith.constant 0 : index
    %320 = vector.load %arg3[%c384_159, %c0_160] : memref<2720x128xf32, #tpu.memory_space<vmem>>, vector<16x128xf32>
    %321 = arith.mulf %319, %320 : vector<16x128xf32>
    %322 = arith.mulf %321, %122 : vector<16x128xf32>
    %c448_161 = arith.constant 448 : index
    %c0_162 = arith.constant 0 : index
    %323 = vector.load %arg2[%c448_161, %c0_162] : memref<672x128xf32, #tpu.memory_space<vmem>>, vector<16x128xf32>
    %324 = arith.subf %3, %323 : vector<16x128xf32>
    %c384_163 = arith.constant 384 : index
    %c0_164 = arith.constant 0 : index
    %325 = vector.load %arg4[%c384_163, %c0_164] : memref<2720x128xf32, #tpu.memory_space<vmem>>, vector<16x128xf32>
    %326 = arith.mulf %324, %325 : vector<16x128xf32>
    %327 = arith.mulf %326, %131 : vector<16x128xf32>
    %328 = arith.addf %322, %327 : vector<16x128xf32>
    %c416_165 = arith.constant 416 : index
    %c0_166 = arith.constant 0 : index
    %329 = vector.load %arg2[%c416_165, %c0_166] : memref<672x128xf32, #tpu.memory_space<vmem>>, vector<16x128xf32>
    %330 = arith.subf %3, %329 : vector<16x128xf32>
    %c416_167 = arith.constant 416 : index
    %c0_168 = arith.constant 0 : index
    %331 = vector.load %arg3[%c416_167, %c0_168] : memref<2720x128xf32, #tpu.memory_space<vmem>>, vector<16x128xf32>
    %332 = arith.mulf %330, %331 : vector<16x128xf32>
    %333 = arith.mulf %332, %131 : vector<16x128xf32>
    %c480_169 = arith.constant 480 : index
    %c0_170 = arith.constant 0 : index
    %334 = vector.load %arg2[%c480_169, %c0_170] : memref<672x128xf32, #tpu.memory_space<vmem>>, vector<16x128xf32>
    %335 = arith.subf %3, %334 : vector<16x128xf32>
    %c416_171 = arith.constant 416 : index
    %c0_172 = arith.constant 0 : index
    %336 = vector.load %arg4[%c416_171, %c0_172] : memref<2720x128xf32, #tpu.memory_space<vmem>>, vector<16x128xf32>
    %337 = arith.mulf %335, %336 : vector<16x128xf32>
    %338 = arith.mulf %337, %140 : vector<16x128xf32>
    %339 = arith.addf %333, %338 : vector<16x128xf32>
    %c448_173 = arith.constant 448 : index
    %c0_174 = arith.constant 0 : index
    %340 = vector.load %arg2[%c448_173, %c0_174] : memref<672x128xf32, #tpu.memory_space<vmem>>, vector<16x128xf32>
    %341 = arith.subf %3, %340 : vector<16x128xf32>
    %c448_175 = arith.constant 448 : index
    %c0_176 = arith.constant 0 : index
    %342 = vector.load %arg3[%c448_175, %c0_176] : memref<2720x128xf32, #tpu.memory_space<vmem>>, vector<16x128xf32>
    %343 = arith.mulf %341, %342 : vector<16x128xf32>
    %344 = arith.mulf %343, %140 : vector<16x128xf32>
    %c512_177 = arith.constant 512 : index
    %c0_178 = arith.constant 0 : index
    %345 = vector.load %arg2[%c512_177, %c0_178] : memref<672x128xf32, #tpu.memory_space<vmem>>, vector<16x128xf32>
    %346 = arith.subf %3, %345 : vector<16x128xf32>
    %c448_179 = arith.constant 448 : index
    %c0_180 = arith.constant 0 : index
    %347 = vector.load %arg4[%c448_179, %c0_180] : memref<2720x128xf32, #tpu.memory_space<vmem>>, vector<16x128xf32>
    %348 = arith.mulf %346, %347 : vector<16x128xf32>
    %349 = arith.mulf %348, %149 : vector<16x128xf32>
    %350 = arith.addf %344, %349 : vector<16x128xf32>
    %c480_181 = arith.constant 480 : index
    %c0_182 = arith.constant 0 : index
    %351 = vector.load %arg2[%c480_181, %c0_182] : memref<672x128xf32, #tpu.memory_space<vmem>>, vector<16x128xf32>
    %352 = arith.subf %3, %351 : vector<16x128xf32>
    %c480_183 = arith.constant 480 : index
    %c0_184 = arith.constant 0 : index
    %353 = vector.load %arg3[%c480_183, %c0_184] : memref<2720x128xf32, #tpu.memory_space<vmem>>, vector<16x128xf32>
    %354 = arith.mulf %352, %353 : vector<16x128xf32>
    %355 = arith.mulf %354, %149 : vector<16x128xf32>
    %c544_185 = arith.constant 544 : index
    %c0_186 = arith.constant 0 : index
    %356 = vector.load %arg2[%c544_185, %c0_186] : memref<672x128xf32, #tpu.memory_space<vmem>>, vector<16x128xf32>
    %357 = arith.subf %3, %356 : vector<16x128xf32>
    %c480_187 = arith.constant 480 : index
    %c0_188 = arith.constant 0 : index
    %358 = vector.load %arg4[%c480_187, %c0_188] : memref<2720x128xf32, #tpu.memory_space<vmem>>, vector<16x128xf32>
    %359 = arith.mulf %357, %358 : vector<16x128xf32>
    %360 = arith.mulf %359, %158 : vector<16x128xf32>
    %361 = arith.addf %355, %360 : vector<16x128xf32>
    %c512_189 = arith.constant 512 : index
    %c0_190 = arith.constant 0 : index
    %362 = vector.load %arg2[%c512_189, %c0_190] : memref<672x128xf32, #tpu.memory_space<vmem>>, vector<16x128xf32>
    %363 = arith.subf %3, %362 : vector<16x128xf32>
    %c512_191 = arith.constant 512 : index
    %c0_192 = arith.constant 0 : index
    %364 = vector.load %arg3[%c512_191, %c0_192] : memref<2720x128xf32, #tpu.memory_space<vmem>>, vector<16x128xf32>
    %365 = arith.mulf %363, %364 : vector<16x128xf32>
    %366 = arith.mulf %365, %158 : vector<16x128xf32>
    %c576_193 = arith.constant 576 : index
    %c0_194 = arith.constant 0 : index
    %367 = vector.load %arg2[%c576_193, %c0_194] : memref<672x128xf32, #tpu.memory_space<vmem>>, vector<16x128xf32>
    %368 = arith.subf %3, %367 : vector<16x128xf32>
    %c512_195 = arith.constant 512 : index
    %c0_196 = arith.constant 0 : index
    %369 = vector.load %arg4[%c512_195, %c0_196] : memref<2720x128xf32, #tpu.memory_space<vmem>>, vector<16x128xf32>
    %370 = arith.mulf %368, %369 : vector<16x128xf32>
    %371 = arith.mulf %370, %167 : vector<16x128xf32>
    %372 = arith.addf %366, %371 : vector<16x128xf32>
    %c544_197 = arith.constant 544 : index
    %c0_198 = arith.constant 0 : index
    %373 = vector.load %arg2[%c544_197, %c0_198] : memref<672x128xf32, #tpu.memory_space<vmem>>, vector<16x128xf32>
    %374 = arith.subf %3, %373 : vector<16x128xf32>
    %c544_199 = arith.constant 544 : index
    %c0_200 = arith.constant 0 : index
    %375 = vector.load %arg3[%c544_199, %c0_200] : memref<2720x128xf32, #tpu.memory_space<vmem>>, vector<16x128xf32>
    %376 = arith.mulf %374, %375 : vector<16x128xf32>
    %377 = arith.mulf %376, %167 : vector<16x128xf32>
    %c608_201 = arith.constant 608 : index
    %c0_202 = arith.constant 0 : index
    %378 = vector.load %arg2[%c608_201, %c0_202] : memref<672x128xf32, #tpu.memory_space<vmem>>, vector<16x128xf32>
    %379 = arith.subf %3, %378 : vector<16x128xf32>
    %c544_203 = arith.constant 544 : index
    %c0_204 = arith.constant 0 : index
    %380 = vector.load %arg4[%c544_203, %c0_204] : memref<2720x128xf32, #tpu.memory_space<vmem>>, vector<16x128xf32>
    %381 = arith.mulf %379, %380 : vector<16x128xf32>
    %382 = arith.mulf %381, %176 : vector<16x128xf32>
    %383 = arith.addf %377, %382 : vector<16x128xf32>
    %c576_205 = arith.constant 576 : index
    %c0_206 = arith.constant 0 : index
    %384 = vector.load %arg2[%c576_205, %c0_206] : memref<672x128xf32, #tpu.memory_space<vmem>>, vector<16x128xf32>
    %385 = arith.subf %3, %384 : vector<16x128xf32>
    %c576_207 = arith.constant 576 : index
    %c0_208 = arith.constant 0 : index
    %386 = vector.load %arg3[%c576_207, %c0_208] : memref<2720x128xf32, #tpu.memory_space<vmem>>, vector<16x128xf32>
    %387 = arith.mulf %385, %386 : vector<16x128xf32>
    %388 = arith.mulf %387, %176 : vector<16x128xf32>
    %c640_209 = arith.constant 640 : index
    %c0_210 = arith.constant 0 : index
    %389 = vector.load %arg2[%c640_209, %c0_210] : memref<672x128xf32, #tpu.memory_space<vmem>>, vector<16x128xf32>
    %390 = arith.subf %3, %389 : vector<16x128xf32>
    %c576_211 = arith.constant 576 : index
    %c0_212 = arith.constant 0 : index
    %391 = vector.load %arg4[%c576_211, %c0_212] : memref<2720x128xf32, #tpu.memory_space<vmem>>, vector<16x128xf32>
    %392 = arith.mulf %390, %391 : vector<16x128xf32>
    %393 = arith.mulf %392, %185 : vector<16x128xf32>
    %394 = arith.addf %388, %393 : vector<16x128xf32>
    %c0_213 = arith.constant 0 : index
    %c0_214 = arith.constant 0 : index
    %395 = vector.load %arg2[%c0_213, %c0_214] : memref<672x128xf32, #tpu.memory_space<vmem>>, vector<16x128xf32>
    %396 = arith.subf %3, %395 : vector<16x128xf32>
    %c608_215 = arith.constant 608 : index
    %c0_216 = arith.constant 0 : index
    %397 = vector.load %arg3[%c608_215, %c0_216] : memref<2720x128xf32, #tpu.memory_space<vmem>>, vector<16x128xf32>
    %398 = arith.mulf %396, %397 : vector<16x128xf32>
    %399 = arith.mulf %398, %196 : vector<16x128xf32>
    %c96_217 = arith.constant 96 : index
    %c0_218 = arith.constant 0 : index
    %400 = vector.load %arg2[%c96_217, %c0_218] : memref<672x128xf32, #tpu.memory_space<vmem>>, vector<16x128xf32>
    %401 = arith.subf %3, %400 : vector<16x128xf32>
    %c608_219 = arith.constant 608 : index
    %c0_220 = arith.constant 0 : index
    %402 = vector.load %arg4[%c608_219, %c0_220] : memref<2720x128xf32, #tpu.memory_space<vmem>>, vector<16x128xf32>
    %403 = arith.mulf %401, %402 : vector<16x128xf32>
    %404 = arith.mulf %403, %207 : vector<16x128xf32>
    %405 = arith.addf %399, %404 : vector<16x128xf32>
    %c32_221 = arith.constant 32 : index
    %c0_222 = arith.constant 0 : index
    %406 = vector.load %arg2[%c32_221, %c0_222] : memref<672x128xf32, #tpu.memory_space<vmem>>, vector<16x128xf32>
    %407 = arith.subf %3, %406 : vector<16x128xf32>
    %c640_223 = arith.constant 640 : index
    %c0_224 = arith.constant 0 : index
    %408 = vector.load %arg3[%c640_223, %c0_224] : memref<2720x128xf32, #tpu.memory_space<vmem>>, vector<16x128xf32>
    %409 = arith.mulf %407, %408 : vector<16x128xf32>
    %410 = arith.mulf %409, %207 : vector<16x128xf32>
    %c128_225 = arith.constant 128 : index
    %c0_226 = arith.constant 0 : index
    %411 = vector.load %arg2[%c128_225, %c0_226] : memref<672x128xf32, #tpu.memory_space<vmem>>, vector<16x128xf32>
    %412 = arith.subf %3, %411 : vector<16x128xf32>
    %c640_227 = arith.constant 640 : index
    %c0_228 = arith.constant 0 : index
    %413 = vector.load %arg4[%c640_227, %c0_228] : memref<2720x128xf32, #tpu.memory_space<vmem>>, vector<16x128xf32>
    %414 = arith.mulf %412, %413 : vector<16x128xf32>
    %415 = arith.mulf %414, %218 : vector<16x128xf32>
    %416 = arith.addf %410, %415 : vector<16x128xf32>
    %c64_229 = arith.constant 64 : index
    %c0_230 = arith.constant 0 : index
    %417 = vector.load %arg2[%c64_229, %c0_230] : memref<672x128xf32, #tpu.memory_space<vmem>>, vector<16x128xf32>
    %418 = arith.subf %3, %417 : vector<16x128xf32>
    %c672 = arith.constant 672 : index
    %c0_231 = arith.constant 0 : index
    %419 = vector.load %arg3[%c672, %c0_231] : memref<2720x128xf32, #tpu.memory_space<vmem>>, vector<16x128xf32>
    %420 = arith.mulf %418, %419 : vector<16x128xf32>
    %421 = arith.mulf %420, %218 : vector<16x128xf32>
    %c160_232 = arith.constant 160 : index
    %c0_233 = arith.constant 0 : index
    %422 = vector.load %arg2[%c160_232, %c0_233] : memref<672x128xf32, #tpu.memory_space<vmem>>, vector<16x128xf32>
    %423 = arith.subf %3, %422 : vector<16x128xf32>
    %c672_234 = arith.constant 672 : index
    %c0_235 = arith.constant 0 : index
    %424 = vector.load %arg4[%c672_234, %c0_235] : memref<2720x128xf32, #tpu.memory_space<vmem>>, vector<16x128xf32>
    %425 = arith.mulf %423, %424 : vector<16x128xf32>
    %426 = arith.mulf %425, %229 : vector<16x128xf32>
    %427 = arith.addf %421, %426 : vector<16x128xf32>
    %c96_236 = arith.constant 96 : index
    %c0_237 = arith.constant 0 : index
    %428 = vector.load %arg2[%c96_236, %c0_237] : memref<672x128xf32, #tpu.memory_space<vmem>>, vector<16x128xf32>
    %429 = arith.subf %3, %428 : vector<16x128xf32>
    %c704 = arith.constant 704 : index
    %c0_238 = arith.constant 0 : index
    %430 = vector.load %arg3[%c704, %c0_238] : memref<2720x128xf32, #tpu.memory_space<vmem>>, vector<16x128xf32>
    %431 = arith.mulf %429, %430 : vector<16x128xf32>
    %432 = arith.mulf %431, %229 : vector<16x128xf32>
    %c192_239 = arith.constant 192 : index
    %c0_240 = arith.constant 0 : index
    %433 = vector.load %arg2[%c192_239, %c0_240] : memref<672x128xf32, #tpu.memory_space<vmem>>, vector<16x128xf32>
    %434 = arith.subf %3, %433 : vector<16x128xf32>
    %c704_241 = arith.constant 704 : index
    %c0_242 = arith.constant 0 : index
    %435 = vector.load %arg4[%c704_241, %c0_242] : memref<2720x128xf32, #tpu.memory_space<vmem>>, vector<16x128xf32>
    %436 = arith.mulf %434, %435 : vector<16x128xf32>
    %437 = arith.mulf %436, %240 : vector<16x128xf32>
    %438 = arith.addf %432, %437 : vector<16x128xf32>
    %c128_243 = arith.constant 128 : index
    %c0_244 = arith.constant 0 : index
    %439 = vector.load %arg2[%c128_243, %c0_244] : memref<672x128xf32, #tpu.memory_space<vmem>>, vector<16x128xf32>
    %440 = arith.subf %3, %439 : vector<16x128xf32>
    %c736 = arith.constant 736 : index
    %c0_245 = arith.constant 0 : index
    %441 = vector.load %arg3[%c736, %c0_245] : memref<2720x128xf32, #tpu.memory_space<vmem>>, vector<16x128xf32>
    %442 = arith.mulf %440, %441 : vector<16x128xf32>
    %443 = arith.mulf %442, %240 : vector<16x128xf32>
    %c224_246 = arith.constant 224 : index
    %c0_247 = arith.constant 0 : index
    %444 = vector.load %arg2[%c224_246, %c0_247] : memref<672x128xf32, #tpu.memory_space<vmem>>, vector<16x128xf32>
    %445 = arith.subf %3, %444 : vector<16x128xf32>
    %c736_248 = arith.constant 736 : index
    %c0_249 = arith.constant 0 : index
    %446 = vector.load %arg4[%c736_248, %c0_249] : memref<2720x128xf32, #tpu.memory_space<vmem>>, vector<16x128xf32>
    %447 = arith.mulf %445, %446 : vector<16x128xf32>
    %448 = arith.mulf %447, %251 : vector<16x128xf32>
    %449 = arith.addf %443, %448 : vector<16x128xf32>
    %c160_250 = arith.constant 160 : index
    %c0_251 = arith.constant 0 : index
    %450 = vector.load %arg2[%c160_250, %c0_251] : memref<672x128xf32, #tpu.memory_space<vmem>>, vector<16x128xf32>
    %451 = arith.subf %3, %450 : vector<16x128xf32>
    %c768 = arith.constant 768 : index
    %c0_252 = arith.constant 0 : index
    %452 = vector.load %arg3[%c768, %c0_252] : memref<2720x128xf32, #tpu.memory_space<vmem>>, vector<16x128xf32>
    %453 = arith.mulf %451, %452 : vector<16x128xf32>
    %454 = arith.mulf %453, %251 : vector<16x128xf32>
    %c256_253 = arith.constant 256 : index
    %c0_254 = arith.constant 0 : index
    %455 = vector.load %arg2[%c256_253, %c0_254] : memref<672x128xf32, #tpu.memory_space<vmem>>, vector<16x128xf32>
    %456 = arith.subf %3, %455 : vector<16x128xf32>
    %c768_255 = arith.constant 768 : index
    %c0_256 = arith.constant 0 : index
    %457 = vector.load %arg4[%c768_255, %c0_256] : memref<2720x128xf32, #tpu.memory_space<vmem>>, vector<16x128xf32>
    %458 = arith.mulf %456, %457 : vector<16x128xf32>
    %459 = arith.mulf %458, %262 : vector<16x128xf32>
    %460 = arith.addf %454, %459 : vector<16x128xf32>
    %c192_257 = arith.constant 192 : index
    %c0_258 = arith.constant 0 : index
    %461 = vector.load %arg2[%c192_257, %c0_258] : memref<672x128xf32, #tpu.memory_space<vmem>>, vector<16x128xf32>
    %462 = arith.subf %3, %461 : vector<16x128xf32>
    %c800 = arith.constant 800 : index
    %c0_259 = arith.constant 0 : index
    %463 = vector.load %arg3[%c800, %c0_259] : memref<2720x128xf32, #tpu.memory_space<vmem>>, vector<16x128xf32>
    %464 = arith.mulf %462, %463 : vector<16x128xf32>
    %465 = arith.mulf %464, %262 : vector<16x128xf32>
    %c288_260 = arith.constant 288 : index
    %c0_261 = arith.constant 0 : index
    %466 = vector.load %arg2[%c288_260, %c0_261] : memref<672x128xf32, #tpu.memory_space<vmem>>, vector<16x128xf32>
    %467 = arith.subf %3, %466 : vector<16x128xf32>
    %c800_262 = arith.constant 800 : index
    %c0_263 = arith.constant 0 : index
    %468 = vector.load %arg4[%c800_262, %c0_263] : memref<2720x128xf32, #tpu.memory_space<vmem>>, vector<16x128xf32>
    %469 = arith.mulf %467, %468 : vector<16x128xf32>
    %470 = arith.mulf %469, %273 : vector<16x128xf32>
    %471 = arith.addf %465, %470 : vector<16x128xf32>
    %c224_264 = arith.constant 224 : index
    %c0_265 = arith.constant 0 : index
    %472 = vector.load %arg2[%c224_264, %c0_265] : memref<672x128xf32, #tpu.memory_space<vmem>>, vector<16x128xf32>
    %473 = arith.subf %3, %472 : vector<16x128xf32>
    %c832 = arith.constant 832 : index
    %c0_266 = arith.constant 0 : index
    %474 = vector.load %arg3[%c832, %c0_266] : memref<2720x128xf32, #tpu.memory_space<vmem>>, vector<16x128xf32>
    %475 = arith.mulf %473, %474 : vector<16x128xf32>
    %476 = arith.mulf %475, %273 : vector<16x128xf32>
    %c320_267 = arith.constant 320 : index
    %c0_268 = arith.constant 0 : index
    %477 = vector.load %arg2[%c320_267, %c0_268] : memref<672x128xf32, #tpu.memory_space<vmem>>, vector<16x128xf32>
    %478 = arith.subf %3, %477 : vector<16x128xf32>
    %c832_269 = arith.constant 832 : index
    %c0_270 = arith.constant 0 : index
    %479 = vector.load %arg4[%c832_269, %c0_270] : memref<2720x128xf32, #tpu.memory_space<vmem>>, vector<16x128xf32>
    %480 = arith.mulf %478, %479 : vector<16x128xf32>
    %481 = arith.mulf %480, %284 : vector<16x128xf32>
    %482 = arith.addf %476, %481 : vector<16x128xf32>
    %c256_271 = arith.constant 256 : index
    %c0_272 = arith.constant 0 : index
    %483 = vector.load %arg2[%c256_271, %c0_272] : memref<672x128xf32, #tpu.memory_space<vmem>>, vector<16x128xf32>
    %484 = arith.subf %3, %483 : vector<16x128xf32>
    %c864 = arith.constant 864 : index
    %c0_273 = arith.constant 0 : index
    %485 = vector.load %arg3[%c864, %c0_273] : memref<2720x128xf32, #tpu.memory_space<vmem>>, vector<16x128xf32>
    %486 = arith.mulf %484, %485 : vector<16x128xf32>
    %487 = arith.mulf %486, %284 : vector<16x128xf32>
    %c352_274 = arith.constant 352 : index
    %c0_275 = arith.constant 0 : index
    %488 = vector.load %arg2[%c352_274, %c0_275] : memref<672x128xf32, #tpu.memory_space<vmem>>, vector<16x128xf32>
    %489 = arith.subf %3, %488 : vector<16x128xf32>
    %c864_276 = arith.constant 864 : index
    %c0_277 = arith.constant 0 : index
    %490 = vector.load %arg4[%c864_276, %c0_277] : memref<2720x128xf32, #tpu.memory_space<vmem>>, vector<16x128xf32>
    %491 = arith.mulf %489, %490 : vector<16x128xf32>
    %492 = arith.mulf %491, %295 : vector<16x128xf32>
    %493 = arith.addf %487, %492 : vector<16x128xf32>
    %c288_278 = arith.constant 288 : index
    %c0_279 = arith.constant 0 : index
    %494 = vector.load %arg2[%c288_278, %c0_279] : memref<672x128xf32, #tpu.memory_space<vmem>>, vector<16x128xf32>
    %495 = arith.subf %3, %494 : vector<16x128xf32>
    %c896 = arith.constant 896 : index
    %c0_280 = arith.constant 0 : index
    %496 = vector.load %arg3[%c896, %c0_280] : memref<2720x128xf32, #tpu.memory_space<vmem>>, vector<16x128xf32>
    %497 = arith.mulf %495, %496 : vector<16x128xf32>
    %498 = arith.mulf %497, %295 : vector<16x128xf32>
    %c384_281 = arith.constant 384 : index
    %c0_282 = arith.constant 0 : index
    %499 = vector.load %arg2[%c384_281, %c0_282] : memref<672x128xf32, #tpu.memory_space<vmem>>, vector<16x128xf32>
    %500 = arith.subf %3, %499 : vector<16x128xf32>
    %c896_283 = arith.constant 896 : index
    %c0_284 = arith.constant 0 : index
    %501 = vector.load %arg4[%c896_283, %c0_284] : memref<2720x128xf32, #tpu.memory_space<vmem>>, vector<16x128xf32>
    %502 = arith.mulf %500, %501 : vector<16x128xf32>
    %503 = arith.mulf %502, %306 : vector<16x128xf32>
    %504 = arith.addf %498, %503 : vector<16x128xf32>
    %c320_285 = arith.constant 320 : index
    %c0_286 = arith.constant 0 : index
    %505 = vector.load %arg2[%c320_285, %c0_286] : memref<672x128xf32, #tpu.memory_space<vmem>>, vector<16x128xf32>
    %506 = arith.subf %3, %505 : vector<16x128xf32>
    %c928 = arith.constant 928 : index
    %c0_287 = arith.constant 0 : index
    %507 = vector.load %arg3[%c928, %c0_287] : memref<2720x128xf32, #tpu.memory_space<vmem>>, vector<16x128xf32>
    %508 = arith.mulf %506, %507 : vector<16x128xf32>
    %509 = arith.mulf %508, %306 : vector<16x128xf32>
    %c416_288 = arith.constant 416 : index
    %c0_289 = arith.constant 0 : index
    %510 = vector.load %arg2[%c416_288, %c0_289] : memref<672x128xf32, #tpu.memory_space<vmem>>, vector<16x128xf32>
    %511 = arith.subf %3, %510 : vector<16x128xf32>
    %c928_290 = arith.constant 928 : index
    %c0_291 = arith.constant 0 : index
    %512 = vector.load %arg4[%c928_290, %c0_291] : memref<2720x128xf32, #tpu.memory_space<vmem>>, vector<16x128xf32>
    %513 = arith.mulf %511, %512 : vector<16x128xf32>
    %514 = arith.mulf %513, %317 : vector<16x128xf32>
    %515 = arith.addf %509, %514 : vector<16x128xf32>
    %c352_292 = arith.constant 352 : index
    %c0_293 = arith.constant 0 : index
    %516 = vector.load %arg2[%c352_292, %c0_293] : memref<672x128xf32, #tpu.memory_space<vmem>>, vector<16x128xf32>
    %517 = arith.subf %3, %516 : vector<16x128xf32>
    %c960 = arith.constant 960 : index
    %c0_294 = arith.constant 0 : index
    %518 = vector.load %arg3[%c960, %c0_294] : memref<2720x128xf32, #tpu.memory_space<vmem>>, vector<16x128xf32>
    %519 = arith.mulf %517, %518 : vector<16x128xf32>
    %520 = arith.mulf %519, %317 : vector<16x128xf32>
    %c448_295 = arith.constant 448 : index
    %c0_296 = arith.constant 0 : index
    %521 = vector.load %arg2[%c448_295, %c0_296] : memref<672x128xf32, #tpu.memory_space<vmem>>, vector<16x128xf32>
    %522 = arith.subf %3, %521 : vector<16x128xf32>
    %c960_297 = arith.constant 960 : index
    %c0_298 = arith.constant 0 : index
    %523 = vector.load %arg4[%c960_297, %c0_298] : memref<2720x128xf32, #tpu.memory_space<vmem>>, vector<16x128xf32>
    %524 = arith.mulf %522, %523 : vector<16x128xf32>
    %525 = arith.mulf %524, %328 : vector<16x128xf32>
    %526 = arith.addf %520, %525 : vector<16x128xf32>
    %c384_299 = arith.constant 384 : index
    %c0_300 = arith.constant 0 : index
    %527 = vector.load %arg2[%c384_299, %c0_300] : memref<672x128xf32, #tpu.memory_space<vmem>>, vector<16x128xf32>
    %528 = arith.subf %3, %527 : vector<16x128xf32>
    %c992 = arith.constant 992 : index
    %c0_301 = arith.constant 0 : index
    %529 = vector.load %arg3[%c992, %c0_301] : memref<2720x128xf32, #tpu.memory_space<vmem>>, vector<16x128xf32>
    %530 = arith.mulf %528, %529 : vector<16x128xf32>
    %531 = arith.mulf %530, %328 : vector<16x128xf32>
    %c480_302 = arith.constant 480 : index
    %c0_303 = arith.constant 0 : index
    %532 = vector.load %arg2[%c480_302, %c0_303] : memref<672x128xf32, #tpu.memory_space<vmem>>, vector<16x128xf32>
    %533 = arith.subf %3, %532 : vector<16x128xf32>
    %c992_304 = arith.constant 992 : index
    %c0_305 = arith.constant 0 : index
    %534 = vector.load %arg4[%c992_304, %c0_305] : memref<2720x128xf32, #tpu.memory_space<vmem>>, vector<16x128xf32>
    %535 = arith.mulf %533, %534 : vector<16x128xf32>
    %536 = arith.mulf %535, %339 : vector<16x128xf32>
    %537 = arith.addf %531, %536 : vector<16x128xf32>
    %c416_306 = arith.constant 416 : index
    %c0_307 = arith.constant 0 : index
    %538 = vector.load %arg2[%c416_306, %c0_307] : memref<672x128xf32, #tpu.memory_space<vmem>>, vector<16x128xf32>
    %539 = arith.subf %3, %538 : vector<16x128xf32>
    %c1024 = arith.constant 1024 : index
    %c0_308 = arith.constant 0 : index
    %540 = vector.load %arg3[%c1024, %c0_308] : memref<2720x128xf32, #tpu.memory_space<vmem>>, vector<16x128xf32>
    %541 = arith.mulf %539, %540 : vector<16x128xf32>
    %542 = arith.mulf %541, %339 : vector<16x128xf32>
    %c512_309 = arith.constant 512 : index
    %c0_310 = arith.constant 0 : index
    %543 = vector.load %arg2[%c512_309, %c0_310] : memref<672x128xf32, #tpu.memory_space<vmem>>, vector<16x128xf32>
    %544 = arith.subf %3, %543 : vector<16x128xf32>
    %c1024_311 = arith.constant 1024 : index
    %c0_312 = arith.constant 0 : index
    %545 = vector.load %arg4[%c1024_311, %c0_312] : memref<2720x128xf32, #tpu.memory_space<vmem>>, vector<16x128xf32>
    %546 = arith.mulf %544, %545 : vector<16x128xf32>
    %547 = arith.mulf %546, %350 : vector<16x128xf32>
    %548 = arith.addf %542, %547 : vector<16x128xf32>
    %c448_313 = arith.constant 448 : index
    %c0_314 = arith.constant 0 : index
    %549 = vector.load %arg2[%c448_313, %c0_314] : memref<672x128xf32, #tpu.memory_space<vmem>>, vector<16x128xf32>
    %550 = arith.subf %3, %549 : vector<16x128xf32>
    %c1056 = arith.constant 1056 : index
    %c0_315 = arith.constant 0 : index
    %551 = vector.load %arg3[%c1056, %c0_315] : memref<2720x128xf32, #tpu.memory_space<vmem>>, vector<16x128xf32>
    %552 = arith.mulf %550, %551 : vector<16x128xf32>
    %553 = arith.mulf %552, %350 : vector<16x128xf32>
    %c544_316 = arith.constant 544 : index
    %c0_317 = arith.constant 0 : index
    %554 = vector.load %arg2[%c544_316, %c0_317] : memref<672x128xf32, #tpu.memory_space<vmem>>, vector<16x128xf32>
    %555 = arith.subf %3, %554 : vector<16x128xf32>
    %c1056_318 = arith.constant 1056 : index
    %c0_319 = arith.constant 0 : index
    %556 = vector.load %arg4[%c1056_318, %c0_319] : memref<2720x128xf32, #tpu.memory_space<vmem>>, vector<16x128xf32>
    %557 = arith.mulf %555, %556 : vector<16x128xf32>
    %558 = arith.mulf %557, %361 : vector<16x128xf32>
    %559 = arith.addf %553, %558 : vector<16x128xf32>
    %c480_320 = arith.constant 480 : index
    %c0_321 = arith.constant 0 : index
    %560 = vector.load %arg2[%c480_320, %c0_321] : memref<672x128xf32, #tpu.memory_space<vmem>>, vector<16x128xf32>
    %561 = arith.subf %3, %560 : vector<16x128xf32>
    %c1088 = arith.constant 1088 : index
    %c0_322 = arith.constant 0 : index
    %562 = vector.load %arg3[%c1088, %c0_322] : memref<2720x128xf32, #tpu.memory_space<vmem>>, vector<16x128xf32>
    %563 = arith.mulf %561, %562 : vector<16x128xf32>
    %564 = arith.mulf %563, %361 : vector<16x128xf32>
    %c576_323 = arith.constant 576 : index
    %c0_324 = arith.constant 0 : index
    %565 = vector.load %arg2[%c576_323, %c0_324] : memref<672x128xf32, #tpu.memory_space<vmem>>, vector<16x128xf32>
    %566 = arith.subf %3, %565 : vector<16x128xf32>
    %c1088_325 = arith.constant 1088 : index
    %c0_326 = arith.constant 0 : index
    %567 = vector.load %arg4[%c1088_325, %c0_326] : memref<2720x128xf32, #tpu.memory_space<vmem>>, vector<16x128xf32>
    %568 = arith.mulf %566, %567 : vector<16x128xf32>
    %569 = arith.mulf %568, %372 : vector<16x128xf32>
    %570 = arith.addf %564, %569 : vector<16x128xf32>
    %c512_327 = arith.constant 512 : index
    %c0_328 = arith.constant 0 : index
    %571 = vector.load %arg2[%c512_327, %c0_328] : memref<672x128xf32, #tpu.memory_space<vmem>>, vector<16x128xf32>
    %572 = arith.subf %3, %571 : vector<16x128xf32>
    %c1120 = arith.constant 1120 : index
    %c0_329 = arith.constant 0 : index
    %573 = vector.load %arg3[%c1120, %c0_329] : memref<2720x128xf32, #tpu.memory_space<vmem>>, vector<16x128xf32>
    %574 = arith.mulf %572, %573 : vector<16x128xf32>
    %575 = arith.mulf %574, %372 : vector<16x128xf32>
    %c608_330 = arith.constant 608 : index
    %c0_331 = arith.constant 0 : index
    %576 = vector.load %arg2[%c608_330, %c0_331] : memref<672x128xf32, #tpu.memory_space<vmem>>, vector<16x128xf32>
    %577 = arith.subf %3, %576 : vector<16x128xf32>
    %c1120_332 = arith.constant 1120 : index
    %c0_333 = arith.constant 0 : index
    %578 = vector.load %arg4[%c1120_332, %c0_333] : memref<2720x128xf32, #tpu.memory_space<vmem>>, vector<16x128xf32>
    %579 = arith.mulf %577, %578 : vector<16x128xf32>
    %580 = arith.mulf %579, %383 : vector<16x128xf32>
    %581 = arith.addf %575, %580 : vector<16x128xf32>
    %c544_334 = arith.constant 544 : index
    %c0_335 = arith.constant 0 : index
    %582 = vector.load %arg2[%c544_334, %c0_335] : memref<672x128xf32, #tpu.memory_space<vmem>>, vector<16x128xf32>
    %583 = arith.subf %3, %582 : vector<16x128xf32>
    %c1152 = arith.constant 1152 : index
    %c0_336 = arith.constant 0 : index
    %584 = vector.load %arg3[%c1152, %c0_336] : memref<2720x128xf32, #tpu.memory_space<vmem>>, vector<16x128xf32>
    %585 = arith.mulf %583, %584 : vector<16x128xf32>
    %586 = arith.mulf %585, %383 : vector<16x128xf32>
    %c640_337 = arith.constant 640 : index
    %c0_338 = arith.constant 0 : index
    %587 = vector.load %arg2[%c640_337, %c0_338] : memref<672x128xf32, #tpu.memory_space<vmem>>, vector<16x128xf32>
    %588 = arith.subf %3, %587 : vector<16x128xf32>
    %c1152_339 = arith.constant 1152 : index
    %c0_340 = arith.constant 0 : index
    %589 = vector.load %arg4[%c1152_339, %c0_340] : memref<2720x128xf32, #tpu.memory_space<vmem>>, vector<16x128xf32>
    %590 = arith.mulf %588, %589 : vector<16x128xf32>
    %591 = arith.mulf %590, %394 : vector<16x128xf32>
    %592 = arith.addf %586, %591 : vector<16x128xf32>
    %c0_341 = arith.constant 0 : index
    %c0_342 = arith.constant 0 : index
    %593 = vector.load %arg2[%c0_341, %c0_342] : memref<672x128xf32, #tpu.memory_space<vmem>>, vector<16x128xf32>
    %594 = arith.subf %3, %593 : vector<16x128xf32>
    %c1184 = arith.constant 1184 : index
    %c0_343 = arith.constant 0 : index
    %595 = vector.load %arg3[%c1184, %c0_343] : memref<2720x128xf32, #tpu.memory_space<vmem>>, vector<16x128xf32>
    %596 = arith.mulf %594, %595 : vector<16x128xf32>
    %597 = arith.mulf %596, %405 : vector<16x128xf32>
    %c128_344 = arith.constant 128 : index
    %c0_345 = arith.constant 0 : index
    %598 = vector.load %arg2[%c128_344, %c0_345] : memref<672x128xf32, #tpu.memory_space<vmem>>, vector<16x128xf32>
    %599 = arith.subf %3, %598 : vector<16x128xf32>
    %c1184_346 = arith.constant 1184 : index
    %c0_347 = arith.constant 0 : index
    %600 = vector.load %arg4[%c1184_346, %c0_347] : memref<2720x128xf32, #tpu.memory_space<vmem>>, vector<16x128xf32>
    %601 = arith.mulf %599, %600 : vector<16x128xf32>
    %602 = arith.mulf %601, %416 : vector<16x128xf32>
    %603 = arith.addf %597, %602 : vector<16x128xf32>
    %c32_348 = arith.constant 32 : index
    %c0_349 = arith.constant 0 : index
    %604 = vector.load %arg2[%c32_348, %c0_349] : memref<672x128xf32, #tpu.memory_space<vmem>>, vector<16x128xf32>
    %605 = arith.subf %3, %604 : vector<16x128xf32>
    %c1216 = arith.constant 1216 : index
    %c0_350 = arith.constant 0 : index
    %606 = vector.load %arg3[%c1216, %c0_350] : memref<2720x128xf32, #tpu.memory_space<vmem>>, vector<16x128xf32>
    %607 = arith.mulf %605, %606 : vector<16x128xf32>
    %608 = arith.mulf %607, %416 : vector<16x128xf32>
    %c160_351 = arith.constant 160 : index
    %c0_352 = arith.constant 0 : index
    %609 = vector.load %arg2[%c160_351, %c0_352] : memref<672x128xf32, #tpu.memory_space<vmem>>, vector<16x128xf32>
    %610 = arith.subf %3, %609 : vector<16x128xf32>
    %c1216_353 = arith.constant 1216 : index
    %c0_354 = arith.constant 0 : index
    %611 = vector.load %arg4[%c1216_353, %c0_354] : memref<2720x128xf32, #tpu.memory_space<vmem>>, vector<16x128xf32>
    %612 = arith.mulf %610, %611 : vector<16x128xf32>
    %613 = arith.mulf %612, %427 : vector<16x128xf32>
    %614 = arith.addf %608, %613 : vector<16x128xf32>
    %c64_355 = arith.constant 64 : index
    %c0_356 = arith.constant 0 : index
    %615 = vector.load %arg2[%c64_355, %c0_356] : memref<672x128xf32, #tpu.memory_space<vmem>>, vector<16x128xf32>
    %616 = arith.subf %3, %615 : vector<16x128xf32>
    %c1248 = arith.constant 1248 : index
    %c0_357 = arith.constant 0 : index
    %617 = vector.load %arg3[%c1248, %c0_357] : memref<2720x128xf32, #tpu.memory_space<vmem>>, vector<16x128xf32>
    %618 = arith.mulf %616, %617 : vector<16x128xf32>
    %619 = arith.mulf %618, %427 : vector<16x128xf32>
    %c192_358 = arith.constant 192 : index
    %c0_359 = arith.constant 0 : index
    %620 = vector.load %arg2[%c192_358, %c0_359] : memref<672x128xf32, #tpu.memory_space<vmem>>, vector<16x128xf32>
    %621 = arith.subf %3, %620 : vector<16x128xf32>
    %c1248_360 = arith.constant 1248 : index
    %c0_361 = arith.constant 0 : index
    %622 = vector.load %arg4[%c1248_360, %c0_361] : memref<2720x128xf32, #tpu.memory_space<vmem>>, vector<16x128xf32>
    %623 = arith.mulf %621, %622 : vector<16x128xf32>
    %624 = arith.mulf %623, %438 : vector<16x128xf32>
    %625 = arith.addf %619, %624 : vector<16x128xf32>
    %c96_362 = arith.constant 96 : index
    %c0_363 = arith.constant 0 : index
    %626 = vector.load %arg2[%c96_362, %c0_363] : memref<672x128xf32, #tpu.memory_space<vmem>>, vector<16x128xf32>
    %627 = arith.subf %3, %626 : vector<16x128xf32>
    %c1280 = arith.constant 1280 : index
    %c0_364 = arith.constant 0 : index
    %628 = vector.load %arg3[%c1280, %c0_364] : memref<2720x128xf32, #tpu.memory_space<vmem>>, vector<16x128xf32>
    %629 = arith.mulf %627, %628 : vector<16x128xf32>
    %630 = arith.mulf %629, %438 : vector<16x128xf32>
    %c224_365 = arith.constant 224 : index
    %c0_366 = arith.constant 0 : index
    %631 = vector.load %arg2[%c224_365, %c0_366] : memref<672x128xf32, #tpu.memory_space<vmem>>, vector<16x128xf32>
    %632 = arith.subf %3, %631 : vector<16x128xf32>
    %c1280_367 = arith.constant 1280 : index
    %c0_368 = arith.constant 0 : index
    %633 = vector.load %arg4[%c1280_367, %c0_368] : memref<2720x128xf32, #tpu.memory_space<vmem>>, vector<16x128xf32>
    %634 = arith.mulf %632, %633 : vector<16x128xf32>
    %635 = arith.mulf %634, %449 : vector<16x128xf32>
    %636 = arith.addf %630, %635 : vector<16x128xf32>
    %c128_369 = arith.constant 128 : index
    %c0_370 = arith.constant 0 : index
    %637 = vector.load %arg2[%c128_369, %c0_370] : memref<672x128xf32, #tpu.memory_space<vmem>>, vector<16x128xf32>
    %638 = arith.subf %3, %637 : vector<16x128xf32>
    %c1312 = arith.constant 1312 : index
    %c0_371 = arith.constant 0 : index
    %639 = vector.load %arg3[%c1312, %c0_371] : memref<2720x128xf32, #tpu.memory_space<vmem>>, vector<16x128xf32>
    %640 = arith.mulf %638, %639 : vector<16x128xf32>
    %641 = arith.mulf %640, %449 : vector<16x128xf32>
    %c256_372 = arith.constant 256 : index
    %c0_373 = arith.constant 0 : index
    %642 = vector.load %arg2[%c256_372, %c0_373] : memref<672x128xf32, #tpu.memory_space<vmem>>, vector<16x128xf32>
    %643 = arith.subf %3, %642 : vector<16x128xf32>
    %c1312_374 = arith.constant 1312 : index
    %c0_375 = arith.constant 0 : index
    %644 = vector.load %arg4[%c1312_374, %c0_375] : memref<2720x128xf32, #tpu.memory_space<vmem>>, vector<16x128xf32>
    %645 = arith.mulf %643, %644 : vector<16x128xf32>
    %646 = arith.mulf %645, %460 : vector<16x128xf32>
    %647 = arith.addf %641, %646 : vector<16x128xf32>
    %c160_376 = arith.constant 160 : index
    %c0_377 = arith.constant 0 : index
    %648 = vector.load %arg2[%c160_376, %c0_377] : memref<672x128xf32, #tpu.memory_space<vmem>>, vector<16x128xf32>
    %649 = arith.subf %3, %648 : vector<16x128xf32>
    %c1344 = arith.constant 1344 : index
    %c0_378 = arith.constant 0 : index
    %650 = vector.load %arg3[%c1344, %c0_378] : memref<2720x128xf32, #tpu.memory_space<vmem>>, vector<16x128xf32>
    %651 = arith.mulf %649, %650 : vector<16x128xf32>
    %652 = arith.mulf %651, %460 : vector<16x128xf32>
    %c288_379 = arith.constant 288 : index
    %c0_380 = arith.constant 0 : index
    %653 = vector.load %arg2[%c288_379, %c0_380] : memref<672x128xf32, #tpu.memory_space<vmem>>, vector<16x128xf32>
    %654 = arith.subf %3, %653 : vector<16x128xf32>
    %c1344_381 = arith.constant 1344 : index
    %c0_382 = arith.constant 0 : index
    %655 = vector.load %arg4[%c1344_381, %c0_382] : memref<2720x128xf32, #tpu.memory_space<vmem>>, vector<16x128xf32>
    %656 = arith.mulf %654, %655 : vector<16x128xf32>
    %657 = arith.mulf %656, %471 : vector<16x128xf32>
    %658 = arith.addf %652, %657 : vector<16x128xf32>
    %c192_383 = arith.constant 192 : index
    %c0_384 = arith.constant 0 : index
    %659 = vector.load %arg2[%c192_383, %c0_384] : memref<672x128xf32, #tpu.memory_space<vmem>>, vector<16x128xf32>
    %660 = arith.subf %3, %659 : vector<16x128xf32>
    %c1376 = arith.constant 1376 : index
    %c0_385 = arith.constant 0 : index
    %661 = vector.load %arg3[%c1376, %c0_385] : memref<2720x128xf32, #tpu.memory_space<vmem>>, vector<16x128xf32>
    %662 = arith.mulf %660, %661 : vector<16x128xf32>
    %663 = arith.mulf %662, %471 : vector<16x128xf32>
    %c320_386 = arith.constant 320 : index
    %c0_387 = arith.constant 0 : index
    %664 = vector.load %arg2[%c320_386, %c0_387] : memref<672x128xf32, #tpu.memory_space<vmem>>, vector<16x128xf32>
    %665 = arith.subf %3, %664 : vector<16x128xf32>
    %c1376_388 = arith.constant 1376 : index
    %c0_389 = arith.constant 0 : index
    %666 = vector.load %arg4[%c1376_388, %c0_389] : memref<2720x128xf32, #tpu.memory_space<vmem>>, vector<16x128xf32>
    %667 = arith.mulf %665, %666 : vector<16x128xf32>
    %668 = arith.mulf %667, %482 : vector<16x128xf32>
    %669 = arith.addf %663, %668 : vector<16x128xf32>
    %c224_390 = arith.constant 224 : index
    %c0_391 = arith.constant 0 : index
    %670 = vector.load %arg2[%c224_390, %c0_391] : memref<672x128xf32, #tpu.memory_space<vmem>>, vector<16x128xf32>
    %671 = arith.subf %3, %670 : vector<16x128xf32>
    %c1408 = arith.constant 1408 : index
    %c0_392 = arith.constant 0 : index
    %672 = vector.load %arg3[%c1408, %c0_392] : memref<2720x128xf32, #tpu.memory_space<vmem>>, vector<16x128xf32>
    %673 = arith.mulf %671, %672 : vector<16x128xf32>
    %674 = arith.mulf %673, %482 : vector<16x128xf32>
    %c352_393 = arith.constant 352 : index
    %c0_394 = arith.constant 0 : index
    %675 = vector.load %arg2[%c352_393, %c0_394] : memref<672x128xf32, #tpu.memory_space<vmem>>, vector<16x128xf32>
    %676 = arith.subf %3, %675 : vector<16x128xf32>
    %c1408_395 = arith.constant 1408 : index
    %c0_396 = arith.constant 0 : index
    %677 = vector.load %arg4[%c1408_395, %c0_396] : memref<2720x128xf32, #tpu.memory_space<vmem>>, vector<16x128xf32>
    %678 = arith.mulf %676, %677 : vector<16x128xf32>
    %679 = arith.mulf %678, %493 : vector<16x128xf32>
    %680 = arith.addf %674, %679 : vector<16x128xf32>
    %c256_397 = arith.constant 256 : index
    %c0_398 = arith.constant 0 : index
    %681 = vector.load %arg2[%c256_397, %c0_398] : memref<672x128xf32, #tpu.memory_space<vmem>>, vector<16x128xf32>
    %682 = arith.subf %3, %681 : vector<16x128xf32>
    %c1440 = arith.constant 1440 : index
    %c0_399 = arith.constant 0 : index
    %683 = vector.load %arg3[%c1440, %c0_399] : memref<2720x128xf32, #tpu.memory_space<vmem>>, vector<16x128xf32>
    %684 = arith.mulf %682, %683 : vector<16x128xf32>
    %685 = arith.mulf %684, %493 : vector<16x128xf32>
    %c384_400 = arith.constant 384 : index
    %c0_401 = arith.constant 0 : index
    %686 = vector.load %arg2[%c384_400, %c0_401] : memref<672x128xf32, #tpu.memory_space<vmem>>, vector<16x128xf32>
    %687 = arith.subf %3, %686 : vector<16x128xf32>
    %c1440_402 = arith.constant 1440 : index
    %c0_403 = arith.constant 0 : index
    %688 = vector.load %arg4[%c1440_402, %c0_403] : memref<2720x128xf32, #tpu.memory_space<vmem>>, vector<16x128xf32>
    %689 = arith.mulf %687, %688 : vector<16x128xf32>
    %690 = arith.mulf %689, %504 : vector<16x128xf32>
    %691 = arith.addf %685, %690 : vector<16x128xf32>
    %c288_404 = arith.constant 288 : index
    %c0_405 = arith.constant 0 : index
    %692 = vector.load %arg2[%c288_404, %c0_405] : memref<672x128xf32, #tpu.memory_space<vmem>>, vector<16x128xf32>
    %693 = arith.subf %3, %692 : vector<16x128xf32>
    %c1472 = arith.constant 1472 : index
    %c0_406 = arith.constant 0 : index
    %694 = vector.load %arg3[%c1472, %c0_406] : memref<2720x128xf32, #tpu.memory_space<vmem>>, vector<16x128xf32>
    %695 = arith.mulf %693, %694 : vector<16x128xf32>
    %696 = arith.mulf %695, %504 : vector<16x128xf32>
    %c416_407 = arith.constant 416 : index
    %c0_408 = arith.constant 0 : index
    %697 = vector.load %arg2[%c416_407, %c0_408] : memref<672x128xf32, #tpu.memory_space<vmem>>, vector<16x128xf32>
    %698 = arith.subf %3, %697 : vector<16x128xf32>
    %c1472_409 = arith.constant 1472 : index
    %c0_410 = arith.constant 0 : index
    %699 = vector.load %arg4[%c1472_409, %c0_410] : memref<2720x128xf32, #tpu.memory_space<vmem>>, vector<16x128xf32>
    %700 = arith.mulf %698, %699 : vector<16x128xf32>
    %701 = arith.mulf %700, %515 : vector<16x128xf32>
    %702 = arith.addf %696, %701 : vector<16x128xf32>
    %c320_411 = arith.constant 320 : index
    %c0_412 = arith.constant 0 : index
    %703 = vector.load %arg2[%c320_411, %c0_412] : memref<672x128xf32, #tpu.memory_space<vmem>>, vector<16x128xf32>
    %704 = arith.subf %3, %703 : vector<16x128xf32>
    %c1504 = arith.constant 1504 : index
    %c0_413 = arith.constant 0 : index
    %705 = vector.load %arg3[%c1504, %c0_413] : memref<2720x128xf32, #tpu.memory_space<vmem>>, vector<16x128xf32>
    %706 = arith.mulf %704, %705 : vector<16x128xf32>
    %707 = arith.mulf %706, %515 : vector<16x128xf32>
    %c448_414 = arith.constant 448 : index
    %c0_415 = arith.constant 0 : index
    %708 = vector.load %arg2[%c448_414, %c0_415] : memref<672x128xf32, #tpu.memory_space<vmem>>, vector<16x128xf32>
    %709 = arith.subf %3, %708 : vector<16x128xf32>
    %c1504_416 = arith.constant 1504 : index
    %c0_417 = arith.constant 0 : index
    %710 = vector.load %arg4[%c1504_416, %c0_417] : memref<2720x128xf32, #tpu.memory_space<vmem>>, vector<16x128xf32>
    %711 = arith.mulf %709, %710 : vector<16x128xf32>
    %712 = arith.mulf %711, %526 : vector<16x128xf32>
    %713 = arith.addf %707, %712 : vector<16x128xf32>
    %c352_418 = arith.constant 352 : index
    %c0_419 = arith.constant 0 : index
    %714 = vector.load %arg2[%c352_418, %c0_419] : memref<672x128xf32, #tpu.memory_space<vmem>>, vector<16x128xf32>
    %715 = arith.subf %3, %714 : vector<16x128xf32>
    %c1536 = arith.constant 1536 : index
    %c0_420 = arith.constant 0 : index
    %716 = vector.load %arg3[%c1536, %c0_420] : memref<2720x128xf32, #tpu.memory_space<vmem>>, vector<16x128xf32>
    %717 = arith.mulf %715, %716 : vector<16x128xf32>
    %718 = arith.mulf %717, %526 : vector<16x128xf32>
    %c480_421 = arith.constant 480 : index
    %c0_422 = arith.constant 0 : index
    %719 = vector.load %arg2[%c480_421, %c0_422] : memref<672x128xf32, #tpu.memory_space<vmem>>, vector<16x128xf32>
    %720 = arith.subf %3, %719 : vector<16x128xf32>
    %c1536_423 = arith.constant 1536 : index
    %c0_424 = arith.constant 0 : index
    %721 = vector.load %arg4[%c1536_423, %c0_424] : memref<2720x128xf32, #tpu.memory_space<vmem>>, vector<16x128xf32>
    %722 = arith.mulf %720, %721 : vector<16x128xf32>
    %723 = arith.mulf %722, %537 : vector<16x128xf32>
    %724 = arith.addf %718, %723 : vector<16x128xf32>
    %c384_425 = arith.constant 384 : index
    %c0_426 = arith.constant 0 : index
    %725 = vector.load %arg2[%c384_425, %c0_426] : memref<672x128xf32, #tpu.memory_space<vmem>>, vector<16x128xf32>
    %726 = arith.subf %3, %725 : vector<16x128xf32>
    %c1568 = arith.constant 1568 : index
    %c0_427 = arith.constant 0 : index
    %727 = vector.load %arg3[%c1568, %c0_427] : memref<2720x128xf32, #tpu.memory_space<vmem>>, vector<16x128xf32>
    %728 = arith.mulf %726, %727 : vector<16x128xf32>
    %729 = arith.mulf %728, %537 : vector<16x128xf32>
    %c512_428 = arith.constant 512 : index
    %c0_429 = arith.constant 0 : index
    %730 = vector.load %arg2[%c512_428, %c0_429] : memref<672x128xf32, #tpu.memory_space<vmem>>, vector<16x128xf32>
    %731 = arith.subf %3, %730 : vector<16x128xf32>
    %c1568_430 = arith.constant 1568 : index
    %c0_431 = arith.constant 0 : index
    %732 = vector.load %arg4[%c1568_430, %c0_431] : memref<2720x128xf32, #tpu.memory_space<vmem>>, vector<16x128xf32>
    %733 = arith.mulf %731, %732 : vector<16x128xf32>
    %734 = arith.mulf %733, %548 : vector<16x128xf32>
    %735 = arith.addf %729, %734 : vector<16x128xf32>
    %c416_432 = arith.constant 416 : index
    %c0_433 = arith.constant 0 : index
    %736 = vector.load %arg2[%c416_432, %c0_433] : memref<672x128xf32, #tpu.memory_space<vmem>>, vector<16x128xf32>
    %737 = arith.subf %3, %736 : vector<16x128xf32>
    %c1600 = arith.constant 1600 : index
    %c0_434 = arith.constant 0 : index
    %738 = vector.load %arg3[%c1600, %c0_434] : memref<2720x128xf32, #tpu.memory_space<vmem>>, vector<16x128xf32>
    %739 = arith.mulf %737, %738 : vector<16x128xf32>
    %740 = arith.mulf %739, %548 : vector<16x128xf32>
    %c544_435 = arith.constant 544 : index
    %c0_436 = arith.constant 0 : index
    %741 = vector.load %arg2[%c544_435, %c0_436] : memref<672x128xf32, #tpu.memory_space<vmem>>, vector<16x128xf32>
    %742 = arith.subf %3, %741 : vector<16x128xf32>
    %c1600_437 = arith.constant 1600 : index
    %c0_438 = arith.constant 0 : index
    %743 = vector.load %arg4[%c1600_437, %c0_438] : memref<2720x128xf32, #tpu.memory_space<vmem>>, vector<16x128xf32>
    %744 = arith.mulf %742, %743 : vector<16x128xf32>
    %745 = arith.mulf %744, %559 : vector<16x128xf32>
    %746 = arith.addf %740, %745 : vector<16x128xf32>
    %c448_439 = arith.constant 448 : index
    %c0_440 = arith.constant 0 : index
    %747 = vector.load %arg2[%c448_439, %c0_440] : memref<672x128xf32, #tpu.memory_space<vmem>>, vector<16x128xf32>
    %748 = arith.subf %3, %747 : vector<16x128xf32>
    %c1632 = arith.constant 1632 : index
    %c0_441 = arith.constant 0 : index
    %749 = vector.load %arg3[%c1632, %c0_441] : memref<2720x128xf32, #tpu.memory_space<vmem>>, vector<16x128xf32>
    %750 = arith.mulf %748, %749 : vector<16x128xf32>
    %751 = arith.mulf %750, %559 : vector<16x128xf32>
    %c576_442 = arith.constant 576 : index
    %c0_443 = arith.constant 0 : index
    %752 = vector.load %arg2[%c576_442, %c0_443] : memref<672x128xf32, #tpu.memory_space<vmem>>, vector<16x128xf32>
    %753 = arith.subf %3, %752 : vector<16x128xf32>
    %c1632_444 = arith.constant 1632 : index
    %c0_445 = arith.constant 0 : index
    %754 = vector.load %arg4[%c1632_444, %c0_445] : memref<2720x128xf32, #tpu.memory_space<vmem>>, vector<16x128xf32>
    %755 = arith.mulf %753, %754 : vector<16x128xf32>
    %756 = arith.mulf %755, %570 : vector<16x128xf32>
    %757 = arith.addf %751, %756 : vector<16x128xf32>
    %c480_446 = arith.constant 480 : index
    %c0_447 = arith.constant 0 : index
    %758 = vector.load %arg2[%c480_446, %c0_447] : memref<672x128xf32, #tpu.memory_space<vmem>>, vector<16x128xf32>
    %759 = arith.subf %3, %758 : vector<16x128xf32>
    %c1664 = arith.constant 1664 : index
    %c0_448 = arith.constant 0 : index
    %760 = vector.load %arg3[%c1664, %c0_448] : memref<2720x128xf32, #tpu.memory_space<vmem>>, vector<16x128xf32>
    %761 = arith.mulf %759, %760 : vector<16x128xf32>
    %762 = arith.mulf %761, %570 : vector<16x128xf32>
    %c608_449 = arith.constant 608 : index
    %c0_450 = arith.constant 0 : index
    %763 = vector.load %arg2[%c608_449, %c0_450] : memref<672x128xf32, #tpu.memory_space<vmem>>, vector<16x128xf32>
    %764 = arith.subf %3, %763 : vector<16x128xf32>
    %c1664_451 = arith.constant 1664 : index
    %c0_452 = arith.constant 0 : index
    %765 = vector.load %arg4[%c1664_451, %c0_452] : memref<2720x128xf32, #tpu.memory_space<vmem>>, vector<16x128xf32>
    %766 = arith.mulf %764, %765 : vector<16x128xf32>
    %767 = arith.mulf %766, %581 : vector<16x128xf32>
    %768 = arith.addf %762, %767 : vector<16x128xf32>
    %c512_453 = arith.constant 512 : index
    %c0_454 = arith.constant 0 : index
    %769 = vector.load %arg2[%c512_453, %c0_454] : memref<672x128xf32, #tpu.memory_space<vmem>>, vector<16x128xf32>
    %770 = arith.subf %3, %769 : vector<16x128xf32>
    %c1696 = arith.constant 1696 : index
    %c0_455 = arith.constant 0 : index
    %771 = vector.load %arg3[%c1696, %c0_455] : memref<2720x128xf32, #tpu.memory_space<vmem>>, vector<16x128xf32>
    %772 = arith.mulf %770, %771 : vector<16x128xf32>
    %773 = arith.mulf %772, %581 : vector<16x128xf32>
    %c640_456 = arith.constant 640 : index
    %c0_457 = arith.constant 0 : index
    %774 = vector.load %arg2[%c640_456, %c0_457] : memref<672x128xf32, #tpu.memory_space<vmem>>, vector<16x128xf32>
    %775 = arith.subf %3, %774 : vector<16x128xf32>
    %c1696_458 = arith.constant 1696 : index
    %c0_459 = arith.constant 0 : index
    %776 = vector.load %arg4[%c1696_458, %c0_459] : memref<2720x128xf32, #tpu.memory_space<vmem>>, vector<16x128xf32>
    %777 = arith.mulf %775, %776 : vector<16x128xf32>
    %778 = arith.mulf %777, %592 : vector<16x128xf32>
    %779 = arith.addf %773, %778 : vector<16x128xf32>
    %c0_460 = arith.constant 0 : index
    %c0_461 = arith.constant 0 : index
    %780 = vector.load %arg2[%c0_460, %c0_461] : memref<672x128xf32, #tpu.memory_space<vmem>>, vector<16x128xf32>
    %781 = arith.subf %3, %780 : vector<16x128xf32>
    %c1728 = arith.constant 1728 : index
    %c0_462 = arith.constant 0 : index
    %782 = vector.load %arg3[%c1728, %c0_462] : memref<2720x128xf32, #tpu.memory_space<vmem>>, vector<16x128xf32>
    %783 = arith.mulf %781, %782 : vector<16x128xf32>
    %784 = arith.mulf %783, %603 : vector<16x128xf32>
    %c160_463 = arith.constant 160 : index
    %c0_464 = arith.constant 0 : index
    %785 = vector.load %arg2[%c160_463, %c0_464] : memref<672x128xf32, #tpu.memory_space<vmem>>, vector<16x128xf32>
    %786 = arith.subf %3, %785 : vector<16x128xf32>
    %c1728_465 = arith.constant 1728 : index
    %c0_466 = arith.constant 0 : index
    %787 = vector.load %arg4[%c1728_465, %c0_466] : memref<2720x128xf32, #tpu.memory_space<vmem>>, vector<16x128xf32>
    %788 = arith.mulf %786, %787 : vector<16x128xf32>
    %789 = arith.mulf %788, %614 : vector<16x128xf32>
    %790 = arith.addf %784, %789 : vector<16x128xf32>
    %c32_467 = arith.constant 32 : index
    %c0_468 = arith.constant 0 : index
    %791 = vector.load %arg2[%c32_467, %c0_468] : memref<672x128xf32, #tpu.memory_space<vmem>>, vector<16x128xf32>
    %792 = arith.subf %3, %791 : vector<16x128xf32>
    %c1760 = arith.constant 1760 : index
    %c0_469 = arith.constant 0 : index
    %793 = vector.load %arg3[%c1760, %c0_469] : memref<2720x128xf32, #tpu.memory_space<vmem>>, vector<16x128xf32>
    %794 = arith.mulf %792, %793 : vector<16x128xf32>
    %795 = arith.mulf %794, %614 : vector<16x128xf32>
    %c192_470 = arith.constant 192 : index
    %c0_471 = arith.constant 0 : index
    %796 = vector.load %arg2[%c192_470, %c0_471] : memref<672x128xf32, #tpu.memory_space<vmem>>, vector<16x128xf32>
    %797 = arith.subf %3, %796 : vector<16x128xf32>
    %c1760_472 = arith.constant 1760 : index
    %c0_473 = arith.constant 0 : index
    %798 = vector.load %arg4[%c1760_472, %c0_473] : memref<2720x128xf32, #tpu.memory_space<vmem>>, vector<16x128xf32>
    %799 = arith.mulf %797, %798 : vector<16x128xf32>
    %800 = arith.mulf %799, %625 : vector<16x128xf32>
    %801 = arith.addf %795, %800 : vector<16x128xf32>
    %c64_474 = arith.constant 64 : index
    %c0_475 = arith.constant 0 : index
    %802 = vector.load %arg2[%c64_474, %c0_475] : memref<672x128xf32, #tpu.memory_space<vmem>>, vector<16x128xf32>
    %803 = arith.subf %3, %802 : vector<16x128xf32>
    %c1792 = arith.constant 1792 : index
    %c0_476 = arith.constant 0 : index
    %804 = vector.load %arg3[%c1792, %c0_476] : memref<2720x128xf32, #tpu.memory_space<vmem>>, vector<16x128xf32>
    %805 = arith.mulf %803, %804 : vector<16x128xf32>
    %806 = arith.mulf %805, %625 : vector<16x128xf32>
    %c224_477 = arith.constant 224 : index
    %c0_478 = arith.constant 0 : index
    %807 = vector.load %arg2[%c224_477, %c0_478] : memref<672x128xf32, #tpu.memory_space<vmem>>, vector<16x128xf32>
    %808 = arith.subf %3, %807 : vector<16x128xf32>
    %c1792_479 = arith.constant 1792 : index
    %c0_480 = arith.constant 0 : index
    %809 = vector.load %arg4[%c1792_479, %c0_480] : memref<2720x128xf32, #tpu.memory_space<vmem>>, vector<16x128xf32>
    %810 = arith.mulf %808, %809 : vector<16x128xf32>
    %811 = arith.mulf %810, %636 : vector<16x128xf32>
    %812 = arith.addf %806, %811 : vector<16x128xf32>
    %c96_481 = arith.constant 96 : index
    %c0_482 = arith.constant 0 : index
    %813 = vector.load %arg2[%c96_481, %c0_482] : memref<672x128xf32, #tpu.memory_space<vmem>>, vector<16x128xf32>
    %814 = arith.subf %3, %813 : vector<16x128xf32>
    %c1824 = arith.constant 1824 : index
    %c0_483 = arith.constant 0 : index
    %815 = vector.load %arg3[%c1824, %c0_483] : memref<2720x128xf32, #tpu.memory_space<vmem>>, vector<16x128xf32>
    %816 = arith.mulf %814, %815 : vector<16x128xf32>
    %817 = arith.mulf %816, %636 : vector<16x128xf32>
    %c256_484 = arith.constant 256 : index
    %c0_485 = arith.constant 0 : index
    %818 = vector.load %arg2[%c256_484, %c0_485] : memref<672x128xf32, #tpu.memory_space<vmem>>, vector<16x128xf32>
    %819 = arith.subf %3, %818 : vector<16x128xf32>
    %c1824_486 = arith.constant 1824 : index
    %c0_487 = arith.constant 0 : index
    %820 = vector.load %arg4[%c1824_486, %c0_487] : memref<2720x128xf32, #tpu.memory_space<vmem>>, vector<16x128xf32>
    %821 = arith.mulf %819, %820 : vector<16x128xf32>
    %822 = arith.mulf %821, %647 : vector<16x128xf32>
    %823 = arith.addf %817, %822 : vector<16x128xf32>
    %c128_488 = arith.constant 128 : index
    %c0_489 = arith.constant 0 : index
    %824 = vector.load %arg2[%c128_488, %c0_489] : memref<672x128xf32, #tpu.memory_space<vmem>>, vector<16x128xf32>
    %825 = arith.subf %3, %824 : vector<16x128xf32>
    %c1856 = arith.constant 1856 : index
    %c0_490 = arith.constant 0 : index
    %826 = vector.load %arg3[%c1856, %c0_490] : memref<2720x128xf32, #tpu.memory_space<vmem>>, vector<16x128xf32>
    %827 = arith.mulf %825, %826 : vector<16x128xf32>
    %828 = arith.mulf %827, %647 : vector<16x128xf32>
    %c288_491 = arith.constant 288 : index
    %c0_492 = arith.constant 0 : index
    %829 = vector.load %arg2[%c288_491, %c0_492] : memref<672x128xf32, #tpu.memory_space<vmem>>, vector<16x128xf32>
    %830 = arith.subf %3, %829 : vector<16x128xf32>
    %c1856_493 = arith.constant 1856 : index
    %c0_494 = arith.constant 0 : index
    %831 = vector.load %arg4[%c1856_493, %c0_494] : memref<2720x128xf32, #tpu.memory_space<vmem>>, vector<16x128xf32>
    %832 = arith.mulf %830, %831 : vector<16x128xf32>
    %833 = arith.mulf %832, %658 : vector<16x128xf32>
    %834 = arith.addf %828, %833 : vector<16x128xf32>
    %c160_495 = arith.constant 160 : index
    %c0_496 = arith.constant 0 : index
    %835 = vector.load %arg2[%c160_495, %c0_496] : memref<672x128xf32, #tpu.memory_space<vmem>>, vector<16x128xf32>
    %836 = arith.subf %3, %835 : vector<16x128xf32>
    %c1888 = arith.constant 1888 : index
    %c0_497 = arith.constant 0 : index
    %837 = vector.load %arg3[%c1888, %c0_497] : memref<2720x128xf32, #tpu.memory_space<vmem>>, vector<16x128xf32>
    %838 = arith.mulf %836, %837 : vector<16x128xf32>
    %839 = arith.mulf %838, %658 : vector<16x128xf32>
    %c320_498 = arith.constant 320 : index
    %c0_499 = arith.constant 0 : index
    %840 = vector.load %arg2[%c320_498, %c0_499] : memref<672x128xf32, #tpu.memory_space<vmem>>, vector<16x128xf32>
    %841 = arith.subf %3, %840 : vector<16x128xf32>
    %c1888_500 = arith.constant 1888 : index
    %c0_501 = arith.constant 0 : index
    %842 = vector.load %arg4[%c1888_500, %c0_501] : memref<2720x128xf32, #tpu.memory_space<vmem>>, vector<16x128xf32>
    %843 = arith.mulf %841, %842 : vector<16x128xf32>
    %844 = arith.mulf %843, %669 : vector<16x128xf32>
    %845 = arith.addf %839, %844 : vector<16x128xf32>
    %c192_502 = arith.constant 192 : index
    %c0_503 = arith.constant 0 : index
    %846 = vector.load %arg2[%c192_502, %c0_503] : memref<672x128xf32, #tpu.memory_space<vmem>>, vector<16x128xf32>
    %847 = arith.subf %3, %846 : vector<16x128xf32>
    %c1920 = arith.constant 1920 : index
    %c0_504 = arith.constant 0 : index
    %848 = vector.load %arg3[%c1920, %c0_504] : memref<2720x128xf32, #tpu.memory_space<vmem>>, vector<16x128xf32>
    %849 = arith.mulf %847, %848 : vector<16x128xf32>
    %850 = arith.mulf %849, %669 : vector<16x128xf32>
    %c352_505 = arith.constant 352 : index
    %c0_506 = arith.constant 0 : index
    %851 = vector.load %arg2[%c352_505, %c0_506] : memref<672x128xf32, #tpu.memory_space<vmem>>, vector<16x128xf32>
    %852 = arith.subf %3, %851 : vector<16x128xf32>
    %c1920_507 = arith.constant 1920 : index
    %c0_508 = arith.constant 0 : index
    %853 = vector.load %arg4[%c1920_507, %c0_508] : memref<2720x128xf32, #tpu.memory_space<vmem>>, vector<16x128xf32>
    %854 = arith.mulf %852, %853 : vector<16x128xf32>
    %855 = arith.mulf %854, %680 : vector<16x128xf32>
    %856 = arith.addf %850, %855 : vector<16x128xf32>
    %c224_509 = arith.constant 224 : index
    %c0_510 = arith.constant 0 : index
    %857 = vector.load %arg2[%c224_509, %c0_510] : memref<672x128xf32, #tpu.memory_space<vmem>>, vector<16x128xf32>
    %858 = arith.subf %3, %857 : vector<16x128xf32>
    %c1952 = arith.constant 1952 : index
    %c0_511 = arith.constant 0 : index
    %859 = vector.load %arg3[%c1952, %c0_511] : memref<2720x128xf32, #tpu.memory_space<vmem>>, vector<16x128xf32>
    %860 = arith.mulf %858, %859 : vector<16x128xf32>
    %861 = arith.mulf %860, %680 : vector<16x128xf32>
    %c384_512 = arith.constant 384 : index
    %c0_513 = arith.constant 0 : index
    %862 = vector.load %arg2[%c384_512, %c0_513] : memref<672x128xf32, #tpu.memory_space<vmem>>, vector<16x128xf32>
    %863 = arith.subf %3, %862 : vector<16x128xf32>
    %c1952_514 = arith.constant 1952 : index
    %c0_515 = arith.constant 0 : index
    %864 = vector.load %arg4[%c1952_514, %c0_515] : memref<2720x128xf32, #tpu.memory_space<vmem>>, vector<16x128xf32>
    %865 = arith.mulf %863, %864 : vector<16x128xf32>
    %866 = arith.mulf %865, %691 : vector<16x128xf32>
    %867 = arith.addf %861, %866 : vector<16x128xf32>
    %c256_516 = arith.constant 256 : index
    %c0_517 = arith.constant 0 : index
    %868 = vector.load %arg2[%c256_516, %c0_517] : memref<672x128xf32, #tpu.memory_space<vmem>>, vector<16x128xf32>
    %869 = arith.subf %3, %868 : vector<16x128xf32>
    %c1984 = arith.constant 1984 : index
    %c0_518 = arith.constant 0 : index
    %870 = vector.load %arg3[%c1984, %c0_518] : memref<2720x128xf32, #tpu.memory_space<vmem>>, vector<16x128xf32>
    %871 = arith.mulf %869, %870 : vector<16x128xf32>
    %872 = arith.mulf %871, %691 : vector<16x128xf32>
    %c416_519 = arith.constant 416 : index
    %c0_520 = arith.constant 0 : index
    %873 = vector.load %arg2[%c416_519, %c0_520] : memref<672x128xf32, #tpu.memory_space<vmem>>, vector<16x128xf32>
    %874 = arith.subf %3, %873 : vector<16x128xf32>
    %c1984_521 = arith.constant 1984 : index
    %c0_522 = arith.constant 0 : index
    %875 = vector.load %arg4[%c1984_521, %c0_522] : memref<2720x128xf32, #tpu.memory_space<vmem>>, vector<16x128xf32>
    %876 = arith.mulf %874, %875 : vector<16x128xf32>
    %877 = arith.mulf %876, %702 : vector<16x128xf32>
    %878 = arith.addf %872, %877 : vector<16x128xf32>
    %c288_523 = arith.constant 288 : index
    %c0_524 = arith.constant 0 : index
    %879 = vector.load %arg2[%c288_523, %c0_524] : memref<672x128xf32, #tpu.memory_space<vmem>>, vector<16x128xf32>
    %880 = arith.subf %3, %879 : vector<16x128xf32>
    %c2016 = arith.constant 2016 : index
    %c0_525 = arith.constant 0 : index
    %881 = vector.load %arg3[%c2016, %c0_525] : memref<2720x128xf32, #tpu.memory_space<vmem>>, vector<16x128xf32>
    %882 = arith.mulf %880, %881 : vector<16x128xf32>
    %883 = arith.mulf %882, %702 : vector<16x128xf32>
    %c448_526 = arith.constant 448 : index
    %c0_527 = arith.constant 0 : index
    %884 = vector.load %arg2[%c448_526, %c0_527] : memref<672x128xf32, #tpu.memory_space<vmem>>, vector<16x128xf32>
    %885 = arith.subf %3, %884 : vector<16x128xf32>
    %c2016_528 = arith.constant 2016 : index
    %c0_529 = arith.constant 0 : index
    %886 = vector.load %arg4[%c2016_528, %c0_529] : memref<2720x128xf32, #tpu.memory_space<vmem>>, vector<16x128xf32>
    %887 = arith.mulf %885, %886 : vector<16x128xf32>
    %888 = arith.mulf %887, %713 : vector<16x128xf32>
    %889 = arith.addf %883, %888 : vector<16x128xf32>
    %c320_530 = arith.constant 320 : index
    %c0_531 = arith.constant 0 : index
    %890 = vector.load %arg2[%c320_530, %c0_531] : memref<672x128xf32, #tpu.memory_space<vmem>>, vector<16x128xf32>
    %891 = arith.subf %3, %890 : vector<16x128xf32>
    %c2048 = arith.constant 2048 : index
    %c0_532 = arith.constant 0 : index
    %892 = vector.load %arg3[%c2048, %c0_532] : memref<2720x128xf32, #tpu.memory_space<vmem>>, vector<16x128xf32>
    %893 = arith.mulf %891, %892 : vector<16x128xf32>
    %894 = arith.mulf %893, %713 : vector<16x128xf32>
    %c480_533 = arith.constant 480 : index
    %c0_534 = arith.constant 0 : index
    %895 = vector.load %arg2[%c480_533, %c0_534] : memref<672x128xf32, #tpu.memory_space<vmem>>, vector<16x128xf32>
    %896 = arith.subf %3, %895 : vector<16x128xf32>
    %c2048_535 = arith.constant 2048 : index
    %c0_536 = arith.constant 0 : index
    %897 = vector.load %arg4[%c2048_535, %c0_536] : memref<2720x128xf32, #tpu.memory_space<vmem>>, vector<16x128xf32>
    %898 = arith.mulf %896, %897 : vector<16x128xf32>
    %899 = arith.mulf %898, %724 : vector<16x128xf32>
    %900 = arith.addf %894, %899 : vector<16x128xf32>
    %c352_537 = arith.constant 352 : index
    %c0_538 = arith.constant 0 : index
    %901 = vector.load %arg2[%c352_537, %c0_538] : memref<672x128xf32, #tpu.memory_space<vmem>>, vector<16x128xf32>
    %902 = arith.subf %3, %901 : vector<16x128xf32>
    %c2080 = arith.constant 2080 : index
    %c0_539 = arith.constant 0 : index
    %903 = vector.load %arg3[%c2080, %c0_539] : memref<2720x128xf32, #tpu.memory_space<vmem>>, vector<16x128xf32>
    %904 = arith.mulf %902, %903 : vector<16x128xf32>
    %905 = arith.mulf %904, %724 : vector<16x128xf32>
    %c512_540 = arith.constant 512 : index
    %c0_541 = arith.constant 0 : index
    %906 = vector.load %arg2[%c512_540, %c0_541] : memref<672x128xf32, #tpu.memory_space<vmem>>, vector<16x128xf32>
    %907 = arith.subf %3, %906 : vector<16x128xf32>
    %c2080_542 = arith.constant 2080 : index
    %c0_543 = arith.constant 0 : index
    %908 = vector.load %arg4[%c2080_542, %c0_543] : memref<2720x128xf32, #tpu.memory_space<vmem>>, vector<16x128xf32>
    %909 = arith.mulf %907, %908 : vector<16x128xf32>
    %910 = arith.mulf %909, %735 : vector<16x128xf32>
    %911 = arith.addf %905, %910 : vector<16x128xf32>
    %c384_544 = arith.constant 384 : index
    %c0_545 = arith.constant 0 : index
    %912 = vector.load %arg2[%c384_544, %c0_545] : memref<672x128xf32, #tpu.memory_space<vmem>>, vector<16x128xf32>
    %913 = arith.subf %3, %912 : vector<16x128xf32>
    %c2112 = arith.constant 2112 : index
    %c0_546 = arith.constant 0 : index
    %914 = vector.load %arg3[%c2112, %c0_546] : memref<2720x128xf32, #tpu.memory_space<vmem>>, vector<16x128xf32>
    %915 = arith.mulf %913, %914 : vector<16x128xf32>
    %916 = arith.mulf %915, %735 : vector<16x128xf32>
    %c544_547 = arith.constant 544 : index
    %c0_548 = arith.constant 0 : index
    %917 = vector.load %arg2[%c544_547, %c0_548] : memref<672x128xf32, #tpu.memory_space<vmem>>, vector<16x128xf32>
    %918 = arith.subf %3, %917 : vector<16x128xf32>
    %c2112_549 = arith.constant 2112 : index
    %c0_550 = arith.constant 0 : index
    %919 = vector.load %arg4[%c2112_549, %c0_550] : memref<2720x128xf32, #tpu.memory_space<vmem>>, vector<16x128xf32>
    %920 = arith.mulf %918, %919 : vector<16x128xf32>
    %921 = arith.mulf %920, %746 : vector<16x128xf32>
    %922 = arith.addf %916, %921 : vector<16x128xf32>
    %c416_551 = arith.constant 416 : index
    %c0_552 = arith.constant 0 : index
    %923 = vector.load %arg2[%c416_551, %c0_552] : memref<672x128xf32, #tpu.memory_space<vmem>>, vector<16x128xf32>
    %924 = arith.subf %3, %923 : vector<16x128xf32>
    %c2144 = arith.constant 2144 : index
    %c0_553 = arith.constant 0 : index
    %925 = vector.load %arg3[%c2144, %c0_553] : memref<2720x128xf32, #tpu.memory_space<vmem>>, vector<16x128xf32>
    %926 = arith.mulf %924, %925 : vector<16x128xf32>
    %927 = arith.mulf %926, %746 : vector<16x128xf32>
    %c576_554 = arith.constant 576 : index
    %c0_555 = arith.constant 0 : index
    %928 = vector.load %arg2[%c576_554, %c0_555] : memref<672x128xf32, #tpu.memory_space<vmem>>, vector<16x128xf32>
    %929 = arith.subf %3, %928 : vector<16x128xf32>
    %c2144_556 = arith.constant 2144 : index
    %c0_557 = arith.constant 0 : index
    %930 = vector.load %arg4[%c2144_556, %c0_557] : memref<2720x128xf32, #tpu.memory_space<vmem>>, vector<16x128xf32>
    %931 = arith.mulf %929, %930 : vector<16x128xf32>
    %932 = arith.mulf %931, %757 : vector<16x128xf32>
    %933 = arith.addf %927, %932 : vector<16x128xf32>
    %c448_558 = arith.constant 448 : index
    %c0_559 = arith.constant 0 : index
    %934 = vector.load %arg2[%c448_558, %c0_559] : memref<672x128xf32, #tpu.memory_space<vmem>>, vector<16x128xf32>
    %935 = arith.subf %3, %934 : vector<16x128xf32>
    %c2176 = arith.constant 2176 : index
    %c0_560 = arith.constant 0 : index
    %936 = vector.load %arg3[%c2176, %c0_560] : memref<2720x128xf32, #tpu.memory_space<vmem>>, vector<16x128xf32>
    %937 = arith.mulf %935, %936 : vector<16x128xf32>
    %938 = arith.mulf %937, %757 : vector<16x128xf32>
    %c608_561 = arith.constant 608 : index
    %c0_562 = arith.constant 0 : index
    %939 = vector.load %arg2[%c608_561, %c0_562] : memref<672x128xf32, #tpu.memory_space<vmem>>, vector<16x128xf32>
    %940 = arith.subf %3, %939 : vector<16x128xf32>
    %c2176_563 = arith.constant 2176 : index
    %c0_564 = arith.constant 0 : index
    %941 = vector.load %arg4[%c2176_563, %c0_564] : memref<2720x128xf32, #tpu.memory_space<vmem>>, vector<16x128xf32>
    %942 = arith.mulf %940, %941 : vector<16x128xf32>
    %943 = arith.mulf %942, %768 : vector<16x128xf32>
    %944 = arith.addf %938, %943 : vector<16x128xf32>
    %c480_565 = arith.constant 480 : index
    %c0_566 = arith.constant 0 : index
    %945 = vector.load %arg2[%c480_565, %c0_566] : memref<672x128xf32, #tpu.memory_space<vmem>>, vector<16x128xf32>
    %946 = arith.subf %3, %945 : vector<16x128xf32>
    %c2208 = arith.constant 2208 : index
    %c0_567 = arith.constant 0 : index
    %947 = vector.load %arg3[%c2208, %c0_567] : memref<2720x128xf32, #tpu.memory_space<vmem>>, vector<16x128xf32>
    %948 = arith.mulf %946, %947 : vector<16x128xf32>
    %949 = arith.mulf %948, %768 : vector<16x128xf32>
    %c640_568 = arith.constant 640 : index
    %c0_569 = arith.constant 0 : index
    %950 = vector.load %arg2[%c640_568, %c0_569] : memref<672x128xf32, #tpu.memory_space<vmem>>, vector<16x128xf32>
    %951 = arith.subf %3, %950 : vector<16x128xf32>
    %c2208_570 = arith.constant 2208 : index
    %c0_571 = arith.constant 0 : index
    %952 = vector.load %arg4[%c2208_570, %c0_571] : memref<2720x128xf32, #tpu.memory_space<vmem>>, vector<16x128xf32>
    %953 = arith.mulf %951, %952 : vector<16x128xf32>
    %954 = arith.mulf %953, %779 : vector<16x128xf32>
    %955 = arith.addf %949, %954 : vector<16x128xf32>
    %c0_572 = arith.constant 0 : index
    %c0_573 = arith.constant 0 : index
    %956 = vector.load %arg2[%c0_572, %c0_573] : memref<672x128xf32, #tpu.memory_space<vmem>>, vector<16x128xf32>
    %957 = arith.subf %3, %956 : vector<16x128xf32>
    %c2240 = arith.constant 2240 : index
    %c0_574 = arith.constant 0 : index
    %958 = vector.load %arg3[%c2240, %c0_574] : memref<2720x128xf32, #tpu.memory_space<vmem>>, vector<16x128xf32>
    %959 = arith.mulf %957, %958 : vector<16x128xf32>
    %960 = arith.mulf %959, %790 : vector<16x128xf32>
    %c192_575 = arith.constant 192 : index
    %c0_576 = arith.constant 0 : index
    %961 = vector.load %arg2[%c192_575, %c0_576] : memref<672x128xf32, #tpu.memory_space<vmem>>, vector<16x128xf32>
    %962 = arith.subf %3, %961 : vector<16x128xf32>
    %c2240_577 = arith.constant 2240 : index
    %c0_578 = arith.constant 0 : index
    %963 = vector.load %arg4[%c2240_577, %c0_578] : memref<2720x128xf32, #tpu.memory_space<vmem>>, vector<16x128xf32>
    %964 = arith.mulf %962, %963 : vector<16x128xf32>
    %965 = arith.mulf %964, %801 : vector<16x128xf32>
    %966 = arith.addf %960, %965 : vector<16x128xf32>
    %c32_579 = arith.constant 32 : index
    %c0_580 = arith.constant 0 : index
    %967 = vector.load %arg2[%c32_579, %c0_580] : memref<672x128xf32, #tpu.memory_space<vmem>>, vector<16x128xf32>
    %968 = arith.subf %3, %967 : vector<16x128xf32>
    %c2272 = arith.constant 2272 : index
    %c0_581 = arith.constant 0 : index
    %969 = vector.load %arg3[%c2272, %c0_581] : memref<2720x128xf32, #tpu.memory_space<vmem>>, vector<16x128xf32>
    %970 = arith.mulf %968, %969 : vector<16x128xf32>
    %971 = arith.mulf %970, %801 : vector<16x128xf32>
    %c224_582 = arith.constant 224 : index
    %c0_583 = arith.constant 0 : index
    %972 = vector.load %arg2[%c224_582, %c0_583] : memref<672x128xf32, #tpu.memory_space<vmem>>, vector<16x128xf32>
    %973 = arith.subf %3, %972 : vector<16x128xf32>
    %c2272_584 = arith.constant 2272 : index
    %c0_585 = arith.constant 0 : index
    %974 = vector.load %arg4[%c2272_584, %c0_585] : memref<2720x128xf32, #tpu.memory_space<vmem>>, vector<16x128xf32>
    %975 = arith.mulf %973, %974 : vector<16x128xf32>
    %976 = arith.mulf %975, %812 : vector<16x128xf32>
    %977 = arith.addf %971, %976 : vector<16x128xf32>
    %c64_586 = arith.constant 64 : index
    %c0_587 = arith.constant 0 : index
    %978 = vector.load %arg2[%c64_586, %c0_587] : memref<672x128xf32, #tpu.memory_space<vmem>>, vector<16x128xf32>
    %979 = arith.subf %3, %978 : vector<16x128xf32>
    %c2304 = arith.constant 2304 : index
    %c0_588 = arith.constant 0 : index
    %980 = vector.load %arg3[%c2304, %c0_588] : memref<2720x128xf32, #tpu.memory_space<vmem>>, vector<16x128xf32>
    %981 = arith.mulf %979, %980 : vector<16x128xf32>
    %982 = arith.mulf %981, %812 : vector<16x128xf32>
    %c256_589 = arith.constant 256 : index
    %c0_590 = arith.constant 0 : index
    %983 = vector.load %arg2[%c256_589, %c0_590] : memref<672x128xf32, #tpu.memory_space<vmem>>, vector<16x128xf32>
    %984 = arith.subf %3, %983 : vector<16x128xf32>
    %c2304_591 = arith.constant 2304 : index
    %c0_592 = arith.constant 0 : index
    %985 = vector.load %arg4[%c2304_591, %c0_592] : memref<2720x128xf32, #tpu.memory_space<vmem>>, vector<16x128xf32>
    %986 = arith.mulf %984, %985 : vector<16x128xf32>
    %987 = arith.mulf %986, %823 : vector<16x128xf32>
    %988 = arith.addf %982, %987 : vector<16x128xf32>
    %c96_593 = arith.constant 96 : index
    %c0_594 = arith.constant 0 : index
    %989 = vector.load %arg2[%c96_593, %c0_594] : memref<672x128xf32, #tpu.memory_space<vmem>>, vector<16x128xf32>
    %990 = arith.subf %3, %989 : vector<16x128xf32>
    %c2336 = arith.constant 2336 : index
    %c0_595 = arith.constant 0 : index
    %991 = vector.load %arg3[%c2336, %c0_595] : memref<2720x128xf32, #tpu.memory_space<vmem>>, vector<16x128xf32>
    %992 = arith.mulf %990, %991 : vector<16x128xf32>
    %993 = arith.mulf %992, %823 : vector<16x128xf32>
    %c288_596 = arith.constant 288 : index
    %c0_597 = arith.constant 0 : index
    %994 = vector.load %arg2[%c288_596, %c0_597] : memref<672x128xf32, #tpu.memory_space<vmem>>, vector<16x128xf32>
    %995 = arith.subf %3, %994 : vector<16x128xf32>
    %c2336_598 = arith.constant 2336 : index
    %c0_599 = arith.constant 0 : index
    %996 = vector.load %arg4[%c2336_598, %c0_599] : memref<2720x128xf32, #tpu.memory_space<vmem>>, vector<16x128xf32>
    %997 = arith.mulf %995, %996 : vector<16x128xf32>
    %998 = arith.mulf %997, %834 : vector<16x128xf32>
    %999 = arith.addf %993, %998 : vector<16x128xf32>
    %c128_600 = arith.constant 128 : index
    %c0_601 = arith.constant 0 : index
    %1000 = vector.load %arg2[%c128_600, %c0_601] : memref<672x128xf32, #tpu.memory_space<vmem>>, vector<16x128xf32>
    %1001 = arith.subf %3, %1000 : vector<16x128xf32>
    %c2368 = arith.constant 2368 : index
    %c0_602 = arith.constant 0 : index
    %1002 = vector.load %arg3[%c2368, %c0_602] : memref<2720x128xf32, #tpu.memory_space<vmem>>, vector<16x128xf32>
    %1003 = arith.mulf %1001, %1002 : vector<16x128xf32>
    %1004 = arith.mulf %1003, %834 : vector<16x128xf32>
    %c320_603 = arith.constant 320 : index
    %c0_604 = arith.constant 0 : index
    %1005 = vector.load %arg2[%c320_603, %c0_604] : memref<672x128xf32, #tpu.memory_space<vmem>>, vector<16x128xf32>
    %1006 = arith.subf %3, %1005 : vector<16x128xf32>
    %c2368_605 = arith.constant 2368 : index
    %c0_606 = arith.constant 0 : index
    %1007 = vector.load %arg4[%c2368_605, %c0_606] : memref<2720x128xf32, #tpu.memory_space<vmem>>, vector<16x128xf32>
    %1008 = arith.mulf %1006, %1007 : vector<16x128xf32>
    %1009 = arith.mulf %1008, %845 : vector<16x128xf32>
    %1010 = arith.addf %1004, %1009 : vector<16x128xf32>
    %c160_607 = arith.constant 160 : index
    %c0_608 = arith.constant 0 : index
    %1011 = vector.load %arg2[%c160_607, %c0_608] : memref<672x128xf32, #tpu.memory_space<vmem>>, vector<16x128xf32>
    %1012 = arith.subf %3, %1011 : vector<16x128xf32>
    %c2400 = arith.constant 2400 : index
    %c0_609 = arith.constant 0 : index
    %1013 = vector.load %arg3[%c2400, %c0_609] : memref<2720x128xf32, #tpu.memory_space<vmem>>, vector<16x128xf32>
    %1014 = arith.mulf %1012, %1013 : vector<16x128xf32>
    %1015 = arith.mulf %1014, %845 : vector<16x128xf32>
    %c352_610 = arith.constant 352 : index
    %c0_611 = arith.constant 0 : index
    %1016 = vector.load %arg2[%c352_610, %c0_611] : memref<672x128xf32, #tpu.memory_space<vmem>>, vector<16x128xf32>
    %1017 = arith.subf %3, %1016 : vector<16x128xf32>
    %c2400_612 = arith.constant 2400 : index
    %c0_613 = arith.constant 0 : index
    %1018 = vector.load %arg4[%c2400_612, %c0_613] : memref<2720x128xf32, #tpu.memory_space<vmem>>, vector<16x128xf32>
    %1019 = arith.mulf %1017, %1018 : vector<16x128xf32>
    %1020 = arith.mulf %1019, %856 : vector<16x128xf32>
    %1021 = arith.addf %1015, %1020 : vector<16x128xf32>
    %c192_614 = arith.constant 192 : index
    %c0_615 = arith.constant 0 : index
    %1022 = vector.load %arg2[%c192_614, %c0_615] : memref<672x128xf32, #tpu.memory_space<vmem>>, vector<16x128xf32>
    %1023 = arith.subf %3, %1022 : vector<16x128xf32>
    %c2432 = arith.constant 2432 : index
    %c0_616 = arith.constant 0 : index
    %1024 = vector.load %arg3[%c2432, %c0_616] : memref<2720x128xf32, #tpu.memory_space<vmem>>, vector<16x128xf32>
    %1025 = arith.mulf %1023, %1024 : vector<16x128xf32>
    %1026 = arith.mulf %1025, %856 : vector<16x128xf32>
    %c384_617 = arith.constant 384 : index
    %c0_618 = arith.constant 0 : index
    %1027 = vector.load %arg2[%c384_617, %c0_618] : memref<672x128xf32, #tpu.memory_space<vmem>>, vector<16x128xf32>
    %1028 = arith.subf %3, %1027 : vector<16x128xf32>
    %c2432_619 = arith.constant 2432 : index
    %c0_620 = arith.constant 0 : index
    %1029 = vector.load %arg4[%c2432_619, %c0_620] : memref<2720x128xf32, #tpu.memory_space<vmem>>, vector<16x128xf32>
    %1030 = arith.mulf %1028, %1029 : vector<16x128xf32>
    %1031 = arith.mulf %1030, %867 : vector<16x128xf32>
    %1032 = arith.addf %1026, %1031 : vector<16x128xf32>
    %c224_621 = arith.constant 224 : index
    %c0_622 = arith.constant 0 : index
    %1033 = vector.load %arg2[%c224_621, %c0_622] : memref<672x128xf32, #tpu.memory_space<vmem>>, vector<16x128xf32>
    %1034 = arith.subf %3, %1033 : vector<16x128xf32>
    %c2464 = arith.constant 2464 : index
    %c0_623 = arith.constant 0 : index
    %1035 = vector.load %arg3[%c2464, %c0_623] : memref<2720x128xf32, #tpu.memory_space<vmem>>, vector<16x128xf32>
    %1036 = arith.mulf %1034, %1035 : vector<16x128xf32>
    %1037 = arith.mulf %1036, %867 : vector<16x128xf32>
    %c416_624 = arith.constant 416 : index
    %c0_625 = arith.constant 0 : index
    %1038 = vector.load %arg2[%c416_624, %c0_625] : memref<672x128xf32, #tpu.memory_space<vmem>>, vector<16x128xf32>
    %1039 = arith.subf %3, %1038 : vector<16x128xf32>
    %c2464_626 = arith.constant 2464 : index
    %c0_627 = arith.constant 0 : index
    %1040 = vector.load %arg4[%c2464_626, %c0_627] : memref<2720x128xf32, #tpu.memory_space<vmem>>, vector<16x128xf32>
    %1041 = arith.mulf %1039, %1040 : vector<16x128xf32>
    %1042 = arith.mulf %1041, %878 : vector<16x128xf32>
    %1043 = arith.addf %1037, %1042 : vector<16x128xf32>
    %c256_628 = arith.constant 256 : index
    %c0_629 = arith.constant 0 : index
    %1044 = vector.load %arg2[%c256_628, %c0_629] : memref<672x128xf32, #tpu.memory_space<vmem>>, vector<16x128xf32>
    %1045 = arith.subf %3, %1044 : vector<16x128xf32>
    %c2496 = arith.constant 2496 : index
    %c0_630 = arith.constant 0 : index
    %1046 = vector.load %arg3[%c2496, %c0_630] : memref<2720x128xf32, #tpu.memory_space<vmem>>, vector<16x128xf32>
    %1047 = arith.mulf %1045, %1046 : vector<16x128xf32>
    %1048 = arith.mulf %1047, %878 : vector<16x128xf32>
    %c448_631 = arith.constant 448 : index
    %c0_632 = arith.constant 0 : index
    %1049 = vector.load %arg2[%c448_631, %c0_632] : memref<672x128xf32, #tpu.memory_space<vmem>>, vector<16x128xf32>
    %1050 = arith.subf %3, %1049 : vector<16x128xf32>
    %c2496_633 = arith.constant 2496 : index
    %c0_634 = arith.constant 0 : index
    %1051 = vector.load %arg4[%c2496_633, %c0_634] : memref<2720x128xf32, #tpu.memory_space<vmem>>, vector<16x128xf32>
    %1052 = arith.mulf %1050, %1051 : vector<16x128xf32>
    %1053 = arith.mulf %1052, %889 : vector<16x128xf32>
    %1054 = arith.addf %1048, %1053 : vector<16x128xf32>
    %c288_635 = arith.constant 288 : index
    %c0_636 = arith.constant 0 : index
    %1055 = vector.load %arg2[%c288_635, %c0_636] : memref<672x128xf32, #tpu.memory_space<vmem>>, vector<16x128xf32>
    %1056 = arith.subf %3, %1055 : vector<16x128xf32>
    %c2528 = arith.constant 2528 : index
    %c0_637 = arith.constant 0 : index
    %1057 = vector.load %arg3[%c2528, %c0_637] : memref<2720x128xf32, #tpu.memory_space<vmem>>, vector<16x128xf32>
    %1058 = arith.mulf %1056, %1057 : vector<16x128xf32>
    %1059 = arith.mulf %1058, %889 : vector<16x128xf32>
    %c480_638 = arith.constant 480 : index
    %c0_639 = arith.constant 0 : index
    %1060 = vector.load %arg2[%c480_638, %c0_639] : memref<672x128xf32, #tpu.memory_space<vmem>>, vector<16x128xf32>
    %1061 = arith.subf %3, %1060 : vector<16x128xf32>
    %c2528_640 = arith.constant 2528 : index
    %c0_641 = arith.constant 0 : index
    %1062 = vector.load %arg4[%c2528_640, %c0_641] : memref<2720x128xf32, #tpu.memory_space<vmem>>, vector<16x128xf32>
    %1063 = arith.mulf %1061, %1062 : vector<16x128xf32>
    %1064 = arith.mulf %1063, %900 : vector<16x128xf32>
    %1065 = arith.addf %1059, %1064 : vector<16x128xf32>
    %c320_642 = arith.constant 320 : index
    %c0_643 = arith.constant 0 : index
    %1066 = vector.load %arg2[%c320_642, %c0_643] : memref<672x128xf32, #tpu.memory_space<vmem>>, vector<16x128xf32>
    %1067 = arith.subf %3, %1066 : vector<16x128xf32>
    %c2560 = arith.constant 2560 : index
    %c0_644 = arith.constant 0 : index
    %1068 = vector.load %arg3[%c2560, %c0_644] : memref<2720x128xf32, #tpu.memory_space<vmem>>, vector<16x128xf32>
    %1069 = arith.mulf %1067, %1068 : vector<16x128xf32>
    %1070 = arith.mulf %1069, %900 : vector<16x128xf32>
    %c512_645 = arith.constant 512 : index
    %c0_646 = arith.constant 0 : index
    %1071 = vector.load %arg2[%c512_645, %c0_646] : memref<672x128xf32, #tpu.memory_space<vmem>>, vector<16x128xf32>
    %1072 = arith.subf %3, %1071 : vector<16x128xf32>
    %c2560_647 = arith.constant 2560 : index
    %c0_648 = arith.constant 0 : index
    %1073 = vector.load %arg4[%c2560_647, %c0_648] : memref<2720x128xf32, #tpu.memory_space<vmem>>, vector<16x128xf32>
    %1074 = arith.mulf %1072, %1073 : vector<16x128xf32>
    %1075 = arith.mulf %1074, %911 : vector<16x128xf32>
    %1076 = arith.addf %1070, %1075 : vector<16x128xf32>
    %c352_649 = arith.constant 352 : index
    %c0_650 = arith.constant 0 : index
    %1077 = vector.load %arg2[%c352_649, %c0_650] : memref<672x128xf32, #tpu.memory_space<vmem>>, vector<16x128xf32>
    %1078 = arith.subf %3, %1077 : vector<16x128xf32>
    %c2592 = arith.constant 2592 : index
    %c0_651 = arith.constant 0 : index
    %1079 = vector.load %arg3[%c2592, %c0_651] : memref<2720x128xf32, #tpu.memory_space<vmem>>, vector<16x128xf32>
    %1080 = arith.mulf %1078, %1079 : vector<16x128xf32>
    %1081 = arith.mulf %1080, %911 : vector<16x128xf32>
    %c544_652 = arith.constant 544 : index
    %c0_653 = arith.constant 0 : index
    %1082 = vector.load %arg2[%c544_652, %c0_653] : memref<672x128xf32, #tpu.memory_space<vmem>>, vector<16x128xf32>
    %1083 = arith.subf %3, %1082 : vector<16x128xf32>
    %c2592_654 = arith.constant 2592 : index
    %c0_655 = arith.constant 0 : index
    %1084 = vector.load %arg4[%c2592_654, %c0_655] : memref<2720x128xf32, #tpu.memory_space<vmem>>, vector<16x128xf32>
    %1085 = arith.mulf %1083, %1084 : vector<16x128xf32>
    %1086 = arith.mulf %1085, %922 : vector<16x128xf32>
    %1087 = arith.addf %1081, %1086 : vector<16x128xf32>
    %c384_656 = arith.constant 384 : index
    %c0_657 = arith.constant 0 : index
    %1088 = vector.load %arg2[%c384_656, %c0_657] : memref<672x128xf32, #tpu.memory_space<vmem>>, vector<16x128xf32>
    %1089 = arith.subf %3, %1088 : vector<16x128xf32>
    %c2624 = arith.constant 2624 : index
    %c0_658 = arith.constant 0 : index
    %1090 = vector.load %arg3[%c2624, %c0_658] : memref<2720x128xf32, #tpu.memory_space<vmem>>, vector<16x128xf32>
    %1091 = arith.mulf %1089, %1090 : vector<16x128xf32>
    %1092 = arith.mulf %1091, %922 : vector<16x128xf32>
    %c576_659 = arith.constant 576 : index
    %c0_660 = arith.constant 0 : index
    %1093 = vector.load %arg2[%c576_659, %c0_660] : memref<672x128xf32, #tpu.memory_space<vmem>>, vector<16x128xf32>
    %1094 = arith.subf %3, %1093 : vector<16x128xf32>
    %c2624_661 = arith.constant 2624 : index
    %c0_662 = arith.constant 0 : index
    %1095 = vector.load %arg4[%c2624_661, %c0_662] : memref<2720x128xf32, #tpu.memory_space<vmem>>, vector<16x128xf32>
    %1096 = arith.mulf %1094, %1095 : vector<16x128xf32>
    %1097 = arith.mulf %1096, %933 : vector<16x128xf32>
    %1098 = arith.addf %1092, %1097 : vector<16x128xf32>
    %c416_663 = arith.constant 416 : index
    %c0_664 = arith.constant 0 : index
    %1099 = vector.load %arg2[%c416_663, %c0_664] : memref<672x128xf32, #tpu.memory_space<vmem>>, vector<16x128xf32>
    %1100 = arith.subf %3, %1099 : vector<16x128xf32>
    %c2656 = arith.constant 2656 : index
    %c0_665 = arith.constant 0 : index
    %1101 = vector.load %arg3[%c2656, %c0_665] : memref<2720x128xf32, #tpu.memory_space<vmem>>, vector<16x128xf32>
    %1102 = arith.mulf %1100, %1101 : vector<16x128xf32>
    %1103 = arith.mulf %1102, %933 : vector<16x128xf32>
    %c608_666 = arith.constant 608 : index
    %c0_667 = arith.constant 0 : index
    %1104 = vector.load %arg2[%c608_666, %c0_667] : memref<672x128xf32, #tpu.memory_space<vmem>>, vector<16x128xf32>
    %1105 = arith.subf %3, %1104 : vector<16x128xf32>
    %c2656_668 = arith.constant 2656 : index
    %c0_669 = arith.constant 0 : index
    %1106 = vector.load %arg4[%c2656_668, %c0_669] : memref<2720x128xf32, #tpu.memory_space<vmem>>, vector<16x128xf32>
    %1107 = arith.mulf %1105, %1106 : vector<16x128xf32>
    %1108 = arith.mulf %1107, %944 : vector<16x128xf32>
    %1109 = arith.addf %1103, %1108 : vector<16x128xf32>
    %c448_670 = arith.constant 448 : index
    %c0_671 = arith.constant 0 : index
    %1110 = vector.load %arg2[%c448_670, %c0_671] : memref<672x128xf32, #tpu.memory_space<vmem>>, vector<16x128xf32>
    %1111 = arith.subf %3, %1110 : vector<16x128xf32>
    %c2688 = arith.constant 2688 : index
    %c0_672 = arith.constant 0 : index
    %1112 = vector.load %arg3[%c2688, %c0_672] : memref<2720x128xf32, #tpu.memory_space<vmem>>, vector<16x128xf32>
    %1113 = arith.mulf %1111, %1112 : vector<16x128xf32>
    %1114 = arith.mulf %1113, %944 : vector<16x128xf32>
    %c640_673 = arith.constant 640 : index
    %c0_674 = arith.constant 0 : index
    %1115 = vector.load %arg2[%c640_673, %c0_674] : memref<672x128xf32, #tpu.memory_space<vmem>>, vector<16x128xf32>
    %1116 = arith.subf %3, %1115 : vector<16x128xf32>
    %c2688_675 = arith.constant 2688 : index
    %c0_676 = arith.constant 0 : index
    %1117 = vector.load %arg4[%c2688_675, %c0_676] : memref<2720x128xf32, #tpu.memory_space<vmem>>, vector<16x128xf32>
    %1118 = arith.mulf %1116, %1117 : vector<16x128xf32>
    %1119 = arith.mulf %1118, %955 : vector<16x128xf32>
    %1120 = arith.addf %1114, %1119 : vector<16x128xf32>
    %1121 = arith.negf %3 : vector<16x128xf32>
    %1122 = math.exp %1121 : vector<16x128xf32>
    %cst_677 = arith.constant 1.000000e+00 : f32
    %1123 = vector.broadcast %cst_677 : f32 to vector<16x128xf32>
    %1124 = arith.addf %1123, %1122 : vector<16x128xf32>
    %1125 = arith.divf %1123, %1124 : vector<16x128xf32>
    %1126 = arith.mulf %3, %1125 : vector<16x128xf32>
    %c0_678 = arith.constant 0 : index
    %1127 = arith.index_cast %1 : i32 to index
    %1128 = vector.load %arg7[%c0_678, %1127] : memref<512x128xf32, #tpu.memory_space<vmem>>, vector<16x128xf32>
    tpu.vector_store %arg7[%c0_678, %1127], %1126 {strides = array<i32>} : memref<512x128xf32, #tpu.memory_space<vmem>>, vector<16x128xf32>,
    %c32_679 = arith.constant 32 : index
    %1129 = arith.index_cast %1 : i32 to index
    %1130 = vector.load %arg7[%c32_679, %1129] : memref<512x128xf32, #tpu.memory_space<vmem>>, vector<16x128xf32>
    tpu.vector_store %arg7[%c32_679, %1129], %966 {strides = array<i32>} : memref<512x128xf32, #tpu.memory_space<vmem>>, vector<16x128xf32>,
    %c64_680 = arith.constant 64 : index
    %1131 = arith.index_cast %1 : i32 to index
    %1132 = vector.load %arg7[%c64_680, %1131] : memref<512x128xf32, #tpu.memory_space<vmem>>, vector<16x128xf32>
    tpu.vector_store %arg7[%c64_680, %1131], %977 {strides = array<i32>} : memref<512x128xf32, #tpu.memory_space<vmem>>, vector<16x128xf32>,
    %c96_681 = arith.constant 96 : index
    %1133 = arith.index_cast %1 : i32 to index
    %1134 = vector.load %arg7[%c96_681, %1133] : memref<512x128xf32, #tpu.memory_space<vmem>>, vector<16x128xf32>
    tpu.vector_store %arg7[%c96_681, %1133], %988 {strides = array<i32>} : memref<512x128xf32, #tpu.memory_space<vmem>>, vector<16x128xf32>,
    %c128_682 = arith.constant 128 : index
    %1135 = arith.index_cast %1 : i32 to index
    %1136 = vector.load %arg7[%c128_682, %1135] : memref<512x128xf32, #tpu.memory_space<vmem>>, vector<16x128xf32>
    tpu.vector_store %arg7[%c128_682, %1135], %999 {strides = array<i32>} : memref<512x128xf32, #tpu.memory_space<vmem>>, vector<16x128xf32>,
    %c160_683 = arith.constant 160 : index
    %1137 = arith.index_cast %1 : i32 to index
    %1138 = vector.load %arg7[%c160_683, %1137] : memref<512x128xf32, #tpu.memory_space<vmem>>, vector<16x128xf32>
    tpu.vector_store %arg7[%c160_683, %1137], %1010 {strides = array<i32>} : memref<512x128xf32, #tpu.memory_space<vmem>>, vector<16x128xf32>,
    %c192_684 = arith.constant 192 : index
    %1139 = arith.index_cast %1 : i32 to index
    %1140 = vector.load %arg7[%c192_684, %1139] : memref<512x128xf32, #tpu.memory_space<vmem>>, vector<16x128xf32>
    tpu.vector_store %arg7[%c192_684, %1139], %1021 {strides = array<i32>} : memref<512x128xf32, #tpu.memory_space<vmem>>, vector<16x128xf32>,
    %c224_685 = arith.constant 224 : index
    %1141 = arith.index_cast %1 : i32 to index
    %1142 = vector.load %arg7[%c224_685, %1141] : memref<512x128xf32, #tpu.memory_space<vmem>>, vector<16x128xf32>
    tpu.vector_store %arg7[%c224_685, %1141], %1032 {strides = array<i32>} : memref<512x128xf32, #tpu.memory_space<vmem>>, vector<16x128xf32>,
    %c256_686 = arith.constant 256 : index
    %1143 = arith.index_cast %1 : i32 to index
    %1144 = vector.load %arg7[%c256_686, %1143] : memref<512x128xf32, #tpu.memory_space<vmem>>, vector<16x128xf32>
    tpu.vector_store %arg7[%c256_686, %1143], %1043 {strides = array<i32>} : memref<512x128xf32, #tpu.memory_space<vmem>>, vector<16x128xf32>,
    %c288_687 = arith.constant 288 : index
    %1145 = arith.index_cast %1 : i32 to index
    %1146 = vector.load %arg7[%c288_687, %1145] : memref<512x128xf32, #tpu.memory_space<vmem>>, vector<16x128xf32>
    tpu.vector_store %arg7[%c288_687, %1145], %1054 {strides = array<i32>} : memref<512x128xf32, #tpu.memory_space<vmem>>, vector<16x128xf32>,
    %c320_688 = arith.constant 320 : index
    %1147 = arith.index_cast %1 : i32 to index
    %1148 = vector.load %arg7[%c320_688, %1147] : memref<512x128xf32, #tpu.memory_space<vmem>>, vector<16x128xf32>
    tpu.vector_store %arg7[%c320_688, %1147], %1065 {strides = array<i32>} : memref<512x128xf32, #tpu.memory_space<vmem>>, vector<16x128xf32>,
    %c352_689 = arith.constant 352 : index
    %1149 = arith.index_cast %1 : i32 to index
    %1150 = vector.load %arg7[%c352_689, %1149] : memref<512x128xf32, #tpu.memory_space<vmem>>, vector<16x128xf32>
    tpu.vector_store %arg7[%c352_689, %1149], %1076 {strides = array<i32>} : memref<512x128xf32, #tpu.memory_space<vmem>>, vector<16x128xf32>,
    %c384_690 = arith.constant 384 : index
    %1151 = arith.index_cast %1 : i32 to index
    %1152 = vector.load %arg7[%c384_690, %1151] : memref<512x128xf32, #tpu.memory_space<vmem>>, vector<16x128xf32>
    tpu.vector_store %arg7[%c384_690, %1151], %1087 {strides = array<i32>} : memref<512x128xf32, #tpu.memory_space<vmem>>, vector<16x128xf32>,
    %c416_691 = arith.constant 416 : index
    %1153 = arith.index_cast %1 : i32 to index
    %1154 = vector.load %arg7[%c416_691, %1153] : memref<512x128xf32, #tpu.memory_space<vmem>>, vector<16x128xf32>
    tpu.vector_store %arg7[%c416_691, %1153], %1098 {strides = array<i32>} : memref<512x128xf32, #tpu.memory_space<vmem>>, vector<16x128xf32>,
    %c448_692 = arith.constant 448 : index
    %1155 = arith.index_cast %1 : i32 to index
    %1156 = vector.load %arg7[%c448_692, %1155] : memref<512x128xf32, #tpu.memory_space<vmem>>, vector<16x128xf32>
    tpu.vector_store %arg7[%c448_692, %1155], %1109 {strides = array<i32>} : memref<512x128xf32, #tpu.memory_space<vmem>>, vector<16x128xf32>,
    %c480_693 = arith.constant 480 : index
    %1157 = arith.index_cast %1 : i32 to index
    %1158 = vector.load %arg7[%c480_693, %1157] : memref<512x128xf32, #tpu.memory_space<vmem>>, vector<16x128xf32>
    tpu.vector_store %arg7[%c480_693, %1157], %1120 {strides = array<i32>} : memref<512x128xf32, #tpu.memory_space<vmem>>, vector<16x128xf32>,
    %c16 = arith.constant 16 : index
    %1159 = arith.index_cast %1 : i32 to index
    %1160 = vector.load %arg1[%c16, %1159] : memref<32x128xf32, #tpu.memory_space<vmem>>, vector<16x128xf32>
    %c16_694 = arith.constant 16 : index
    %c0_695 = arith.constant 0 : index
    %1161 = vector.load %arg2[%c16_694, %c0_695] : memref<672x128xf32, #tpu.memory_space<vmem>>, vector<16x128xf32>
    %1162 = arith.subf %1160, %1161 : vector<16x128xf32>
    %c48 = arith.constant 48 : index
    %c0_696 = arith.constant 0 : index
    %1163 = vector.load %arg2[%c48, %c0_696] : memref<672x128xf32, #tpu.memory_space<vmem>>, vector<16x128xf32>
    %1164 = arith.subf %1160, %1163 : vector<16x128xf32>
    %cst_697 = arith.constant 0.000000e+00 : f32
    %1165 = vector.broadcast %cst_697 : f32 to vector<16x128xf32>
    %1166 = arith.cmpf oge, %1162, %1165 : vector<16x128xf32>
    %cst_698 = arith.constant 0.000000e+00 : f32
    %1167 = vector.broadcast %cst_698 : f32 to vector<16x128xf32>
    %1168 = arith.cmpf olt, %1164, %1167 : vector<16x128xf32>
    %1169 = arith.andi %1166, %1168 : vector<16x128xi1>
    %1170 = arith.extui %1169 : vector<16x128xi1> to vector<16x128xi32>
    %1171 = arith.sitofp %1170 : vector<16x128xi32> to vector<16x128xf32>
    %c80 = arith.constant 80 : index
    %c0_699 = arith.constant 0 : index
    %1172 = vector.load %arg2[%c80, %c0_699] : memref<672x128xf32, #tpu.memory_space<vmem>>, vector<16x128xf32>
    %1173 = arith.subf %1160, %1172 : vector<16x128xf32>
    %cst_700 = arith.constant 0.000000e+00 : f32
    %1174 = vector.broadcast %cst_700 : f32 to vector<16x128xf32>
    %1175 = arith.cmpf oge, %1164, %1174 : vector<16x128xf32>
    %cst_701 = arith.constant 0.000000e+00 : f32
    %1176 = vector.broadcast %cst_701 : f32 to vector<16x128xf32>
    %1177 = arith.cmpf olt, %1173, %1176 : vector<16x128xf32>
    %1178 = arith.andi %1175, %1177 : vector<16x128xi1>
    %1179 = arith.extui %1178 : vector<16x128xi1> to vector<16x128xi32>
    %1180 = arith.sitofp %1179 : vector<16x128xi32> to vector<16x128xf32>
    %c112 = arith.constant 112 : index
    %c0_702 = arith.constant 0 : index
    %1181 = vector.load %arg2[%c112, %c0_702] : memref<672x128xf32, #tpu.memory_space<vmem>>, vector<16x128xf32>
    %1182 = arith.subf %1160, %1181 : vector<16x128xf32>
    %cst_703 = arith.constant 0.000000e+00 : f32
    %1183 = vector.broadcast %cst_703 : f32 to vector<16x128xf32>
    %1184 = arith.cmpf oge, %1173, %1183 : vector<16x128xf32>
    %cst_704 = arith.constant 0.000000e+00 : f32
    %1185 = vector.broadcast %cst_704 : f32 to vector<16x128xf32>
    %1186 = arith.cmpf olt, %1182, %1185 : vector<16x128xf32>
    %1187 = arith.andi %1184, %1186 : vector<16x128xi1>
    %1188 = arith.extui %1187 : vector<16x128xi1> to vector<16x128xi32>
    %1189 = arith.sitofp %1188 : vector<16x128xi32> to vector<16x128xf32>
    %c144 = arith.constant 144 : index
    %c0_705 = arith.constant 0 : index
    %1190 = vector.load %arg2[%c144, %c0_705] : memref<672x128xf32, #tpu.memory_space<vmem>>, vector<16x128xf32>
    %1191 = arith.subf %1160, %1190 : vector<16x128xf32>
    %cst_706 = arith.constant 0.000000e+00 : f32
    %1192 = vector.broadcast %cst_706 : f32 to vector<16x128xf32>
    %1193 = arith.cmpf oge, %1182, %1192 : vector<16x128xf32>
    %cst_707 = arith.constant 0.000000e+00 : f32
    %1194 = vector.broadcast %cst_707 : f32 to vector<16x128xf32>
    %1195 = arith.cmpf olt, %1191, %1194 : vector<16x128xf32>
    %1196 = arith.andi %1193, %1195 : vector<16x128xi1>
    %1197 = arith.extui %1196 : vector<16x128xi1> to vector<16x128xi32>
    %1198 = arith.sitofp %1197 : vector<16x128xi32> to vector<16x128xf32>
    %c176 = arith.constant 176 : index
    %c0_708 = arith.constant 0 : index
    %1199 = vector.load %arg2[%c176, %c0_708] : memref<672x128xf32, #tpu.memory_space<vmem>>, vector<16x128xf32>
    %1200 = arith.subf %1160, %1199 : vector<16x128xf32>
    %cst_709 = arith.constant 0.000000e+00 : f32
    %1201 = vector.broadcast %cst_709 : f32 to vector<16x128xf32>
    %1202 = arith.cmpf oge, %1191, %1201 : vector<16x128xf32>
    %cst_710 = arith.constant 0.000000e+00 : f32
    %1203 = vector.broadcast %cst_710 : f32 to vector<16x128xf32>
    %1204 = arith.cmpf olt, %1200, %1203 : vector<16x128xf32>
    %1205 = arith.andi %1202, %1204 : vector<16x128xi1>
    %1206 = arith.extui %1205 : vector<16x128xi1> to vector<16x128xi32>
    %1207 = arith.sitofp %1206 : vector<16x128xi32> to vector<16x128xf32>
    %c208 = arith.constant 208 : index
    %c0_711 = arith.constant 0 : index
    %1208 = vector.load %arg2[%c208, %c0_711] : memref<672x128xf32, #tpu.memory_space<vmem>>, vector<16x128xf32>
    %1209 = arith.subf %1160, %1208 : vector<16x128xf32>
    %cst_712 = arith.constant 0.000000e+00 : f32
    %1210 = vector.broadcast %cst_712 : f32 to vector<16x128xf32>
    %1211 = arith.cmpf oge, %1200, %1210 : vector<16x128xf32>
    %cst_713 = arith.constant 0.000000e+00 : f32
    %1212 = vector.broadcast %cst_713 : f32 to vector<16x128xf32>
    %1213 = arith.cmpf olt, %1209, %1212 : vector<16x128xf32>
    %1214 = arith.andi %1211, %1213 : vector<16x128xi1>
    %1215 = arith.extui %1214 : vector<16x128xi1> to vector<16x128xi32>
    %1216 = arith.sitofp %1215 : vector<16x128xi32> to vector<16x128xf32>
    %c240 = arith.constant 240 : index
    %c0_714 = arith.constant 0 : index
    %1217 = vector.load %arg2[%c240, %c0_714] : memref<672x128xf32, #tpu.memory_space<vmem>>, vector<16x128xf32>
    %1218 = arith.subf %1160, %1217 : vector<16x128xf32>
    %cst_715 = arith.constant 0.000000e+00 : f32
    %1219 = vector.broadcast %cst_715 : f32 to vector<16x128xf32>
    %1220 = arith.cmpf oge, %1209, %1219 : vector<16x128xf32>
    %cst_716 = arith.constant 0.000000e+00 : f32
    %1221 = vector.broadcast %cst_716 : f32 to vector<16x128xf32>
    %1222 = arith.cmpf olt, %1218, %1221 : vector<16x128xf32>
    %1223 = arith.andi %1220, %1222 : vector<16x128xi1>
    %1224 = arith.extui %1223 : vector<16x128xi1> to vector<16x128xi32>
    %1225 = arith.sitofp %1224 : vector<16x128xi32> to vector<16x128xf32>
    %c272 = arith.constant 272 : index
    %c0_717 = arith.constant 0 : index
    %1226 = vector.load %arg2[%c272, %c0_717] : memref<672x128xf32, #tpu.memory_space<vmem>>, vector<16x128xf32>
    %1227 = arith.subf %1160, %1226 : vector<16x128xf32>
    %cst_718 = arith.constant 0.000000e+00 : f32
    %1228 = vector.broadcast %cst_718 : f32 to vector<16x128xf32>
    %1229 = arith.cmpf oge, %1218, %1228 : vector<16x128xf32>
    %cst_719 = arith.constant 0.000000e+00 : f32
    %1230 = vector.broadcast %cst_719 : f32 to vector<16x128xf32>
    %1231 = arith.cmpf olt, %1227, %1230 : vector<16x128xf32>
    %1232 = arith.andi %1229, %1231 : vector<16x128xi1>
    %1233 = arith.extui %1232 : vector<16x128xi1> to vector<16x128xi32>
    %1234 = arith.sitofp %1233 : vector<16x128xi32> to vector<16x128xf32>
    %c304 = arith.constant 304 : index
    %c0_720 = arith.constant 0 : index
    %1235 = vector.load %arg2[%c304, %c0_720] : memref<672x128xf32, #tpu.memory_space<vmem>>, vector<16x128xf32>
    %1236 = arith.subf %1160, %1235 : vector<16x128xf32>
    %cst_721 = arith.constant 0.000000e+00 : f32
    %1237 = vector.broadcast %cst_721 : f32 to vector<16x128xf32>
    %1238 = arith.cmpf oge, %1227, %1237 : vector<16x128xf32>
    %cst_722 = arith.constant 0.000000e+00 : f32
    %1239 = vector.broadcast %cst_722 : f32 to vector<16x128xf32>
    %1240 = arith.cmpf olt, %1236, %1239 : vector<16x128xf32>
    %1241 = arith.andi %1238, %1240 : vector<16x128xi1>
    %1242 = arith.extui %1241 : vector<16x128xi1> to vector<16x128xi32>
    %1243 = arith.sitofp %1242 : vector<16x128xi32> to vector<16x128xf32>
    %c336 = arith.constant 336 : index
    %c0_723 = arith.constant 0 : index
    %1244 = vector.load %arg2[%c336, %c0_723] : memref<672x128xf32, #tpu.memory_space<vmem>>, vector<16x128xf32>
    %1245 = arith.subf %1160, %1244 : vector<16x128xf32>
    %cst_724 = arith.constant 0.000000e+00 : f32
    %1246 = vector.broadcast %cst_724 : f32 to vector<16x128xf32>
    %1247 = arith.cmpf oge, %1236, %1246 : vector<16x128xf32>
    %cst_725 = arith.constant 0.000000e+00 : f32
    %1248 = vector.broadcast %cst_725 : f32 to vector<16x128xf32>
    %1249 = arith.cmpf olt, %1245, %1248 : vector<16x128xf32>
    %1250 = arith.andi %1247, %1249 : vector<16x128xi1>
    %1251 = arith.extui %1250 : vector<16x128xi1> to vector<16x128xi32>
    %1252 = arith.sitofp %1251 : vector<16x128xi32> to vector<16x128xf32>
    %c368 = arith.constant 368 : index
    %c0_726 = arith.constant 0 : index
    %1253 = vector.load %arg2[%c368, %c0_726] : memref<672x128xf32, #tpu.memory_space<vmem>>, vector<16x128xf32>
    %1254 = arith.subf %1160, %1253 : vector<16x128xf32>
    %cst_727 = arith.constant 0.000000e+00 : f32
    %1255 = vector.broadcast %cst_727 : f32 to vector<16x128xf32>
    %1256 = arith.cmpf oge, %1245, %1255 : vector<16x128xf32>
    %cst_728 = arith.constant 0.000000e+00 : f32
    %1257 = vector.broadcast %cst_728 : f32 to vector<16x128xf32>
    %1258 = arith.cmpf olt, %1254, %1257 : vector<16x128xf32>
    %1259 = arith.andi %1256, %1258 : vector<16x128xi1>
    %1260 = arith.extui %1259 : vector<16x128xi1> to vector<16x128xi32>
    %1261 = arith.sitofp %1260 : vector<16x128xi32> to vector<16x128xf32>
    %c400 = arith.constant 400 : index
    %c0_729 = arith.constant 0 : index
    %1262 = vector.load %arg2[%c400, %c0_729] : memref<672x128xf32, #tpu.memory_space<vmem>>, vector<16x128xf32>
    %1263 = arith.subf %1160, %1262 : vector<16x128xf32>
    %cst_730 = arith.constant 0.000000e+00 : f32
    %1264 = vector.broadcast %cst_730 : f32 to vector<16x128xf32>
    %1265 = arith.cmpf oge, %1254, %1264 : vector<16x128xf32>
    %cst_731 = arith.constant 0.000000e+00 : f32
    %1266 = vector.broadcast %cst_731 : f32 to vector<16x128xf32>
    %1267 = arith.cmpf olt, %1263, %1266 : vector<16x128xf32>
    %1268 = arith.andi %1265, %1267 : vector<16x128xi1>
    %1269 = arith.extui %1268 : vector<16x128xi1> to vector<16x128xi32>
    %1270 = arith.sitofp %1269 : vector<16x128xi32> to vector<16x128xf32>
    %c432 = arith.constant 432 : index
    %c0_732 = arith.constant 0 : index
    %1271 = vector.load %arg2[%c432, %c0_732] : memref<672x128xf32, #tpu.memory_space<vmem>>, vector<16x128xf32>
    %1272 = arith.subf %1160, %1271 : vector<16x128xf32>
    %cst_733 = arith.constant 0.000000e+00 : f32
    %1273 = vector.broadcast %cst_733 : f32 to vector<16x128xf32>
    %1274 = arith.cmpf oge, %1263, %1273 : vector<16x128xf32>
    %cst_734 = arith.constant 0.000000e+00 : f32
    %1275 = vector.broadcast %cst_734 : f32 to vector<16x128xf32>
    %1276 = arith.cmpf olt, %1272, %1275 : vector<16x128xf32>
    %1277 = arith.andi %1274, %1276 : vector<16x128xi1>
    %1278 = arith.extui %1277 : vector<16x128xi1> to vector<16x128xi32>
    %1279 = arith.sitofp %1278 : vector<16x128xi32> to vector<16x128xf32>
    %c464 = arith.constant 464 : index
    %c0_735 = arith.constant 0 : index
    %1280 = vector.load %arg2[%c464, %c0_735] : memref<672x128xf32, #tpu.memory_space<vmem>>, vector<16x128xf32>
    %1281 = arith.subf %1160, %1280 : vector<16x128xf32>
    %cst_736 = arith.constant 0.000000e+00 : f32
    %1282 = vector.broadcast %cst_736 : f32 to vector<16x128xf32>
    %1283 = arith.cmpf oge, %1272, %1282 : vector<16x128xf32>
    %cst_737 = arith.constant 0.000000e+00 : f32
    %1284 = vector.broadcast %cst_737 : f32 to vector<16x128xf32>
    %1285 = arith.cmpf olt, %1281, %1284 : vector<16x128xf32>
    %1286 = arith.andi %1283, %1285 : vector<16x128xi1>
    %1287 = arith.extui %1286 : vector<16x128xi1> to vector<16x128xi32>
    %1288 = arith.sitofp %1287 : vector<16x128xi32> to vector<16x128xf32>
    %c496 = arith.constant 496 : index
    %c0_738 = arith.constant 0 : index
    %1289 = vector.load %arg2[%c496, %c0_738] : memref<672x128xf32, #tpu.memory_space<vmem>>, vector<16x128xf32>
    %1290 = arith.subf %1160, %1289 : vector<16x128xf32>
    %cst_739 = arith.constant 0.000000e+00 : f32
    %1291 = vector.broadcast %cst_739 : f32 to vector<16x128xf32>
    %1292 = arith.cmpf oge, %1281, %1291 : vector<16x128xf32>
    %cst_740 = arith.constant 0.000000e+00 : f32
    %1293 = vector.broadcast %cst_740 : f32 to vector<16x128xf32>
    %1294 = arith.cmpf olt, %1290, %1293 : vector<16x128xf32>
    %1295 = arith.andi %1292, %1294 : vector<16x128xi1>
    %1296 = arith.extui %1295 : vector<16x128xi1> to vector<16x128xi32>
    %1297 = arith.sitofp %1296 : vector<16x128xi32> to vector<16x128xf32>
    %c528 = arith.constant 528 : index
    %c0_741 = arith.constant 0 : index
    %1298 = vector.load %arg2[%c528, %c0_741] : memref<672x128xf32, #tpu.memory_space<vmem>>, vector<16x128xf32>
    %1299 = arith.subf %1160, %1298 : vector<16x128xf32>
    %cst_742 = arith.constant 0.000000e+00 : f32
    %1300 = vector.broadcast %cst_742 : f32 to vector<16x128xf32>
    %1301 = arith.cmpf oge, %1290, %1300 : vector<16x128xf32>
    %cst_743 = arith.constant 0.000000e+00 : f32
    %1302 = vector.broadcast %cst_743 : f32 to vector<16x128xf32>
    %1303 = arith.cmpf olt, %1299, %1302 : vector<16x128xf32>
    %1304 = arith.andi %1301, %1303 : vector<16x128xi1>
    %1305 = arith.extui %1304 : vector<16x128xi1> to vector<16x128xi32>
    %1306 = arith.sitofp %1305 : vector<16x128xi32> to vector<16x128xf32>
    %c560 = arith.constant 560 : index
    %c0_744 = arith.constant 0 : index
    %1307 = vector.load %arg2[%c560, %c0_744] : memref<672x128xf32, #tpu.memory_space<vmem>>, vector<16x128xf32>
    %1308 = arith.subf %1160, %1307 : vector<16x128xf32>
    %cst_745 = arith.constant 0.000000e+00 : f32
    %1309 = vector.broadcast %cst_745 : f32 to vector<16x128xf32>
    %1310 = arith.cmpf oge, %1299, %1309 : vector<16x128xf32>
    %cst_746 = arith.constant 0.000000e+00 : f32
    %1311 = vector.broadcast %cst_746 : f32 to vector<16x128xf32>
    %1312 = arith.cmpf olt, %1308, %1311 : vector<16x128xf32>
    %1313 = arith.andi %1310, %1312 : vector<16x128xi1>
    %1314 = arith.extui %1313 : vector<16x128xi1> to vector<16x128xi32>
    %1315 = arith.sitofp %1314 : vector<16x128xi32> to vector<16x128xf32>
    %c592 = arith.constant 592 : index
    %c0_747 = arith.constant 0 : index
    %1316 = vector.load %arg2[%c592, %c0_747] : memref<672x128xf32, #tpu.memory_space<vmem>>, vector<16x128xf32>
    %1317 = arith.subf %1160, %1316 : vector<16x128xf32>
    %cst_748 = arith.constant 0.000000e+00 : f32
    %1318 = vector.broadcast %cst_748 : f32 to vector<16x128xf32>
    %1319 = arith.cmpf oge, %1308, %1318 : vector<16x128xf32>
    %cst_749 = arith.constant 0.000000e+00 : f32
    %1320 = vector.broadcast %cst_749 : f32 to vector<16x128xf32>
    %1321 = arith.cmpf olt, %1317, %1320 : vector<16x128xf32>
    %1322 = arith.andi %1319, %1321 : vector<16x128xi1>
    %1323 = arith.extui %1322 : vector<16x128xi1> to vector<16x128xi32>
    %1324 = arith.sitofp %1323 : vector<16x128xi32> to vector<16x128xf32>
    %c624 = arith.constant 624 : index
    %c0_750 = arith.constant 0 : index
    %1325 = vector.load %arg2[%c624, %c0_750] : memref<672x128xf32, #tpu.memory_space<vmem>>, vector<16x128xf32>
    %1326 = arith.subf %1160, %1325 : vector<16x128xf32>
    %cst_751 = arith.constant 0.000000e+00 : f32
    %1327 = vector.broadcast %cst_751 : f32 to vector<16x128xf32>
    %1328 = arith.cmpf oge, %1317, %1327 : vector<16x128xf32>
    %cst_752 = arith.constant 0.000000e+00 : f32
    %1329 = vector.broadcast %cst_752 : f32 to vector<16x128xf32>
    %1330 = arith.cmpf olt, %1326, %1329 : vector<16x128xf32>
    %1331 = arith.andi %1328, %1330 : vector<16x128xi1>
    %1332 = arith.extui %1331 : vector<16x128xi1> to vector<16x128xi32>
    %1333 = arith.sitofp %1332 : vector<16x128xi32> to vector<16x128xf32>
    %c656 = arith.constant 656 : index
    %c0_753 = arith.constant 0 : index
    %1334 = vector.load %arg2[%c656, %c0_753] : memref<672x128xf32, #tpu.memory_space<vmem>>, vector<16x128xf32>
    %1335 = arith.subf %1160, %1334 : vector<16x128xf32>
    %cst_754 = arith.constant 0.000000e+00 : f32
    %1336 = vector.broadcast %cst_754 : f32 to vector<16x128xf32>
    %1337 = arith.cmpf oge, %1326, %1336 : vector<16x128xf32>
    %cst_755 = arith.constant 0.000000e+00 : f32
    %1338 = vector.broadcast %cst_755 : f32 to vector<16x128xf32>
    %1339 = arith.cmpf olt, %1335, %1338 : vector<16x128xf32>
    %1340 = arith.andi %1337, %1339 : vector<16x128xi1>
    %1341 = arith.extui %1340 : vector<16x128xi1> to vector<16x128xi32>
    %1342 = arith.sitofp %1341 : vector<16x128xi32> to vector<16x128xf32>
    %c16_756 = arith.constant 16 : index
    %c0_757 = arith.constant 0 : index
    %1343 = vector.load %arg2[%c16_756, %c0_757] : memref<672x128xf32, #tpu.memory_space<vmem>>, vector<16x128xf32>
    %1344 = arith.subf %1160, %1343 : vector<16x128xf32>
    %c16_758 = arith.constant 16 : index
    %c0_759 = arith.constant 0 : index
    %1345 = vector.load %arg3[%c16_758, %c0_759] : memref<2720x128xf32, #tpu.memory_space<vmem>>, vector<16x128xf32>
    %1346 = arith.mulf %1344, %1345 : vector<16x128xf32>
    %1347 = arith.mulf %1346, %1171 : vector<16x128xf32>
    %c80_760 = arith.constant 80 : index
    %c0_761 = arith.constant 0 : index
    %1348 = vector.load %arg2[%c80_760, %c0_761] : memref<672x128xf32, #tpu.memory_space<vmem>>, vector<16x128xf32>
    %1349 = arith.subf %1160, %1348 : vector<16x128xf32>
    %c16_762 = arith.constant 16 : index
    %c0_763 = arith.constant 0 : index
    %1350 = vector.load %arg4[%c16_762, %c0_763] : memref<2720x128xf32, #tpu.memory_space<vmem>>, vector<16x128xf32>
    %1351 = arith.mulf %1349, %1350 : vector<16x128xf32>
    %1352 = arith.mulf %1351, %1180 : vector<16x128xf32>
    %1353 = arith.addf %1347, %1352 : vector<16x128xf32>
    %c48_764 = arith.constant 48 : index
    %c0_765 = arith.constant 0 : index
    %1354 = vector.load %arg2[%c48_764, %c0_765] : memref<672x128xf32, #tpu.memory_space<vmem>>, vector<16x128xf32>
    %1355 = arith.subf %1160, %1354 : vector<16x128xf32>
    %c48_766 = arith.constant 48 : index
    %c0_767 = arith.constant 0 : index
    %1356 = vector.load %arg3[%c48_766, %c0_767] : memref<2720x128xf32, #tpu.memory_space<vmem>>, vector<16x128xf32>
    %1357 = arith.mulf %1355, %1356 : vector<16x128xf32>
    %1358 = arith.mulf %1357, %1180 : vector<16x128xf32>
    %c112_768 = arith.constant 112 : index
    %c0_769 = arith.constant 0 : index
    %1359 = vector.load %arg2[%c112_768, %c0_769] : memref<672x128xf32, #tpu.memory_space<vmem>>, vector<16x128xf32>
    %1360 = arith.subf %1160, %1359 : vector<16x128xf32>
    %c48_770 = arith.constant 48 : index
    %c0_771 = arith.constant 0 : index
    %1361 = vector.load %arg4[%c48_770, %c0_771] : memref<2720x128xf32, #tpu.memory_space<vmem>>, vector<16x128xf32>
    %1362 = arith.mulf %1360, %1361 : vector<16x128xf32>
    %1363 = arith.mulf %1362, %1189 : vector<16x128xf32>
    %1364 = arith.addf %1358, %1363 : vector<16x128xf32>
    %c80_772 = arith.constant 80 : index
    %c0_773 = arith.constant 0 : index
    %1365 = vector.load %arg2[%c80_772, %c0_773] : memref<672x128xf32, #tpu.memory_space<vmem>>, vector<16x128xf32>
    %1366 = arith.subf %1160, %1365 : vector<16x128xf32>
    %c80_774 = arith.constant 80 : index
    %c0_775 = arith.constant 0 : index
    %1367 = vector.load %arg3[%c80_774, %c0_775] : memref<2720x128xf32, #tpu.memory_space<vmem>>, vector<16x128xf32>
    %1368 = arith.mulf %1366, %1367 : vector<16x128xf32>
    %1369 = arith.mulf %1368, %1189 : vector<16x128xf32>
    %c144_776 = arith.constant 144 : index
    %c0_777 = arith.constant 0 : index
    %1370 = vector.load %arg2[%c144_776, %c0_777] : memref<672x128xf32, #tpu.memory_space<vmem>>, vector<16x128xf32>
    %1371 = arith.subf %1160, %1370 : vector<16x128xf32>
    %c80_778 = arith.constant 80 : index
    %c0_779 = arith.constant 0 : index
    %1372 = vector.load %arg4[%c80_778, %c0_779] : memref<2720x128xf32, #tpu.memory_space<vmem>>, vector<16x128xf32>
    %1373 = arith.mulf %1371, %1372 : vector<16x128xf32>
    %1374 = arith.mulf %1373, %1198 : vector<16x128xf32>
    %1375 = arith.addf %1369, %1374 : vector<16x128xf32>
    %c112_780 = arith.constant 112 : index
    %c0_781 = arith.constant 0 : index
    %1376 = vector.load %arg2[%c112_780, %c0_781] : memref<672x128xf32, #tpu.memory_space<vmem>>, vector<16x128xf32>
    %1377 = arith.subf %1160, %1376 : vector<16x128xf32>
    %c112_782 = arith.constant 112 : index
    %c0_783 = arith.constant 0 : index
    %1378 = vector.load %arg3[%c112_782, %c0_783] : memref<2720x128xf32, #tpu.memory_space<vmem>>, vector<16x128xf32>
    %1379 = arith.mulf %1377, %1378 : vector<16x128xf32>
    %1380 = arith.mulf %1379, %1198 : vector<16x128xf32>
    %c176_784 = arith.constant 176 : index
    %c0_785 = arith.constant 0 : index
    %1381 = vector.load %arg2[%c176_784, %c0_785] : memref<672x128xf32, #tpu.memory_space<vmem>>, vector<16x128xf32>
    %1382 = arith.subf %1160, %1381 : vector<16x128xf32>
    %c112_786 = arith.constant 112 : index
    %c0_787 = arith.constant 0 : index
    %1383 = vector.load %arg4[%c112_786, %c0_787] : memref<2720x128xf32, #tpu.memory_space<vmem>>, vector<16x128xf32>
    %1384 = arith.mulf %1382, %1383 : vector<16x128xf32>
    %1385 = arith.mulf %1384, %1207 : vector<16x128xf32>
    %1386 = arith.addf %1380, %1385 : vector<16x128xf32>
    %c144_788 = arith.constant 144 : index
    %c0_789 = arith.constant 0 : index
    %1387 = vector.load %arg2[%c144_788, %c0_789] : memref<672x128xf32, #tpu.memory_space<vmem>>, vector<16x128xf32>
    %1388 = arith.subf %1160, %1387 : vector<16x128xf32>
    %c144_790 = arith.constant 144 : index
    %c0_791 = arith.constant 0 : index
    %1389 = vector.load %arg3[%c144_790, %c0_791] : memref<2720x128xf32, #tpu.memory_space<vmem>>, vector<16x128xf32>
    %1390 = arith.mulf %1388, %1389 : vector<16x128xf32>
    %1391 = arith.mulf %1390, %1207 : vector<16x128xf32>
    %c208_792 = arith.constant 208 : index
    %c0_793 = arith.constant 0 : index
    %1392 = vector.load %arg2[%c208_792, %c0_793] : memref<672x128xf32, #tpu.memory_space<vmem>>, vector<16x128xf32>
    %1393 = arith.subf %1160, %1392 : vector<16x128xf32>
    %c144_794 = arith.constant 144 : index
    %c0_795 = arith.constant 0 : index
    %1394 = vector.load %arg4[%c144_794, %c0_795] : memref<2720x128xf32, #tpu.memory_space<vmem>>, vector<16x128xf32>
    %1395 = arith.mulf %1393, %1394 : vector<16x128xf32>
    %1396 = arith.mulf %1395, %1216 : vector<16x128xf32>
    %1397 = arith.addf %1391, %1396 : vector<16x128xf32>
    %c176_796 = arith.constant 176 : index
    %c0_797 = arith.constant 0 : index
    %1398 = vector.load %arg2[%c176_796, %c0_797] : memref<672x128xf32, #tpu.memory_space<vmem>>, vector<16x128xf32>
    %1399 = arith.subf %1160, %1398 : vector<16x128xf32>
    %c176_798 = arith.constant 176 : index
    %c0_799 = arith.constant 0 : index
    %1400 = vector.load %arg3[%c176_798, %c0_799] : memref<2720x128xf32, #tpu.memory_space<vmem>>, vector<16x128xf32>
    %1401 = arith.mulf %1399, %1400 : vector<16x128xf32>
    %1402 = arith.mulf %1401, %1216 : vector<16x128xf32>
    %c240_800 = arith.constant 240 : index
    %c0_801 = arith.constant 0 : index
    %1403 = vector.load %arg2[%c240_800, %c0_801] : memref<672x128xf32, #tpu.memory_space<vmem>>, vector<16x128xf32>
    %1404 = arith.subf %1160, %1403 : vector<16x128xf32>
    %c176_802 = arith.constant 176 : index
    %c0_803 = arith.constant 0 : index
    %1405 = vector.load %arg4[%c176_802, %c0_803] : memref<2720x128xf32, #tpu.memory_space<vmem>>, vector<16x128xf32>
    %1406 = arith.mulf %1404, %1405 : vector<16x128xf32>
    %1407 = arith.mulf %1406, %1225 : vector<16x128xf32>
    %1408 = arith.addf %1402, %1407 : vector<16x128xf32>
    %c208_804 = arith.constant 208 : index
    %c0_805 = arith.constant 0 : index
    %1409 = vector.load %arg2[%c208_804, %c0_805] : memref<672x128xf32, #tpu.memory_space<vmem>>, vector<16x128xf32>
    %1410 = arith.subf %1160, %1409 : vector<16x128xf32>
    %c208_806 = arith.constant 208 : index
    %c0_807 = arith.constant 0 : index
    %1411 = vector.load %arg3[%c208_806, %c0_807] : memref<2720x128xf32, #tpu.memory_space<vmem>>, vector<16x128xf32>
    %1412 = arith.mulf %1410, %1411 : vector<16x128xf32>
    %1413 = arith.mulf %1412, %1225 : vector<16x128xf32>
    %c272_808 = arith.constant 272 : index
    %c0_809 = arith.constant 0 : index
    %1414 = vector.load %arg2[%c272_808, %c0_809] : memref<672x128xf32, #tpu.memory_space<vmem>>, vector<16x128xf32>
    %1415 = arith.subf %1160, %1414 : vector<16x128xf32>
    %c208_810 = arith.constant 208 : index
    %c0_811 = arith.constant 0 : index
    %1416 = vector.load %arg4[%c208_810, %c0_811] : memref<2720x128xf32, #tpu.memory_space<vmem>>, vector<16x128xf32>
    %1417 = arith.mulf %1415, %1416 : vector<16x128xf32>
    %1418 = arith.mulf %1417, %1234 : vector<16x128xf32>
    %1419 = arith.addf %1413, %1418 : vector<16x128xf32>
    %c240_812 = arith.constant 240 : index
    %c0_813 = arith.constant 0 : index
    %1420 = vector.load %arg2[%c240_812, %c0_813] : memref<672x128xf32, #tpu.memory_space<vmem>>, vector<16x128xf32>
    %1421 = arith.subf %1160, %1420 : vector<16x128xf32>
    %c240_814 = arith.constant 240 : index
    %c0_815 = arith.constant 0 : index
    %1422 = vector.load %arg3[%c240_814, %c0_815] : memref<2720x128xf32, #tpu.memory_space<vmem>>, vector<16x128xf32>
    %1423 = arith.mulf %1421, %1422 : vector<16x128xf32>
    %1424 = arith.mulf %1423, %1234 : vector<16x128xf32>
    %c304_816 = arith.constant 304 : index
    %c0_817 = arith.constant 0 : index
    %1425 = vector.load %arg2[%c304_816, %c0_817] : memref<672x128xf32, #tpu.memory_space<vmem>>, vector<16x128xf32>
    %1426 = arith.subf %1160, %1425 : vector<16x128xf32>
    %c240_818 = arith.constant 240 : index
    %c0_819 = arith.constant 0 : index
    %1427 = vector.load %arg4[%c240_818, %c0_819] : memref<2720x128xf32, #tpu.memory_space<vmem>>, vector<16x128xf32>
    %1428 = arith.mulf %1426, %1427 : vector<16x128xf32>
    %1429 = arith.mulf %1428, %1243 : vector<16x128xf32>
    %1430 = arith.addf %1424, %1429 : vector<16x128xf32>
    %c272_820 = arith.constant 272 : index
    %c0_821 = arith.constant 0 : index
    %1431 = vector.load %arg2[%c272_820, %c0_821] : memref<672x128xf32, #tpu.memory_space<vmem>>, vector<16x128xf32>
    %1432 = arith.subf %1160, %1431 : vector<16x128xf32>
    %c272_822 = arith.constant 272 : index
    %c0_823 = arith.constant 0 : index
    %1433 = vector.load %arg3[%c272_822, %c0_823] : memref<2720x128xf32, #tpu.memory_space<vmem>>, vector<16x128xf32>
    %1434 = arith.mulf %1432, %1433 : vector<16x128xf32>
    %1435 = arith.mulf %1434, %1243 : vector<16x128xf32>
    %c336_824 = arith.constant 336 : index
    %c0_825 = arith.constant 0 : index
    %1436 = vector.load %arg2[%c336_824, %c0_825] : memref<672x128xf32, #tpu.memory_space<vmem>>, vector<16x128xf32>
    %1437 = arith.subf %1160, %1436 : vector<16x128xf32>
    %c272_826 = arith.constant 272 : index
    %c0_827 = arith.constant 0 : index
    %1438 = vector.load %arg4[%c272_826, %c0_827] : memref<2720x128xf32, #tpu.memory_space<vmem>>, vector<16x128xf32>
    %1439 = arith.mulf %1437, %1438 : vector<16x128xf32>
    %1440 = arith.mulf %1439, %1252 : vector<16x128xf32>
    %1441 = arith.addf %1435, %1440 : vector<16x128xf32>
    %c304_828 = arith.constant 304 : index
    %c0_829 = arith.constant 0 : index
    %1442 = vector.load %arg2[%c304_828, %c0_829] : memref<672x128xf32, #tpu.memory_space<vmem>>, vector<16x128xf32>
    %1443 = arith.subf %1160, %1442 : vector<16x128xf32>
    %c304_830 = arith.constant 304 : index
    %c0_831 = arith.constant 0 : index
    %1444 = vector.load %arg3[%c304_830, %c0_831] : memref<2720x128xf32, #tpu.memory_space<vmem>>, vector<16x128xf32>
    %1445 = arith.mulf %1443, %1444 : vector<16x128xf32>
    %1446 = arith.mulf %1445, %1252 : vector<16x128xf32>
    %c368_832 = arith.constant 368 : index
    %c0_833 = arith.constant 0 : index
    %1447 = vector.load %arg2[%c368_832, %c0_833] : memref<672x128xf32, #tpu.memory_space<vmem>>, vector<16x128xf32>
    %1448 = arith.subf %1160, %1447 : vector<16x128xf32>
    %c304_834 = arith.constant 304 : index
    %c0_835 = arith.constant 0 : index
    %1449 = vector.load %arg4[%c304_834, %c0_835] : memref<2720x128xf32, #tpu.memory_space<vmem>>, vector<16x128xf32>
    %1450 = arith.mulf %1448, %1449 : vector<16x128xf32>
    %1451 = arith.mulf %1450, %1261 : vector<16x128xf32>
    %1452 = arith.addf %1446, %1451 : vector<16x128xf32>
    %c336_836 = arith.constant 336 : index
    %c0_837 = arith.constant 0 : index
    %1453 = vector.load %arg2[%c336_836, %c0_837] : memref<672x128xf32, #tpu.memory_space<vmem>>, vector<16x128xf32>
    %1454 = arith.subf %1160, %1453 : vector<16x128xf32>
    %c336_838 = arith.constant 336 : index
    %c0_839 = arith.constant 0 : index
    %1455 = vector.load %arg3[%c336_838, %c0_839] : memref<2720x128xf32, #tpu.memory_space<vmem>>, vector<16x128xf32>
    %1456 = arith.mulf %1454, %1455 : vector<16x128xf32>
    %1457 = arith.mulf %1456, %1261 : vector<16x128xf32>
    %c400_840 = arith.constant 400 : index
    %c0_841 = arith.constant 0 : index
    %1458 = vector.load %arg2[%c400_840, %c0_841] : memref<672x128xf32, #tpu.memory_space<vmem>>, vector<16x128xf32>
    %1459 = arith.subf %1160, %1458 : vector<16x128xf32>
    %c336_842 = arith.constant 336 : index
    %c0_843 = arith.constant 0 : index
    %1460 = vector.load %arg4[%c336_842, %c0_843] : memref<2720x128xf32, #tpu.memory_space<vmem>>, vector<16x128xf32>
    %1461 = arith.mulf %1459, %1460 : vector<16x128xf32>
    %1462 = arith.mulf %1461, %1270 : vector<16x128xf32>
    %1463 = arith.addf %1457, %1462 : vector<16x128xf32>
    %c368_844 = arith.constant 368 : index
    %c0_845 = arith.constant 0 : index
    %1464 = vector.load %arg2[%c368_844, %c0_845] : memref<672x128xf32, #tpu.memory_space<vmem>>, vector<16x128xf32>
    %1465 = arith.subf %1160, %1464 : vector<16x128xf32>
    %c368_846 = arith.constant 368 : index
    %c0_847 = arith.constant 0 : index
    %1466 = vector.load %arg3[%c368_846, %c0_847] : memref<2720x128xf32, #tpu.memory_space<vmem>>, vector<16x128xf32>
    %1467 = arith.mulf %1465, %1466 : vector<16x128xf32>
    %1468 = arith.mulf %1467, %1270 : vector<16x128xf32>
    %c432_848 = arith.constant 432 : index
    %c0_849 = arith.constant 0 : index
    %1469 = vector.load %arg2[%c432_848, %c0_849] : memref<672x128xf32, #tpu.memory_space<vmem>>, vector<16x128xf32>
    %1470 = arith.subf %1160, %1469 : vector<16x128xf32>
    %c368_850 = arith.constant 368 : index
    %c0_851 = arith.constant 0 : index
    %1471 = vector.load %arg4[%c368_850, %c0_851] : memref<2720x128xf32, #tpu.memory_space<vmem>>, vector<16x128xf32>
    %1472 = arith.mulf %1470, %1471 : vector<16x128xf32>
    %1473 = arith.mulf %1472, %1279 : vector<16x128xf32>
    %1474 = arith.addf %1468, %1473 : vector<16x128xf32>
    %c400_852 = arith.constant 400 : index
    %c0_853 = arith.constant 0 : index
    %1475 = vector.load %arg2[%c400_852, %c0_853] : memref<672x128xf32, #tpu.memory_space<vmem>>, vector<16x128xf32>
    %1476 = arith.subf %1160, %1475 : vector<16x128xf32>
    %c400_854 = arith.constant 400 : index
    %c0_855 = arith.constant 0 : index
    %1477 = vector.load %arg3[%c400_854, %c0_855] : memref<2720x128xf32, #tpu.memory_space<vmem>>, vector<16x128xf32>
    %1478 = arith.mulf %1476, %1477 : vector<16x128xf32>
    %1479 = arith.mulf %1478, %1279 : vector<16x128xf32>
    %c464_856 = arith.constant 464 : index
    %c0_857 = arith.constant 0 : index
    %1480 = vector.load %arg2[%c464_856, %c0_857] : memref<672x128xf32, #tpu.memory_space<vmem>>, vector<16x128xf32>
    %1481 = arith.subf %1160, %1480 : vector<16x128xf32>
    %c400_858 = arith.constant 400 : index
    %c0_859 = arith.constant 0 : index
    %1482 = vector.load %arg4[%c400_858, %c0_859] : memref<2720x128xf32, #tpu.memory_space<vmem>>, vector<16x128xf32>
    %1483 = arith.mulf %1481, %1482 : vector<16x128xf32>
    %1484 = arith.mulf %1483, %1288 : vector<16x128xf32>
    %1485 = arith.addf %1479, %1484 : vector<16x128xf32>
    %c432_860 = arith.constant 432 : index
    %c0_861 = arith.constant 0 : index
    %1486 = vector.load %arg2[%c432_860, %c0_861] : memref<672x128xf32, #tpu.memory_space<vmem>>, vector<16x128xf32>
    %1487 = arith.subf %1160, %1486 : vector<16x128xf32>
    %c432_862 = arith.constant 432 : index
    %c0_863 = arith.constant 0 : index
    %1488 = vector.load %arg3[%c432_862, %c0_863] : memref<2720x128xf32, #tpu.memory_space<vmem>>, vector<16x128xf32>
    %1489 = arith.mulf %1487, %1488 : vector<16x128xf32>
    %1490 = arith.mulf %1489, %1288 : vector<16x128xf32>
    %c496_864 = arith.constant 496 : index
    %c0_865 = arith.constant 0 : index
    %1491 = vector.load %arg2[%c496_864, %c0_865] : memref<672x128xf32, #tpu.memory_space<vmem>>, vector<16x128xf32>
    %1492 = arith.subf %1160, %1491 : vector<16x128xf32>
    %c432_866 = arith.constant 432 : index
    %c0_867 = arith.constant 0 : index
    %1493 = vector.load %arg4[%c432_866, %c0_867] : memref<2720x128xf32, #tpu.memory_space<vmem>>, vector<16x128xf32>
    %1494 = arith.mulf %1492, %1493 : vector<16x128xf32>
    %1495 = arith.mulf %1494, %1297 : vector<16x128xf32>
    %1496 = arith.addf %1490, %1495 : vector<16x128xf32>
    %c464_868 = arith.constant 464 : index
    %c0_869 = arith.constant 0 : index
    %1497 = vector.load %arg2[%c464_868, %c0_869] : memref<672x128xf32, #tpu.memory_space<vmem>>, vector<16x128xf32>
    %1498 = arith.subf %1160, %1497 : vector<16x128xf32>
    %c464_870 = arith.constant 464 : index
    %c0_871 = arith.constant 0 : index
    %1499 = vector.load %arg3[%c464_870, %c0_871] : memref<2720x128xf32, #tpu.memory_space<vmem>>, vector<16x128xf32>
    %1500 = arith.mulf %1498, %1499 : vector<16x128xf32>
    %1501 = arith.mulf %1500, %1297 : vector<16x128xf32>
    %c528_872 = arith.constant 528 : index
    %c0_873 = arith.constant 0 : index
    %1502 = vector.load %arg2[%c528_872, %c0_873] : memref<672x128xf32, #tpu.memory_space<vmem>>, vector<16x128xf32>
    %1503 = arith.subf %1160, %1502 : vector<16x128xf32>
    %c464_874 = arith.constant 464 : index
    %c0_875 = arith.constant 0 : index
    %1504 = vector.load %arg4[%c464_874, %c0_875] : memref<2720x128xf32, #tpu.memory_space<vmem>>, vector<16x128xf32>
    %1505 = arith.mulf %1503, %1504 : vector<16x128xf32>
    %1506 = arith.mulf %1505, %1306 : vector<16x128xf32>
    %1507 = arith.addf %1501, %1506 : vector<16x128xf32>
    %c496_876 = arith.constant 496 : index
    %c0_877 = arith.constant 0 : index
    %1508 = vector.load %arg2[%c496_876, %c0_877] : memref<672x128xf32, #tpu.memory_space<vmem>>, vector<16x128xf32>
    %1509 = arith.subf %1160, %1508 : vector<16x128xf32>
    %c496_878 = arith.constant 496 : index
    %c0_879 = arith.constant 0 : index
    %1510 = vector.load %arg3[%c496_878, %c0_879] : memref<2720x128xf32, #tpu.memory_space<vmem>>, vector<16x128xf32>
    %1511 = arith.mulf %1509, %1510 : vector<16x128xf32>
    %1512 = arith.mulf %1511, %1306 : vector<16x128xf32>
    %c560_880 = arith.constant 560 : index
    %c0_881 = arith.constant 0 : index
    %1513 = vector.load %arg2[%c560_880, %c0_881] : memref<672x128xf32, #tpu.memory_space<vmem>>, vector<16x128xf32>
    %1514 = arith.subf %1160, %1513 : vector<16x128xf32>
    %c496_882 = arith.constant 496 : index
    %c0_883 = arith.constant 0 : index
    %1515 = vector.load %arg4[%c496_882, %c0_883] : memref<2720x128xf32, #tpu.memory_space<vmem>>, vector<16x128xf32>
    %1516 = arith.mulf %1514, %1515 : vector<16x128xf32>
    %1517 = arith.mulf %1516, %1315 : vector<16x128xf32>
    %1518 = arith.addf %1512, %1517 : vector<16x128xf32>
    %c528_884 = arith.constant 528 : index
    %c0_885 = arith.constant 0 : index
    %1519 = vector.load %arg2[%c528_884, %c0_885] : memref<672x128xf32, #tpu.memory_space<vmem>>, vector<16x128xf32>
    %1520 = arith.subf %1160, %1519 : vector<16x128xf32>
    %c528_886 = arith.constant 528 : index
    %c0_887 = arith.constant 0 : index
    %1521 = vector.load %arg3[%c528_886, %c0_887] : memref<2720x128xf32, #tpu.memory_space<vmem>>, vector<16x128xf32>
    %1522 = arith.mulf %1520, %1521 : vector<16x128xf32>
    %1523 = arith.mulf %1522, %1315 : vector<16x128xf32>
    %c592_888 = arith.constant 592 : index
    %c0_889 = arith.constant 0 : index
    %1524 = vector.load %arg2[%c592_888, %c0_889] : memref<672x128xf32, #tpu.memory_space<vmem>>, vector<16x128xf32>
    %1525 = arith.subf %1160, %1524 : vector<16x128xf32>
    %c528_890 = arith.constant 528 : index
    %c0_891 = arith.constant 0 : index
    %1526 = vector.load %arg4[%c528_890, %c0_891] : memref<2720x128xf32, #tpu.memory_space<vmem>>, vector<16x128xf32>
    %1527 = arith.mulf %1525, %1526 : vector<16x128xf32>
    %1528 = arith.mulf %1527, %1324 : vector<16x128xf32>
    %1529 = arith.addf %1523, %1528 : vector<16x128xf32>
    %c560_892 = arith.constant 560 : index
    %c0_893 = arith.constant 0 : index
    %1530 = vector.load %arg2[%c560_892, %c0_893] : memref<672x128xf32, #tpu.memory_space<vmem>>, vector<16x128xf32>
    %1531 = arith.subf %1160, %1530 : vector<16x128xf32>
    %c560_894 = arith.constant 560 : index
    %c0_895 = arith.constant 0 : index
    %1532 = vector.load %arg3[%c560_894, %c0_895] : memref<2720x128xf32, #tpu.memory_space<vmem>>, vector<16x128xf32>
    %1533 = arith.mulf %1531, %1532 : vector<16x128xf32>
    %1534 = arith.mulf %1533, %1324 : vector<16x128xf32>
    %c624_896 = arith.constant 624 : index
    %c0_897 = arith.constant 0 : index
    %1535 = vector.load %arg2[%c624_896, %c0_897] : memref<672x128xf32, #tpu.memory_space<vmem>>, vector<16x128xf32>
    %1536 = arith.subf %1160, %1535 : vector<16x128xf32>
    %c560_898 = arith.constant 560 : index
    %c0_899 = arith.constant 0 : index
    %1537 = vector.load %arg4[%c560_898, %c0_899] : memref<2720x128xf32, #tpu.memory_space<vmem>>, vector<16x128xf32>
    %1538 = arith.mulf %1536, %1537 : vector<16x128xf32>
    %1539 = arith.mulf %1538, %1333 : vector<16x128xf32>
    %1540 = arith.addf %1534, %1539 : vector<16x128xf32>
    %c592_900 = arith.constant 592 : index
    %c0_901 = arith.constant 0 : index
    %1541 = vector.load %arg2[%c592_900, %c0_901] : memref<672x128xf32, #tpu.memory_space<vmem>>, vector<16x128xf32>
    %1542 = arith.subf %1160, %1541 : vector<16x128xf32>
    %c592_902 = arith.constant 592 : index
    %c0_903 = arith.constant 0 : index
    %1543 = vector.load %arg3[%c592_902, %c0_903] : memref<2720x128xf32, #tpu.memory_space<vmem>>, vector<16x128xf32>
    %1544 = arith.mulf %1542, %1543 : vector<16x128xf32>
    %1545 = arith.mulf %1544, %1333 : vector<16x128xf32>
    %c656_904 = arith.constant 656 : index
    %c0_905 = arith.constant 0 : index
    %1546 = vector.load %arg2[%c656_904, %c0_905] : memref<672x128xf32, #tpu.memory_space<vmem>>, vector<16x128xf32>
    %1547 = arith.subf %1160, %1546 : vector<16x128xf32>
    %c592_906 = arith.constant 592 : index
    %c0_907 = arith.constant 0 : index
    %1548 = vector.load %arg4[%c592_906, %c0_907] : memref<2720x128xf32, #tpu.memory_space<vmem>>, vector<16x128xf32>
    %1549 = arith.mulf %1547, %1548 : vector<16x128xf32>
    %1550 = arith.mulf %1549, %1342 : vector<16x128xf32>
    %1551 = arith.addf %1545, %1550 : vector<16x128xf32>
    %c16_908 = arith.constant 16 : index
    %c0_909 = arith.constant 0 : index
    %1552 = vector.load %arg2[%c16_908, %c0_909] : memref<672x128xf32, #tpu.memory_space<vmem>>, vector<16x128xf32>
    %1553 = arith.subf %1160, %1552 : vector<16x128xf32>
    %c624_910 = arith.constant 624 : index
    %c0_911 = arith.constant 0 : index
    %1554 = vector.load %arg3[%c624_910, %c0_911] : memref<2720x128xf32, #tpu.memory_space<vmem>>, vector<16x128xf32>
    %1555 = arith.mulf %1553, %1554 : vector<16x128xf32>
    %1556 = arith.mulf %1555, %1353 : vector<16x128xf32>
    %c112_912 = arith.constant 112 : index
    %c0_913 = arith.constant 0 : index
    %1557 = vector.load %arg2[%c112_912, %c0_913] : memref<672x128xf32, #tpu.memory_space<vmem>>, vector<16x128xf32>
    %1558 = arith.subf %1160, %1557 : vector<16x128xf32>
    %c624_914 = arith.constant 624 : index
    %c0_915 = arith.constant 0 : index
    %1559 = vector.load %arg4[%c624_914, %c0_915] : memref<2720x128xf32, #tpu.memory_space<vmem>>, vector<16x128xf32>
    %1560 = arith.mulf %1558, %1559 : vector<16x128xf32>
    %1561 = arith.mulf %1560, %1364 : vector<16x128xf32>
    %1562 = arith.addf %1556, %1561 : vector<16x128xf32>
    %c48_916 = arith.constant 48 : index
    %c0_917 = arith.constant 0 : index
    %1563 = vector.load %arg2[%c48_916, %c0_917] : memref<672x128xf32, #tpu.memory_space<vmem>>, vector<16x128xf32>
    %1564 = arith.subf %1160, %1563 : vector<16x128xf32>
    %c656_918 = arith.constant 656 : index
    %c0_919 = arith.constant 0 : index
    %1565 = vector.load %arg3[%c656_918, %c0_919] : memref<2720x128xf32, #tpu.memory_space<vmem>>, vector<16x128xf32>
    %1566 = arith.mulf %1564, %1565 : vector<16x128xf32>
    %1567 = arith.mulf %1566, %1364 : vector<16x128xf32>
    %c144_920 = arith.constant 144 : index
    %c0_921 = arith.constant 0 : index
    %1568 = vector.load %arg2[%c144_920, %c0_921] : memref<672x128xf32, #tpu.memory_space<vmem>>, vector<16x128xf32>
    %1569 = arith.subf %1160, %1568 : vector<16x128xf32>
    %c656_922 = arith.constant 656 : index
    %c0_923 = arith.constant 0 : index
    %1570 = vector.load %arg4[%c656_922, %c0_923] : memref<2720x128xf32, #tpu.memory_space<vmem>>, vector<16x128xf32>
    %1571 = arith.mulf %1569, %1570 : vector<16x128xf32>
    %1572 = arith.mulf %1571, %1375 : vector<16x128xf32>
    %1573 = arith.addf %1567, %1572 : vector<16x128xf32>
    %c80_924 = arith.constant 80 : index
    %c0_925 = arith.constant 0 : index
    %1574 = vector.load %arg2[%c80_924, %c0_925] : memref<672x128xf32, #tpu.memory_space<vmem>>, vector<16x128xf32>
    %1575 = arith.subf %1160, %1574 : vector<16x128xf32>
    %c688 = arith.constant 688 : index
    %c0_926 = arith.constant 0 : index
    %1576 = vector.load %arg3[%c688, %c0_926] : memref<2720x128xf32, #tpu.memory_space<vmem>>, vector<16x128xf32>
    %1577 = arith.mulf %1575, %1576 : vector<16x128xf32>
    %1578 = arith.mulf %1577, %1375 : vector<16x128xf32>
    %c176_927 = arith.constant 176 : index
    %c0_928 = arith.constant 0 : index
    %1579 = vector.load %arg2[%c176_927, %c0_928] : memref<672x128xf32, #tpu.memory_space<vmem>>, vector<16x128xf32>
    %1580 = arith.subf %1160, %1579 : vector<16x128xf32>
    %c688_929 = arith.constant 688 : index
    %c0_930 = arith.constant 0 : index
    %1581 = vector.load %arg4[%c688_929, %c0_930] : memref<2720x128xf32, #tpu.memory_space<vmem>>, vector<16x128xf32>
    %1582 = arith.mulf %1580, %1581 : vector<16x128xf32>
    %1583 = arith.mulf %1582, %1386 : vector<16x128xf32>
    %1584 = arith.addf %1578, %1583 : vector<16x128xf32>
    %c112_931 = arith.constant 112 : index
    %c0_932 = arith.constant 0 : index
    %1585 = vector.load %arg2[%c112_931, %c0_932] : memref<672x128xf32, #tpu.memory_space<vmem>>, vector<16x128xf32>
    %1586 = arith.subf %1160, %1585 : vector<16x128xf32>
    %c720 = arith.constant 720 : index
    %c0_933 = arith.constant 0 : index
    %1587 = vector.load %arg3[%c720, %c0_933] : memref<2720x128xf32, #tpu.memory_space<vmem>>, vector<16x128xf32>
    %1588 = arith.mulf %1586, %1587 : vector<16x128xf32>
    %1589 = arith.mulf %1588, %1386 : vector<16x128xf32>
    %c208_934 = arith.constant 208 : index
    %c0_935 = arith.constant 0 : index
    %1590 = vector.load %arg2[%c208_934, %c0_935] : memref<672x128xf32, #tpu.memory_space<vmem>>, vector<16x128xf32>
    %1591 = arith.subf %1160, %1590 : vector<16x128xf32>
    %c720_936 = arith.constant 720 : index
    %c0_937 = arith.constant 0 : index
    %1592 = vector.load %arg4[%c720_936, %c0_937] : memref<2720x128xf32, #tpu.memory_space<vmem>>, vector<16x128xf32>
    %1593 = arith.mulf %1591, %1592 : vector<16x128xf32>
    %1594 = arith.mulf %1593, %1397 : vector<16x128xf32>
    %1595 = arith.addf %1589, %1594 : vector<16x128xf32>
    %c144_938 = arith.constant 144 : index
    %c0_939 = arith.constant 0 : index
    %1596 = vector.load %arg2[%c144_938, %c0_939] : memref<672x128xf32, #tpu.memory_space<vmem>>, vector<16x128xf32>
    %1597 = arith.subf %1160, %1596 : vector<16x128xf32>
    %c752 = arith.constant 752 : index
    %c0_940 = arith.constant 0 : index
    %1598 = vector.load %arg3[%c752, %c0_940] : memref<2720x128xf32, #tpu.memory_space<vmem>>, vector<16x128xf32>
    %1599 = arith.mulf %1597, %1598 : vector<16x128xf32>
    %1600 = arith.mulf %1599, %1397 : vector<16x128xf32>
    %c240_941 = arith.constant 240 : index
    %c0_942 = arith.constant 0 : index
    %1601 = vector.load %arg2[%c240_941, %c0_942] : memref<672x128xf32, #tpu.memory_space<vmem>>, vector<16x128xf32>
    %1602 = arith.subf %1160, %1601 : vector<16x128xf32>
    %c752_943 = arith.constant 752 : index
    %c0_944 = arith.constant 0 : index
    %1603 = vector.load %arg4[%c752_943, %c0_944] : memref<2720x128xf32, #tpu.memory_space<vmem>>, vector<16x128xf32>
    %1604 = arith.mulf %1602, %1603 : vector<16x128xf32>
    %1605 = arith.mulf %1604, %1408 : vector<16x128xf32>
    %1606 = arith.addf %1600, %1605 : vector<16x128xf32>
    %c176_945 = arith.constant 176 : index
    %c0_946 = arith.constant 0 : index
    %1607 = vector.load %arg2[%c176_945, %c0_946] : memref<672x128xf32, #tpu.memory_space<vmem>>, vector<16x128xf32>
    %1608 = arith.subf %1160, %1607 : vector<16x128xf32>
    %c784 = arith.constant 784 : index
    %c0_947 = arith.constant 0 : index
    %1609 = vector.load %arg3[%c784, %c0_947] : memref<2720x128xf32, #tpu.memory_space<vmem>>, vector<16x128xf32>
    %1610 = arith.mulf %1608, %1609 : vector<16x128xf32>
    %1611 = arith.mulf %1610, %1408 : vector<16x128xf32>
    %c272_948 = arith.constant 272 : index
    %c0_949 = arith.constant 0 : index
    %1612 = vector.load %arg2[%c272_948, %c0_949] : memref<672x128xf32, #tpu.memory_space<vmem>>, vector<16x128xf32>
    %1613 = arith.subf %1160, %1612 : vector<16x128xf32>
    %c784_950 = arith.constant 784 : index
    %c0_951 = arith.constant 0 : index
    %1614 = vector.load %arg4[%c784_950, %c0_951] : memref<2720x128xf32, #tpu.memory_space<vmem>>, vector<16x128xf32>
    %1615 = arith.mulf %1613, %1614 : vector<16x128xf32>
    %1616 = arith.mulf %1615, %1419 : vector<16x128xf32>
    %1617 = arith.addf %1611, %1616 : vector<16x128xf32>
    %c208_952 = arith.constant 208 : index
    %c0_953 = arith.constant 0 : index
    %1618 = vector.load %arg2[%c208_952, %c0_953] : memref<672x128xf32, #tpu.memory_space<vmem>>, vector<16x128xf32>
    %1619 = arith.subf %1160, %1618 : vector<16x128xf32>
    %c816 = arith.constant 816 : index
    %c0_954 = arith.constant 0 : index
    %1620 = vector.load %arg3[%c816, %c0_954] : memref<2720x128xf32, #tpu.memory_space<vmem>>, vector<16x128xf32>
    %1621 = arith.mulf %1619, %1620 : vector<16x128xf32>
    %1622 = arith.mulf %1621, %1419 : vector<16x128xf32>
    %c304_955 = arith.constant 304 : index
    %c0_956 = arith.constant 0 : index
    %1623 = vector.load %arg2[%c304_955, %c0_956] : memref<672x128xf32, #tpu.memory_space<vmem>>, vector<16x128xf32>
    %1624 = arith.subf %1160, %1623 : vector<16x128xf32>
    %c816_957 = arith.constant 816 : index
    %c0_958 = arith.constant 0 : index
    %1625 = vector.load %arg4[%c816_957, %c0_958] : memref<2720x128xf32, #tpu.memory_space<vmem>>, vector<16x128xf32>
    %1626 = arith.mulf %1624, %1625 : vector<16x128xf32>
    %1627 = arith.mulf %1626, %1430 : vector<16x128xf32>
    %1628 = arith.addf %1622, %1627 : vector<16x128xf32>
    %c240_959 = arith.constant 240 : index
    %c0_960 = arith.constant 0 : index
    %1629 = vector.load %arg2[%c240_959, %c0_960] : memref<672x128xf32, #tpu.memory_space<vmem>>, vector<16x128xf32>
    %1630 = arith.subf %1160, %1629 : vector<16x128xf32>
    %c848 = arith.constant 848 : index
    %c0_961 = arith.constant 0 : index
    %1631 = vector.load %arg3[%c848, %c0_961] : memref<2720x128xf32, #tpu.memory_space<vmem>>, vector<16x128xf32>
    %1632 = arith.mulf %1630, %1631 : vector<16x128xf32>
    %1633 = arith.mulf %1632, %1430 : vector<16x128xf32>
    %c336_962 = arith.constant 336 : index
    %c0_963 = arith.constant 0 : index
    %1634 = vector.load %arg2[%c336_962, %c0_963] : memref<672x128xf32, #tpu.memory_space<vmem>>, vector<16x128xf32>
    %1635 = arith.subf %1160, %1634 : vector<16x128xf32>
    %c848_964 = arith.constant 848 : index
    %c0_965 = arith.constant 0 : index
    %1636 = vector.load %arg4[%c848_964, %c0_965] : memref<2720x128xf32, #tpu.memory_space<vmem>>, vector<16x128xf32>
    %1637 = arith.mulf %1635, %1636 : vector<16x128xf32>
    %1638 = arith.mulf %1637, %1441 : vector<16x128xf32>
    %1639 = arith.addf %1633, %1638 : vector<16x128xf32>
    %c272_966 = arith.constant 272 : index
    %c0_967 = arith.constant 0 : index
    %1640 = vector.load %arg2[%c272_966, %c0_967] : memref<672x128xf32, #tpu.memory_space<vmem>>, vector<16x128xf32>
    %1641 = arith.subf %1160, %1640 : vector<16x128xf32>
    %c880 = arith.constant 880 : index
    %c0_968 = arith.constant 0 : index
    %1642 = vector.load %arg3[%c880, %c0_968] : memref<2720x128xf32, #tpu.memory_space<vmem>>, vector<16x128xf32>
    %1643 = arith.mulf %1641, %1642 : vector<16x128xf32>
    %1644 = arith.mulf %1643, %1441 : vector<16x128xf32>
    %c368_969 = arith.constant 368 : index
    %c0_970 = arith.constant 0 : index
    %1645 = vector.load %arg2[%c368_969, %c0_970] : memref<672x128xf32, #tpu.memory_space<vmem>>, vector<16x128xf32>
    %1646 = arith.subf %1160, %1645 : vector<16x128xf32>
    %c880_971 = arith.constant 880 : index
    %c0_972 = arith.constant 0 : index
    %1647 = vector.load %arg4[%c880_971, %c0_972] : memref<2720x128xf32, #tpu.memory_space<vmem>>, vector<16x128xf32>
    %1648 = arith.mulf %1646, %1647 : vector<16x128xf32>
    %1649 = arith.mulf %1648, %1452 : vector<16x128xf32>
    %1650 = arith.addf %1644, %1649 : vector<16x128xf32>
    %c304_973 = arith.constant 304 : index
    %c0_974 = arith.constant 0 : index
    %1651 = vector.load %arg2[%c304_973, %c0_974] : memref<672x128xf32, #tpu.memory_space<vmem>>, vector<16x128xf32>
    %1652 = arith.subf %1160, %1651 : vector<16x128xf32>
    %c912 = arith.constant 912 : index
    %c0_975 = arith.constant 0 : index
    %1653 = vector.load %arg3[%c912, %c0_975] : memref<2720x128xf32, #tpu.memory_space<vmem>>, vector<16x128xf32>
    %1654 = arith.mulf %1652, %1653 : vector<16x128xf32>
    %1655 = arith.mulf %1654, %1452 : vector<16x128xf32>
    %c400_976 = arith.constant 400 : index
    %c0_977 = arith.constant 0 : index
    %1656 = vector.load %arg2[%c400_976, %c0_977] : memref<672x128xf32, #tpu.memory_space<vmem>>, vector<16x128xf32>
    %1657 = arith.subf %1160, %1656 : vector<16x128xf32>
    %c912_978 = arith.constant 912 : index
    %c0_979 = arith.constant 0 : index
    %1658 = vector.load %arg4[%c912_978, %c0_979] : memref<2720x128xf32, #tpu.memory_space<vmem>>, vector<16x128xf32>
    %1659 = arith.mulf %1657, %1658 : vector<16x128xf32>
    %1660 = arith.mulf %1659, %1463 : vector<16x128xf32>
    %1661 = arith.addf %1655, %1660 : vector<16x128xf32>
    %c336_980 = arith.constant 336 : index
    %c0_981 = arith.constant 0 : index
    %1662 = vector.load %arg2[%c336_980, %c0_981] : memref<672x128xf32, #tpu.memory_space<vmem>>, vector<16x128xf32>
    %1663 = arith.subf %1160, %1662 : vector<16x128xf32>
    %c944 = arith.constant 944 : index
    %c0_982 = arith.constant 0 : index
    %1664 = vector.load %arg3[%c944, %c0_982] : memref<2720x128xf32, #tpu.memory_space<vmem>>, vector<16x128xf32>
    %1665 = arith.mulf %1663, %1664 : vector<16x128xf32>
    %1666 = arith.mulf %1665, %1463 : vector<16x128xf32>
    %c432_983 = arith.constant 432 : index
    %c0_984 = arith.constant 0 : index
    %1667 = vector.load %arg2[%c432_983, %c0_984] : memref<672x128xf32, #tpu.memory_space<vmem>>, vector<16x128xf32>
    %1668 = arith.subf %1160, %1667 : vector<16x128xf32>
    %c944_985 = arith.constant 944 : index
    %c0_986 = arith.constant 0 : index
    %1669 = vector.load %arg4[%c944_985, %c0_986] : memref<2720x128xf32, #tpu.memory_space<vmem>>, vector<16x128xf32>
    %1670 = arith.mulf %1668, %1669 : vector<16x128xf32>
    %1671 = arith.mulf %1670, %1474 : vector<16x128xf32>
    %1672 = arith.addf %1666, %1671 : vector<16x128xf32>
    %c368_987 = arith.constant 368 : index
    %c0_988 = arith.constant 0 : index
    %1673 = vector.load %arg2[%c368_987, %c0_988] : memref<672x128xf32, #tpu.memory_space<vmem>>, vector<16x128xf32>
    %1674 = arith.subf %1160, %1673 : vector<16x128xf32>
    %c976 = arith.constant 976 : index
    %c0_989 = arith.constant 0 : index
    %1675 = vector.load %arg3[%c976, %c0_989] : memref<2720x128xf32, #tpu.memory_space<vmem>>, vector<16x128xf32>
    %1676 = arith.mulf %1674, %1675 : vector<16x128xf32>
    %1677 = arith.mulf %1676, %1474 : vector<16x128xf32>
    %c464_990 = arith.constant 464 : index
    %c0_991 = arith.constant 0 : index
    %1678 = vector.load %arg2[%c464_990, %c0_991] : memref<672x128xf32, #tpu.memory_space<vmem>>, vector<16x128xf32>
    %1679 = arith.subf %1160, %1678 : vector<16x128xf32>
    %c976_992 = arith.constant 976 : index
    %c0_993 = arith.constant 0 : index
    %1680 = vector.load %arg4[%c976_992, %c0_993] : memref<2720x128xf32, #tpu.memory_space<vmem>>, vector<16x128xf32>
    %1681 = arith.mulf %1679, %1680 : vector<16x128xf32>
    %1682 = arith.mulf %1681, %1485 : vector<16x128xf32>
    %1683 = arith.addf %1677, %1682 : vector<16x128xf32>
    %c400_994 = arith.constant 400 : index
    %c0_995 = arith.constant 0 : index
    %1684 = vector.load %arg2[%c400_994, %c0_995] : memref<672x128xf32, #tpu.memory_space<vmem>>, vector<16x128xf32>
    %1685 = arith.subf %1160, %1684 : vector<16x128xf32>
    %c1008 = arith.constant 1008 : index
    %c0_996 = arith.constant 0 : index
    %1686 = vector.load %arg3[%c1008, %c0_996] : memref<2720x128xf32, #tpu.memory_space<vmem>>, vector<16x128xf32>
    %1687 = arith.mulf %1685, %1686 : vector<16x128xf32>
    %1688 = arith.mulf %1687, %1485 : vector<16x128xf32>
    %c496_997 = arith.constant 496 : index
    %c0_998 = arith.constant 0 : index
    %1689 = vector.load %arg2[%c496_997, %c0_998] : memref<672x128xf32, #tpu.memory_space<vmem>>, vector<16x128xf32>
    %1690 = arith.subf %1160, %1689 : vector<16x128xf32>
    %c1008_999 = arith.constant 1008 : index
    %c0_1000 = arith.constant 0 : index
    %1691 = vector.load %arg4[%c1008_999, %c0_1000] : memref<2720x128xf32, #tpu.memory_space<vmem>>, vector<16x128xf32>
    %1692 = arith.mulf %1690, %1691 : vector<16x128xf32>
    %1693 = arith.mulf %1692, %1496 : vector<16x128xf32>
    %1694 = arith.addf %1688, %1693 : vector<16x128xf32>
    %c432_1001 = arith.constant 432 : index
    %c0_1002 = arith.constant 0 : index
    %1695 = vector.load %arg2[%c432_1001, %c0_1002] : memref<672x128xf32, #tpu.memory_space<vmem>>, vector<16x128xf32>
    %1696 = arith.subf %1160, %1695 : vector<16x128xf32>
    %c1040 = arith.constant 1040 : index
    %c0_1003 = arith.constant 0 : index
    %1697 = vector.load %arg3[%c1040, %c0_1003] : memref<2720x128xf32, #tpu.memory_space<vmem>>, vector<16x128xf32>
    %1698 = arith.mulf %1696, %1697 : vector<16x128xf32>
    %1699 = arith.mulf %1698, %1496 : vector<16x128xf32>
    %c528_1004 = arith.constant 528 : index
    %c0_1005 = arith.constant 0 : index
    %1700 = vector.load %arg2[%c528_1004, %c0_1005] : memref<672x128xf32, #tpu.memory_space<vmem>>, vector<16x128xf32>
    %1701 = arith.subf %1160, %1700 : vector<16x128xf32>
    %c1040_1006 = arith.constant 1040 : index
    %c0_1007 = arith.constant 0 : index
    %1702 = vector.load %arg4[%c1040_1006, %c0_1007] : memref<2720x128xf32, #tpu.memory_space<vmem>>, vector<16x128xf32>
    %1703 = arith.mulf %1701, %1702 : vector<16x128xf32>
    %1704 = arith.mulf %1703, %1507 : vector<16x128xf32>
    %1705 = arith.addf %1699, %1704 : vector<16x128xf32>
    %c464_1008 = arith.constant 464 : index
    %c0_1009 = arith.constant 0 : index
    %1706 = vector.load %arg2[%c464_1008, %c0_1009] : memref<672x128xf32, #tpu.memory_space<vmem>>, vector<16x128xf32>
    %1707 = arith.subf %1160, %1706 : vector<16x128xf32>
    %c1072 = arith.constant 1072 : index
    %c0_1010 = arith.constant 0 : index
    %1708 = vector.load %arg3[%c1072, %c0_1010] : memref<2720x128xf32, #tpu.memory_space<vmem>>, vector<16x128xf32>
    %1709 = arith.mulf %1707, %1708 : vector<16x128xf32>
    %1710 = arith.mulf %1709, %1507 : vector<16x128xf32>
    %c560_1011 = arith.constant 560 : index
    %c0_1012 = arith.constant 0 : index
    %1711 = vector.load %arg2[%c560_1011, %c0_1012] : memref<672x128xf32, #tpu.memory_space<vmem>>, vector<16x128xf32>
    %1712 = arith.subf %1160, %1711 : vector<16x128xf32>
    %c1072_1013 = arith.constant 1072 : index
    %c0_1014 = arith.constant 0 : index
    %1713 = vector.load %arg4[%c1072_1013, %c0_1014] : memref<2720x128xf32, #tpu.memory_space<vmem>>, vector<16x128xf32>
    %1714 = arith.mulf %1712, %1713 : vector<16x128xf32>
    %1715 = arith.mulf %1714, %1518 : vector<16x128xf32>
    %1716 = arith.addf %1710, %1715 : vector<16x128xf32>
    %c496_1015 = arith.constant 496 : index
    %c0_1016 = arith.constant 0 : index
    %1717 = vector.load %arg2[%c496_1015, %c0_1016] : memref<672x128xf32, #tpu.memory_space<vmem>>, vector<16x128xf32>
    %1718 = arith.subf %1160, %1717 : vector<16x128xf32>
    %c1104 = arith.constant 1104 : index
    %c0_1017 = arith.constant 0 : index
    %1719 = vector.load %arg3[%c1104, %c0_1017] : memref<2720x128xf32, #tpu.memory_space<vmem>>, vector<16x128xf32>
    %1720 = arith.mulf %1718, %1719 : vector<16x128xf32>
    %1721 = arith.mulf %1720, %1518 : vector<16x128xf32>
    %c592_1018 = arith.constant 592 : index
    %c0_1019 = arith.constant 0 : index
    %1722 = vector.load %arg2[%c592_1018, %c0_1019] : memref<672x128xf32, #tpu.memory_space<vmem>>, vector<16x128xf32>
    %1723 = arith.subf %1160, %1722 : vector<16x128xf32>
    %c1104_1020 = arith.constant 1104 : index
    %c0_1021 = arith.constant 0 : index
    %1724 = vector.load %arg4[%c1104_1020, %c0_1021] : memref<2720x128xf32, #tpu.memory_space<vmem>>, vector<16x128xf32>
    %1725 = arith.mulf %1723, %1724 : vector<16x128xf32>
    %1726 = arith.mulf %1725, %1529 : vector<16x128xf32>
    %1727 = arith.addf %1721, %1726 : vector<16x128xf32>
    %c528_1022 = arith.constant 528 : index
    %c0_1023 = arith.constant 0 : index
    %1728 = vector.load %arg2[%c528_1022, %c0_1023] : memref<672x128xf32, #tpu.memory_space<vmem>>, vector<16x128xf32>
    %1729 = arith.subf %1160, %1728 : vector<16x128xf32>
    %c1136 = arith.constant 1136 : index
    %c0_1024 = arith.constant 0 : index
    %1730 = vector.load %arg3[%c1136, %c0_1024] : memref<2720x128xf32, #tpu.memory_space<vmem>>, vector<16x128xf32>
    %1731 = arith.mulf %1729, %1730 : vector<16x128xf32>
    %1732 = arith.mulf %1731, %1529 : vector<16x128xf32>
    %c624_1025 = arith.constant 624 : index
    %c0_1026 = arith.constant 0 : index
    %1733 = vector.load %arg2[%c624_1025, %c0_1026] : memref<672x128xf32, #tpu.memory_space<vmem>>, vector<16x128xf32>
    %1734 = arith.subf %1160, %1733 : vector<16x128xf32>
    %c1136_1027 = arith.constant 1136 : index
    %c0_1028 = arith.constant 0 : index
    %1735 = vector.load %arg4[%c1136_1027, %c0_1028] : memref<2720x128xf32, #tpu.memory_space<vmem>>, vector<16x128xf32>
    %1736 = arith.mulf %1734, %1735 : vector<16x128xf32>
    %1737 = arith.mulf %1736, %1540 : vector<16x128xf32>
    %1738 = arith.addf %1732, %1737 : vector<16x128xf32>
    %c560_1029 = arith.constant 560 : index
    %c0_1030 = arith.constant 0 : index
    %1739 = vector.load %arg2[%c560_1029, %c0_1030] : memref<672x128xf32, #tpu.memory_space<vmem>>, vector<16x128xf32>
    %1740 = arith.subf %1160, %1739 : vector<16x128xf32>
    %c1168 = arith.constant 1168 : index
    %c0_1031 = arith.constant 0 : index
    %1741 = vector.load %arg3[%c1168, %c0_1031] : memref<2720x128xf32, #tpu.memory_space<vmem>>, vector<16x128xf32>
    %1742 = arith.mulf %1740, %1741 : vector<16x128xf32>
    %1743 = arith.mulf %1742, %1540 : vector<16x128xf32>
    %c656_1032 = arith.constant 656 : index
    %c0_1033 = arith.constant 0 : index
    %1744 = vector.load %arg2[%c656_1032, %c0_1033] : memref<672x128xf32, #tpu.memory_space<vmem>>, vector<16x128xf32>
    %1745 = arith.subf %1160, %1744 : vector<16x128xf32>
    %c1168_1034 = arith.constant 1168 : index
    %c0_1035 = arith.constant 0 : index
    %1746 = vector.load %arg4[%c1168_1034, %c0_1035] : memref<2720x128xf32, #tpu.memory_space<vmem>>, vector<16x128xf32>
    %1747 = arith.mulf %1745, %1746 : vector<16x128xf32>
    %1748 = arith.mulf %1747, %1551 : vector<16x128xf32>
    %1749 = arith.addf %1743, %1748 : vector<16x128xf32>
    %c16_1036 = arith.constant 16 : index
    %c0_1037 = arith.constant 0 : index
    %1750 = vector.load %arg2[%c16_1036, %c0_1037] : memref<672x128xf32, #tpu.memory_space<vmem>>, vector<16x128xf32>
    %1751 = arith.subf %1160, %1750 : vector<16x128xf32>
    %c1200 = arith.constant 1200 : index
    %c0_1038 = arith.constant 0 : index
    %1752 = vector.load %arg3[%c1200, %c0_1038] : memref<2720x128xf32, #tpu.memory_space<vmem>>, vector<16x128xf32>
    %1753 = arith.mulf %1751, %1752 : vector<16x128xf32>
    %1754 = arith.mulf %1753, %1562 : vector<16x128xf32>
    %c144_1039 = arith.constant 144 : index
    %c0_1040 = arith.constant 0 : index
    %1755 = vector.load %arg2[%c144_1039, %c0_1040] : memref<672x128xf32, #tpu.memory_space<vmem>>, vector<16x128xf32>
    %1756 = arith.subf %1160, %1755 : vector<16x128xf32>
    %c1200_1041 = arith.constant 1200 : index
    %c0_1042 = arith.constant 0 : index
    %1757 = vector.load %arg4[%c1200_1041, %c0_1042] : memref<2720x128xf32, #tpu.memory_space<vmem>>, vector<16x128xf32>
    %1758 = arith.mulf %1756, %1757 : vector<16x128xf32>
    %1759 = arith.mulf %1758, %1573 : vector<16x128xf32>
    %1760 = arith.addf %1754, %1759 : vector<16x128xf32>
    %c48_1043 = arith.constant 48 : index
    %c0_1044 = arith.constant 0 : index
    %1761 = vector.load %arg2[%c48_1043, %c0_1044] : memref<672x128xf32, #tpu.memory_space<vmem>>, vector<16x128xf32>
    %1762 = arith.subf %1160, %1761 : vector<16x128xf32>
    %c1232 = arith.constant 1232 : index
    %c0_1045 = arith.constant 0 : index
    %1763 = vector.load %arg3[%c1232, %c0_1045] : memref<2720x128xf32, #tpu.memory_space<vmem>>, vector<16x128xf32>
    %1764 = arith.mulf %1762, %1763 : vector<16x128xf32>
    %1765 = arith.mulf %1764, %1573 : vector<16x128xf32>
    %c176_1046 = arith.constant 176 : index
    %c0_1047 = arith.constant 0 : index
    %1766 = vector.load %arg2[%c176_1046, %c0_1047] : memref<672x128xf32, #tpu.memory_space<vmem>>, vector<16x128xf32>
    %1767 = arith.subf %1160, %1766 : vector<16x128xf32>
    %c1232_1048 = arith.constant 1232 : index
    %c0_1049 = arith.constant 0 : index
    %1768 = vector.load %arg4[%c1232_1048, %c0_1049] : memref<2720x128xf32, #tpu.memory_space<vmem>>, vector<16x128xf32>
    %1769 = arith.mulf %1767, %1768 : vector<16x128xf32>
    %1770 = arith.mulf %1769, %1584 : vector<16x128xf32>
    %1771 = arith.addf %1765, %1770 : vector<16x128xf32>
    %c80_1050 = arith.constant 80 : index
    %c0_1051 = arith.constant 0 : index
    %1772 = vector.load %arg2[%c80_1050, %c0_1051] : memref<672x128xf32, #tpu.memory_space<vmem>>, vector<16x128xf32>
    %1773 = arith.subf %1160, %1772 : vector<16x128xf32>
    %c1264 = arith.constant 1264 : index
    %c0_1052 = arith.constant 0 : index
    %1774 = vector.load %arg3[%c1264, %c0_1052] : memref<2720x128xf32, #tpu.memory_space<vmem>>, vector<16x128xf32>
    %1775 = arith.mulf %1773, %1774 : vector<16x128xf32>
    %1776 = arith.mulf %1775, %1584 : vector<16x128xf32>
    %c208_1053 = arith.constant 208 : index
    %c0_1054 = arith.constant 0 : index
    %1777 = vector.load %arg2[%c208_1053, %c0_1054] : memref<672x128xf32, #tpu.memory_space<vmem>>, vector<16x128xf32>
    %1778 = arith.subf %1160, %1777 : vector<16x128xf32>
    %c1264_1055 = arith.constant 1264 : index
    %c0_1056 = arith.constant 0 : index
    %1779 = vector.load %arg4[%c1264_1055, %c0_1056] : memref<2720x128xf32, #tpu.memory_space<vmem>>, vector<16x128xf32>
    %1780 = arith.mulf %1778, %1779 : vector<16x128xf32>
    %1781 = arith.mulf %1780, %1595 : vector<16x128xf32>
    %1782 = arith.addf %1776, %1781 : vector<16x128xf32>
    %c112_1057 = arith.constant 112 : index
    %c0_1058 = arith.constant 0 : index
    %1783 = vector.load %arg2[%c112_1057, %c0_1058] : memref<672x128xf32, #tpu.memory_space<vmem>>, vector<16x128xf32>
    %1784 = arith.subf %1160, %1783 : vector<16x128xf32>
    %c1296 = arith.constant 1296 : index
    %c0_1059 = arith.constant 0 : index
    %1785 = vector.load %arg3[%c1296, %c0_1059] : memref<2720x128xf32, #tpu.memory_space<vmem>>, vector<16x128xf32>
    %1786 = arith.mulf %1784, %1785 : vector<16x128xf32>
    %1787 = arith.mulf %1786, %1595 : vector<16x128xf32>
    %c240_1060 = arith.constant 240 : index
    %c0_1061 = arith.constant 0 : index
    %1788 = vector.load %arg2[%c240_1060, %c0_1061] : memref<672x128xf32, #tpu.memory_space<vmem>>, vector<16x128xf32>
    %1789 = arith.subf %1160, %1788 : vector<16x128xf32>
    %c1296_1062 = arith.constant 1296 : index
    %c0_1063 = arith.constant 0 : index
    %1790 = vector.load %arg4[%c1296_1062, %c0_1063] : memref<2720x128xf32, #tpu.memory_space<vmem>>, vector<16x128xf32>
    %1791 = arith.mulf %1789, %1790 : vector<16x128xf32>
    %1792 = arith.mulf %1791, %1606 : vector<16x128xf32>
    %1793 = arith.addf %1787, %1792 : vector<16x128xf32>
    %c144_1064 = arith.constant 144 : index
    %c0_1065 = arith.constant 0 : index
    %1794 = vector.load %arg2[%c144_1064, %c0_1065] : memref<672x128xf32, #tpu.memory_space<vmem>>, vector<16x128xf32>
    %1795 = arith.subf %1160, %1794 : vector<16x128xf32>
    %c1328 = arith.constant 1328 : index
    %c0_1066 = arith.constant 0 : index
    %1796 = vector.load %arg3[%c1328, %c0_1066] : memref<2720x128xf32, #tpu.memory_space<vmem>>, vector<16x128xf32>
    %1797 = arith.mulf %1795, %1796 : vector<16x128xf32>
    %1798 = arith.mulf %1797, %1606 : vector<16x128xf32>
    %c272_1067 = arith.constant 272 : index
    %c0_1068 = arith.constant 0 : index
    %1799 = vector.load %arg2[%c272_1067, %c0_1068] : memref<672x128xf32, #tpu.memory_space<vmem>>, vector<16x128xf32>
    %1800 = arith.subf %1160, %1799 : vector<16x128xf32>
    %c1328_1069 = arith.constant 1328 : index
    %c0_1070 = arith.constant 0 : index
    %1801 = vector.load %arg4[%c1328_1069, %c0_1070] : memref<2720x128xf32, #tpu.memory_space<vmem>>, vector<16x128xf32>
    %1802 = arith.mulf %1800, %1801 : vector<16x128xf32>
    %1803 = arith.mulf %1802, %1617 : vector<16x128xf32>
    %1804 = arith.addf %1798, %1803 : vector<16x128xf32>
    %c176_1071 = arith.constant 176 : index
    %c0_1072 = arith.constant 0 : index
    %1805 = vector.load %arg2[%c176_1071, %c0_1072] : memref<672x128xf32, #tpu.memory_space<vmem>>, vector<16x128xf32>
    %1806 = arith.subf %1160, %1805 : vector<16x128xf32>
    %c1360 = arith.constant 1360 : index
    %c0_1073 = arith.constant 0 : index
    %1807 = vector.load %arg3[%c1360, %c0_1073] : memref<2720x128xf32, #tpu.memory_space<vmem>>, vector<16x128xf32>
    %1808 = arith.mulf %1806, %1807 : vector<16x128xf32>
    %1809 = arith.mulf %1808, %1617 : vector<16x128xf32>
    %c304_1074 = arith.constant 304 : index
    %c0_1075 = arith.constant 0 : index
    %1810 = vector.load %arg2[%c304_1074, %c0_1075] : memref<672x128xf32, #tpu.memory_space<vmem>>, vector<16x128xf32>
    %1811 = arith.subf %1160, %1810 : vector<16x128xf32>
    %c1360_1076 = arith.constant 1360 : index
    %c0_1077 = arith.constant 0 : index
    %1812 = vector.load %arg4[%c1360_1076, %c0_1077] : memref<2720x128xf32, #tpu.memory_space<vmem>>, vector<16x128xf32>
    %1813 = arith.mulf %1811, %1812 : vector<16x128xf32>
    %1814 = arith.mulf %1813, %1628 : vector<16x128xf32>
    %1815 = arith.addf %1809, %1814 : vector<16x128xf32>
    %c208_1078 = arith.constant 208 : index
    %c0_1079 = arith.constant 0 : index
    %1816 = vector.load %arg2[%c208_1078, %c0_1079] : memref<672x128xf32, #tpu.memory_space<vmem>>, vector<16x128xf32>
    %1817 = arith.subf %1160, %1816 : vector<16x128xf32>
    %c1392 = arith.constant 1392 : index
    %c0_1080 = arith.constant 0 : index
    %1818 = vector.load %arg3[%c1392, %c0_1080] : memref<2720x128xf32, #tpu.memory_space<vmem>>, vector<16x128xf32>
    %1819 = arith.mulf %1817, %1818 : vector<16x128xf32>
    %1820 = arith.mulf %1819, %1628 : vector<16x128xf32>
    %c336_1081 = arith.constant 336 : index
    %c0_1082 = arith.constant 0 : index
    %1821 = vector.load %arg2[%c336_1081, %c0_1082] : memref<672x128xf32, #tpu.memory_space<vmem>>, vector<16x128xf32>
    %1822 = arith.subf %1160, %1821 : vector<16x128xf32>
    %c1392_1083 = arith.constant 1392 : index
    %c0_1084 = arith.constant 0 : index
    %1823 = vector.load %arg4[%c1392_1083, %c0_1084] : memref<2720x128xf32, #tpu.memory_space<vmem>>, vector<16x128xf32>
    %1824 = arith.mulf %1822, %1823 : vector<16x128xf32>
    %1825 = arith.mulf %1824, %1639 : vector<16x128xf32>
    %1826 = arith.addf %1820, %1825 : vector<16x128xf32>
    %c240_1085 = arith.constant 240 : index
    %c0_1086 = arith.constant 0 : index
    %1827 = vector.load %arg2[%c240_1085, %c0_1086] : memref<672x128xf32, #tpu.memory_space<vmem>>, vector<16x128xf32>
    %1828 = arith.subf %1160, %1827 : vector<16x128xf32>
    %c1424 = arith.constant 1424 : index
    %c0_1087 = arith.constant 0 : index
    %1829 = vector.load %arg3[%c1424, %c0_1087] : memref<2720x128xf32, #tpu.memory_space<vmem>>, vector<16x128xf32>
    %1830 = arith.mulf %1828, %1829 : vector<16x128xf32>
    %1831 = arith.mulf %1830, %1639 : vector<16x128xf32>
    %c368_1088 = arith.constant 368 : index
    %c0_1089 = arith.constant 0 : index
    %1832 = vector.load %arg2[%c368_1088, %c0_1089] : memref<672x128xf32, #tpu.memory_space<vmem>>, vector<16x128xf32>
    %1833 = arith.subf %1160, %1832 : vector<16x128xf32>
    %c1424_1090 = arith.constant 1424 : index
    %c0_1091 = arith.constant 0 : index
    %1834 = vector.load %arg4[%c1424_1090, %c0_1091] : memref<2720x128xf32, #tpu.memory_space<vmem>>, vector<16x128xf32>
    %1835 = arith.mulf %1833, %1834 : vector<16x128xf32>
    %1836 = arith.mulf %1835, %1650 : vector<16x128xf32>
    %1837 = arith.addf %1831, %1836 : vector<16x128xf32>
    %c272_1092 = arith.constant 272 : index
    %c0_1093 = arith.constant 0 : index
    %1838 = vector.load %arg2[%c272_1092, %c0_1093] : memref<672x128xf32, #tpu.memory_space<vmem>>, vector<16x128xf32>
    %1839 = arith.subf %1160, %1838 : vector<16x128xf32>
    %c1456 = arith.constant 1456 : index
    %c0_1094 = arith.constant 0 : index
    %1840 = vector.load %arg3[%c1456, %c0_1094] : memref<2720x128xf32, #tpu.memory_space<vmem>>, vector<16x128xf32>
    %1841 = arith.mulf %1839, %1840 : vector<16x128xf32>
    %1842 = arith.mulf %1841, %1650 : vector<16x128xf32>
    %c400_1095 = arith.constant 400 : index
    %c0_1096 = arith.constant 0 : index
    %1843 = vector.load %arg2[%c400_1095, %c0_1096] : memref<672x128xf32, #tpu.memory_space<vmem>>, vector<16x128xf32>
    %1844 = arith.subf %1160, %1843 : vector<16x128xf32>
    %c1456_1097 = arith.constant 1456 : index
    %c0_1098 = arith.constant 0 : index
    %1845 = vector.load %arg4[%c1456_1097, %c0_1098] : memref<2720x128xf32, #tpu.memory_space<vmem>>, vector<16x128xf32>
    %1846 = arith.mulf %1844, %1845 : vector<16x128xf32>
    %1847 = arith.mulf %1846, %1661 : vector<16x128xf32>
    %1848 = arith.addf %1842, %1847 : vector<16x128xf32>
    %c304_1099 = arith.constant 304 : index
    %c0_1100 = arith.constant 0 : index
    %1849 = vector.load %arg2[%c304_1099, %c0_1100] : memref<672x128xf32, #tpu.memory_space<vmem>>, vector<16x128xf32>
    %1850 = arith.subf %1160, %1849 : vector<16x128xf32>
    %c1488 = arith.constant 1488 : index
    %c0_1101 = arith.constant 0 : index
    %1851 = vector.load %arg3[%c1488, %c0_1101] : memref<2720x128xf32, #tpu.memory_space<vmem>>, vector<16x128xf32>
    %1852 = arith.mulf %1850, %1851 : vector<16x128xf32>
    %1853 = arith.mulf %1852, %1661 : vector<16x128xf32>
    %c432_1102 = arith.constant 432 : index
    %c0_1103 = arith.constant 0 : index
    %1854 = vector.load %arg2[%c432_1102, %c0_1103] : memref<672x128xf32, #tpu.memory_space<vmem>>, vector<16x128xf32>
    %1855 = arith.subf %1160, %1854 : vector<16x128xf32>
    %c1488_1104 = arith.constant 1488 : index
    %c0_1105 = arith.constant 0 : index
    %1856 = vector.load %arg4[%c1488_1104, %c0_1105] : memref<2720x128xf32, #tpu.memory_space<vmem>>, vector<16x128xf32>
    %1857 = arith.mulf %1855, %1856 : vector<16x128xf32>
    %1858 = arith.mulf %1857, %1672 : vector<16x128xf32>
    %1859 = arith.addf %1853, %1858 : vector<16x128xf32>
    %c336_1106 = arith.constant 336 : index
    %c0_1107 = arith.constant 0 : index
    %1860 = vector.load %arg2[%c336_1106, %c0_1107] : memref<672x128xf32, #tpu.memory_space<vmem>>, vector<16x128xf32>
    %1861 = arith.subf %1160, %1860 : vector<16x128xf32>
    %c1520 = arith.constant 1520 : index
    %c0_1108 = arith.constant 0 : index
    %1862 = vector.load %arg3[%c1520, %c0_1108] : memref<2720x128xf32, #tpu.memory_space<vmem>>, vector<16x128xf32>
    %1863 = arith.mulf %1861, %1862 : vector<16x128xf32>
    %1864 = arith.mulf %1863, %1672 : vector<16x128xf32>
    %c464_1109 = arith.constant 464 : index
    %c0_1110 = arith.constant 0 : index
    %1865 = vector.load %arg2[%c464_1109, %c0_1110] : memref<672x128xf32, #tpu.memory_space<vmem>>, vector<16x128xf32>
    %1866 = arith.subf %1160, %1865 : vector<16x128xf32>
    %c1520_1111 = arith.constant 1520 : index
    %c0_1112 = arith.constant 0 : index
    %1867 = vector.load %arg4[%c1520_1111, %c0_1112] : memref<2720x128xf32, #tpu.memory_space<vmem>>, vector<16x128xf32>
    %1868 = arith.mulf %1866, %1867 : vector<16x128xf32>
    %1869 = arith.mulf %1868, %1683 : vector<16x128xf32>
    %1870 = arith.addf %1864, %1869 : vector<16x128xf32>
    %c368_1113 = arith.constant 368 : index
    %c0_1114 = arith.constant 0 : index
    %1871 = vector.load %arg2[%c368_1113, %c0_1114] : memref<672x128xf32, #tpu.memory_space<vmem>>, vector<16x128xf32>
    %1872 = arith.subf %1160, %1871 : vector<16x128xf32>
    %c1552 = arith.constant 1552 : index
    %c0_1115 = arith.constant 0 : index
    %1873 = vector.load %arg3[%c1552, %c0_1115] : memref<2720x128xf32, #tpu.memory_space<vmem>>, vector<16x128xf32>
    %1874 = arith.mulf %1872, %1873 : vector<16x128xf32>
    %1875 = arith.mulf %1874, %1683 : vector<16x128xf32>
    %c496_1116 = arith.constant 496 : index
    %c0_1117 = arith.constant 0 : index
    %1876 = vector.load %arg2[%c496_1116, %c0_1117] : memref<672x128xf32, #tpu.memory_space<vmem>>, vector<16x128xf32>
    %1877 = arith.subf %1160, %1876 : vector<16x128xf32>
    %c1552_1118 = arith.constant 1552 : index
    %c0_1119 = arith.constant 0 : index
    %1878 = vector.load %arg4[%c1552_1118, %c0_1119] : memref<2720x128xf32, #tpu.memory_space<vmem>>, vector<16x128xf32>
    %1879 = arith.mulf %1877, %1878 : vector<16x128xf32>
    %1880 = arith.mulf %1879, %1694 : vector<16x128xf32>
    %1881 = arith.addf %1875, %1880 : vector<16x128xf32>
    %c400_1120 = arith.constant 400 : index
    %c0_1121 = arith.constant 0 : index
    %1882 = vector.load %arg2[%c400_1120, %c0_1121] : memref<672x128xf32, #tpu.memory_space<vmem>>, vector<16x128xf32>
    %1883 = arith.subf %1160, %1882 : vector<16x128xf32>
    %c1584 = arith.constant 1584 : index
    %c0_1122 = arith.constant 0 : index
    %1884 = vector.load %arg3[%c1584, %c0_1122] : memref<2720x128xf32, #tpu.memory_space<vmem>>, vector<16x128xf32>
    %1885 = arith.mulf %1883, %1884 : vector<16x128xf32>
    %1886 = arith.mulf %1885, %1694 : vector<16x128xf32>
    %c528_1123 = arith.constant 528 : index
    %c0_1124 = arith.constant 0 : index
    %1887 = vector.load %arg2[%c528_1123, %c0_1124] : memref<672x128xf32, #tpu.memory_space<vmem>>, vector<16x128xf32>
    %1888 = arith.subf %1160, %1887 : vector<16x128xf32>
    %c1584_1125 = arith.constant 1584 : index
    %c0_1126 = arith.constant 0 : index
    %1889 = vector.load %arg4[%c1584_1125, %c0_1126] : memref<2720x128xf32, #tpu.memory_space<vmem>>, vector<16x128xf32>
    %1890 = arith.mulf %1888, %1889 : vector<16x128xf32>
    %1891 = arith.mulf %1890, %1705 : vector<16x128xf32>
    %1892 = arith.addf %1886, %1891 : vector<16x128xf32>
    %c432_1127 = arith.constant 432 : index
    %c0_1128 = arith.constant 0 : index
    %1893 = vector.load %arg2[%c432_1127, %c0_1128] : memref<672x128xf32, #tpu.memory_space<vmem>>, vector<16x128xf32>
    %1894 = arith.subf %1160, %1893 : vector<16x128xf32>
    %c1616 = arith.constant 1616 : index
    %c0_1129 = arith.constant 0 : index
    %1895 = vector.load %arg3[%c1616, %c0_1129] : memref<2720x128xf32, #tpu.memory_space<vmem>>, vector<16x128xf32>
    %1896 = arith.mulf %1894, %1895 : vector<16x128xf32>
    %1897 = arith.mulf %1896, %1705 : vector<16x128xf32>
    %c560_1130 = arith.constant 560 : index
    %c0_1131 = arith.constant 0 : index
    %1898 = vector.load %arg2[%c560_1130, %c0_1131] : memref<672x128xf32, #tpu.memory_space<vmem>>, vector<16x128xf32>
    %1899 = arith.subf %1160, %1898 : vector<16x128xf32>
    %c1616_1132 = arith.constant 1616 : index
    %c0_1133 = arith.constant 0 : index
    %1900 = vector.load %arg4[%c1616_1132, %c0_1133] : memref<2720x128xf32, #tpu.memory_space<vmem>>, vector<16x128xf32>
    %1901 = arith.mulf %1899, %1900 : vector<16x128xf32>
    %1902 = arith.mulf %1901, %1716 : vector<16x128xf32>
    %1903 = arith.addf %1897, %1902 : vector<16x128xf32>
    %c464_1134 = arith.constant 464 : index
    %c0_1135 = arith.constant 0 : index
    %1904 = vector.load %arg2[%c464_1134, %c0_1135] : memref<672x128xf32, #tpu.memory_space<vmem>>, vector<16x128xf32>
    %1905 = arith.subf %1160, %1904 : vector<16x128xf32>
    %c1648 = arith.constant 1648 : index
    %c0_1136 = arith.constant 0 : index
    %1906 = vector.load %arg3[%c1648, %c0_1136] : memref<2720x128xf32, #tpu.memory_space<vmem>>, vector<16x128xf32>
    %1907 = arith.mulf %1905, %1906 : vector<16x128xf32>
    %1908 = arith.mulf %1907, %1716 : vector<16x128xf32>
    %c592_1137 = arith.constant 592 : index
    %c0_1138 = arith.constant 0 : index
    %1909 = vector.load %arg2[%c592_1137, %c0_1138] : memref<672x128xf32, #tpu.memory_space<vmem>>, vector<16x128xf32>
    %1910 = arith.subf %1160, %1909 : vector<16x128xf32>
    %c1648_1139 = arith.constant 1648 : index
    %c0_1140 = arith.constant 0 : index
    %1911 = vector.load %arg4[%c1648_1139, %c0_1140] : memref<2720x128xf32, #tpu.memory_space<vmem>>, vector<16x128xf32>
    %1912 = arith.mulf %1910, %1911 : vector<16x128xf32>
    %1913 = arith.mulf %1912, %1727 : vector<16x128xf32>
    %1914 = arith.addf %1908, %1913 : vector<16x128xf32>
    %c496_1141 = arith.constant 496 : index
    %c0_1142 = arith.constant 0 : index
    %1915 = vector.load %arg2[%c496_1141, %c0_1142] : memref<672x128xf32, #tpu.memory_space<vmem>>, vector<16x128xf32>
    %1916 = arith.subf %1160, %1915 : vector<16x128xf32>
    %c1680 = arith.constant 1680 : index
    %c0_1143 = arith.constant 0 : index
    %1917 = vector.load %arg3[%c1680, %c0_1143] : memref<2720x128xf32, #tpu.memory_space<vmem>>, vector<16x128xf32>
    %1918 = arith.mulf %1916, %1917 : vector<16x128xf32>
    %1919 = arith.mulf %1918, %1727 : vector<16x128xf32>
    %c624_1144 = arith.constant 624 : index
    %c0_1145 = arith.constant 0 : index
    %1920 = vector.load %arg2[%c624_1144, %c0_1145] : memref<672x128xf32, #tpu.memory_space<vmem>>, vector<16x128xf32>
    %1921 = arith.subf %1160, %1920 : vector<16x128xf32>
    %c1680_1146 = arith.constant 1680 : index
    %c0_1147 = arith.constant 0 : index
    %1922 = vector.load %arg4[%c1680_1146, %c0_1147] : memref<2720x128xf32, #tpu.memory_space<vmem>>, vector<16x128xf32>
    %1923 = arith.mulf %1921, %1922 : vector<16x128xf32>
    %1924 = arith.mulf %1923, %1738 : vector<16x128xf32>
    %1925 = arith.addf %1919, %1924 : vector<16x128xf32>
    %c528_1148 = arith.constant 528 : index
    %c0_1149 = arith.constant 0 : index
    %1926 = vector.load %arg2[%c528_1148, %c0_1149] : memref<672x128xf32, #tpu.memory_space<vmem>>, vector<16x128xf32>
    %1927 = arith.subf %1160, %1926 : vector<16x128xf32>
    %c1712 = arith.constant 1712 : index
    %c0_1150 = arith.constant 0 : index
    %1928 = vector.load %arg3[%c1712, %c0_1150] : memref<2720x128xf32, #tpu.memory_space<vmem>>, vector<16x128xf32>
    %1929 = arith.mulf %1927, %1928 : vector<16x128xf32>
    %1930 = arith.mulf %1929, %1738 : vector<16x128xf32>
    %c656_1151 = arith.constant 656 : index
    %c0_1152 = arith.constant 0 : index
    %1931 = vector.load %arg2[%c656_1151, %c0_1152] : memref<672x128xf32, #tpu.memory_space<vmem>>, vector<16x128xf32>
    %1932 = arith.subf %1160, %1931 : vector<16x128xf32>
    %c1712_1153 = arith.constant 1712 : index
    %c0_1154 = arith.constant 0 : index
    %1933 = vector.load %arg4[%c1712_1153, %c0_1154] : memref<2720x128xf32, #tpu.memory_space<vmem>>, vector<16x128xf32>
    %1934 = arith.mulf %1932, %1933 : vector<16x128xf32>
    %1935 = arith.mulf %1934, %1749 : vector<16x128xf32>
    %1936 = arith.addf %1930, %1935 : vector<16x128xf32>
    %c16_1155 = arith.constant 16 : index
    %c0_1156 = arith.constant 0 : index
    %1937 = vector.load %arg2[%c16_1155, %c0_1156] : memref<672x128xf32, #tpu.memory_space<vmem>>, vector<16x128xf32>
    %1938 = arith.subf %1160, %1937 : vector<16x128xf32>
    %c1744 = arith.constant 1744 : index
    %c0_1157 = arith.constant 0 : index
    %1939 = vector.load %arg3[%c1744, %c0_1157] : memref<2720x128xf32, #tpu.memory_space<vmem>>, vector<16x128xf32>
    %1940 = arith.mulf %1938, %1939 : vector<16x128xf32>
    %1941 = arith.mulf %1940, %1760 : vector<16x128xf32>
    %c176_1158 = arith.constant 176 : index
    %c0_1159 = arith.constant 0 : index
    %1942 = vector.load %arg2[%c176_1158, %c0_1159] : memref<672x128xf32, #tpu.memory_space<vmem>>, vector<16x128xf32>
    %1943 = arith.subf %1160, %1942 : vector<16x128xf32>
    %c1744_1160 = arith.constant 1744 : index
    %c0_1161 = arith.constant 0 : index
    %1944 = vector.load %arg4[%c1744_1160, %c0_1161] : memref<2720x128xf32, #tpu.memory_space<vmem>>, vector<16x128xf32>
    %1945 = arith.mulf %1943, %1944 : vector<16x128xf32>
    %1946 = arith.mulf %1945, %1771 : vector<16x128xf32>
    %1947 = arith.addf %1941, %1946 : vector<16x128xf32>
    %c48_1162 = arith.constant 48 : index
    %c0_1163 = arith.constant 0 : index
    %1948 = vector.load %arg2[%c48_1162, %c0_1163] : memref<672x128xf32, #tpu.memory_space<vmem>>, vector<16x128xf32>
    %1949 = arith.subf %1160, %1948 : vector<16x128xf32>
    %c1776 = arith.constant 1776 : index
    %c0_1164 = arith.constant 0 : index
    %1950 = vector.load %arg3[%c1776, %c0_1164] : memref<2720x128xf32, #tpu.memory_space<vmem>>, vector<16x128xf32>
    %1951 = arith.mulf %1949, %1950 : vector<16x128xf32>
    %1952 = arith.mulf %1951, %1771 : vector<16x128xf32>
    %c208_1165 = arith.constant 208 : index
    %c0_1166 = arith.constant 0 : index
    %1953 = vector.load %arg2[%c208_1165, %c0_1166] : memref<672x128xf32, #tpu.memory_space<vmem>>, vector<16x128xf32>
    %1954 = arith.subf %1160, %1953 : vector<16x128xf32>
    %c1776_1167 = arith.constant 1776 : index
    %c0_1168 = arith.constant 0 : index
    %1955 = vector.load %arg4[%c1776_1167, %c0_1168] : memref<2720x128xf32, #tpu.memory_space<vmem>>, vector<16x128xf32>
    %1956 = arith.mulf %1954, %1955 : vector<16x128xf32>
    %1957 = arith.mulf %1956, %1782 : vector<16x128xf32>
    %1958 = arith.addf %1952, %1957 : vector<16x128xf32>
    %c80_1169 = arith.constant 80 : index
    %c0_1170 = arith.constant 0 : index
    %1959 = vector.load %arg2[%c80_1169, %c0_1170] : memref<672x128xf32, #tpu.memory_space<vmem>>, vector<16x128xf32>
    %1960 = arith.subf %1160, %1959 : vector<16x128xf32>
    %c1808 = arith.constant 1808 : index
    %c0_1171 = arith.constant 0 : index
    %1961 = vector.load %arg3[%c1808, %c0_1171] : memref<2720x128xf32, #tpu.memory_space<vmem>>, vector<16x128xf32>
    %1962 = arith.mulf %1960, %1961 : vector<16x128xf32>
    %1963 = arith.mulf %1962, %1782 : vector<16x128xf32>
    %c240_1172 = arith.constant 240 : index
    %c0_1173 = arith.constant 0 : index
    %1964 = vector.load %arg2[%c240_1172, %c0_1173] : memref<672x128xf32, #tpu.memory_space<vmem>>, vector<16x128xf32>
    %1965 = arith.subf %1160, %1964 : vector<16x128xf32>
    %c1808_1174 = arith.constant 1808 : index
    %c0_1175 = arith.constant 0 : index
    %1966 = vector.load %arg4[%c1808_1174, %c0_1175] : memref<2720x128xf32, #tpu.memory_space<vmem>>, vector<16x128xf32>
    %1967 = arith.mulf %1965, %1966 : vector<16x128xf32>
    %1968 = arith.mulf %1967, %1793 : vector<16x128xf32>
    %1969 = arith.addf %1963, %1968 : vector<16x128xf32>
    %c112_1176 = arith.constant 112 : index
    %c0_1177 = arith.constant 0 : index
    %1970 = vector.load %arg2[%c112_1176, %c0_1177] : memref<672x128xf32, #tpu.memory_space<vmem>>, vector<16x128xf32>
    %1971 = arith.subf %1160, %1970 : vector<16x128xf32>
    %c1840 = arith.constant 1840 : index
    %c0_1178 = arith.constant 0 : index
    %1972 = vector.load %arg3[%c1840, %c0_1178] : memref<2720x128xf32, #tpu.memory_space<vmem>>, vector<16x128xf32>
    %1973 = arith.mulf %1971, %1972 : vector<16x128xf32>
    %1974 = arith.mulf %1973, %1793 : vector<16x128xf32>
    %c272_1179 = arith.constant 272 : index
    %c0_1180 = arith.constant 0 : index
    %1975 = vector.load %arg2[%c272_1179, %c0_1180] : memref<672x128xf32, #tpu.memory_space<vmem>>, vector<16x128xf32>
    %1976 = arith.subf %1160, %1975 : vector<16x128xf32>
    %c1840_1181 = arith.constant 1840 : index
    %c0_1182 = arith.constant 0 : index
    %1977 = vector.load %arg4[%c1840_1181, %c0_1182] : memref<2720x128xf32, #tpu.memory_space<vmem>>, vector<16x128xf32>
    %1978 = arith.mulf %1976, %1977 : vector<16x128xf32>
    %1979 = arith.mulf %1978, %1804 : vector<16x128xf32>
    %1980 = arith.addf %1974, %1979 : vector<16x128xf32>
    %c144_1183 = arith.constant 144 : index
    %c0_1184 = arith.constant 0 : index
    %1981 = vector.load %arg2[%c144_1183, %c0_1184] : memref<672x128xf32, #tpu.memory_space<vmem>>, vector<16x128xf32>
    %1982 = arith.subf %1160, %1981 : vector<16x128xf32>
    %c1872 = arith.constant 1872 : index
    %c0_1185 = arith.constant 0 : index
    %1983 = vector.load %arg3[%c1872, %c0_1185] : memref<2720x128xf32, #tpu.memory_space<vmem>>, vector<16x128xf32>
    %1984 = arith.mulf %1982, %1983 : vector<16x128xf32>
    %1985 = arith.mulf %1984, %1804 : vector<16x128xf32>
    %c304_1186 = arith.constant 304 : index
    %c0_1187 = arith.constant 0 : index
    %1986 = vector.load %arg2[%c304_1186, %c0_1187] : memref<672x128xf32, #tpu.memory_space<vmem>>, vector<16x128xf32>
    %1987 = arith.subf %1160, %1986 : vector<16x128xf32>
    %c1872_1188 = arith.constant 1872 : index
    %c0_1189 = arith.constant 0 : index
    %1988 = vector.load %arg4[%c1872_1188, %c0_1189] : memref<2720x128xf32, #tpu.memory_space<vmem>>, vector<16x128xf32>
    %1989 = arith.mulf %1987, %1988 : vector<16x128xf32>
    %1990 = arith.mulf %1989, %1815 : vector<16x128xf32>
    %1991 = arith.addf %1985, %1990 : vector<16x128xf32>
    %c176_1190 = arith.constant 176 : index
    %c0_1191 = arith.constant 0 : index
    %1992 = vector.load %arg2[%c176_1190, %c0_1191] : memref<672x128xf32, #tpu.memory_space<vmem>>, vector<16x128xf32>
    %1993 = arith.subf %1160, %1992 : vector<16x128xf32>
    %c1904 = arith.constant 1904 : index
    %c0_1192 = arith.constant 0 : index
    %1994 = vector.load %arg3[%c1904, %c0_1192] : memref<2720x128xf32, #tpu.memory_space<vmem>>, vector<16x128xf32>
    %1995 = arith.mulf %1993, %1994 : vector<16x128xf32>
    %1996 = arith.mulf %1995, %1815 : vector<16x128xf32>
    %c336_1193 = arith.constant 336 : index
    %c0_1194 = arith.constant 0 : index
    %1997 = vector.load %arg2[%c336_1193, %c0_1194] : memref<672x128xf32, #tpu.memory_space<vmem>>, vector<16x128xf32>
    %1998 = arith.subf %1160, %1997 : vector<16x128xf32>
    %c1904_1195 = arith.constant 1904 : index
    %c0_1196 = arith.constant 0 : index
    %1999 = vector.load %arg4[%c1904_1195, %c0_1196] : memref<2720x128xf32, #tpu.memory_space<vmem>>, vector<16x128xf32>
    %2000 = arith.mulf %1998, %1999 : vector<16x128xf32>
    %2001 = arith.mulf %2000, %1826 : vector<16x128xf32>
    %2002 = arith.addf %1996, %2001 : vector<16x128xf32>
    %c208_1197 = arith.constant 208 : index
    %c0_1198 = arith.constant 0 : index
    %2003 = vector.load %arg2[%c208_1197, %c0_1198] : memref<672x128xf32, #tpu.memory_space<vmem>>, vector<16x128xf32>
    %2004 = arith.subf %1160, %2003 : vector<16x128xf32>
    %c1936 = arith.constant 1936 : index
    %c0_1199 = arith.constant 0 : index
    %2005 = vector.load %arg3[%c1936, %c0_1199] : memref<2720x128xf32, #tpu.memory_space<vmem>>, vector<16x128xf32>
    %2006 = arith.mulf %2004, %2005 : vector<16x128xf32>
    %2007 = arith.mulf %2006, %1826 : vector<16x128xf32>
    %c368_1200 = arith.constant 368 : index
    %c0_1201 = arith.constant 0 : index
    %2008 = vector.load %arg2[%c368_1200, %c0_1201] : memref<672x128xf32, #tpu.memory_space<vmem>>, vector<16x128xf32>
    %2009 = arith.subf %1160, %2008 : vector<16x128xf32>
    %c1936_1202 = arith.constant 1936 : index
    %c0_1203 = arith.constant 0 : index
    %2010 = vector.load %arg4[%c1936_1202, %c0_1203] : memref<2720x128xf32, #tpu.memory_space<vmem>>, vector<16x128xf32>
    %2011 = arith.mulf %2009, %2010 : vector<16x128xf32>
    %2012 = arith.mulf %2011, %1837 : vector<16x128xf32>
    %2013 = arith.addf %2007, %2012 : vector<16x128xf32>
    %c240_1204 = arith.constant 240 : index
    %c0_1205 = arith.constant 0 : index
    %2014 = vector.load %arg2[%c240_1204, %c0_1205] : memref<672x128xf32, #tpu.memory_space<vmem>>, vector<16x128xf32>
    %2015 = arith.subf %1160, %2014 : vector<16x128xf32>
    %c1968 = arith.constant 1968 : index
    %c0_1206 = arith.constant 0 : index
    %2016 = vector.load %arg3[%c1968, %c0_1206] : memref<2720x128xf32, #tpu.memory_space<vmem>>, vector<16x128xf32>
    %2017 = arith.mulf %2015, %2016 : vector<16x128xf32>
    %2018 = arith.mulf %2017, %1837 : vector<16x128xf32>
    %c400_1207 = arith.constant 400 : index
    %c0_1208 = arith.constant 0 : index
    %2019 = vector.load %arg2[%c400_1207, %c0_1208] : memref<672x128xf32, #tpu.memory_space<vmem>>, vector<16x128xf32>
    %2020 = arith.subf %1160, %2019 : vector<16x128xf32>
    %c1968_1209 = arith.constant 1968 : index
    %c0_1210 = arith.constant 0 : index
    %2021 = vector.load %arg4[%c1968_1209, %c0_1210] : memref<2720x128xf32, #tpu.memory_space<vmem>>, vector<16x128xf32>
    %2022 = arith.mulf %2020, %2021 : vector<16x128xf32>
    %2023 = arith.mulf %2022, %1848 : vector<16x128xf32>
    %2024 = arith.addf %2018, %2023 : vector<16x128xf32>
    %c272_1211 = arith.constant 272 : index
    %c0_1212 = arith.constant 0 : index
    %2025 = vector.load %arg2[%c272_1211, %c0_1212] : memref<672x128xf32, #tpu.memory_space<vmem>>, vector<16x128xf32>
    %2026 = arith.subf %1160, %2025 : vector<16x128xf32>
    %c2000 = arith.constant 2000 : index
    %c0_1213 = arith.constant 0 : index
    %2027 = vector.load %arg3[%c2000, %c0_1213] : memref<2720x128xf32, #tpu.memory_space<vmem>>, vector<16x128xf32>
    %2028 = arith.mulf %2026, %2027 : vector<16x128xf32>
    %2029 = arith.mulf %2028, %1848 : vector<16x128xf32>
    %c432_1214 = arith.constant 432 : index
    %c0_1215 = arith.constant 0 : index
    %2030 = vector.load %arg2[%c432_1214, %c0_1215] : memref<672x128xf32, #tpu.memory_space<vmem>>, vector<16x128xf32>
    %2031 = arith.subf %1160, %2030 : vector<16x128xf32>
    %c2000_1216 = arith.constant 2000 : index
    %c0_1217 = arith.constant 0 : index
    %2032 = vector.load %arg4[%c2000_1216, %c0_1217] : memref<2720x128xf32, #tpu.memory_space<vmem>>, vector<16x128xf32>
    %2033 = arith.mulf %2031, %2032 : vector<16x128xf32>
    %2034 = arith.mulf %2033, %1859 : vector<16x128xf32>
    %2035 = arith.addf %2029, %2034 : vector<16x128xf32>
    %c304_1218 = arith.constant 304 : index
    %c0_1219 = arith.constant 0 : index
    %2036 = vector.load %arg2[%c304_1218, %c0_1219] : memref<672x128xf32, #tpu.memory_space<vmem>>, vector<16x128xf32>
    %2037 = arith.subf %1160, %2036 : vector<16x128xf32>
    %c2032 = arith.constant 2032 : index
    %c0_1220 = arith.constant 0 : index
    %2038 = vector.load %arg3[%c2032, %c0_1220] : memref<2720x128xf32, #tpu.memory_space<vmem>>, vector<16x128xf32>
    %2039 = arith.mulf %2037, %2038 : vector<16x128xf32>
    %2040 = arith.mulf %2039, %1859 : vector<16x128xf32>
    %c464_1221 = arith.constant 464 : index
    %c0_1222 = arith.constant 0 : index
    %2041 = vector.load %arg2[%c464_1221, %c0_1222] : memref<672x128xf32, #tpu.memory_space<vmem>>, vector<16x128xf32>
    %2042 = arith.subf %1160, %2041 : vector<16x128xf32>
    %c2032_1223 = arith.constant 2032 : index
    %c0_1224 = arith.constant 0 : index
    %2043 = vector.load %arg4[%c2032_1223, %c0_1224] : memref<2720x128xf32, #tpu.memory_space<vmem>>, vector<16x128xf32>
    %2044 = arith.mulf %2042, %2043 : vector<16x128xf32>
    %2045 = arith.mulf %2044, %1870 : vector<16x128xf32>
    %2046 = arith.addf %2040, %2045 : vector<16x128xf32>
    %c336_1225 = arith.constant 336 : index
    %c0_1226 = arith.constant 0 : index
    %2047 = vector.load %arg2[%c336_1225, %c0_1226] : memref<672x128xf32, #tpu.memory_space<vmem>>, vector<16x128xf32>
    %2048 = arith.subf %1160, %2047 : vector<16x128xf32>
    %c2064 = arith.constant 2064 : index
    %c0_1227 = arith.constant 0 : index
    %2049 = vector.load %arg3[%c2064, %c0_1227] : memref<2720x128xf32, #tpu.memory_space<vmem>>, vector<16x128xf32>
    %2050 = arith.mulf %2048, %2049 : vector<16x128xf32>
    %2051 = arith.mulf %2050, %1870 : vector<16x128xf32>
    %c496_1228 = arith.constant 496 : index
    %c0_1229 = arith.constant 0 : index
    %2052 = vector.load %arg2[%c496_1228, %c0_1229] : memref<672x128xf32, #tpu.memory_space<vmem>>, vector<16x128xf32>
    %2053 = arith.subf %1160, %2052 : vector<16x128xf32>
    %c2064_1230 = arith.constant 2064 : index
    %c0_1231 = arith.constant 0 : index
    %2054 = vector.load %arg4[%c2064_1230, %c0_1231] : memref<2720x128xf32, #tpu.memory_space<vmem>>, vector<16x128xf32>
    %2055 = arith.mulf %2053, %2054 : vector<16x128xf32>
    %2056 = arith.mulf %2055, %1881 : vector<16x128xf32>
    %2057 = arith.addf %2051, %2056 : vector<16x128xf32>
    %c368_1232 = arith.constant 368 : index
    %c0_1233 = arith.constant 0 : index
    %2058 = vector.load %arg2[%c368_1232, %c0_1233] : memref<672x128xf32, #tpu.memory_space<vmem>>, vector<16x128xf32>
    %2059 = arith.subf %1160, %2058 : vector<16x128xf32>
    %c2096 = arith.constant 2096 : index
    %c0_1234 = arith.constant 0 : index
    %2060 = vector.load %arg3[%c2096, %c0_1234] : memref<2720x128xf32, #tpu.memory_space<vmem>>, vector<16x128xf32>
    %2061 = arith.mulf %2059, %2060 : vector<16x128xf32>
    %2062 = arith.mulf %2061, %1881 : vector<16x128xf32>
    %c528_1235 = arith.constant 528 : index
    %c0_1236 = arith.constant 0 : index
    %2063 = vector.load %arg2[%c528_1235, %c0_1236] : memref<672x128xf32, #tpu.memory_space<vmem>>, vector<16x128xf32>
    %2064 = arith.subf %1160, %2063 : vector<16x128xf32>
    %c2096_1237 = arith.constant 2096 : index
    %c0_1238 = arith.constant 0 : index
    %2065 = vector.load %arg4[%c2096_1237, %c0_1238] : memref<2720x128xf32, #tpu.memory_space<vmem>>, vector<16x128xf32>
    %2066 = arith.mulf %2064, %2065 : vector<16x128xf32>
    %2067 = arith.mulf %2066, %1892 : vector<16x128xf32>
    %2068 = arith.addf %2062, %2067 : vector<16x128xf32>
    %c400_1239 = arith.constant 400 : index
    %c0_1240 = arith.constant 0 : index
    %2069 = vector.load %arg2[%c400_1239, %c0_1240] : memref<672x128xf32, #tpu.memory_space<vmem>>, vector<16x128xf32>
    %2070 = arith.subf %1160, %2069 : vector<16x128xf32>
    %c2128 = arith.constant 2128 : index
    %c0_1241 = arith.constant 0 : index
    %2071 = vector.load %arg3[%c2128, %c0_1241] : memref<2720x128xf32, #tpu.memory_space<vmem>>, vector<16x128xf32>
    %2072 = arith.mulf %2070, %2071 : vector<16x128xf32>
    %2073 = arith.mulf %2072, %1892 : vector<16x128xf32>
    %c560_1242 = arith.constant 560 : index
    %c0_1243 = arith.constant 0 : index
    %2074 = vector.load %arg2[%c560_1242, %c0_1243] : memref<672x128xf32, #tpu.memory_space<vmem>>, vector<16x128xf32>
    %2075 = arith.subf %1160, %2074 : vector<16x128xf32>
    %c2128_1244 = arith.constant 2128 : index
    %c0_1245 = arith.constant 0 : index
    %2076 = vector.load %arg4[%c2128_1244, %c0_1245] : memref<2720x128xf32, #tpu.memory_space<vmem>>, vector<16x128xf32>
    %2077 = arith.mulf %2075, %2076 : vector<16x128xf32>
    %2078 = arith.mulf %2077, %1903 : vector<16x128xf32>
    %2079 = arith.addf %2073, %2078 : vector<16x128xf32>
    %c432_1246 = arith.constant 432 : index
    %c0_1247 = arith.constant 0 : index
    %2080 = vector.load %arg2[%c432_1246, %c0_1247] : memref<672x128xf32, #tpu.memory_space<vmem>>, vector<16x128xf32>
    %2081 = arith.subf %1160, %2080 : vector<16x128xf32>
    %c2160 = arith.constant 2160 : index
    %c0_1248 = arith.constant 0 : index
    %2082 = vector.load %arg3[%c2160, %c0_1248] : memref<2720x128xf32, #tpu.memory_space<vmem>>, vector<16x128xf32>
    %2083 = arith.mulf %2081, %2082 : vector<16x128xf32>
    %2084 = arith.mulf %2083, %1903 : vector<16x128xf32>
    %c592_1249 = arith.constant 592 : index
    %c0_1250 = arith.constant 0 : index
    %2085 = vector.load %arg2[%c592_1249, %c0_1250] : memref<672x128xf32, #tpu.memory_space<vmem>>, vector<16x128xf32>
    %2086 = arith.subf %1160, %2085 : vector<16x128xf32>
    %c2160_1251 = arith.constant 2160 : index
    %c0_1252 = arith.constant 0 : index
    %2087 = vector.load %arg4[%c2160_1251, %c0_1252] : memref<2720x128xf32, #tpu.memory_space<vmem>>, vector<16x128xf32>
    %2088 = arith.mulf %2086, %2087 : vector<16x128xf32>
    %2089 = arith.mulf %2088, %1914 : vector<16x128xf32>
    %2090 = arith.addf %2084, %2089 : vector<16x128xf32>
    %c464_1253 = arith.constant 464 : index
    %c0_1254 = arith.constant 0 : index
    %2091 = vector.load %arg2[%c464_1253, %c0_1254] : memref<672x128xf32, #tpu.memory_space<vmem>>, vector<16x128xf32>
    %2092 = arith.subf %1160, %2091 : vector<16x128xf32>
    %c2192 = arith.constant 2192 : index
    %c0_1255 = arith.constant 0 : index
    %2093 = vector.load %arg3[%c2192, %c0_1255] : memref<2720x128xf32, #tpu.memory_space<vmem>>, vector<16x128xf32>
    %2094 = arith.mulf %2092, %2093 : vector<16x128xf32>
    %2095 = arith.mulf %2094, %1914 : vector<16x128xf32>
    %c624_1256 = arith.constant 624 : index
    %c0_1257 = arith.constant 0 : index
    %2096 = vector.load %arg2[%c624_1256, %c0_1257] : memref<672x128xf32, #tpu.memory_space<vmem>>, vector<16x128xf32>
    %2097 = arith.subf %1160, %2096 : vector<16x128xf32>
    %c2192_1258 = arith.constant 2192 : index
    %c0_1259 = arith.constant 0 : index
    %2098 = vector.load %arg4[%c2192_1258, %c0_1259] : memref<2720x128xf32, #tpu.memory_space<vmem>>, vector<16x128xf32>
    %2099 = arith.mulf %2097, %2098 : vector<16x128xf32>
    %2100 = arith.mulf %2099, %1925 : vector<16x128xf32>
    %2101 = arith.addf %2095, %2100 : vector<16x128xf32>
    %c496_1260 = arith.constant 496 : index
    %c0_1261 = arith.constant 0 : index
    %2102 = vector.load %arg2[%c496_1260, %c0_1261] : memref<672x128xf32, #tpu.memory_space<vmem>>, vector<16x128xf32>
    %2103 = arith.subf %1160, %2102 : vector<16x128xf32>
    %c2224 = arith.constant 2224 : index
    %c0_1262 = arith.constant 0 : index
    %2104 = vector.load %arg3[%c2224, %c0_1262] : memref<2720x128xf32, #tpu.memory_space<vmem>>, vector<16x128xf32>
    %2105 = arith.mulf %2103, %2104 : vector<16x128xf32>
    %2106 = arith.mulf %2105, %1925 : vector<16x128xf32>
    %c656_1263 = arith.constant 656 : index
    %c0_1264 = arith.constant 0 : index
    %2107 = vector.load %arg2[%c656_1263, %c0_1264] : memref<672x128xf32, #tpu.memory_space<vmem>>, vector<16x128xf32>
    %2108 = arith.subf %1160, %2107 : vector<16x128xf32>
    %c2224_1265 = arith.constant 2224 : index
    %c0_1266 = arith.constant 0 : index
    %2109 = vector.load %arg4[%c2224_1265, %c0_1266] : memref<2720x128xf32, #tpu.memory_space<vmem>>, vector<16x128xf32>
    %2110 = arith.mulf %2108, %2109 : vector<16x128xf32>
    %2111 = arith.mulf %2110, %1936 : vector<16x128xf32>
    %2112 = arith.addf %2106, %2111 : vector<16x128xf32>
    %c16_1267 = arith.constant 16 : index
    %c0_1268 = arith.constant 0 : index
    %2113 = vector.load %arg2[%c16_1267, %c0_1268] : memref<672x128xf32, #tpu.memory_space<vmem>>, vector<16x128xf32>
    %2114 = arith.subf %1160, %2113 : vector<16x128xf32>
    %c2256 = arith.constant 2256 : index
    %c0_1269 = arith.constant 0 : index
    %2115 = vector.load %arg3[%c2256, %c0_1269] : memref<2720x128xf32, #tpu.memory_space<vmem>>, vector<16x128xf32>
    %2116 = arith.mulf %2114, %2115 : vector<16x128xf32>
    %2117 = arith.mulf %2116, %1947 : vector<16x128xf32>
    %c208_1270 = arith.constant 208 : index
    %c0_1271 = arith.constant 0 : index
    %2118 = vector.load %arg2[%c208_1270, %c0_1271] : memref<672x128xf32, #tpu.memory_space<vmem>>, vector<16x128xf32>
    %2119 = arith.subf %1160, %2118 : vector<16x128xf32>
    %c2256_1272 = arith.constant 2256 : index
    %c0_1273 = arith.constant 0 : index
    %2120 = vector.load %arg4[%c2256_1272, %c0_1273] : memref<2720x128xf32, #tpu.memory_space<vmem>>, vector<16x128xf32>
    %2121 = arith.mulf %2119, %2120 : vector<16x128xf32>
    %2122 = arith.mulf %2121, %1958 : vector<16x128xf32>
    %2123 = arith.addf %2117, %2122 : vector<16x128xf32>
    %c48_1274 = arith.constant 48 : index
    %c0_1275 = arith.constant 0 : index
    %2124 = vector.load %arg2[%c48_1274, %c0_1275] : memref<672x128xf32, #tpu.memory_space<vmem>>, vector<16x128xf32>
    %2125 = arith.subf %1160, %2124 : vector<16x128xf32>
    %c2288 = arith.constant 2288 : index
    %c0_1276 = arith.constant 0 : index
    %2126 = vector.load %arg3[%c2288, %c0_1276] : memref<2720x128xf32, #tpu.memory_space<vmem>>, vector<16x128xf32>
    %2127 = arith.mulf %2125, %2126 : vector<16x128xf32>
    %2128 = arith.mulf %2127, %1958 : vector<16x128xf32>
    %c240_1277 = arith.constant 240 : index
    %c0_1278 = arith.constant 0 : index
    %2129 = vector.load %arg2[%c240_1277, %c0_1278] : memref<672x128xf32, #tpu.memory_space<vmem>>, vector<16x128xf32>
    %2130 = arith.subf %1160, %2129 : vector<16x128xf32>
    %c2288_1279 = arith.constant 2288 : index
    %c0_1280 = arith.constant 0 : index
    %2131 = vector.load %arg4[%c2288_1279, %c0_1280] : memref<2720x128xf32, #tpu.memory_space<vmem>>, vector<16x128xf32>
    %2132 = arith.mulf %2130, %2131 : vector<16x128xf32>
    %2133 = arith.mulf %2132, %1969 : vector<16x128xf32>
    %2134 = arith.addf %2128, %2133 : vector<16x128xf32>
    %c80_1281 = arith.constant 80 : index
    %c0_1282 = arith.constant 0 : index
    %2135 = vector.load %arg2[%c80_1281, %c0_1282] : memref<672x128xf32, #tpu.memory_space<vmem>>, vector<16x128xf32>
    %2136 = arith.subf %1160, %2135 : vector<16x128xf32>
    %c2320 = arith.constant 2320 : index
    %c0_1283 = arith.constant 0 : index
    %2137 = vector.load %arg3[%c2320, %c0_1283] : memref<2720x128xf32, #tpu.memory_space<vmem>>, vector<16x128xf32>
    %2138 = arith.mulf %2136, %2137 : vector<16x128xf32>
    %2139 = arith.mulf %2138, %1969 : vector<16x128xf32>
    %c272_1284 = arith.constant 272 : index
    %c0_1285 = arith.constant 0 : index
    %2140 = vector.load %arg2[%c272_1284, %c0_1285] : memref<672x128xf32, #tpu.memory_space<vmem>>, vector<16x128xf32>
    %2141 = arith.subf %1160, %2140 : vector<16x128xf32>
    %c2320_1286 = arith.constant 2320 : index
    %c0_1287 = arith.constant 0 : index
    %2142 = vector.load %arg4[%c2320_1286, %c0_1287] : memref<2720x128xf32, #tpu.memory_space<vmem>>, vector<16x128xf32>
    %2143 = arith.mulf %2141, %2142 : vector<16x128xf32>
    %2144 = arith.mulf %2143, %1980 : vector<16x128xf32>
    %2145 = arith.addf %2139, %2144 : vector<16x128xf32>
    %c112_1288 = arith.constant 112 : index
    %c0_1289 = arith.constant 0 : index
    %2146 = vector.load %arg2[%c112_1288, %c0_1289] : memref<672x128xf32, #tpu.memory_space<vmem>>, vector<16x128xf32>
    %2147 = arith.subf %1160, %2146 : vector<16x128xf32>
    %c2352 = arith.constant 2352 : index
    %c0_1290 = arith.constant 0 : index
    %2148 = vector.load %arg3[%c2352, %c0_1290] : memref<2720x128xf32, #tpu.memory_space<vmem>>, vector<16x128xf32>
    %2149 = arith.mulf %2147, %2148 : vector<16x128xf32>
    %2150 = arith.mulf %2149, %1980 : vector<16x128xf32>
    %c304_1291 = arith.constant 304 : index
    %c0_1292 = arith.constant 0 : index
    %2151 = vector.load %arg2[%c304_1291, %c0_1292] : memref<672x128xf32, #tpu.memory_space<vmem>>, vector<16x128xf32>
    %2152 = arith.subf %1160, %2151 : vector<16x128xf32>
    %c2352_1293 = arith.constant 2352 : index
    %c0_1294 = arith.constant 0 : index
    %2153 = vector.load %arg4[%c2352_1293, %c0_1294] : memref<2720x128xf32, #tpu.memory_space<vmem>>, vector<16x128xf32>
    %2154 = arith.mulf %2152, %2153 : vector<16x128xf32>
    %2155 = arith.mulf %2154, %1991 : vector<16x128xf32>
    %2156 = arith.addf %2150, %2155 : vector<16x128xf32>
    %c144_1295 = arith.constant 144 : index
    %c0_1296 = arith.constant 0 : index
    %2157 = vector.load %arg2[%c144_1295, %c0_1296] : memref<672x128xf32, #tpu.memory_space<vmem>>, vector<16x128xf32>
    %2158 = arith.subf %1160, %2157 : vector<16x128xf32>
    %c2384 = arith.constant 2384 : index
    %c0_1297 = arith.constant 0 : index
    %2159 = vector.load %arg3[%c2384, %c0_1297] : memref<2720x128xf32, #tpu.memory_space<vmem>>, vector<16x128xf32>
    %2160 = arith.mulf %2158, %2159 : vector<16x128xf32>
    %2161 = arith.mulf %2160, %1991 : vector<16x128xf32>
    %c336_1298 = arith.constant 336 : index
    %c0_1299 = arith.constant 0 : index
    %2162 = vector.load %arg2[%c336_1298, %c0_1299] : memref<672x128xf32, #tpu.memory_space<vmem>>, vector<16x128xf32>
    %2163 = arith.subf %1160, %2162 : vector<16x128xf32>
    %c2384_1300 = arith.constant 2384 : index
    %c0_1301 = arith.constant 0 : index
    %2164 = vector.load %arg4[%c2384_1300, %c0_1301] : memref<2720x128xf32, #tpu.memory_space<vmem>>, vector<16x128xf32>
    %2165 = arith.mulf %2163, %2164 : vector<16x128xf32>
    %2166 = arith.mulf %2165, %2002 : vector<16x128xf32>
    %2167 = arith.addf %2161, %2166 : vector<16x128xf32>
    %c176_1302 = arith.constant 176 : index
    %c0_1303 = arith.constant 0 : index
    %2168 = vector.load %arg2[%c176_1302, %c0_1303] : memref<672x128xf32, #tpu.memory_space<vmem>>, vector<16x128xf32>
    %2169 = arith.subf %1160, %2168 : vector<16x128xf32>
    %c2416 = arith.constant 2416 : index
    %c0_1304 = arith.constant 0 : index
    %2170 = vector.load %arg3[%c2416, %c0_1304] : memref<2720x128xf32, #tpu.memory_space<vmem>>, vector<16x128xf32>
    %2171 = arith.mulf %2169, %2170 : vector<16x128xf32>
    %2172 = arith.mulf %2171, %2002 : vector<16x128xf32>
    %c368_1305 = arith.constant 368 : index
    %c0_1306 = arith.constant 0 : index
    %2173 = vector.load %arg2[%c368_1305, %c0_1306] : memref<672x128xf32, #tpu.memory_space<vmem>>, vector<16x128xf32>
    %2174 = arith.subf %1160, %2173 : vector<16x128xf32>
    %c2416_1307 = arith.constant 2416 : index
    %c0_1308 = arith.constant 0 : index
    %2175 = vector.load %arg4[%c2416_1307, %c0_1308] : memref<2720x128xf32, #tpu.memory_space<vmem>>, vector<16x128xf32>
    %2176 = arith.mulf %2174, %2175 : vector<16x128xf32>
    %2177 = arith.mulf %2176, %2013 : vector<16x128xf32>
    %2178 = arith.addf %2172, %2177 : vector<16x128xf32>
    %c208_1309 = arith.constant 208 : index
    %c0_1310 = arith.constant 0 : index
    %2179 = vector.load %arg2[%c208_1309, %c0_1310] : memref<672x128xf32, #tpu.memory_space<vmem>>, vector<16x128xf32>
    %2180 = arith.subf %1160, %2179 : vector<16x128xf32>
    %c2448 = arith.constant 2448 : index
    %c0_1311 = arith.constant 0 : index
    %2181 = vector.load %arg3[%c2448, %c0_1311] : memref<2720x128xf32, #tpu.memory_space<vmem>>, vector<16x128xf32>
    %2182 = arith.mulf %2180, %2181 : vector<16x128xf32>
    %2183 = arith.mulf %2182, %2013 : vector<16x128xf32>
    %c400_1312 = arith.constant 400 : index
    %c0_1313 = arith.constant 0 : index
    %2184 = vector.load %arg2[%c400_1312, %c0_1313] : memref<672x128xf32, #tpu.memory_space<vmem>>, vector<16x128xf32>
    %2185 = arith.subf %1160, %2184 : vector<16x128xf32>
    %c2448_1314 = arith.constant 2448 : index
    %c0_1315 = arith.constant 0 : index
    %2186 = vector.load %arg4[%c2448_1314, %c0_1315] : memref<2720x128xf32, #tpu.memory_space<vmem>>, vector<16x128xf32>
    %2187 = arith.mulf %2185, %2186 : vector<16x128xf32>
    %2188 = arith.mulf %2187, %2024 : vector<16x128xf32>
    %2189 = arith.addf %2183, %2188 : vector<16x128xf32>
    %c240_1316 = arith.constant 240 : index
    %c0_1317 = arith.constant 0 : index
    %2190 = vector.load %arg2[%c240_1316, %c0_1317] : memref<672x128xf32, #tpu.memory_space<vmem>>, vector<16x128xf32>
    %2191 = arith.subf %1160, %2190 : vector<16x128xf32>
    %c2480 = arith.constant 2480 : index
    %c0_1318 = arith.constant 0 : index
    %2192 = vector.load %arg3[%c2480, %c0_1318] : memref<2720x128xf32, #tpu.memory_space<vmem>>, vector<16x128xf32>
    %2193 = arith.mulf %2191, %2192 : vector<16x128xf32>
    %2194 = arith.mulf %2193, %2024 : vector<16x128xf32>
    %c432_1319 = arith.constant 432 : index
    %c0_1320 = arith.constant 0 : index
    %2195 = vector.load %arg2[%c432_1319, %c0_1320] : memref<672x128xf32, #tpu.memory_space<vmem>>, vector<16x128xf32>
    %2196 = arith.subf %1160, %2195 : vector<16x128xf32>
    %c2480_1321 = arith.constant 2480 : index
    %c0_1322 = arith.constant 0 : index
    %2197 = vector.load %arg4[%c2480_1321, %c0_1322] : memref<2720x128xf32, #tpu.memory_space<vmem>>, vector<16x128xf32>
    %2198 = arith.mulf %2196, %2197 : vector<16x128xf32>
    %2199 = arith.mulf %2198, %2035 : vector<16x128xf32>
    %2200 = arith.addf %2194, %2199 : vector<16x128xf32>
    %c272_1323 = arith.constant 272 : index
    %c0_1324 = arith.constant 0 : index
    %2201 = vector.load %arg2[%c272_1323, %c0_1324] : memref<672x128xf32, #tpu.memory_space<vmem>>, vector<16x128xf32>
    %2202 = arith.subf %1160, %2201 : vector<16x128xf32>
    %c2512 = arith.constant 2512 : index
    %c0_1325 = arith.constant 0 : index
    %2203 = vector.load %arg3[%c2512, %c0_1325] : memref<2720x128xf32, #tpu.memory_space<vmem>>, vector<16x128xf32>
    %2204 = arith.mulf %2202, %2203 : vector<16x128xf32>
    %2205 = arith.mulf %2204, %2035 : vector<16x128xf32>
    %c464_1326 = arith.constant 464 : index
    %c0_1327 = arith.constant 0 : index
    %2206 = vector.load %arg2[%c464_1326, %c0_1327] : memref<672x128xf32, #tpu.memory_space<vmem>>, vector<16x128xf32>
    %2207 = arith.subf %1160, %2206 : vector<16x128xf32>
    %c2512_1328 = arith.constant 2512 : index
    %c0_1329 = arith.constant 0 : index
    %2208 = vector.load %arg4[%c2512_1328, %c0_1329] : memref<2720x128xf32, #tpu.memory_space<vmem>>, vector<16x128xf32>
    %2209 = arith.mulf %2207, %2208 : vector<16x128xf32>
    %2210 = arith.mulf %2209, %2046 : vector<16x128xf32>
    %2211 = arith.addf %2205, %2210 : vector<16x128xf32>
    %c304_1330 = arith.constant 304 : index
    %c0_1331 = arith.constant 0 : index
    %2212 = vector.load %arg2[%c304_1330, %c0_1331] : memref<672x128xf32, #tpu.memory_space<vmem>>, vector<16x128xf32>
    %2213 = arith.subf %1160, %2212 : vector<16x128xf32>
    %c2544 = arith.constant 2544 : index
    %c0_1332 = arith.constant 0 : index
    %2214 = vector.load %arg3[%c2544, %c0_1332] : memref<2720x128xf32, #tpu.memory_space<vmem>>, vector<16x128xf32>
    %2215 = arith.mulf %2213, %2214 : vector<16x128xf32>
    %2216 = arith.mulf %2215, %2046 : vector<16x128xf32>
    %c496_1333 = arith.constant 496 : index
    %c0_1334 = arith.constant 0 : index
    %2217 = vector.load %arg2[%c496_1333, %c0_1334] : memref<672x128xf32, #tpu.memory_space<vmem>>, vector<16x128xf32>
    %2218 = arith.subf %1160, %2217 : vector<16x128xf32>
    %c2544_1335 = arith.constant 2544 : index
    %c0_1336 = arith.constant 0 : index
    %2219 = vector.load %arg4[%c2544_1335, %c0_1336] : memref<2720x128xf32, #tpu.memory_space<vmem>>, vector<16x128xf32>
    %2220 = arith.mulf %2218, %2219 : vector<16x128xf32>
    %2221 = arith.mulf %2220, %2057 : vector<16x128xf32>
    %2222 = arith.addf %2216, %2221 : vector<16x128xf32>
    %c336_1337 = arith.constant 336 : index
    %c0_1338 = arith.constant 0 : index
    %2223 = vector.load %arg2[%c336_1337, %c0_1338] : memref<672x128xf32, #tpu.memory_space<vmem>>, vector<16x128xf32>
    %2224 = arith.subf %1160, %2223 : vector<16x128xf32>
    %c2576 = arith.constant 2576 : index
    %c0_1339 = arith.constant 0 : index
    %2225 = vector.load %arg3[%c2576, %c0_1339] : memref<2720x128xf32, #tpu.memory_space<vmem>>, vector<16x128xf32>
    %2226 = arith.mulf %2224, %2225 : vector<16x128xf32>
    %2227 = arith.mulf %2226, %2057 : vector<16x128xf32>
    %c528_1340 = arith.constant 528 : index
    %c0_1341 = arith.constant 0 : index
    %2228 = vector.load %arg2[%c528_1340, %c0_1341] : memref<672x128xf32, #tpu.memory_space<vmem>>, vector<16x128xf32>
    %2229 = arith.subf %1160, %2228 : vector<16x128xf32>
    %c2576_1342 = arith.constant 2576 : index
    %c0_1343 = arith.constant 0 : index
    %2230 = vector.load %arg4[%c2576_1342, %c0_1343] : memref<2720x128xf32, #tpu.memory_space<vmem>>, vector<16x128xf32>
    %2231 = arith.mulf %2229, %2230 : vector<16x128xf32>
    %2232 = arith.mulf %2231, %2068 : vector<16x128xf32>
    %2233 = arith.addf %2227, %2232 : vector<16x128xf32>
    %c368_1344 = arith.constant 368 : index
    %c0_1345 = arith.constant 0 : index
    %2234 = vector.load %arg2[%c368_1344, %c0_1345] : memref<672x128xf32, #tpu.memory_space<vmem>>, vector<16x128xf32>
    %2235 = arith.subf %1160, %2234 : vector<16x128xf32>
    %c2608 = arith.constant 2608 : index
    %c0_1346 = arith.constant 0 : index
    %2236 = vector.load %arg3[%c2608, %c0_1346] : memref<2720x128xf32, #tpu.memory_space<vmem>>, vector<16x128xf32>
    %2237 = arith.mulf %2235, %2236 : vector<16x128xf32>
    %2238 = arith.mulf %2237, %2068 : vector<16x128xf32>
    %c560_1347 = arith.constant 560 : index
    %c0_1348 = arith.constant 0 : index
    %2239 = vector.load %arg2[%c560_1347, %c0_1348] : memref<672x128xf32, #tpu.memory_space<vmem>>, vector<16x128xf32>
    %2240 = arith.subf %1160, %2239 : vector<16x128xf32>
    %c2608_1349 = arith.constant 2608 : index
    %c0_1350 = arith.constant 0 : index
    %2241 = vector.load %arg4[%c2608_1349, %c0_1350] : memref<2720x128xf32, #tpu.memory_space<vmem>>, vector<16x128xf32>
    %2242 = arith.mulf %2240, %2241 : vector<16x128xf32>
    %2243 = arith.mulf %2242, %2079 : vector<16x128xf32>
    %2244 = arith.addf %2238, %2243 : vector<16x128xf32>
    %c400_1351 = arith.constant 400 : index
    %c0_1352 = arith.constant 0 : index
    %2245 = vector.load %arg2[%c400_1351, %c0_1352] : memref<672x128xf32, #tpu.memory_space<vmem>>, vector<16x128xf32>
    %2246 = arith.subf %1160, %2245 : vector<16x128xf32>
    %c2640 = arith.constant 2640 : index
    %c0_1353 = arith.constant 0 : index
    %2247 = vector.load %arg3[%c2640, %c0_1353] : memref<2720x128xf32, #tpu.memory_space<vmem>>, vector<16x128xf32>
    %2248 = arith.mulf %2246, %2247 : vector<16x128xf32>
    %2249 = arith.mulf %2248, %2079 : vector<16x128xf32>
    %c592_1354 = arith.constant 592 : index
    %c0_1355 = arith.constant 0 : index
    %2250 = vector.load %arg2[%c592_1354, %c0_1355] : memref<672x128xf32, #tpu.memory_space<vmem>>, vector<16x128xf32>
    %2251 = arith.subf %1160, %2250 : vector<16x128xf32>
    %c2640_1356 = arith.constant 2640 : index
    %c0_1357 = arith.constant 0 : index
    %2252 = vector.load %arg4[%c2640_1356, %c0_1357] : memref<2720x128xf32, #tpu.memory_space<vmem>>, vector<16x128xf32>
    %2253 = arith.mulf %2251, %2252 : vector<16x128xf32>
    %2254 = arith.mulf %2253, %2090 : vector<16x128xf32>
    %2255 = arith.addf %2249, %2254 : vector<16x128xf32>
    %c432_1358 = arith.constant 432 : index
    %c0_1359 = arith.constant 0 : index
    %2256 = vector.load %arg2[%c432_1358, %c0_1359] : memref<672x128xf32, #tpu.memory_space<vmem>>, vector<16x128xf32>
    %2257 = arith.subf %1160, %2256 : vector<16x128xf32>
    %c2672 = arith.constant 2672 : index
    %c0_1360 = arith.constant 0 : index
    %2258 = vector.load %arg3[%c2672, %c0_1360] : memref<2720x128xf32, #tpu.memory_space<vmem>>, vector<16x128xf32>
    %2259 = arith.mulf %2257, %2258 : vector<16x128xf32>
    %2260 = arith.mulf %2259, %2090 : vector<16x128xf32>
    %c624_1361 = arith.constant 624 : index
    %c0_1362 = arith.constant 0 : index
    %2261 = vector.load %arg2[%c624_1361, %c0_1362] : memref<672x128xf32, #tpu.memory_space<vmem>>, vector<16x128xf32>
    %2262 = arith.subf %1160, %2261 : vector<16x128xf32>
    %c2672_1363 = arith.constant 2672 : index
    %c0_1364 = arith.constant 0 : index
    %2263 = vector.load %arg4[%c2672_1363, %c0_1364] : memref<2720x128xf32, #tpu.memory_space<vmem>>, vector<16x128xf32>
    %2264 = arith.mulf %2262, %2263 : vector<16x128xf32>
    %2265 = arith.mulf %2264, %2101 : vector<16x128xf32>
    %2266 = arith.addf %2260, %2265 : vector<16x128xf32>
    %c464_1365 = arith.constant 464 : index
    %c0_1366 = arith.constant 0 : index
    %2267 = vector.load %arg2[%c464_1365, %c0_1366] : memref<672x128xf32, #tpu.memory_space<vmem>>, vector<16x128xf32>
    %2268 = arith.subf %1160, %2267 : vector<16x128xf32>
    %c2704 = arith.constant 2704 : index
    %c0_1367 = arith.constant 0 : index
    %2269 = vector.load %arg3[%c2704, %c0_1367] : memref<2720x128xf32, #tpu.memory_space<vmem>>, vector<16x128xf32>
    %2270 = arith.mulf %2268, %2269 : vector<16x128xf32>
    %2271 = arith.mulf %2270, %2101 : vector<16x128xf32>
    %c656_1368 = arith.constant 656 : index
    %c0_1369 = arith.constant 0 : index
    %2272 = vector.load %arg2[%c656_1368, %c0_1369] : memref<672x128xf32, #tpu.memory_space<vmem>>, vector<16x128xf32>
    %2273 = arith.subf %1160, %2272 : vector<16x128xf32>
    %c2704_1370 = arith.constant 2704 : index
    %c0_1371 = arith.constant 0 : index
    %2274 = vector.load %arg4[%c2704_1370, %c0_1371] : memref<2720x128xf32, #tpu.memory_space<vmem>>, vector<16x128xf32>
    %2275 = arith.mulf %2273, %2274 : vector<16x128xf32>
    %2276 = arith.mulf %2275, %2112 : vector<16x128xf32>
    %2277 = arith.addf %2271, %2276 : vector<16x128xf32>
    %2278 = arith.negf %1160 : vector<16x128xf32>
    %2279 = math.exp %2278 : vector<16x128xf32>
    %cst_1372 = arith.constant 1.000000e+00 : f32
    %2280 = vector.broadcast %cst_1372 : f32 to vector<16x128xf32>
    %2281 = arith.addf %2280, %2279 : vector<16x128xf32>
    %2282 = arith.divf %2280, %2281 : vector<16x128xf32>
    %2283 = arith.mulf %1160, %2282 : vector<16x128xf32>
    %c16_1373 = arith.constant 16 : index
    %2284 = arith.index_cast %1 : i32 to index
    %2285 = vector.load %arg7[%c16_1373, %2284] : memref<512x128xf32, #tpu.memory_space<vmem>>, vector<16x128xf32>
    tpu.vector_store %arg7[%c16_1373, %2284], %2283 {strides = array<i32>} : memref<512x128xf32, #tpu.memory_space<vmem>>, vector<16x128xf32>,
    %c48_1374 = arith.constant 48 : index
    %2286 = arith.index_cast %1 : i32 to index
    %2287 = vector.load %arg7[%c48_1374, %2286] : memref<512x128xf32, #tpu.memory_space<vmem>>, vector<16x128xf32>
    tpu.vector_store %arg7[%c48_1374, %2286], %2123 {strides = array<i32>} : memref<512x128xf32, #tpu.memory_space<vmem>>, vector<16x128xf32>,
    %c80_1375 = arith.constant 80 : index
    %2288 = arith.index_cast %1 : i32 to index
    %2289 = vector.load %arg7[%c80_1375, %2288] : memref<512x128xf32, #tpu.memory_space<vmem>>, vector<16x128xf32>
    tpu.vector_store %arg7[%c80_1375, %2288], %2134 {strides = array<i32>} : memref<512x128xf32, #tpu.memory_space<vmem>>, vector<16x128xf32>,
    %c112_1376 = arith.constant 112 : index
    %2290 = arith.index_cast %1 : i32 to index
    %2291 = vector.load %arg7[%c112_1376, %2290] : memref<512x128xf32, #tpu.memory_space<vmem>>, vector<16x128xf32>
    tpu.vector_store %arg7[%c112_1376, %2290], %2145 {strides = array<i32>} : memref<512x128xf32, #tpu.memory_space<vmem>>, vector<16x128xf32>,
    %c144_1377 = arith.constant 144 : index
    %2292 = arith.index_cast %1 : i32 to index
    %2293 = vector.load %arg7[%c144_1377, %2292] : memref<512x128xf32, #tpu.memory_space<vmem>>, vector<16x128xf32>
    tpu.vector_store %arg7[%c144_1377, %2292], %2156 {strides = array<i32>} : memref<512x128xf32, #tpu.memory_space<vmem>>, vector<16x128xf32>,
    %c176_1378 = arith.constant 176 : index
    %2294 = arith.index_cast %1 : i32 to index
    %2295 = vector.load %arg7[%c176_1378, %2294] : memref<512x128xf32, #tpu.memory_space<vmem>>, vector<16x128xf32>
    tpu.vector_store %arg7[%c176_1378, %2294], %2167 {strides = array<i32>} : memref<512x128xf32, #tpu.memory_space<vmem>>, vector<16x128xf32>,
    %c208_1379 = arith.constant 208 : index
    %2296 = arith.index_cast %1 : i32 to index
    %2297 = vector.load %arg7[%c208_1379, %2296] : memref<512x128xf32, #tpu.memory_space<vmem>>, vector<16x128xf32>
    tpu.vector_store %arg7[%c208_1379, %2296], %2178 {strides = array<i32>} : memref<512x128xf32, #tpu.memory_space<vmem>>, vector<16x128xf32>,
    %c240_1380 = arith.constant 240 : index
    %2298 = arith.index_cast %1 : i32 to index
    %2299 = vector.load %arg7[%c240_1380, %2298] : memref<512x128xf32, #tpu.memory_space<vmem>>, vector<16x128xf32>
    tpu.vector_store %arg7[%c240_1380, %2298], %2189 {strides = array<i32>} : memref<512x128xf32, #tpu.memory_space<vmem>>, vector<16x128xf32>,
    %c272_1381 = arith.constant 272 : index
    %2300 = arith.index_cast %1 : i32 to index
    %2301 = vector.load %arg7[%c272_1381, %2300] : memref<512x128xf32, #tpu.memory_space<vmem>>, vector<16x128xf32>
    tpu.vector_store %arg7[%c272_1381, %2300], %2200 {strides = array<i32>} : memref<512x128xf32, #tpu.memory_space<vmem>>, vector<16x128xf32>,
    %c304_1382 = arith.constant 304 : index
    %2302 = arith.index_cast %1 : i32 to index
    %2303 = vector.load %arg7[%c304_1382, %2302] : memref<512x128xf32, #tpu.memory_space<vmem>>, vector<16x128xf32>
    tpu.vector_store %arg7[%c304_1382, %2302], %2211 {strides = array<i32>} : memref<512x128xf32, #tpu.memory_space<vmem>>, vector<16x128xf32>,
    %c336_1383 = arith.constant 336 : index
    %2304 = arith.index_cast %1 : i32 to index
    %2305 = vector.load %arg7[%c336_1383, %2304] : memref<512x128xf32, #tpu.memory_space<vmem>>, vector<16x128xf32>
    tpu.vector_store %arg7[%c336_1383, %2304], %2222 {strides = array<i32>} : memref<512x128xf32, #tpu.memory_space<vmem>>, vector<16x128xf32>,
    %c368_1384 = arith.constant 368 : index
    %2306 = arith.index_cast %1 : i32 to index
    %2307 = vector.load %arg7[%c368_1384, %2306] : memref<512x128xf32, #tpu.memory_space<vmem>>, vector<16x128xf32>
    tpu.vector_store %arg7[%c368_1384, %2306], %2233 {strides = array<i32>} : memref<512x128xf32, #tpu.memory_space<vmem>>, vector<16x128xf32>,
    %c400_1385 = arith.constant 400 : index
    %2308 = arith.index_cast %1 : i32 to index
    %2309 = vector.load %arg7[%c400_1385, %2308] : memref<512x128xf32, #tpu.memory_space<vmem>>, vector<16x128xf32>
    tpu.vector_store %arg7[%c400_1385, %2308], %2244 {strides = array<i32>} : memref<512x128xf32, #tpu.memory_space<vmem>>, vector<16x128xf32>,
    %c432_1386 = arith.constant 432 : index
    %2310 = arith.index_cast %1 : i32 to index
    %2311 = vector.load %arg7[%c432_1386, %2310] : memref<512x128xf32, #tpu.memory_space<vmem>>, vector<16x128xf32>
    tpu.vector_store %arg7[%c432_1386, %2310], %2255 {strides = array<i32>} : memref<512x128xf32, #tpu.memory_space<vmem>>, vector<16x128xf32>,
    %c464_1387 = arith.constant 464 : index
    %2312 = arith.index_cast %1 : i32 to index
    %2313 = vector.load %arg7[%c464_1387, %2312] : memref<512x128xf32, #tpu.memory_space<vmem>>, vector<16x128xf32>
    tpu.vector_store %arg7[%c464_1387, %2312], %2266 {strides = array<i32>} : memref<512x128xf32, #tpu.memory_space<vmem>>, vector<16x128xf32>,
    %c496_1388 = arith.constant 496 : index
    %2314 = arith.index_cast %1 : i32 to index
    %2315 = vector.load %arg7[%c496_1388, %2314] : memref<512x128xf32, #tpu.memory_space<vmem>>, vector<16x128xf32>
    tpu.vector_store %arg7[%c496_1388, %2314], %2277 {strides = array<i32>} : memref<512x128xf32, #tpu.memory_space<vmem>>, vector<16x128xf32>,
    %c1_i32 = arith.constant 1 : i32
    %c0_1389 = arith.constant 0 : index
    %c0_1390 = arith.constant 0 : index
    %2316 = vector.load %arg5[%c0_1389, %c0_1390] : memref<32x512xf32, #tpu.memory_space<vmem>>, vector<32x512xf32>
    %c0_1391 = arith.constant 0 : index
    %c0_1392 = arith.constant 0 : index
    %2317 = vector.load %arg7[%c0_1391, %c0_1392] : memref<512x128xf32, #tpu.memory_space<vmem>>, vector<512x128xf32>
    %cst_1393 = arith.constant dense<0.000000e+00> : vector<32x128xf32>
    %2318 = tpu.matmul %2316, %2317, %cst_1393 {dimension_numbers = #tpu.dot_dimension_numbers<[1], [0], [0], [1], [0, 0, 1, 1], [], []>} : vector<32x512xf32>, vector<512x128xf32>, vector<32x128xf32> -> vector<32x128xf32>
    %c0_1394 = arith.constant 0 : index
    %c0_1395 = arith.constant 0 : index
    %2319 = vector.load %arg6[%c0_1394, %c0_1395] : memref<32x128xf32, #tpu.memory_space<vmem>>, vector<32x128xf32>
    tpu.vector_store %arg6[%c0_1394, %c0_1395], %2318 {strides = array<i32>} : memref<32x128xf32, #tpu.memory_space<vmem>>, vector<32x128xf32>,
    return
  }
  func.func @transform_0(%arg0: i32) -> (i32, i32) {
    %c0_i32 = arith.constant 0 : i32
    %c0_i32_0 = arith.constant 0 : i32
    return %c0_i32, %arg0 : i32, i32
  }
  func.func @transform_1(%arg0: i32) -> (i32, i32) {
    %c0_i32 = arith.constant 0 : i32
    %c0_i32_0 = arith.constant 0 : i32
    %c0_i32_1 = arith.constant 0 : i32
    return %c0_i32, %c0_i32_0 : i32, i32
  }
  func.func @transform_2(%arg0: i32) -> (i32, i32) {
    %c0_i32 = arith.constant 0 : i32
    %c0_i32_0 = arith.constant 0 : i32
    %c0_i32_1 = arith.constant 0 : i32
    return %c0_i32, %c0_i32_0 : i32, i32
  }
  func.func @transform_3(%arg0: i32) -> (i32, i32) {
    %c0_i32 = arith.constant 0 : i32
    %c0_i32_0 = arith.constant 0 : i32
    %c0_i32_1 = arith.constant 0 : i32
    return %c0_i32, %c0_i32_0 : i32, i32
  }
  func.func @transform_4(%arg0: i32) -> (i32, i32) {
    %c0_i32 = arith.constant 0 : i32
    %c0_i32_0 = arith.constant 0 : i32
    %c0_i32_1 = arith.constant 0 : i32
    return %c0_i32, %c0_i32_0 : i32, i32
  }
  func.func @transform_5(%arg0: i32) -> (i32, i32) {
    %c0_i32 = arith.constant 0 : i32
    %c0_i32_0 = arith.constant 0 : i32
    return %c0_i32, %arg0 : i32, i32
  }
}

</mosaic_0001>

<llo_original>
// kernel: tpu_custom_call.1
$region0: #{tpu_custom_call.1}
  #allocation0 [shape = 'u32[]', space=smem, size = 0x4, offset = 0x4, fixed_abs, tag = 'smem constant byte address 0x4 - core index']
  #allocation1 [shape = 'u32[72,128]{1,0:T(1,128)}', space=vmem, size = 0x9000, scoped, tag = 'internal scratch']
  #allocation2 [shape = 'f32[512,128]{1,0:T(8,128)}', space=vmem, size = 0x40000, scoped, tag = 'scratch operand']
  %s0 = inlined_call_operand.hbm [shape: f32[32,128], index: 0, kind: input, shape index: {}]
  %s1 = inlined_call_operand.hbm [shape: f32[672,128], index: 1, kind: input, shape index: {}]
  %s2 = inlined_call_operand.hbm [shape: f32[2720,128], index: 2, kind: input, shape index: {}]
  %s3 = inlined_call_operand.hbm [shape: f32[2720,128], index: 3, kind: input, shape index: {}]
  %s4 = inlined_call_operand.hbm [shape: f32[32,512], index: 4, kind: input, shape index: {}]
  %s5 = inlined_call_operand.hbm [shape: f32[32,128], index: 5, kind: output, shape index: {}]
  %s6 = sld [smem:[#allocation0]]
  $region50: #{tpu_custom_call.1} parent=0
    _
  %s8 = ssub.s32 1, %s6
  %s9 = scalar_select 0, %s8, %s6
  $region1: #{tpu_custom_call.1} parent=0
    #allocation3 [shape = 'u8[16384]{0}', space=vmem, size = 0x4000, scoped, tag = 'input window, operand 0, single buffered']
    #allocation4 [shape = 's32[1]{0}', space=sflag, size = 0x4, scoped, tag = 'scoped memory for tpu_custom_call.1']
    #allocation5 [shape = 's32[1]{0}', space=sflag, size = 0x4, scoped, tag = 'scoped memory for tpu_custom_call.1']
    #allocation6 [shape = 'u8[344064]{0}', space=vmem, size = 0x54000, scoped, tag = 'input window, operand 1, single buffered']
    #allocation7 [shape = 's32[1]{0}', space=sflag, size = 0x4, scoped, tag = 'scoped memory for tpu_custom_call.1']
    #allocation8 [shape = 'u8[1392640]{0}', space=vmem, size = 0x154000, scoped, tag = 'input window, operand 2, single buffered']
    #allocation9 [shape = 'u8[1392640]{0}', space=vmem, size = 0x154000, scoped, tag = 'input window, operand 3, single buffered']
    #allocation10 [shape = 's32[1]{0}', space=sflag, size = 0x4, scoped, tag = 'scoped memory for tpu_custom_call.1']
    #allocation11 [shape = 'u8[65536]{0}', space=vmem, size = 0x10000, scoped, tag = 'input window, operand 4, single buffered']
    #allocation12 [shape = 'u8[16384]{0}', space=vmem, size = 0x4000, scoped, tag = 'output window, operand 0, single buffered']
    %10 = vsyncpa [#allocation4], 0
    %11 = vsyncpa [#allocation7], 0
    %12 = vsyncpa [#allocation10], 0
    %13 = vsyncpa [#allocation5], 0
    // Predicated region
    $region2: #{tpu_custom_call.1} parent=1 // pred_check
      _
    $region3: #{tpu_custom_call.1} parent=1 // pred_check_branch
      %15 = sbr.rel (0) target = $region5
    $region4: #{tpu_custom_call.1} parent=1 // pred_region
      %17 = vsyncadd [#allocation4], 0
      %s18 = sshll.u32 %s0, 4
      %s19 = int_to_ptr.hbm [resolvable:$true] %s18
      %s20 = sshll.u32 [#allocation3], 4
      %s21 = int_to_ptr.vmem [resolvable:$true] %s20
      %26 = dma.hbm_to_vmem [thread:$0]  %s19, 512, %s21, [#allocation4], 128, 128, 8
    $region5: #{tpu_custom_call.1} parent=1 // pred_fallthru
      _
    // Predicated region
    $region6: #{tpu_custom_call.1} parent=1 // pred_check
      _
    $region7: #{tpu_custom_call.1} parent=1 // pred_check_branch
      %28 = sbr.rel (0) target = $region9
    $region8: #{tpu_custom_call.1} parent=1 // pred_region
      %30 = vsyncadd [#allocation7], 0
      %s31 = sshll.u32 %s1, 4
      %s32 = int_to_ptr.hbm [resolvable:$true] %s31
      %s33 = sshll.u32 [#allocation6], 4
      %s34 = int_to_ptr.vmem [resolvable:$true] %s33
      %39 = dma.hbm_to_vmem [thread:$0]  %s32, 10752, %s34, [#allocation7], 128, 128, 8
    $region9: #{tpu_custom_call.1} parent=1 // pred_fallthru
      _
    // Predicated region
    $region10: #{tpu_custom_call.1} parent=1 // pred_check
      _
    $region11: #{tpu_custom_call.1} parent=1 // pred_check_branch
      %41 = sbr.rel (0) target = $region13
    $region12: #{tpu_custom_call.1} parent=1 // pred_region
      %43 = vsyncadd [#allocation7], 0
      %s44 = sshll.u32 %s2, 4
      %s45 = int_to_ptr.hbm [resolvable:$true] %s44
      %s46 = sshll.u32 [#allocation8], 4
      %s47 = int_to_ptr.vmem [resolvable:$true] %s46
      %52 = dma.hbm_to_vmem [thread:$0]  %s45, 43520, %s47, [#allocation7], 128, 128, 8
    $region13: #{tpu_custom_call.1} parent=1 // pred_fallthru
      _
    // Predicated region
    $region14: #{tpu_custom_call.1} parent=1 // pred_check
      _
    $region15: #{tpu_custom_call.1} parent=1 // pred_check_branch
      %54 = sbr.rel (0) target = $region17
    $region16: #{tpu_custom_call.1} parent=1 // pred_region
      %56 = vsyncadd [#allocation10], 0
      %s57 = sshll.u32 %s3, 4
      %s58 = int_to_ptr.hbm [resolvable:$true] %s57
      %s59 = sshll.u32 [#allocation9], 4
      %s60 = int_to_ptr.vmem [resolvable:$true] %s59
      %65 = dma.hbm_to_vmem [thread:$0]  %s58, 43520, %s60, [#allocation10], 128, 128, 8
    $region17: #{tpu_custom_call.1} parent=1 // pred_fallthru
      _
    // Predicated region
    $region18: #{tpu_custom_call.1} parent=1 // pred_check
      _
    $region19: #{tpu_custom_call.1} parent=1 // pred_check_branch
      %67 = sbr.rel (0) target = $region21
    $region20: #{tpu_custom_call.1} parent=1 // pred_region
      %69 = vsyncadd [#allocation10], 0
      %s70 = sshll.u32 %s4, 4
      %s71 = int_to_ptr.hbm [resolvable:$true] %s70
      %s72 = sshll.u32 [#allocation11], 4
      %s73 = int_to_ptr.vmem [resolvable:$true] %s72
      %78 = dma.hbm_to_vmem [thread:$0]  %s71, 2048, %s73, [#allocation10], 512, 512, 32
    $region21: #{tpu_custom_call.1} parent=1 // pred_fallthru
      _
    // Predicated region
    $region22: #{tpu_custom_call.1} parent=1 // pred_check
      _
    $region23: #{tpu_custom_call.1} parent=1 // pred_check_branch
      %80 = sbr.rel (0) target = $region25
    $region24: #{tpu_custom_call.1} parent=1 // pred_region
      %82 = dma.done [#allocation4], 512
    $region25: #{tpu_custom_call.1} parent=1 // pred_fallthru
      _
    // Predicated region
    $region26: #{tpu_custom_call.1} parent=1 // pred_check
      _
    $region27: #{tpu_custom_call.1} parent=1 // pred_check_branch
      %84 = sbr.rel (0) target = $region29
    $region28: #{tpu_custom_call.1} parent=1 // pred_region
      %86 = dma.done [#allocation7], 10752
    $region29: #{tpu_custom_call.1} parent=1 // pred_fallthru
      _
    // Predicated region
    $region30: #{tpu_custom_call.1} parent=1 // pred_check
      _
    $region31: #{tpu_custom_call.1} parent=1 // pred_check_branch
      %88 = sbr.rel (0) target = $region33
    $region32: #{tpu_custom_call.1} parent=1 // pred_region
      %90 = dma.done [#allocation7], 43520
    $region33: #{tpu_custom_call.1} parent=1 // pred_fallthru
      _
    // Predicated region
    $region34: #{tpu_custom_call.1} parent=1 // pred_check
      _
    $region35: #{tpu_custom_call.1} parent=1 // pred_check_branch
      %92 = sbr.rel (0) target = $region37
    $region36: #{tpu_custom_call.1} parent=1 // pred_region
      %94 = dma.done [#allocation10], 43520
    $region37: #{tpu_custom_call.1} parent=1 // pred_fallthru
      _
    // Predicated region
    $region38: #{tpu_custom_call.1} parent=1 // pred_check
      _
    $region39: #{tpu_custom_call.1} parent=1 // pred_check_branch
      %96 = sbr.rel (0) target = $region41
    $region40: #{tpu_custom_call.1} parent=1 // pred_region
      %98 = dma.done [#allocation10], 2048
    $region41: #{tpu_custom_call.1} parent=1 // pred_fallthru
      _
    %v99 = vld [vmem:[#allocation3] sm:$0xff]
    %v100 = vld [vmem:[#allocation3 + $0x8] sm:$0xff]
    %v101 = vld [vmem:[#allocation6] sm:$0xff]
    %v102 = vld [vmem:[#allocation6 + $0x8] sm:$0xff]
    %v103 = vsub.f32 %v99, %v101
    %v104 = vsub.f32 %v100, %v102
    %v105 = vld [vmem:[#allocation6 + $0x20] sm:$0xff]
    %v106 = vld [vmem:[#allocation6 + $0x28] sm:$0xff]
    %v107 = vsub.f32 %v99, %v105
    %v108 = vsub.f32 %v100, %v106
    %vm109 = vcmp.ge.f32.partialorder %v103, 0.0
    %vm110 = vcmp.ge.f32.partialorder %v104, 0.0
    %vm111 = vcmp.lt.f32.partialorder %v107, 0.0
    %vm112 = vcmp.lt.f32.partialorder %v108, 0.0
    %vm113 = vmand %vm109, %vm111
    %vm114 = vmand %vm110, %vm112
    %v115 = vsel %vm113, 1, 0
    %v116 = vsel %vm114, 1, 0
    %v117 = vcvt.s32.f32 %v115
    %v118 = vcvt.s32.f32 %v116
    %v119 = vld [vmem:[#allocation6 + $0x40] sm:$0xff]
    %v120 = vld [vmem:[#allocation6 + $0x48] sm:$0xff]
    %v121 = vsub.f32 %v99, %v119
    %v122 = vsub.f32 %v100, %v120
    %vm123 = vcmp.ge.f32.partialorder %v107, 0.0
    %vm124 = vcmp.ge.f32.partialorder %v108, 0.0
    %vm125 = vcmp.lt.f32.partialorder %v121, 0.0
    %vm126 = vcmp.lt.f32.partialorder %v122, 0.0
    %vm127 = vmand %vm123, %vm125
    %vm128 = vmand %vm124, %vm126
    %v129 = vsel %vm127, 1, 0
    %v130 = vsel %vm128, 1, 0
    %v131 = vcvt.s32.f32 %v129
    %v132 = vcvt.s32.f32 %v130
    %v133 = vld [vmem:[#allocation6 + $0x60] sm:$0xff]
    %v134 = vld [vmem:[#allocation6 + $0x68] sm:$0xff]
    %v135 = vsub.f32 %v99, %v133
    %v136 = vsub.f32 %v100, %v134
    %vm137 = vcmp.ge.f32.partialorder %v121, 0.0
    %vm138 = vcmp.ge.f32.partialorder %v122, 0.0
    %vm139 = vcmp.lt.f32.partialorder %v135, 0.0
    %vm140 = vcmp.lt.f32.partialorder %v136, 0.0
    %vm141 = vmand %vm137, %vm139
    %vm142 = vmand %vm138, %vm140
    %v143 = vsel %vm141, 1, 0
    %v144 = vsel %vm142, 1, 0
    %v145 = vcvt.s32.f32 %v143
    %v146 = vcvt.s32.f32 %v144
    %v147 = vld [vmem:[#allocation6 + $0x80] sm:$0xff]
    %v148 = vld [vmem:[#allocation6 + $0x88] sm:$0xff]
    %v149 = vsub.f32 %v99, %v147
    %v150 = vsub.f32 %v100, %v148
    %vm151 = vcmp.ge.f32.partialorder %v135, 0.0
    %vm152 = vcmp.ge.f32.partialorder %v136, 0.0
    %vm153 = vcmp.lt.f32.partialorder %v149, 0.0
    %vm154 = vcmp.lt.f32.partialorder %v150, 0.0
    %vm155 = vmand %vm151, %vm153
    %vm156 = vmand %vm152, %vm154
    %v157 = vsel %vm155, 1, 0
    %v158 = vsel %vm156, 1, 0
    %v159 = vcvt.s32.f32 %v157
    %v160 = vcvt.s32.f32 %v158
    %v161 = vld [vmem:[#allocation6 + $0xa0] sm:$0xff]
    %v162 = vld [vmem:[#allocation6 + $0xa8] sm:$0xff]
    %v163 = vsub.f32 %v99, %v161
    %v164 = vsub.f32 %v100, %v162
    %vm165 = vcmp.ge.f32.partialorder %v149, 0.0
    %vm166 = vcmp.ge.f32.partialorder %v150, 0.0
    %vm167 = vcmp.lt.f32.partialorder %v163, 0.0
    %vm168 = vcmp.lt.f32.partialorder %v164, 0.0
    %vm169 = vmand %vm165, %vm167
    %vm170 = vmand %vm166, %vm168
    %v171 = vsel %vm169, 1, 0
    %v172 = vsel %vm170, 1, 0
    %v173 = vcvt.s32.f32 %v171
    %v174 = vcvt.s32.f32 %v172
    %v175 = vld [vmem:[#allocation6 + $0xc0] sm:$0xff]
    %v176 = vld [vmem:[#allocation6 + $0xc8] sm:$0xff]
    %v177 = vsub.f32 %v99, %v175
    %v178 = vsub.f32 %v100, %v176
    %vm179 = vcmp.ge.f32.partialorder %v163, 0.0
    %vm180 = vcmp.ge.f32.partialorder %v164, 0.0
    %vm181 = vcmp.lt.f32.partialorder %v177, 0.0
    %vm182 = vcmp.lt.f32.partialorder %v178, 0.0
    %vm183 = vmand %vm179, %vm181
    %vm184 = vmand %vm180, %vm182
    %v185 = vsel %vm183, 1, 0
    %v186 = vsel %vm184, 1, 0
    %v187 = vcvt.s32.f32 %v185
    %v188 = vcvt.s32.f32 %v186
    %v189 = vld [vmem:[#allocation6 + $0xe0] sm:$0xff]
    %v190 = vld [vmem:[#allocation6 + $0xe8] sm:$0xff]
    %v191 = vsub.f32 %v99, %v189
    %v192 = vsub.f32 %v100, %v190
    %vm193 = vcmp.ge.f32.partialorder %v177, 0.0
    %vm194 = vcmp.ge.f32.partialorder %v178, 0.0
    %vm195 = vcmp.lt.f32.partialorder %v191, 0.0
    %vm196 = vcmp.lt.f32.partialorder %v192, 0.0
    %vm197 = vmand %vm193, %vm195
    %vm198 = vmand %vm194, %vm196
    %v199 = vsel %vm197, 1, 0
    %v200 = vsel %vm198, 1, 0
    %v201 = vcvt.s32.f32 %v199
    %v202 = vcvt.s32.f32 %v200
    %v203 = vld [vmem:[#allocation6 + $0x100] sm:$0xff]
    %v204 = vld [vmem:[#allocation6 + $0x108] sm:$0xff]
    %v205 = vsub.f32 %v99, %v203
    %v206 = vsub.f32 %v100, %v204
    %vm207 = vcmp.ge.f32.partialorder %v191, 0.0
    %vm208 = vcmp.ge.f32.partialorder %v192, 0.0
    %vm209 = vcmp.lt.f32.partialorder %v205, 0.0
    %vm210 = vcmp.lt.f32.partialorder %v206, 0.0
    %vm211 = vmand %vm207, %vm209
    %vm212 = vmand %vm208, %vm210
    %v213 = vsel %vm211, 1, 0
    %v214 = vsel %vm212, 1, 0
    %v215 = vcvt.s32.f32 %v213
    %v216 = vcvt.s32.f32 %v214
    %v217 = vld [vmem:[#allocation6 + $0x120] sm:$0xff]
    %v218 = vld [vmem:[#allocation6 + $0x128] sm:$0xff]
    %v219 = vsub.f32 %v99, %v217
    %v220 = vsub.f32 %v100, %v218
    %vm221 = vcmp.ge.f32.partialorder %v205, 0.0
    %vm222 = vcmp.ge.f32.partialorder %v206, 0.0
    %vm223 = vcmp.lt.f32.partialorder %v219, 0.0
    %vm224 = vcmp.lt.f32.partialorder %v220, 0.0
    %vm225 = vmand %vm221, %vm223
    %vm226 = vmand %vm222, %vm224
    %v227 = vsel %vm225, 1, 0
    %v228 = vsel %vm226, 1, 0
    %v229 = vcvt.s32.f32 %v227
    %v230 = vcvt.s32.f32 %v228
    %v231 = vld [vmem:[#allocation6 + $0x140] sm:$0xff]
    %v232 = vld [vmem:[#allocation6 + $0x148] sm:$0xff]
    %v233 = vsub.f32 %v99, %v231
    %v234 = vsub.f32 %v100, %v232
    %vm235 = vcmp.ge.f32.partialorder %v219, 0.0
    %vm236 = vcmp.ge.f32.partialorder %v220, 0.0
    %vm237 = vcmp.lt.f32.partialorder %v233, 0.0
    %vm238 = vcmp.lt.f32.partialorder %v234, 0.0
    %vm239 = vmand %vm235, %vm237
    %vm240 = vmand %vm236, %vm238
    %v241 = vsel %vm239, 1, 0
    %v242 = vsel %vm240, 1, 0
    %v243 = vcvt.s32.f32 %v241
    %v244 = vcvt.s32.f32 %v242
    %v245 = vld [vmem:[#allocation6 + $0x160] sm:$0xff]
    %v246 = vld [vmem:[#allocation6 + $0x168] sm:$0xff]
    %v247 = vsub.f32 %v99, %v245
    %v248 = vsub.f32 %v100, %v246
    %vm249 = vcmp.ge.f32.partialorder %v233, 0.0
    %vm250 = vcmp.ge.f32.partialorder %v234, 0.0
    %vm251 = vcmp.lt.f32.partialorder %v247, 0.0
    %vm252 = vcmp.lt.f32.partialorder %v248, 0.0
    %vm253 = vmand %vm249, %vm251
    %vm254 = vmand %vm250, %vm252
    %v255 = vsel %vm253, 1, 0
    %v256 = vsel %vm254, 1, 0
    %v257 = vcvt.s32.f32 %v255
    %v258 = vcvt.s32.f32 %v256
    %v259 = vld [vmem:[#allocation6 + $0x180] sm:$0xff]
    %v260 = vld [vmem:[#allocation6 + $0x188] sm:$0xff]
    %v261 = vsub.f32 %v99, %v259
    %v262 = vsub.f32 %v100, %v260
    %vm263 = vcmp.ge.f32.partialorder %v247, 0.0
    %vm264 = vcmp.ge.f32.partialorder %v248, 0.0
    %vm265 = vcmp.lt.f32.partialorder %v261, 0.0
    %vm266 = vcmp.lt.f32.partialorder %v262, 0.0
    %vm267 = vmand %vm263, %vm265
    %vm268 = vmand %vm264, %vm266
    %v269 = vsel %vm267, 1, 0
    %v270 = vsel %vm268, 1, 0
    %v271 = vcvt.s32.f32 %v269
    %v272 = vcvt.s32.f32 %v270
    %v273 = vld [vmem:[#allocation6 + $0x1a0] sm:$0xff]
    %v274 = vld [vmem:[#allocation6 + $0x1a8] sm:$0xff]
    %v275 = vsub.f32 %v99, %v273
    %v276 = vsub.f32 %v100, %v274
    %vm277 = vcmp.ge.f32.partialorder %v261, 0.0
    %vm278 = vcmp.ge.f32.partialorder %v262, 0.0
    %vm279 = vcmp.lt.f32.partialorder %v275, 0.0
    %vm280 = vcmp.lt.f32.partialorder %v276, 0.0
    %vm281 = vmand %vm277, %vm279
    %vm282 = vmand %vm278, %vm280
    %v283 = vsel %vm281, 1, 0
    %v284 = vsel %vm282, 1, 0
    %v285 = vcvt.s32.f32 %v283
    %v286 = vcvt.s32.f32 %v284
    %v287 = vld [vmem:[#allocation6 + $0x1c0] sm:$0xff]
    %v288 = vld [vmem:[#allocation6 + $0x1c8] sm:$0xff]
    %v289 = vsub.f32 %v99, %v287
    %v290 = vsub.f32 %v100, %v288
    %vm291 = vcmp.ge.f32.partialorder %v275, 0.0
    %vm292 = vcmp.ge.f32.partialorder %v276, 0.0
    %vm293 = vcmp.lt.f32.partialorder %v289, 0.0
    %vm294 = vcmp.lt.f32.partialorder %v290, 0.0
    %vm295 = vmand %vm291, %vm293
    %vm296 = vmand %vm292, %vm294
    %v297 = vsel %vm295, 1, 0
    %v298 = vsel %vm296, 1, 0
    %v299 = vcvt.s32.f32 %v297
    %v300 = vcvt.s32.f32 %v298
    %v301 = vld [vmem:[#allocation6 + $0x1e0] sm:$0xff]
    %v302 = vld [vmem:[#allocation6 + $0x1e8] sm:$0xff]
    %v303 = vsub.f32 %v99, %v301
    %v304 = vsub.f32 %v100, %v302
    %vm305 = vcmp.ge.f32.partialorder %v289, 0.0
    %vm306 = vcmp.ge.f32.partialorder %v290, 0.0
    %vm307 = vcmp.lt.f32.partialorder %v303, 0.0
    %vm308 = vcmp.lt.f32.partialorder %v304, 0.0
    %vm309 = vmand %vm305, %vm307
    %vm310 = vmand %vm306, %vm308
    %v311 = vsel %vm309, 1, 0
    %v312 = vsel %vm310, 1, 0
    %v313 = vcvt.s32.f32 %v311
    %v314 = vcvt.s32.f32 %v312
    %v315 = vld [vmem:[#allocation6 + $0x200] sm:$0xff]
    %v316 = vld [vmem:[#allocation6 + $0x208] sm:$0xff]
    %v317 = vsub.f32 %v99, %v315
    %v318 = vsub.f32 %v100, %v316
    %vm319 = vcmp.ge.f32.partialorder %v303, 0.0
    %vm320 = vcmp.ge.f32.partialorder %v304, 0.0
    %vm321 = vcmp.lt.f32.partialorder %v317, 0.0
    %vm322 = vcmp.lt.f32.partialorder %v318, 0.0
    %vm323 = vmand %vm319, %vm321
    %vm324 = vmand %vm320, %vm322
    %v325 = vsel %vm323, 1, 0
    %v326 = vsel %vm324, 1, 0
    %v327 = vcvt.s32.f32 %v325
    %v328 = vcvt.s32.f32 %v326
    %v329 = vld [vmem:[#allocation6 + $0x220] sm:$0xff]
    %v330 = vld [vmem:[#allocation6 + $0x228] sm:$0xff]
    %v331 = vsub.f32 %v99, %v329
    %v332 = vsub.f32 %v100, %v330
    %vm333 = vcmp.ge.f32.partialorder %v317, 0.0
    %vm334 = vcmp.ge.f32.partialorder %v318, 0.0
    %vm335 = vcmp.lt.f32.partialorder %v331, 0.0
    %vm336 = vcmp.lt.f32.partialorder %v332, 0.0
    %vm337 = vmand %vm333, %vm335
    %vm338 = vmand %vm334, %vm336
    %v339 = vsel %vm337, 1, 0
    %v340 = vsel %vm338, 1, 0
    %v341 = vcvt.s32.f32 %v339
    %v342 = vcvt.s32.f32 %v340
    %v343 = vld [vmem:[#allocation6 + $0x240] sm:$0xff]
    %v344 = vld [vmem:[#allocation6 + $0x248] sm:$0xff]
    %v345 = vsub.f32 %v99, %v343
    %v346 = vsub.f32 %v100, %v344
    %vm347 = vcmp.ge.f32.partialorder %v331, 0.0
    %vm348 = vcmp.ge.f32.partialorder %v332, 0.0
    %vm349 = vcmp.lt.f32.partialorder %v345, 0.0
    %vm350 = vcmp.lt.f32.partialorder %v346, 0.0
    %vm351 = vmand %vm347, %vm349
    %vm352 = vmand %vm348, %vm350
    %v353 = vsel %vm351, 1, 0
    %v354 = vsel %vm352, 1, 0
    %v355 = vcvt.s32.f32 %v353
    %v356 = vcvt.s32.f32 %v354
    %v357 = vld [vmem:[#allocation6 + $0x260] sm:$0xff]
    %v358 = vld [vmem:[#allocation6 + $0x268] sm:$0xff]
    %v359 = vsub.f32 %v99, %v357
    %v360 = vsub.f32 %v100, %v358
    %vm361 = vcmp.ge.f32.partialorder %v345, 0.0
    %vm362 = vcmp.ge.f32.partialorder %v346, 0.0
    %vm363 = vcmp.lt.f32.partialorder %v359, 0.0
    %vm364 = vcmp.lt.f32.partialorder %v360, 0.0
    %vm365 = vmand %vm361, %vm363
    %vm366 = vmand %vm362, %vm364
    %v367 = vsel %vm365, 1, 0
    %v368 = vsel %vm366, 1, 0
    %v369 = vcvt.s32.f32 %v367
    %v370 = vcvt.s32.f32 %v368
    %v371 = vld [vmem:[#allocation6 + $0x280] sm:$0xff]
    %v372 = vld [vmem:[#allocation6 + $0x288] sm:$0xff]
    %v373 = vsub.f32 %v99, %v371
    %v374 = vsub.f32 %v100, %v372
    %vm375 = vcmp.ge.f32.partialorder %v359, 0.0
    %vm376 = vcmp.ge.f32.partialorder %v360, 0.0
    %vm377 = vcmp.lt.f32.partialorder %v373, 0.0
    %vm378 = vcmp.lt.f32.partialorder %v374, 0.0
    %vm379 = vmand %vm375, %vm377
    %vm380 = vmand %vm376, %vm378
    %v381 = vsel %vm379, 1, 0
    %v382 = vsel %vm380, 1, 0
    %v383 = vcvt.s32.f32 %v381
    %v384 = vcvt.s32.f32 %v382
    %v385 = vld [vmem:[#allocation8] sm:$0xff]
    %v386 = vld [vmem:[#allocation8 + $0x8] sm:$0xff]
    %v387 = vmul.f32 %v103, %v385
    %v388 = vmul.f32 %v104, %v386
    %v389 = vmul.f32 %v387, %v117
    %v390 = vmul.f32 %v388, %v118
    %v391 = vld [vmem:[#allocation9] sm:$0xff]
    %v392 = vld [vmem:[#allocation9 + $0x8] sm:$0xff]
    %v393 = vmul.f32 %v121, %v391
    %v394 = vmul.f32 %v122, %v392
    %v395 = vmul.f32 %v393, %v131
    %v396 = vmul.f32 %v394, %v132
    %v397 = vadd.f32 %v389, %v395
    %v398 = vadd.f32 %v390, %v396
    %v399 = vld [vmem:[#allocation8 + $0x20] sm:$0xff]
    %v400 = vld [vmem:[#allocation8 + $0x28] sm:$0xff]
    %v401 = vmul.f32 %v107, %v399
    %v402 = vmul.f32 %v108, %v400
    %v403 = vmul.f32 %v401, %v131
    %v404 = vmul.f32 %v402, %v132
    %v405 = vld [vmem:[#allocation9 + $0x20] sm:$0xff]
    %v406 = vld [vmem:[#allocation9 + $0x28] sm:$0xff]
    %v407 = vmul.f32 %v135, %v405
    %v408 = vmul.f32 %v136, %v406
    %v409 = vmul.f32 %v407, %v145
    %v410 = vmul.f32 %v408, %v146
    %v411 = vadd.f32 %v403, %v409
    %v412 = vadd.f32 %v404, %v410
    %v413 = vld [vmem:[#allocation8 + $0x40] sm:$0xff]
    %v414 = vld [vmem:[#allocation8 + $0x48] sm:$0xff]
    %v415 = vmul.f32 %v121, %v413
    %v416 = vmul.f32 %v122, %v414
    %v417 = vmul.f32 %v415, %v145
    %v418 = vmul.f32 %v416, %v146
    %v419 = vld [vmem:[#allocation9 + $0x40] sm:$0xff]
    %v420 = vld [vmem:[#allocation9 + $0x48] sm:$0xff]
    %v421 = vmul.f32 %v149, %v419
    %v422 = vmul.f32 %v150, %v420
    %v423 = vmul.f32 %v421, %v159
    %v424 = vmul.f32 %v422, %v160
    %v425 = vadd.f32 %v417, %v423
    %v426 = vadd.f32 %v418, %v424
    %v427 = vld [vmem:[#allocation8 + $0x60] sm:$0xff]
    %v428 = vld [vmem:[#allocation8 + $0x68] sm:$0xff]
    %v429 = vmul.f32 %v135, %v427
    %v430 = vmul.f32 %v136, %v428
    %v431 = vmul.f32 %v429, %v159
    %v432 = vmul.f32 %v430, %v160
    %v433 = vld [vmem:[#allocation9 + $0x60] sm:$0xff]
    %v434 = vld [vmem:[#allocation9 + $0x68] sm:$0xff]
    %v435 = vmul.f32 %v163, %v433
    %v436 = vmul.f32 %v164, %v434
    %v437 = vmul.f32 %v435, %v173
    %v438 = vmul.f32 %v436, %v174
    %v439 = vadd.f32 %v431, %v437
    %v440 = vadd.f32 %v432, %v438
    %v441 = vld [vmem:[#allocation8 + $0x80] sm:$0xff]
    %v442 = vld [vmem:[#allocation8 + $0x88] sm:$0xff]
    %v443 = vmul.f32 %v149, %v441
    %v444 = vmul.f32 %v150, %v442
    %v445 = vmul.f32 %v443, %v173
    %v446 = vmul.f32 %v444, %v174
    %v447 = vld [vmem:[#allocation9 + $0x80] sm:$0xff]
    %v448 = vld [vmem:[#allocation9 + $0x88] sm:$0xff]
    %v449 = vmul.f32 %v177, %v447
    %v450 = vmul.f32 %v178, %v448
    %v451 = vmul.f32 %v449, %v187
    %v452 = vmul.f32 %v450, %v188
    %v453 = vadd.f32 %v445, %v451
    %v454 = vadd.f32 %v446, %v452
    %v455 = vld [vmem:[#allocation8 + $0xa0] sm:$0xff]
    %v456 = vld [vmem:[#allocation8 + $0xa8] sm:$0xff]
    %v457 = vmul.f32 %v163, %v455
    %v458 = vmul.f32 %v164, %v456
    %v459 = vmul.f32 %v457, %v187
    %v460 = vmul.f32 %v458, %v188
    %v461 = vld [vmem:[#allocation9 + $0xa0] sm:$0xff]
    %v462 = vld [vmem:[#allocation9 + $0xa8] sm:$0xff]
    %v463 = vmul.f32 %v191, %v461
    %v464 = vmul.f32 %v192, %v462
    %v465 = vmul.f32 %v463, %v201
    %v466 = vmul.f32 %v464, %v202
    %v467 = vadd.f32 %v459, %v465
    %v468 = vadd.f32 %v460, %v466
    %v469 = vld [vmem:[#allocation8 + $0xc0] sm:$0xff]
    %v470 = vld [vmem:[#allocation8 + $0xc8] sm:$0xff]
    %v471 = vmul.f32 %v177, %v469
    %v472 = vmul.f32 %v178, %v470
    %v473 = vmul.f32 %v471, %v201
    %v474 = vmul.f32 %v472, %v202
    %v475 = vld [vmem:[#allocation9 + $0xc0] sm:$0xff]
    %v476 = vld [vmem:[#allocation9 + $0xc8] sm:$0xff]
    %v477 = vmul.f32 %v205, %v475
    %v478 = vmul.f32 %v206, %v476
    %v479 = vmul.f32 %v477, %v215
    %v480 = vmul.f32 %v478, %v216
    %v481 = vadd.f32 %v473, %v479
    %v482 = vadd.f32 %v474, %v480
    %v483 = vld [vmem:[#allocation8 + $0xe0] sm:$0xff]
    %v484 = vld [vmem:[#allocation8 + $0xe8] sm:$0xff]
    %v485 = vmul.f32 %v191, %v483
    %v486 = vmul.f32 %v192, %v484
    %v487 = vmul.f32 %v485, %v215
    %v488 = vmul.f32 %v486, %v216
    %v489 = vld [vmem:[#allocation9 + $0xe0] sm:$0xff]
    %v490 = vld [vmem:[#allocation9 + $0xe8] sm:$0xff]
    %v491 = vmul.f32 %v219, %v489
    %v492 = vmul.f32 %v220, %v490
    %v493 = vmul.f32 %v491, %v229
    %v494 = vmul.f32 %v492, %v230
    %v495 = vadd.f32 %v487, %v493
    %v496 = vadd.f32 %v488, %v494
    %v497 = vld [vmem:[#allocation8 + $0x100] sm:$0xff]
    %v498 = vld [vmem:[#allocation8 + $0x108] sm:$0xff]
    %v499 = vmul.f32 %v205, %v497
    %v500 = vmul.f32 %v206, %v498
    %v501 = vmul.f32 %v499, %v229
    %v502 = vmul.f32 %v500, %v230
    %v503 = vld [vmem:[#allocation9 + $0x100] sm:$0xff]
    %v504 = vld [vmem:[#allocation9 + $0x108] sm:$0xff]
    %v505 = vmul.f32 %v233, %v503
    %v506 = vmul.f32 %v234, %v504
    %v507 = vmul.f32 %v505, %v243
    %v508 = vmul.f32 %v506, %v244
    %v509 = vadd.f32 %v501, %v507
    %v510 = vadd.f32 %v502, %v508
    %v511 = vld [vmem:[#allocation8 + $0x120] sm:$0xff]
    %v512 = vld [vmem:[#allocation8 + $0x128] sm:$0xff]
    %v513 = vmul.f32 %v219, %v511
    %v514 = vmul.f32 %v220, %v512
    %v515 = vmul.f32 %v513, %v243
    %v516 = vmul.f32 %v514, %v244
    %v517 = vld [vmem:[#allocation9 + $0x120] sm:$0xff]
    %v518 = vld [vmem:[#allocation9 + $0x128] sm:$0xff]
    %v519 = vmul.f32 %v247, %v517
    %v520 = vmul.f32 %v248, %v518
    %v521 = vmul.f32 %v519, %v257
    %v522 = vmul.f32 %v520, %v258
    %v523 = vadd.f32 %v515, %v521
    %v524 = vadd.f32 %v516, %v522
    %v525 = vld [vmem:[#allocation8 + $0x140] sm:$0xff]
    %v526 = vld [vmem:[#allocation8 + $0x148] sm:$0xff]
    %v527 = vmul.f32 %v233, %v525
    %v528 = vmul.f32 %v234, %v526
    %v529 = vmul.f32 %v527, %v257
    %v530 = vmul.f32 %v528, %v258
    %v531 = vld [vmem:[#allocation9 + $0x140] sm:$0xff]
    %v532 = vld [vmem:[#allocation9 + $0x148] sm:$0xff]
    %v533 = vmul.f32 %v261, %v531
    %v534 = vmul.f32 %v262, %v532
    %v535 = vmul.f32 %v533, %v271
    %v536 = vmul.f32 %v534, %v272
    %v537 = vadd.f32 %v529, %v535
    %v538 = vadd.f32 %v530, %v536
    %v539 = vld [vmem:[#allocation8 + $0x160] sm:$0xff]
    %v540 = vld [vmem:[#allocation8 + $0x168] sm:$0xff]
    %v541 = vmul.f32 %v247, %v539
    %v542 = vmul.f32 %v248, %v540
    %v543 = vmul.f32 %v541, %v271
    %v544 = vmul.f32 %v542, %v272
    %v545 = vld [vmem:[#allocation9 + $0x160] sm:$0xff]
    %v546 = vld [vmem:[#allocation9 + $0x168] sm:$0xff]
    %v547 = vmul.f32 %v275, %v545
    %v548 = vmul.f32 %v276, %v546
    %v549 = vmul.f32 %v547, %v285
    %v550 = vmul.f32 %v548, %v286
    %v551 = vadd.f32 %v543, %v549
    %v552 = vadd.f32 %v544, %v550
    %v553 = vld [vmem:[#allocation8 + $0x180] sm:$0xff]
    %v554 = vld [vmem:[#allocation8 + $0x188] sm:$0xff]
    %v555 = vmul.f32 %v261, %v553
    %v556 = vmul.f32 %v262, %v554
    %v557 = vmul.f32 %v555, %v285
    %v558 = vmul.f32 %v556, %v286
    %v559 = vld [vmem:[#allocation9 + $0x180] sm:$0xff]
    %v560 = vld [vmem:[#allocation9 + $0x188] sm:$0xff]
    %v561 = vmul.f32 %v289, %v559
    %v562 = vmul.f32 %v290, %v560
    %v563 = vmul.f32 %v561, %v299
    %v564 = vmul.f32 %v562, %v300
    %v565 = vadd.f32 %v557, %v563
    %v566 = vadd.f32 %v558, %v564
    %v567 = vld [vmem:[#allocation8 + $0x1a0] sm:$0xff]
    %v568 = vld [vmem:[#allocation8 + $0x1a8] sm:$0xff]
    %v569 = vmul.f32 %v275, %v567
    %v570 = vmul.f32 %v276, %v568
    %v571 = vmul.f32 %v569, %v299
    %v572 = vmul.f32 %v570, %v300
    %v573 = vld [vmem:[#allocation9 + $0x1a0] sm:$0xff]
    %v574 = vld [vmem:[#allocation9 + $0x1a8] sm:$0xff]
    %v575 = vmul.f32 %v303, %v573
    %v576 = vmul.f32 %v304, %v574
    %v577 = vmul.f32 %v575, %v313
    %v578 = vmul.f32 %v576, %v314
    %v579 = vadd.f32 %v571, %v577
    %v580 = vadd.f32 %v572, %v578
    %v581 = vld [vmem:[#allocation8 + $0x1c0] sm:$0xff]
    %v582 = vld [vmem:[#allocation8 + $0x1c8] sm:$0xff]
    %v583 = vmul.f32 %v289, %v581
    %v584 = vmul.f32 %v290, %v582
    %v585 = vmul.f32 %v583, %v313
    %v586 = vmul.f32 %v584, %v314
    %v587 = vld [vmem:[#allocation9 + $0x1c0] sm:$0xff]
    %v588 = vld [vmem:[#allocation9 + $0x1c8] sm:$0xff]
    %v589 = vmul.f32 %v317, %v587
    %v590 = vmul.f32 %v318, %v588
    %v591 = vmul.f32 %v589, %v327
    %v592 = vmul.f32 %v590, %v328
    %v593 = vadd.f32 %v585, %v591
    %v594 = vadd.f32 %v586, %v592
    %v595 = vld [vmem:[#allocation8 + $0x1e0] sm:$0xff]
    %v596 = vld [vmem:[#allocation8 + $0x1e8] sm:$0xff]
    %v597 = vmul.f32 %v303, %v595
    %v598 = vmul.f32 %v304, %v596
    %v599 = vmul.f32 %v597, %v327
    %v600 = vmul.f32 %v598, %v328
    %v601 = vld [vmem:[#allocation9 + $0x1e0] sm:$0xff]
    %v602 = vld [vmem:[#allocation9 + $0x1e8] sm:$0xff]
    %v603 = vmul.f32 %v331, %v601
    %v604 = vmul.f32 %v332, %v602
    %v605 = vmul.f32 %v603, %v341
    %v606 = vmul.f32 %v604, %v342
    %v607 = vadd.f32 %v599, %v605
    %v608 = vadd.f32 %v600, %v606
    %v609 = vld [vmem:[#allocation8 + $0x200] sm:$0xff]
    %v610 = vld [vmem:[#allocation8 + $0x208] sm:$0xff]
    %v611 = vmul.f32 %v317, %v609
    %v612 = vmul.f32 %v318, %v610
    %v613 = vmul.f32 %v611, %v341
    %v614 = vmul.f32 %v612, %v342
    %v615 = vld [vmem:[#allocation9 + $0x200] sm:$0xff]
    %v616 = vld [vmem:[#allocation9 + $0x208] sm:$0xff]
    %v617 = vmul.f32 %v345, %v615
    %v618 = vmul.f32 %v346, %v616
    %v619 = vmul.f32 %v617, %v355
    %v620 = vmul.f32 %v618, %v356
    %v621 = vadd.f32 %v613, %v619
    %v622 = vadd.f32 %v614, %v620
    %v623 = vld [vmem:[#allocation8 + $0x220] sm:$0xff]
    %v624 = vld [vmem:[#allocation8 + $0x228] sm:$0xff]
    %v625 = vmul.f32 %v331, %v623
    %v626 = vmul.f32 %v332, %v624
    %v627 = vmul.f32 %v625, %v355
    %v628 = vmul.f32 %v626, %v356
    %v629 = vld [vmem:[#allocation9 + $0x220] sm:$0xff]
    %v630 = vld [vmem:[#allocation9 + $0x228] sm:$0xff]
    %v631 = vmul.f32 %v359, %v629
    %v632 = vmul.f32 %v360, %v630
    %v633 = vmul.f32 %v631, %v369
    %v634 = vmul.f32 %v632, %v370
    %v635 = vadd.f32 %v627, %v633
    %v636 = vadd.f32 %v628, %v634
    %v637 = vld [vmem:[#allocation8 + $0x240] sm:$0xff]
    %v638 = vld [vmem:[#allocation8 + $0x248] sm:$0xff]
    %v639 = vmul.f32 %v345, %v637
    %v640 = vmul.f32 %v346, %v638
    %v641 = vmul.f32 %v639, %v369
    %v642 = vmul.f32 %v640, %v370
    %v643 = vld [vmem:[#allocation9 + $0x240] sm:$0xff]
    %v644 = vld [vmem:[#allocation9 + $0x248] sm:$0xff]
    %v645 = vmul.f32 %v373, %v643
    %v646 = vmul.f32 %v374, %v644
    %v647 = vmul.f32 %v645, %v383
    %v648 = vmul.f32 %v646, %v384
    %v649 = vadd.f32 %v641, %v647
    %v650 = vadd.f32 %v642, %v648
    %v651 = vld [vmem:[#allocation8 + $0x260] sm:$0xff]
    %v652 = vld [vmem:[#allocation8 + $0x268] sm:$0xff]
    %v653 = vmul.f32 %v103, %v651
    %v654 = vmul.f32 %v104, %v652
    %v655 = vmul.f32 %v653, %v397
    %v656 = vmul.f32 %v654, %v398
    %v657 = vld [vmem:[#allocation9 + $0x260] sm:$0xff]
    %v658 = vld [vmem:[#allocation9 + $0x268] sm:$0xff]
    %v659 = vmul.f32 %v135, %v657
    %v660 = vmul.f32 %v136, %v658
    %v661 = vmul.f32 %v659, %v411
    %v662 = vmul.f32 %v660, %v412
    %v663 = vadd.f32 %v655, %v661
    %v664 = vadd.f32 %v656, %v662
    %v665 = vld [vmem:[#allocation8 + $0x280] sm:$0xff]
    %v666 = vld [vmem:[#allocation8 + $0x288] sm:$0xff]
    %v667 = vmul.f32 %v107, %v665
    %v668 = vmul.f32 %v108, %v666
    %v669 = vmul.f32 %v667, %v411
    %v670 = vmul.f32 %v668, %v412
    %v671 = vld [vmem:[#allocation9 + $0x280] sm:$0xff]
    %v672 = vld [vmem:[#allocation9 + $0x288] sm:$0xff]
    %v673 = vmul.f32 %v149, %v671
    %v674 = vmul.f32 %v150, %v672
    %v675 = vmul.f32 %v673, %v425
    %v676 = vmul.f32 %v674, %v426
    %v677 = vadd.f32 %v669, %v675
    %v678 = vadd.f32 %v670, %v676
    %v679 = vld [vmem:[#allocation8 + $0x2a0] sm:$0xff]
    %v680 = vld [vmem:[#allocation8 + $0x2a8] sm:$0xff]
    %v681 = vmul.f32 %v121, %v679
    %v682 = vmul.f32 %v122, %v680
    %v683 = vmul.f32 %v681, %v425
    %v684 = vmul.f32 %v682, %v426
    %v685 = vld [vmem:[#allocation9 + $0x2a0] sm:$0xff]
    %v686 = vld [vmem:[#allocation9 + $0x2a8] sm:$0xff]
    %v687 = vmul.f32 %v163, %v685
    %v688 = vmul.f32 %v164, %v686
    %v689 = vmul.f32 %v687, %v439
    %v690 = vmul.f32 %v688, %v440
    %v691 = vadd.f32 %v683, %v689
    %v692 = vadd.f32 %v684, %v690
    %v693 = vld [vmem:[#allocation8 + $0x2c0] sm:$0xff]
    %v694 = vld [vmem:[#allocation8 + $0x2c8] sm:$0xff]
    %v695 = vmul.f32 %v135, %v693
    %v696 = vmul.f32 %v136, %v694
    %v697 = vmul.f32 %v695, %v439
    %v698 = vmul.f32 %v696, %v440
    %v699 = vld [vmem:[#allocation9 + $0x2c0] sm:$0xff]
    %v700 = vld [vmem:[#allocation9 + $0x2c8] sm:$0xff]
    %v701 = vmul.f32 %v177, %v699
    %v702 = vmul.f32 %v178, %v700
    %v703 = vmul.f32 %v701, %v453
    %v704 = vmul.f32 %v702, %v454
    %v705 = vadd.f32 %v697, %v703
    %v706 = vadd.f32 %v698, %v704
    %v707 = vld [vmem:[#allocation8 + $0x2e0] sm:$0xff]
    %v708 = vld [vmem:[#allocation8 + $0x2e8] sm:$0xff]
    %v709 = vmul.f32 %v149, %v707
    %v710 = vmul.f32 %v150, %v708
    %v711 = vmul.f32 %v709, %v453
    %v712 = vmul.f32 %v710, %v454
    %v713 = vld [vmem:[#allocation9 + $0x2e0] sm:$0xff]
    %v714 = vld [vmem:[#allocation9 + $0x2e8] sm:$0xff]
    %v715 = vmul.f32 %v191, %v713
    %v716 = vmul.f32 %v192, %v714
    %v717 = vmul.f32 %v715, %v467
    %v718 = vmul.f32 %v716, %v468
    %v719 = vadd.f32 %v711, %v717
    %v720 = vadd.f32 %v712, %v718
    %v721 = vld [vmem:[#allocation8 + $0x300] sm:$0xff]
    %v722 = vld [vmem:[#allocation8 + $0x308] sm:$0xff]
    %v723 = vmul.f32 %v163, %v721
    %v724 = vmul.f32 %v164, %v722
    %v725 = vmul.f32 %v723, %v467
    %v726 = vmul.f32 %v724, %v468
    %v727 = vld [vmem:[#allocation9 + $0x300] sm:$0xff]
    %v728 = vld [vmem:[#allocation9 + $0x308] sm:$0xff]
    %v729 = vmul.f32 %v205, %v727
    %v730 = vmul.f32 %v206, %v728
    %v731 = vmul.f32 %v729, %v481
    %v732 = vmul.f32 %v730, %v482
    %v733 = vadd.f32 %v725, %v731
    %v734 = vadd.f32 %v726, %v732
    %v735 = vld [vmem:[#allocation8 + $0x320] sm:$0xff]
    %v736 = vld [vmem:[#allocation8 + $0x328] sm:$0xff]
    %v737 = vmul.f32 %v177, %v735
    %v738 = vmul.f32 %v178, %v736
    %v739 = vmul.f32 %v737, %v481
    %v740 = vmul.f32 %v738, %v482
    %v741 = vld [vmem:[#allocation9 + $0x320] sm:$0xff]
    %v742 = vld [vmem:[#allocation9 + $0x328] sm:$0xff]
    %v743 = vmul.f32 %v219, %v741
    %v744 = vmul.f32 %v220, %v742
    %v745 = vmul.f32 %v743, %v495
    %v746 = vmul.f32 %v744, %v496
    %v747 = vadd.f32 %v739, %v745
    %v748 = vadd.f32 %v740, %v746
    %v749 = vld [vmem:[#allocation8 + $0x340] sm:$0xff]
    %v750 = vld [vmem:[#allocation8 + $0x348] sm:$0xff]
    %v751 = vmul.f32 %v191, %v749
    %v752 = vmul.f32 %v192, %v750
    %v753 = vmul.f32 %v751, %v495
    %v754 = vmul.f32 %v752, %v496
    %v755 = vld [vmem:[#allocation9 + $0x340] sm:$0xff]
    %v756 = vld [vmem:[#allocation9 + $0x348] sm:$0xff]
    %v757 = vmul.f32 %v233, %v755
    %v758 = vmul.f32 %v234, %v756
    %v759 = vmul.f32 %v757, %v509
    %v760 = vmul.f32 %v758, %v510
    %v761 = vadd.f32 %v753, %v759
    %v762 = vadd.f32 %v754, %v760
    %v763 = vld [vmem:[#allocation8 + $0x360] sm:$0xff]
    %v764 = vld [vmem:[#allocation8 + $0x368] sm:$0xff]
    %v765 = vmul.f32 %v205, %v763
    %v766 = vmul.f32 %v206, %v764
    %v767 = vmul.f32 %v765, %v509
    %v768 = vmul.f32 %v766, %v510
    %v769 = vld [vmem:[#allocation9 + $0x360] sm:$0xff]
    %v770 = vld [vmem:[#allocation9 + $0x368] sm:$0xff]
    %v771 = vmul.f32 %v247, %v769
    %v772 = vmul.f32 %v248, %v770
    %v773 = vmul.f32 %v771, %v523
    %v774 = vmul.f32 %v772, %v524
    %v775 = vadd.f32 %v767, %v773
    %v776 = vadd.f32 %v768, %v774
    %v777 = vld [vmem:[#allocation8 + $0x380] sm:$0xff]
    %v778 = vld [vmem:[#allocation8 + $0x388] sm:$0xff]
    %v779 = vmul.f32 %v219, %v777
    %v780 = vmul.f32 %v220, %v778
    %v781 = vmul.f32 %v779, %v523
    %v782 = vmul.f32 %v780, %v524
    %v783 = vld [vmem:[#allocation9 + $0x380] sm:$0xff]
    %v784 = vld [vmem:[#allocation9 + $0x388] sm:$0xff]
    %v785 = vmul.f32 %v261, %v783
    %v786 = vmul.f32 %v262, %v784
    %v787 = vmul.f32 %v785, %v537
    %v788 = vmul.f32 %v786, %v538
    %v789 = vadd.f32 %v781, %v787
    %v790 = vadd.f32 %v782, %v788
    %v791 = vld [vmem:[#allocation8 + $0x3a0] sm:$0xff]
    %v792 = vld [vmem:[#allocation8 + $0x3a8] sm:$0xff]
    %v793 = vmul.f32 %v233, %v791
    %v794 = vmul.f32 %v234, %v792
    %v795 = vmul.f32 %v793, %v537
    %v796 = vmul.f32 %v794, %v538
    %v797 = vld [vmem:[#allocation9 + $0x3a0] sm:$0xff]
    %v798 = vld [vmem:[#allocation9 + $0x3a8] sm:$0xff]
    %v799 = vmul.f32 %v275, %v797
    %v800 = vmul.f32 %v276, %v798
    %v801 = vmul.f32 %v799, %v551
    %v802 = vmul.f32 %v800, %v552
    %v803 = vadd.f32 %v795, %v801
    %v804 = vadd.f32 %v796, %v802
    %v805 = vld [vmem:[#allocation8 + $0x3c0] sm:$0xff]
    %v806 = vld [vmem:[#allocation8 + $0x3c8] sm:$0xff]
    %v807 = vmul.f32 %v247, %v805
    %v808 = vmul.f32 %v248, %v806
    %v809 = vmul.f32 %v807, %v551
    %v810 = vmul.f32 %v808, %v552
    %v811 = vld [vmem:[#allocation9 + $0x3c0] sm:$0xff]
    %v812 = vld [vmem:[#allocation9 + $0x3c8] sm:$0xff]
    %v813 = vmul.f32 %v289, %v811
    %v814 = vmul.f32 %v290, %v812
    %v815 = vmul.f32 %v813, %v565
    %v816 = vmul.f32 %v814, %v566
    %v817 = vadd.f32 %v809, %v815
    %v818 = vadd.f32 %v810, %v816
    %v819 = vld [vmem:[#allocation8 + $0x3e0] sm:$0xff]
    %v820 = vld [vmem:[#allocation8 + $0x3e8] sm:$0xff]
    %v821 = vmul.f32 %v261, %v819
    %v822 = vmul.f32 %v262, %v820
    %v823 = vmul.f32 %v821, %v565
    %v824 = vmul.f32 %v822, %v566
    %v825 = vld [vmem:[#allocation9 + $0x3e0] sm:$0xff]
    %v826 = vld [vmem:[#allocation9 + $0x3e8] sm:$0xff]
    %v827 = vmul.f32 %v303, %v825
    %v828 = vmul.f32 %v304, %v826
    %v829 = vmul.f32 %v827, %v579
    %v830 = vmul.f32 %v828, %v580
    %v831 = vadd.f32 %v823, %v829
    %v832 = vadd.f32 %v824, %v830
    %v833 = vld [vmem:[#allocation8 + $0x400] sm:$0xff]
    %v834 = vld [vmem:[#allocation8 + $0x408] sm:$0xff]
    %v835 = vmul.f32 %v275, %v833
    %v836 = vmul.f32 %v276, %v834
    %v837 = vmul.f32 %v835, %v579
    %v838 = vmul.f32 %v836, %v580
    %v839 = vld [vmem:[#allocation9 + $0x400] sm:$0xff]
    %v840 = vld [vmem:[#allocation9 + $0x408] sm:$0xff]
    %v841 = vmul.f32 %v317, %v839
    %v842 = vmul.f32 %v318, %v840
    %v843 = vmul.f32 %v841, %v593
    %v844 = vmul.f32 %v842, %v594
    %v845 = vadd.f32 %v837, %v843
    %v846 = vadd.f32 %v838, %v844
    %v847 = vld [vmem:[#allocation8 + $0x420] sm:$0xff]
    %v848 = vld [vmem:[#allocation8 + $0x428] sm:$0xff]
    %v849 = vmul.f32 %v289, %v847
    %v850 = vmul.f32 %v290, %v848
    %v851 = vmul.f32 %v849, %v593
    %v852 = vmul.f32 %v850, %v594
    %v853 = vld [vmem:[#allocation9 + $0x420] sm:$0xff]
    %v854 = vld [vmem:[#allocation9 + $0x428] sm:$0xff]
    %v855 = vmul.f32 %v331, %v853
    %v856 = vmul.f32 %v332, %v854
    %v857 = vmul.f32 %v855, %v607
    %v858 = vmul.f32 %v856, %v608
    %v859 = vadd.f32 %v851, %v857
    %v860 = vadd.f32 %v852, %v858
    %v861 = vld [vmem:[#allocation8 + $0x440] sm:$0xff]
    %v862 = vld [vmem:[#allocation8 + $0x448] sm:$0xff]
    %v863 = vmul.f32 %v303, %v861
    %v864 = vmul.f32 %v304, %v862
    %v865 = vmul.f32 %v863, %v607
    %v866 = vmul.f32 %v864, %v608
    %v867 = vld [vmem:[#allocation9 + $0x440] sm:$0xff]
    %v868 = vld [vmem:[#allocation9 + $0x448] sm:$0xff]
    %v869 = vmul.f32 %v345, %v867
    %v870 = vmul.f32 %v346, %v868
    %v871 = vmul.f32 %v869, %v621
    %v872 = vmul.f32 %v870, %v622
    %v873 = vadd.f32 %v865, %v871
    %v874 = vadd.f32 %v866, %v872
    %v875 = vld [vmem:[#allocation8 + $0x460] sm:$0xff]
    %v876 = vld [vmem:[#allocation8 + $0x468] sm:$0xff]
    %v877 = vmul.f32 %v317, %v875
    %v878 = vmul.f32 %v318, %v876
    %v879 = vmul.f32 %v877, %v621
    %v880 = vmul.f32 %v878, %v622
    %v881 = vld [vmem:[#allocation9 + $0x460] sm:$0xff]
    %v882 = vld [vmem:[#allocation9 + $0x468] sm:$0xff]
    %v883 = vmul.f32 %v359, %v881
    %v884 = vmul.f32 %v360, %v882
    %v885 = vmul.f32 %v883, %v635
    %v886 = vmul.f32 %v884, %v636
    %v887 = vadd.f32 %v879, %v885
    %v888 = vadd.f32 %v880, %v886
    %v889 = vld [vmem:[#allocation8 + $0x480] sm:$0xff]
    %v890 = vld [vmem:[#allocation8 + $0x488] sm:$0xff]
    %v891 = vmul.f32 %v331, %v889
    %v892 = vmul.f32 %v332, %v890
    %v893 = vmul.f32 %v891, %v635
    %v894 = vmul.f32 %v892, %v636
    %v895 = vld [vmem:[#allocation9 + $0x480] sm:$0xff]
    %v896 = vld [vmem:[#allocation9 + $0x488] sm:$0xff]
    %v897 = vmul.f32 %v373, %v895
    %v898 = vmul.f32 %v374, %v896
    %v899 = vmul.f32 %v897, %v649
    %v900 = vmul.f32 %v898, %v650
    %v901 = vadd.f32 %v893, %v899
    %v902 = vadd.f32 %v894, %v900
    %v903 = vld [vmem:[#allocation8 + $0x4a0] sm:$0xff]
    %v904 = vld [vmem:[#allocation8 + $0x4a8] sm:$0xff]
    %v905 = vmul.f32 %v103, %v903
    %v906 = vmul.f32 %v104, %v904
    %v907 = vmul.f32 %v905, %v663
    %v908 = vmul.f32 %v906, %v664
    %v909 = vld [vmem:[#allocation9 + $0x4a0] sm:$0xff]
    %v910 = vld [vmem:[#allocation9 + $0x4a8] sm:$0xff]
    %v911 = vmul.f32 %v149, %v909
    %v912 = vmul.f32 %v150, %v910
    %v913 = vmul.f32 %v911, %v677
    %v914 = vmul.f32 %v912, %v678
    %v915 = vadd.f32 %v907, %v913
    %v916 = vadd.f32 %v908, %v914
    %v917 = vld [vmem:[#allocation8 + $0x4c0] sm:$0xff]
    %v918 = vld [vmem:[#allocation8 + $0x4c8] sm:$0xff]
    %v919 = vmul.f32 %v107, %v917
    %v920 = vmul.f32 %v108, %v918
    %v921 = vmul.f32 %v919, %v677
    %v922 = vmul.f32 %v920, %v678
    %v923 = vld [vmem:[#allocation9 + $0x4c0] sm:$0xff]
    %v924 = vld [vmem:[#allocation9 + $0x4c8] sm:$0xff]
    %v925 = vmul.f32 %v163, %v923
    %v926 = vmul.f32 %v164, %v924
    %v927 = vmul.f32 %v925, %v691
    %v928 = vmul.f32 %v926, %v692
    %v929 = vadd.f32 %v921, %v927
    %v930 = vadd.f32 %v922, %v928
    %v931 = vld [vmem:[#allocation8 + $0x4e0] sm:$0xff]
    %v932 = vld [vmem:[#allocation8 + $0x4e8] sm:$0xff]
    %v933 = vmul.f32 %v121, %v931
    %v934 = vmul.f32 %v122, %v932
    %v935 = vmul.f32 %v933, %v691
    %v936 = vmul.f32 %v934, %v692
    %v937 = vld [vmem:[#allocation9 + $0x4e0] sm:$0xff]
    %v938 = vld [vmem:[#allocation9 + $0x4e8] sm:$0xff]
    %v939 = vmul.f32 %v177, %v937
    %v940 = vmul.f32 %v178, %v938
    %v941 = vmul.f32 %v939, %v705
    %v942 = vmul.f32 %v940, %v706
    %v943 = vadd.f32 %v935, %v941
    %v944 = vadd.f32 %v936, %v942
    %v945 = vld [vmem:[#allocation8 + $0x500] sm:$0xff]
    %v946 = vld [vmem:[#allocation8 + $0x508] sm:$0xff]
    %v947 = vmul.f32 %v135, %v945
    %v948 = vmul.f32 %v136, %v946
    %v949 = vmul.f32 %v947, %v705
    %v950 = vmul.f32 %v948, %v706
    %v951 = vld [vmem:[#allocation9 + $0x500] sm:$0xff]
    %v952 = vld [vmem:[#allocation9 + $0x508] sm:$0xff]
    %v953 = vmul.f32 %v191, %v951
    %v954 = vmul.f32 %v192, %v952
    %v955 = vmul.f32 %v953, %v719
    %v956 = vmul.f32 %v954, %v720
    %v957 = vadd.f32 %v949, %v955
    %v958 = vadd.f32 %v950, %v956
    %v959 = vld [vmem:[#allocation8 + $0x520] sm:$0xff]
    %v960 = vld [vmem:[#allocation8 + $0x528] sm:$0xff]
    %v961 = vmul.f32 %v149, %v959
    %v962 = vmul.f32 %v150, %v960
    %v963 = vmul.f32 %v961, %v719
    %v964 = vmul.f32 %v962, %v720
    %v965 = vld [vmem:[#allocation9 + $0x520] sm:$0xff]
    %v966 = vld [vmem:[#allocation9 + $0x528] sm:$0xff]
    %v967 = vmul.f32 %v205, %v965
    %v968 = vmul.f32 %v206, %v966
    %v969 = vmul.f32 %v967, %v733
    %v970 = vmul.f32 %v968, %v734
    %v971 = vadd.f32 %v963, %v969
    %v972 = vadd.f32 %v964, %v970
    %v973 = vld [vmem:[#allocation8 + $0x540] sm:$0xff]
    %v974 = vld [vmem:[#allocation8 + $0x548] sm:$0xff]
    %v975 = vmul.f32 %v163, %v973
    %v976 = vmul.f32 %v164, %v974
    %v977 = vmul.f32 %v975, %v733
    %v978 = vmul.f32 %v976, %v734
    %v979 = vld [vmem:[#allocation9 + $0x540] sm:$0xff]
    %v980 = vld [vmem:[#allocation9 + $0x548] sm:$0xff]
    %v981 = vmul.f32 %v219, %v979
    %v982 = vmul.f32 %v220, %v980
    %v983 = vmul.f32 %v981, %v747
    %v984 = vmul.f32 %v982, %v748
    %v985 = vadd.f32 %v977, %v983
    %v986 = vadd.f32 %v978, %v984
    %v987 = vld [vmem:[#allocation8 + $0x560] sm:$0xff]
    %v988 = vld [vmem:[#allocation8 + $0x568] sm:$0xff]
    %v989 = vmul.f32 %v177, %v987
    %v990 = vmul.f32 %v178, %v988
    %v991 = vmul.f32 %v989, %v747
    %v992 = vmul.f32 %v990, %v748
    %v993 = vld [vmem:[#allocation9 + $0x560] sm:$0xff]
    %v994 = vld [vmem:[#allocation9 + $0x568] sm:$0xff]
    %v995 = vmul.f32 %v233, %v993
    %v996 = vmul.f32 %v234, %v994
    %v997 = vmul.f32 %v995, %v761
    %v998 = vmul.f32 %v996, %v762
    %v999 = vadd.f32 %v991, %v997
    %v1000 = vadd.f32 %v992, %v998
    %v1001 = vld [vmem:[#allocation8 + $0x580] sm:$0xff]
    %v1002 = vld [vmem:[#allocation8 + $0x588] sm:$0xff]
    %v1003 = vmul.f32 %v191, %v1001
    %v1004 = vmul.f32 %v192, %v1002
    %v1005 = vmul.f32 %v1003, %v761
    %v1006 = vmul.f32 %v1004, %v762
    %v1007 = vld [vmem:[#allocation9 + $0x580] sm:$0xff]
    %v1008 = vld [vmem:[#allocation9 + $0x588] sm:$0xff]
    %v1009 = vmul.f32 %v247, %v1007
    %v1010 = vmul.f32 %v248, %v1008
    %v1011 = vmul.f32 %v1009, %v775
    %v1012 = vmul.f32 %v1010, %v776
    %v1013 = vadd.f32 %v1005, %v1011
    %v1014 = vadd.f32 %v1006, %v1012
    %v1015 = vld [vmem:[#allocation8 + $0x5a0] sm:$0xff]
    %v1016 = vld [vmem:[#allocation8 + $0x5a8] sm:$0xff]
    %v1017 = vmul.f32 %v205, %v1015
    %v1018 = vmul.f32 %v206, %v1016
    %v1019 = vmul.f32 %v1017, %v775
    %v1020 = vmul.f32 %v1018, %v776
    %v1021 = vld [vmem:[#allocation9 + $0x5a0] sm:$0xff]
    %v1022 = vld [vmem:[#allocation9 + $0x5a8] sm:$0xff]
    %v1023 = vmul.f32 %v261, %v1021
    %v1024 = vmul.f32 %v262, %v1022
    %v1025 = vmul.f32 %v1023, %v789
    %v1026 = vmul.f32 %v1024, %v790
    %v1027 = vadd.f32 %v1019, %v1025
    %v1028 = vadd.f32 %v1020, %v1026
    %v1029 = vld [vmem:[#allocation8 + $0x5c0] sm:$0xff]
    %v1030 = vld [vmem:[#allocation8 + $0x5c8] sm:$0xff]
    %v1031 = vmul.f32 %v219, %v1029
    %v1032 = vmul.f32 %v220, %v1030
    %v1033 = vmul.f32 %v1031, %v789
    %v1034 = vmul.f32 %v1032, %v790
    %v1035 = vld [vmem:[#allocation9 + $0x5c0] sm:$0xff]
    %v1036 = vld [vmem:[#allocation9 + $0x5c8] sm:$0xff]
    %v1037 = vmul.f32 %v275, %v1035
    %v1038 = vmul.f32 %v276, %v1036
    %v1039 = vmul.f32 %v1037, %v803
    %v1040 = vmul.f32 %v1038, %v804
    %v1041 = vadd.f32 %v1033, %v1039
    %v1042 = vadd.f32 %v1034, %v1040
    %v1043 = vld [vmem:[#allocation8 + $0x5e0] sm:$0xff]
    %v1044 = vld [vmem:[#allocation8 + $0x5e8] sm:$0xff]
    %v1045 = vmul.f32 %v233, %v1043
    %v1046 = vmul.f32 %v234, %v1044
    %v1047 = vmul.f32 %v1045, %v803
    %v1048 = vmul.f32 %v1046, %v804
    %v1049 = vld [vmem:[#allocation9 + $0x5e0] sm:$0xff]
    %v1050 = vld [vmem:[#allocation9 + $0x5e8] sm:$0xff]
    %v1051 = vmul.f32 %v289, %v1049
    %v1052 = vmul.f32 %v290, %v1050
    %v1053 = vmul.f32 %v1051, %v817
    %v1054 = vmul.f32 %v1052, %v818
    %v1055 = vadd.f32 %v1047, %v1053
    %v1056 = vadd.f32 %v1048, %v1054
    %v1057 = vld [vmem:[#allocation8 + $0x600] sm:$0xff]
    %v1058 = vld [vmem:[#allocation8 + $0x608] sm:$0xff]
    %v1059 = vmul.f32 %v247, %v1057
    %v1060 = vmul.f32 %v248, %v1058
    %v1061 = vmul.f32 %v1059, %v817
    %v1062 = vmul.f32 %v1060, %v818
    %v1063 = vld [vmem:[#allocation9 + $0x600] sm:$0xff]
    %v1064 = vld [vmem:[#allocation9 + $0x608] sm:$0xff]
    %v1065 = vmul.f32 %v303, %v1063
    %v1066 = vmul.f32 %v304, %v1064
    %v1067 = vmul.f32 %v1065, %v831
    %v1068 = vmul.f32 %v1066, %v832
    %v1069 = vadd.f32 %v1061, %v1067
    %v1070 = vadd.f32 %v1062, %v1068
    %v1071 = vld [vmem:[#allocation8 + $0x620] sm:$0xff]
    %v1072 = vld [vmem:[#allocation8 + $0x628] sm:$0xff]
    %v1073 = vmul.f32 %v261, %v1071
    %v1074 = vmul.f32 %v262, %v1072
    %v1075 = vmul.f32 %v1073, %v831
    %v1076 = vmul.f32 %v1074, %v832
    %v1077 = vld [vmem:[#allocation9 + $0x620] sm:$0xff]
    %v1078 = vld [vmem:[#allocation9 + $0x628] sm:$0xff]
    %v1079 = vmul.f32 %v317, %v1077
    %v1080 = vmul.f32 %v318, %v1078
    %v1081 = vmul.f32 %v1079, %v845
    %v1082 = vmul.f32 %v1080, %v846
    %v1083 = vadd.f32 %v1075, %v1081
    %v1084 = vadd.f32 %v1076, %v1082
    %v1085 = vld [vmem:[#allocation8 + $0x640] sm:$0xff]
    %v1086 = vld [vmem:[#allocation8 + $0x648] sm:$0xff]
    %v1087 = vmul.f32 %v275, %v1085
    %v1088 = vmul.f32 %v276, %v1086
    %v1089 = vmul.f32 %v1087, %v845
    %v1090 = vmul.f32 %v1088, %v846
    %v1091 = vld [vmem:[#allocation9 + $0x640] sm:$0xff]
    %v1092 = vld [vmem:[#allocation9 + $0x648] sm:$0xff]
    %v1093 = vmul.f32 %v331, %v1091
    %v1094 = vmul.f32 %v332, %v1092
    %v1095 = vmul.f32 %v1093, %v859
    %v1096 = vmul.f32 %v1094, %v860
    %v1097 = vadd.f32 %v1089, %v1095
    %v1098 = vadd.f32 %v1090, %v1096
    %v1099 = vld [vmem:[#allocation8 + $0x660] sm:$0xff]
    %v1100 = vld [vmem:[#allocation8 + $0x668] sm:$0xff]
    %v1101 = vmul.f32 %v289, %v1099
    %v1102 = vmul.f32 %v290, %v1100
    %v1103 = vmul.f32 %v1101, %v859
    %v1104 = vmul.f32 %v1102, %v860
    %v1105 = vld [vmem:[#allocation9 + $0x660] sm:$0xff]
    %v1106 = vld [vmem:[#allocation9 + $0x668] sm:$0xff]
    %v1107 = vmul.f32 %v345, %v1105
    %v1108 = vmul.f32 %v346, %v1106
    %v1109 = vmul.f32 %v1107, %v873
    %v1110 = vmul.f32 %v1108, %v874
    %v1111 = vadd.f32 %v1103, %v1109
    %v1112 = vadd.f32 %v1104, %v1110
    %v1113 = vld [vmem:[#allocation8 + $0x680] sm:$0xff]
    %v1114 = vld [vmem:[#allocation8 + $0x688] sm:$0xff]
    %v1115 = vmul.f32 %v303, %v1113
    %v1116 = vmul.f32 %v304, %v1114
    %v1117 = vmul.f32 %v1115, %v873
    %v1118 = vmul.f32 %v1116, %v874
    %v1119 = vld [vmem:[#allocation9 + $0x680] sm:$0xff]
    %v1120 = vld [vmem:[#allocation9 + $0x688] sm:$0xff]
    %v1121 = vmul.f32 %v359, %v1119
    %v1122 = vmul.f32 %v360, %v1120
    %v1123 = vmul.f32 %v1121, %v887
    %v1124 = vmul.f32 %v1122, %v888
    %v1125 = vadd.f32 %v1117, %v1123
    %v1126 = vadd.f32 %v1118, %v1124
    %v1127 = vld [vmem:[#allocation8 + $0x6a0] sm:$0xff]
    %v1128 = vld [vmem:[#allocation8 + $0x6a8] sm:$0xff]
    %v1129 = vmul.f32 %v317, %v1127
    %v1130 = vmul.f32 %v318, %v1128
    %v1131 = vmul.f32 %v1129, %v887
    %v1132 = vmul.f32 %v1130, %v888
    %v1133 = vld [vmem:[#allocation9 + $0x6a0] sm:$0xff]
    %v1134 = vld [vmem:[#allocation9 + $0x6a8] sm:$0xff]
    %v1135 = vmul.f32 %v373, %v1133
    %v1136 = vmul.f32 %v374, %v1134
    %v1137 = vmul.f32 %v1135, %v901
    %v1138 = vmul.f32 %v1136, %v902
    %v1139 = vadd.f32 %v1131, %v1137
    %v1140 = vadd.f32 %v1132, %v1138
    %v1141 = vld [vmem:[#allocation8 + $0x6c0] sm:$0xff]
    %v1142 = vld [vmem:[#allocation8 + $0x6c8] sm:$0xff]
    %v1143 = vmul.f32 %v103, %v1141
    %v1144 = vmul.f32 %v104, %v1142
    %v1145 = vmul.f32 %v1143, %v915
    %v1146 = vmul.f32 %v1144, %v916
    %v1147 = vld [vmem:[#allocation9 + $0x6c0] sm:$0xff]
    %v1148 = vld [vmem:[#allocation9 + $0x6c8] sm:$0xff]
    %v1149 = vmul.f32 %v163, %v1147
    %v1150 = vmul.f32 %v164, %v1148
    %v1151 = vmul.f32 %v1149, %v929
    %v1152 = vmul.f32 %v1150, %v930
    %v1153 = vadd.f32 %v1145, %v1151
    %v1154 = vadd.f32 %v1146, %v1152
    %v1155 = vld [vmem:[#allocation8 + $0x6e0] sm:$0xff]
    %v1156 = vld [vmem:[#allocation8 + $0x6e8] sm:$0xff]
    %v1157 = vmul.f32 %v107, %v1155
    %v1158 = vmul.f32 %v108, %v1156
    %v1159 = vmul.f32 %v1157, %v929
    %v1160 = vmul.f32 %v1158, %v930
    %v1161 = vld [vmem:[#allocation9 + $0x6e0] sm:$0xff]
    %v1162 = vld [vmem:[#allocation9 + $0x6e8] sm:$0xff]
    %v1163 = vmul.f32 %v177, %v1161
    %v1164 = vmul.f32 %v178, %v1162
    %v1165 = vmul.f32 %v1163, %v943
    %v1166 = vmul.f32 %v1164, %v944
    %v1167 = vadd.f32 %v1159, %v1165
    %v1168 = vadd.f32 %v1160, %v1166
    %v1169 = vld [vmem:[#allocation8 + $0x700] sm:$0xff]
    %v1170 = vld [vmem:[#allocation8 + $0x708] sm:$0xff]
    %v1171 = vmul.f32 %v121, %v1169
    %v1172 = vmul.f32 %v122, %v1170
    %v1173 = vmul.f32 %v1171, %v943
    %v1174 = vmul.f32 %v1172, %v944
    %v1175 = vld [vmem:[#allocation9 + $0x700] sm:$0xff]
    %v1176 = vld [vmem:[#allocation9 + $0x708] sm:$0xff]
    %v1177 = vmul.f32 %v191, %v1175
    %v1178 = vmul.f32 %v192, %v1176
    %v1179 = vmul.f32 %v1177, %v957
    %v1180 = vmul.f32 %v1178, %v958
    %v1181 = vadd.f32 %v1173, %v1179
    %v1182 = vadd.f32 %v1174, %v1180
    %v1183 = vld [vmem:[#allocation8 + $0x720] sm:$0xff]
    %v1184 = vld [vmem:[#allocation8 + $0x728] sm:$0xff]
    %v1185 = vmul.f32 %v135, %v1183
    %v1186 = vmul.f32 %v136, %v1184
    %v1187 = vmul.f32 %v1185, %v957
    %v1188 = vmul.f32 %v1186, %v958
    %v1189 = vld [vmem:[#allocation9 + $0x720] sm:$0xff]
    %v1190 = vld [vmem:[#allocation9 + $0x728] sm:$0xff]
    %v1191 = vmul.f32 %v205, %v1189
    %v1192 = vmul.f32 %v206, %v1190
    %v1193 = vmul.f32 %v1191, %v971
    %v1194 = vmul.f32 %v1192, %v972
    %v1195 = vadd.f32 %v1187, %v1193
    %v1196 = vadd.f32 %v1188, %v1194
    %v1197 = vld [vmem:[#allocation8 + $0x740] sm:$0xff]
    %v1198 = vld [vmem:[#allocation8 + $0x748] sm:$0xff]
    %v1199 = vmul.f32 %v149, %v1197
    %v1200 = vmul.f32 %v150, %v1198
    %v1201 = vmul.f32 %v1199, %v971
    %v1202 = vmul.f32 %v1200, %v972
    %v1203 = vld [vmem:[#allocation9 + $0x740] sm:$0xff]
    %v1204 = vld [vmem:[#allocation9 + $0x748] sm:$0xff]
    %v1205 = vmul.f32 %v219, %v1203
    %v1206 = vmul.f32 %v220, %v1204
    %v1207 = vmul.f32 %v1205, %v985
    %v1208 = vmul.f32 %v1206, %v986
    %v1209 = vadd.f32 %v1201, %v1207
    %v1210 = vadd.f32 %v1202, %v1208
    %v1211 = vld [vmem:[#allocation8 + $0x760] sm:$0xff]
    %v1212 = vld [vmem:[#allocation8 + $0x768] sm:$0xff]
    %v1213 = vmul.f32 %v163, %v1211
    %v1214 = vmul.f32 %v164, %v1212
    %v1215 = vmul.f32 %v1213, %v985
    %v1216 = vmul.f32 %v1214, %v986
    %v1217 = vld [vmem:[#allocation9 + $0x760] sm:$0xff]
    %v1218 = vld [vmem:[#allocation9 + $0x768] sm:$0xff]
    %v1219 = vmul.f32 %v233, %v1217
    %v1220 = vmul.f32 %v234, %v1218
    %v1221 = vmul.f32 %v1219, %v999
    %v1222 = vmul.f32 %v1220, %v1000
    %v1223 = vadd.f32 %v1215, %v1221
    %v1224 = vadd.f32 %v1216, %v1222
    %v1225 = vld [vmem:[#allocation8 + $0x780] sm:$0xff]
    %v1226 = vld [vmem:[#allocation8 + $0x788] sm:$0xff]
    %v1227 = vmul.f32 %v177, %v1225
    %v1228 = vmul.f32 %v178, %v1226
    %v1229 = vmul.f32 %v1227, %v999
    %v1230 = vmul.f32 %v1228, %v1000
    %v1231 = vld [vmem:[#allocation9 + $0x780] sm:$0xff]
    %v1232 = vld [vmem:[#allocation9 + $0x788] sm:$0xff]
    %v1233 = vmul.f32 %v247, %v1231
    %v1234 = vmul.f32 %v248, %v1232
    %v1235 = vmul.f32 %v1233, %v1013
    %v1236 = vmul.f32 %v1234, %v1014
    %v1237 = vadd.f32 %v1229, %v1235
    %v1238 = vadd.f32 %v1230, %v1236
    %v1239 = vld [vmem:[#allocation8 + $0x7a0] sm:$0xff]
    %v1240 = vld [vmem:[#allocation8 + $0x7a8] sm:$0xff]
    %v1241 = vmul.f32 %v191, %v1239
    %v1242 = vmul.f32 %v192, %v1240
    %v1243 = vmul.f32 %v1241, %v1013
    %v1244 = vmul.f32 %v1242, %v1014
    %v1245 = vld [vmem:[#allocation9 + $0x7a0] sm:$0xff]
    %v1246 = vld [vmem:[#allocation9 + $0x7a8] sm:$0xff]
    %v1247 = vmul.f32 %v261, %v1245
    %v1248 = vmul.f32 %v262, %v1246
    %v1249 = vmul.f32 %v1247, %v1027
    %v1250 = vmul.f32 %v1248, %v1028
    %v1251 = vadd.f32 %v1243, %v1249
    %v1252 = vadd.f32 %v1244, %v1250
    %v1253 = vld [vmem:[#allocation8 + $0x7c0] sm:$0xff]
    %v1254 = vld [vmem:[#allocation8 + $0x7c8] sm:$0xff]
    %v1255 = vmul.f32 %v205, %v1253
    %v1256 = vmul.f32 %v206, %v1254
    %v1257 = vmul.f32 %v1255, %v1027
    %v1258 = vmul.f32 %v1256, %v1028
    %v1259 = vld [vmem:[#allocation9 + $0x7c0] sm:$0xff]
    %v1260 = vld [vmem:[#allocation9 + $0x7c8] sm:$0xff]
    %v1261 = vmul.f32 %v275, %v1259
    %v1262 = vmul.f32 %v276, %v1260
    %v1263 = vmul.f32 %v1261, %v1041
    %v1264 = vmul.f32 %v1262, %v1042
    %v1265 = vadd.f32 %v1257, %v1263
    %v1266 = vadd.f32 %v1258, %v1264
    %v1267 = vld [vmem:[#allocation8 + $0x7e0] sm:$0xff]
    %v1268 = vld [vmem:[#allocation8 + $0x7e8] sm:$0xff]
    %v1269 = vmul.f32 %v219, %v1267
    %v1270 = vmul.f32 %v220, %v1268
    %v1271 = vmul.f32 %v1269, %v1041
    %v1272 = vmul.f32 %v1270, %v1042
    %v1273 = vld [vmem:[#allocation9 + $0x7e0] sm:$0xff]
    %v1274 = vld [vmem:[#allocation9 + $0x7e8] sm:$0xff]
    %v1275 = vmul.f32 %v289, %v1273
    %v1276 = vmul.f32 %v290, %v1274
    %v1277 = vmul.f32 %v1275, %v1055
    %v1278 = vmul.f32 %v1276, %v1056
    %v1279 = vadd.f32 %v1271, %v1277
    %v1280 = vadd.f32 %v1272, %v1278
    %v1281 = vld [vmem:[#allocation8 + $0x800] sm:$0xff]
    %v1282 = vld [vmem:[#allocation8 + $0x808] sm:$0xff]
    %v1283 = vmul.f32 %v233, %v1281
    %v1284 = vmul.f32 %v234, %v1282
    %v1285 = vmul.f32 %v1283, %v1055
    %v1286 = vmul.f32 %v1284, %v1056
    %v1287 = vld [vmem:[#allocation9 + $0x800] sm:$0xff]
    %v1288 = vld [vmem:[#allocation9 + $0x808] sm:$0xff]
    %v1289 = vmul.f32 %v303, %v1287
    %v1290 = vmul.f32 %v304, %v1288
    %v1291 = vmul.f32 %v1289, %v1069
    %v1292 = vmul.f32 %v1290, %v1070
    %v1293 = vadd.f32 %v1285, %v1291
    %v1294 = vadd.f32 %v1286, %v1292
    %v1295 = vld [vmem:[#allocation8 + $0x820] sm:$0xff]
    %v1296 = vld [vmem:[#allocation8 + $0x828] sm:$0xff]
    %v1297 = vmul.f32 %v247, %v1295
    %v1298 = vmul.f32 %v248, %v1296
    %v1299 = vmul.f32 %v1297, %v1069
    %v1300 = vmul.f32 %v1298, %v1070
    %v1301 = vld [vmem:[#allocation9 + $0x820] sm:$0xff]
    %v1302 = vld [vmem:[#allocation9 + $0x828] sm:$0xff]
    %v1303 = vmul.f32 %v317, %v1301
    %v1304 = vmul.f32 %v318, %v1302
    %v1305 = vmul.f32 %v1303, %v1083
    %v1306 = vmul.f32 %v1304, %v1084
    %v1307 = vadd.f32 %v1299, %v1305
    %v1308 = vadd.f32 %v1300, %v1306
    %v1309 = vld [vmem:[#allocation8 + $0x840] sm:$0xff]
    %v1310 = vld [vmem:[#allocation8 + $0x848] sm:$0xff]
    %v1311 = vmul.f32 %v261, %v1309
    %v1312 = vmul.f32 %v262, %v1310
    %v1313 = vmul.f32 %v1311, %v1083
    %v1314 = vmul.f32 %v1312, %v1084
    %v1315 = vld [vmem:[#allocation9 + $0x840] sm:$0xff]
    %v1316 = vld [vmem:[#allocation9 + $0x848] sm:$0xff]
    %v1317 = vmul.f32 %v331, %v1315
    %v1318 = vmul.f32 %v332, %v1316
    %v1319 = vmul.f32 %v1317, %v1097
    %v1320 = vmul.f32 %v1318, %v1098
    %v1321 = vadd.f32 %v1313, %v1319
    %v1322 = vadd.f32 %v1314, %v1320
    %v1323 = vld [vmem:[#allocation8 + $0x860] sm:$0xff]
    %v1324 = vld [vmem:[#allocation8 + $0x868] sm:$0xff]
    %v1325 = vmul.f32 %v275, %v1323
    %v1326 = vmul.f32 %v276, %v1324
    %v1327 = vmul.f32 %v1325, %v1097
    %v1328 = vmul.f32 %v1326, %v1098
    %v1329 = vld [vmem:[#allocation9 + $0x860] sm:$0xff]
    %v1330 = vld [vmem:[#allocation9 + $0x868] sm:$0xff]
    %v1331 = vmul.f32 %v345, %v1329
    %v1332 = vmul.f32 %v346, %v1330
    %v1333 = vmul.f32 %v1331, %v1111
    %v1334 = vmul.f32 %v1332, %v1112
    %v1335 = vadd.f32 %v1327, %v1333
    %v1336 = vadd.f32 %v1328, %v1334
    %v1337 = vld [vmem:[#allocation8 + $0x880] sm:$0xff]
    %v1338 = vld [vmem:[#allocation8 + $0x888] sm:$0xff]
    %v1339 = vmul.f32 %v289, %v1337
    %v1340 = vmul.f32 %v290, %v1338
    %v1341 = vmul.f32 %v1339, %v1111
    %v1342 = vmul.f32 %v1340, %v1112
    %v1343 = vld [vmem:[#allocation9 + $0x880] sm:$0xff]
    %v1344 = vld [vmem:[#allocation9 + $0x888] sm:$0xff]
    %v1345 = vmul.f32 %v359, %v1343
    %v1346 = vmul.f32 %v360, %v1344
    %v1347 = vmul.f32 %v1345, %v1125
    %v1348 = vmul.f32 %v1346, %v1126
    %v1349 = vadd.f32 %v1341, %v1347
    %v1350 = vadd.f32 %v1342, %v1348
    %v1351 = vld [vmem:[#allocation8 + $0x8a0] sm:$0xff]
    %v1352 = vld [vmem:[#allocation8 + $0x8a8] sm:$0xff]
    %v1353 = vmul.f32 %v303, %v1351
    %v1354 = vmul.f32 %v304, %v1352
    %v1355 = vmul.f32 %v1353, %v1125
    %v1356 = vmul.f32 %v1354, %v1126
    %v1357 = vld [vmem:[#allocation9 + $0x8a0] sm:$0xff]
    %v1358 = vld [vmem:[#allocation9 + $0x8a8] sm:$0xff]
    %v1359 = vmul.f32 %v373, %v1357
    %v1360 = vmul.f32 %v374, %v1358
    %v1361 = vmul.f32 %v1359, %v1139
    %v1362 = vmul.f32 %v1360, %v1140
    %v1363 = vadd.f32 %v1355, %v1361
    %v1364 = vadd.f32 %v1356, %v1362
    %v1365 = vld [vmem:[#allocation8 + $0x8c0] sm:$0xff]
    %v1366 = vld [vmem:[#allocation8 + $0x8c8] sm:$0xff]
    %v1367 = vmul.f32 %v103, %v1365
    %v1368 = vmul.f32 %v104, %v1366
    %v1369 = vmul.f32 %v1367, %v1153
    %v1370 = vmul.f32 %v1368, %v1154
    %v1371 = vld [vmem:[#allocation9 + $0x8c0] sm:$0xff]
    %v1372 = vld [vmem:[#allocation9 + $0x8c8] sm:$0xff]
    %v1373 = vmul.f32 %v177, %v1371
    %v1374 = vmul.f32 %v178, %v1372
    %v1375 = vmul.f32 %v1373, %v1167
    %v1376 = vmul.f32 %v1374, %v1168
    %v1377 = vadd.f32 %v1369, %v1375
    %v1378 = vadd.f32 %v1370, %v1376
    %v1379 = vld [vmem:[#allocation8 + $0x8e0] sm:$0xff]
    %v1380 = vld [vmem:[#allocation8 + $0x8e8] sm:$0xff]
    %v1381 = vmul.f32 %v107, %v1379
    %v1382 = vmul.f32 %v108, %v1380
    %v1383 = vmul.f32 %v1381, %v1167
    %v1384 = vmul.f32 %v1382, %v1168
    %v1385 = vld [vmem:[#allocation9 + $0x8e0] sm:$0xff]
    %v1386 = vld [vmem:[#allocation9 + $0x8e8] sm:$0xff]
    %v1387 = vmul.f32 %v191, %v1385
    %v1388 = vmul.f32 %v192, %v1386
    %v1389 = vmul.f32 %v1387, %v1181
    %v1390 = vmul.f32 %v1388, %v1182
    %v1391 = vadd.f32 %v1383, %v1389
    %v1392 = vadd.f32 %v1384, %v1390
    %v1393 = vld [vmem:[#allocation8 + $0x900] sm:$0xff]
    %v1394 = vld [vmem:[#allocation8 + $0x908] sm:$0xff]
    %v1395 = vmul.f32 %v121, %v1393
    %v1396 = vmul.f32 %v122, %v1394
    %v1397 = vmul.f32 %v1395, %v1181
    %v1398 = vmul.f32 %v1396, %v1182
    %v1399 = vld [vmem:[#allocation9 + $0x900] sm:$0xff]
    %v1400 = vld [vmem:[#allocation9 + $0x908] sm:$0xff]
    %v1401 = vmul.f32 %v205, %v1399
    %v1402 = vmul.f32 %v206, %v1400
    %v1403 = vmul.f32 %v1401, %v1195
    %v1404 = vmul.f32 %v1402, %v1196
    %v1405 = vadd.f32 %v1397, %v1403
    %v1406 = vadd.f32 %v1398, %v1404
    %v1407 = vld [vmem:[#allocation8 + $0x920] sm:$0xff]
    %v1408 = vld [vmem:[#allocation8 + $0x928] sm:$0xff]
    %v1409 = vmul.f32 %v135, %v1407
    %v1410 = vmul.f32 %v136, %v1408
    %v1411 = vmul.f32 %v1409, %v1195
    %v1412 = vmul.f32 %v1410, %v1196
    %v1413 = vld [vmem:[#allocation9 + $0x920] sm:$0xff]
    %v1414 = vld [vmem:[#allocation9 + $0x928] sm:$0xff]
    %v1415 = vmul.f32 %v219, %v1413
    %v1416 = vmul.f32 %v220, %v1414
    %v1417 = vmul.f32 %v1415, %v1209
    %v1418 = vmul.f32 %v1416, %v1210
    %v1419 = vadd.f32 %v1411, %v1417
    %v1420 = vadd.f32 %v1412, %v1418
    %v1421 = vld [vmem:[#allocation8 + $0x940] sm:$0xff]
    %v1422 = vld [vmem:[#allocation8 + $0x948] sm:$0xff]
    %v1423 = vmul.f32 %v149, %v1421
    %v1424 = vmul.f32 %v150, %v1422
    %v1425 = vmul.f32 %v1423, %v1209
    %v1426 = vmul.f32 %v1424, %v1210
    %v1427 = vld [vmem:[#allocation9 + $0x940] sm:$0xff]
    %v1428 = vld [vmem:[#allocation9 + $0x948] sm:$0xff]
    %v1429 = vmul.f32 %v233, %v1427
    %v1430 = vmul.f32 %v234, %v1428
    %v1431 = vmul.f32 %v1429, %v1223
    %v1432 = vmul.f32 %v1430, %v1224
    %v1433 = vadd.f32 %v1425, %v1431
    %v1434 = vadd.f32 %v1426, %v1432
    %v1435 = vld [vmem:[#allocation8 + $0x960] sm:$0xff]
    %v1436 = vld [vmem:[#allocation8 + $0x968] sm:$0xff]
    %v1437 = vmul.f32 %v163, %v1435
    %v1438 = vmul.f32 %v164, %v1436
    %v1439 = vmul.f32 %v1437, %v1223
    %v1440 = vmul.f32 %v1438, %v1224
    %v1441 = vld [vmem:[#allocation9 + $0x960] sm:$0xff]
    %v1442 = vld [vmem:[#allocation9 + $0x968] sm:$0xff]
    %v1443 = vmul.f32 %v247, %v1441
    %v1444 = vmul.f32 %v248, %v1442
    %v1445 = vmul.f32 %v1443, %v1237
    %v1446 = vmul.f32 %v1444, %v1238
    %v1447 = vadd.f32 %v1439, %v1445
    %v1448 = vadd.f32 %v1440, %v1446
    %v1449 = vld [vmem:[#allocation8 + $0x980] sm:$0xff]
    %v1450 = vld [vmem:[#allocation8 + $0x988] sm:$0xff]
    %v1451 = vmul.f32 %v177, %v1449
    %v1452 = vmul.f32 %v178, %v1450
    %v1453 = vmul.f32 %v1451, %v1237
    %v1454 = vmul.f32 %v1452, %v1238
    %v1455 = vld [vmem:[#allocation9 + $0x980] sm:$0xff]
    %v1456 = vld [vmem:[#allocation9 + $0x988] sm:$0xff]
    %v1457 = vmul.f32 %v261, %v1455
    %v1458 = vmul.f32 %v262, %v1456
    %v1459 = vmul.f32 %v1457, %v1251
    %v1460 = vmul.f32 %v1458, %v1252
    %v1461 = vadd.f32 %v1453, %v1459
    %v1462 = vadd.f32 %v1454, %v1460
    %v1463 = vld [vmem:[#allocation8 + $0x9a0] sm:$0xff]
    %v1464 = vld [vmem:[#allocation8 + $0x9a8] sm:$0xff]
    %v1465 = vmul.f32 %v191, %v1463
    %v1466 = vmul.f32 %v192, %v1464
    %v1467 = vmul.f32 %v1465, %v1251
    %v1468 = vmul.f32 %v1466, %v1252
    %v1469 = vld [vmem:[#allocation9 + $0x9a0] sm:$0xff]
    %v1470 = vld [vmem:[#allocation9 + $0x9a8] sm:$0xff]
    %v1471 = vmul.f32 %v275, %v1469
    %v1472 = vmul.f32 %v276, %v1470
    %v1473 = vmul.f32 %v1471, %v1265
    %v1474 = vmul.f32 %v1472, %v1266
    %v1475 = vadd.f32 %v1467, %v1473
    %v1476 = vadd.f32 %v1468, %v1474
    %v1477 = vld [vmem:[#allocation8 + $0x9c0] sm:$0xff]
    %v1478 = vld [vmem:[#allocation8 + $0x9c8] sm:$0xff]
    %v1479 = vmul.f32 %v205, %v1477
    %v1480 = vmul.f32 %v206, %v1478
    %v1481 = vmul.f32 %v1479, %v1265
    %v1482 = vmul.f32 %v1480, %v1266
    %v1483 = vld [vmem:[#allocation9 + $0x9c0] sm:$0xff]
    %v1484 = vld [vmem:[#allocation9 + $0x9c8] sm:$0xff]
    %v1485 = vmul.f32 %v289, %v1483
    %v1486 = vmul.f32 %v290, %v1484
    %v1487 = vmul.f32 %v1485, %v1279
    %v1488 = vmul.f32 %v1486, %v1280
    %v1489 = vadd.f32 %v1481, %v1487
    %v1490 = vadd.f32 %v1482, %v1488
    %v1491 = vld [vmem:[#allocation8 + $0x9e0] sm:$0xff]
    %v1492 = vld [vmem:[#allocation8 + $0x9e8] sm:$0xff]
    %v1493 = vmul.f32 %v219, %v1491
    %v1494 = vmul.f32 %v220, %v1492
    %v1495 = vmul.f32 %v1493, %v1279
    %v1496 = vmul.f32 %v1494, %v1280
    %v1497 = vld [vmem:[#allocation9 + $0x9e0] sm:$0xff]
    %v1498 = vld [vmem:[#allocation9 + $0x9e8] sm:$0xff]
    %v1499 = vmul.f32 %v303, %v1497
    %v1500 = vmul.f32 %v304, %v1498
    %v1501 = vmul.f32 %v1499, %v1293
    %v1502 = vmul.f32 %v1500, %v1294
    %v1503 = vadd.f32 %v1495, %v1501
    %v1504 = vadd.f32 %v1496, %v1502
    %v1505 = vld [vmem:[#allocation8 + $0xa00] sm:$0xff]
    %v1506 = vld [vmem:[#allocation8 + $0xa08] sm:$0xff]
    %v1507 = vmul.f32 %v233, %v1505
    %v1508 = vmul.f32 %v234, %v1506
    %v1509 = vmul.f32 %v1507, %v1293
    %v1510 = vmul.f32 %v1508, %v1294
    %v1511 = vld [vmem:[#allocation9 + $0xa00] sm:$0xff]
    %v1512 = vld [vmem:[#allocation9 + $0xa08] sm:$0xff]
    %v1513 = vmul.f32 %v317, %v1511
    %v1514 = vmul.f32 %v318, %v1512
    %v1515 = vmul.f32 %v1513, %v1307
    %v1516 = vmul.f32 %v1514, %v1308
    %v1517 = vadd.f32 %v1509, %v1515
    %v1518 = vadd.f32 %v1510, %v1516
    %v1519 = vld [vmem:[#allocation8 + $0xa20] sm:$0xff]
    %v1520 = vld [vmem:[#allocation8 + $0xa28] sm:$0xff]
    %v1521 = vmul.f32 %v247, %v1519
    %v1522 = vmul.f32 %v248, %v1520
    %v1523 = vmul.f32 %v1521, %v1307
    %v1524 = vmul.f32 %v1522, %v1308
    %v1525 = vld [vmem:[#allocation9 + $0xa20] sm:$0xff]
    %v1526 = vld [vmem:[#allocation9 + $0xa28] sm:$0xff]
    %v1527 = vmul.f32 %v331, %v1525
    %v1528 = vmul.f32 %v332, %v1526
    %v1529 = vmul.f32 %v1527, %v1321
    %v1530 = vmul.f32 %v1528, %v1322
    %v1531 = vadd.f32 %v1523, %v1529
    %v1532 = vadd.f32 %v1524, %v1530
    %v1533 = vld [vmem:[#allocation8 + $0xa40] sm:$0xff]
    %v1534 = vld [vmem:[#allocation8 + $0xa48] sm:$0xff]
    %v1535 = vmul.f32 %v261, %v1533
    %v1536 = vmul.f32 %v262, %v1534
    %v1537 = vmul.f32 %v1535, %v1321
    %v1538 = vmul.f32 %v1536, %v1322
    %v1539 = vld [vmem:[#allocation9 + $0xa40] sm:$0xff]
    %v1540 = vld [vmem:[#allocation9 + $0xa48] sm:$0xff]
    %v1541 = vmul.f32 %v345, %v1539
    %v1542 = vmul.f32 %v346, %v1540
    %v1543 = vmul.f32 %v1541, %v1335
    %v1544 = vmul.f32 %v1542, %v1336
    %v1545 = vadd.f32 %v1537, %v1543
    %v1546 = vadd.f32 %v1538, %v1544
    %v1547 = vld [vmem:[#allocation8 + $0xa60] sm:$0xff]
    %v1548 = vld [vmem:[#allocation8 + $0xa68] sm:$0xff]
    %v1549 = vmul.f32 %v275, %v1547
    %v1550 = vmul.f32 %v276, %v1548
    %v1551 = vmul.f32 %v1549, %v1335
    %v1552 = vmul.f32 %v1550, %v1336
    %v1553 = vld [vmem:[#allocation9 + $0xa60] sm:$0xff]
    %v1554 = vld [vmem:[#allocation9 + $0xa68] sm:$0xff]
    %v1555 = vmul.f32 %v359, %v1553
    %v1556 = vmul.f32 %v360, %v1554
    %v1557 = vmul.f32 %v1555, %v1349
    %v1558 = vmul.f32 %v1556, %v1350
    %v1559 = vadd.f32 %v1551, %v1557
    %v1560 = vadd.f32 %v1552, %v1558
    %v1561 = vld [vmem:[#allocation8 + $0xa80] sm:$0xff]
    %v1562 = vld [vmem:[#allocation8 + $0xa88] sm:$0xff]
    %v1563 = vmul.f32 %v289, %v1561
    %v1564 = vmul.f32 %v290, %v1562
    %v1565 = vmul.f32 %v1563, %v1349
    %v1566 = vmul.f32 %v1564, %v1350
    %v1567 = vld [vmem:[#allocation9 + $0xa80] sm:$0xff]
    %v1568 = vld [vmem:[#allocation9 + $0xa88] sm:$0xff]
    %v1569 = vmul.f32 %v373, %v1567
    %v1570 = vmul.f32 %v374, %v1568
    %v1571 = vmul.f32 %v1569, %v1363
    %v1572 = vmul.f32 %v1570, %v1364
    %v1573 = vadd.f32 %v1565, %v1571
    %v1574 = vadd.f32 %v1566, %v1572
    %v1575 = vxor.u32 %v99, 2147483648
    %v1576 = vxor.u32 %v100, 2147483648
    %v1577 = vmul.f32 %v1575, 1.442695
    %v1578 = vpow.pop %v1577
    %v1579 = vmul.f32 %v1576, 1.442695
    %v1580 = vpow.pop %v1579
    %v1581 = vadd.f32 %v1578, 1.0
    %v1582 = vadd.f32 %v1580, 1.0
    %v1583 = vrcp.pop %v1581
    %v1584 = vmul.f32 %v1581, %v1583
    %v1585 = vsub.f32 1.0, %v1584
    %v1586 = vmul.f32 %v1583, %v1585
    %v1587 = vadd.f32 %v1583, %v1586
    %vm1588 = vweird.f32 %v1581
    %vm1589 = vweird.f32 %v1583
    %vm1590 = vmor %vm1588, %vm1589
    %v1591 = vsel %vm1590, %v1583, %v1587
    %v1592 = vand.u32 2147483647, %v1581
    %vm1593 = vcmp.eq.f32.partialorder %v1592, 8.507059e+37
    %v1594 = vand.u32 %v1581, 2147483648
    %v1595 = vor.u32 1.1754944e-38, %v1594
    %v1596 = vsel %vm1593, %v1595, %v1591
    %v1597 = vmul.f32 1.0, %v1596
    %v1598 = vrcp.pop %v1582
    %v1599 = vmul.f32 %v1582, %v1598
    %v1600 = vsub.f32 1.0, %v1599
    %v1601 = vmul.f32 %v1598, %v1600
    %v1602 = vadd.f32 %v1598, %v1601
    %vm1603 = vweird.f32 %v1582
    %vm1604 = vweird.f32 %v1598
    %vm1605 = vmor %vm1603, %vm1604
    %v1606 = vsel %vm1605, %v1598, %v1602
    %v1607 = vand.u32 2147483647, %v1582
    %vm1608 = vcmp.eq.f32.partialorder %v1607, 8.507059e+37
    %v1609 = vand.u32 %v1582, 2147483648
    %v1610 = vor.u32 1.1754944e-38, %v1609
    %v1611 = vsel %vm1608, %v1610, %v1606
    %v1612 = vmul.f32 1.0, %v1611
    %v1613 = vmul.f32 %v99, %v1597
    %v1614 = vmul.f32 %v100, %v1612
    %1615 = vst [vmem:[#allocation2] sm:$0xff] %v1613
    %1616 = vst [vmem:[#allocation2 + $0x8] sm:$0xff] %v1614
    %1617 = vst [vmem:[#allocation2 + $0x20] sm:$0xff] %v1377
    %1618 = vst [vmem:[#allocation2 + $0x28] sm:$0xff] %v1378
    %1619 = vst [vmem:[#allocation2 + $0x40] sm:$0xff] %v1391
    %1620 = vst [vmem:[#allocation2 + $0x48] sm:$0xff] %v1392
    %1621 = vst [vmem:[#allocation2 + $0x60] sm:$0xff] %v1405
    %1622 = vst [vmem:[#allocation2 + $0x68] sm:$0xff] %v1406
    %1623 = vst [vmem:[#allocation2 + $0x80] sm:$0xff] %v1419
    %1624 = vst [vmem:[#allocation2 + $0x88] sm:$0xff] %v1420
    %1625 = vst [vmem:[#allocation2 + $0xa0] sm:$0xff] %v1433
    %1626 = vst [vmem:[#allocation2 + $0xa8] sm:$0xff] %v1434
    %1627 = vst [vmem:[#allocation2 + $0xc0] sm:$0xff] %v1447
    %1628 = vst [vmem:[#allocation2 + $0xc8] sm:$0xff] %v1448
    %1629 = vst [vmem:[#allocation2 + $0xe0] sm:$0xff] %v1461
    %1630 = vst [vmem:[#allocation2 + $0xe8] sm:$0xff] %v1462
    %1631 = vst [vmem:[#allocation2 + $0x100] sm:$0xff] %v1475
    %1632 = vst [vmem:[#allocation2 + $0x108] sm:$0xff] %v1476
    %1633 = vst [vmem:[#allocation2 + $0x120] sm:$0xff] %v1489
    %1634 = vst [vmem:[#allocation2 + $0x128] sm:$0xff] %v1490
    %1635 = vst [vmem:[#allocation2 + $0x140] sm:$0xff] %v1503
    %1636 = vst [vmem:[#allocation2 + $0x148] sm:$0xff] %v1504
    %1637 = vst [vmem:[#allocation2 + $0x160] sm:$0xff] %v1517
    %1638 = vst [vmem:[#allocation2 + $0x168] sm:$0xff] %v1518
    %1639 = vst [vmem:[#allocation2 + $0x180] sm:$0xff] %v1531
    %1640 = vst [vmem:[#allocation2 + $0x188] sm:$0xff] %v1532
    %1641 = vst [vmem:[#allocation2 + $0x1a0] sm:$0xff] %v1545
    %1642 = vst [vmem:[#allocation2 + $0x1a8] sm:$0xff] %v1546
    %1643 = vst [vmem:[#allocation2 + $0x1c0] sm:$0xff] %v1559
    %1644 = vst [vmem:[#allocation2 + $0x1c8] sm:$0xff] %v1560
    %1645 = vst [vmem:[#allocation2 + $0x1e0] sm:$0xff] %v1573
    %1646 = vst [vmem:[#allocation2 + $0x1e8] sm:$0xff] %v1574
    %v1647 = vld [vmem:[#allocation3 + $0x10] sm:$0xff]
    %v1648 = vld [vmem:[#allocation3 + $0x18] sm:$0xff]
    %v1649 = vld [vmem:[#allocation6 + $0x10] sm:$0xff]
    %v1650 = vld [vmem:[#allocation6 + $0x18] sm:$0xff]
    %v1651 = vsub.f32 %v1647, %v1649
    %v1652 = vsub.f32 %v1648, %v1650
    %v1653 = vld [vmem:[#allocation6 + $0x30] sm:$0xff]
    %v1654 = vld [vmem:[#allocation6 + $0x38] sm:$0xff]
    %v1655 = vsub.f32 %v1647, %v1653
    %v1656 = vsub.f32 %v1648, %v1654
    %vm1657 = vcmp.ge.f32.partialorder %v1651, 0.0
    %vm1658 = vcmp.ge.f32.partialorder %v1652, 0.0
    %vm1659 = vcmp.lt.f32.partialorder %v1655, 0.0
    %vm1660 = vcmp.lt.f32.partialorder %v1656, 0.0
    %vm1661 = vmand %vm1657, %vm1659
    %vm1662 = vmand %vm1658, %vm1660
    %v1663 = vsel %vm1661, 1, 0
    %v1664 = vsel %vm1662, 1, 0
    %v1665 = vcvt.s32.f32 %v1663
    %v1666 = vcvt.s32.f32 %v1664
    %v1667 = vld [vmem:[#allocation6 + $0x50] sm:$0xff]
    %v1668 = vld [vmem:[#allocation6 + $0x58] sm:$0xff]
    %v1669 = vsub.f32 %v1647, %v1667
    %v1670 = vsub.f32 %v1648, %v1668
    %vm1671 = vcmp.ge.f32.partialorder %v1655, 0.0
    %vm1672 = vcmp.ge.f32.partialorder %v1656, 0.0
    %vm1673 = vcmp.lt.f32.partialorder %v1669, 0.0
    %vm1674 = vcmp.lt.f32.partialorder %v1670, 0.0
    %vm1675 = vmand %vm1671, %vm1673
    %vm1676 = vmand %vm1672, %vm1674
    %v1677 = vsel %vm1675, 1, 0
    %v1678 = vsel %vm1676, 1, 0
    %v1679 = vcvt.s32.f32 %v1677
    %v1680 = vcvt.s32.f32 %v1678
    %v1681 = vld [vmem:[#allocation6 + $0x70] sm:$0xff]
    %v1682 = vld [vmem:[#allocation6 + $0x78] sm:$0xff]
    %v1683 = vsub.f32 %v1647, %v1681
    %v1684 = vsub.f32 %v1648, %v1682
    %vm1685 = vcmp.ge.f32.partialorder %v1669, 0.0
    %vm1686 = vcmp.ge.f32.partialorder %v1670, 0.0
    %vm1687 = vcmp.lt.f32.partialorder %v1683, 0.0
    %vm1688 = vcmp.lt.f32.partialorder %v1684, 0.0
    %vm1689 = vmand %vm1685, %vm1687
    %vm1690 = vmand %vm1686, %vm1688
    %v1691 = vsel %vm1689, 1, 0
    %v1692 = vsel %vm1690, 1, 0
    %v1693 = vcvt.s32.f32 %v1691
    %v1694 = vcvt.s32.f32 %v1692
    %v1695 = vld [vmem:[#allocation6 + $0x90] sm:$0xff]
    %v1696 = vld [vmem:[#allocation6 + $0x98] sm:$0xff]
    %v1697 = vsub.f32 %v1647, %v1695
    %v1698 = vsub.f32 %v1648, %v1696
    %vm1699 = vcmp.ge.f32.partialorder %v1683, 0.0
    %vm1700 = vcmp.ge.f32.partialorder %v1684, 0.0
    %vm1701 = vcmp.lt.f32.partialorder %v1697, 0.0
    %vm1702 = vcmp.lt.f32.partialorder %v1698, 0.0
    %vm1703 = vmand %vm1699, %vm1701
    %vm1704 = vmand %vm1700, %vm1702
    %v1705 = vsel %vm1703, 1, 0
    %v1706 = vsel %vm1704, 1, 0
    %v1707 = vcvt.s32.f32 %v1705
    %v1708 = vcvt.s32.f32 %v1706
    %v1709 = vld [vmem:[#allocation6 + $0xb0] sm:$0xff]
    %v1710 = vld [vmem:[#allocation6 + $0xb8] sm:$0xff]
    %v1711 = vsub.f32 %v1647, %v1709
    %v1712 = vsub.f32 %v1648, %v1710
    %vm1713 = vcmp.ge.f32.partialorder %v1697, 0.0
    %vm1714 = vcmp.ge.f32.partialorder %v1698, 0.0
    %vm1715 = vcmp.lt.f32.partialorder %v1711, 0.0
    %vm1716 = vcmp.lt.f32.partialorder %v1712, 0.0
    %vm1717 = vmand %vm1713, %vm1715
    %vm1718 = vmand %vm1714, %vm1716
    %v1719 = vsel %vm1717, 1, 0
    %v1720 = vsel %vm1718, 1, 0
    %v1721 = vcvt.s32.f32 %v1719
    %v1722 = vcvt.s32.f32 %v1720
    %v1723 = vld [vmem:[#allocation6 + $0xd0] sm:$0xff]
    %v1724 = vld [vmem:[#allocation6 + $0xd8] sm:$0xff]
    %v1725 = vsub.f32 %v1647, %v1723
    %v1726 = vsub.f32 %v1648, %v1724
    %vm1727 = vcmp.ge.f32.partialorder %v1711, 0.0
    %vm1728 = vcmp.ge.f32.partialorder %v1712, 0.0
    %vm1729 = vcmp.lt.f32.partialorder %v1725, 0.0
    %vm1730 = vcmp.lt.f32.partialorder %v1726, 0.0
    %vm1731 = vmand %vm1727, %vm1729
    %vm1732 = vmand %vm1728, %vm1730
    %v1733 = vsel %vm1731, 1, 0
    %v1734 = vsel %vm1732, 1, 0
    %v1735 = vcvt.s32.f32 %v1733
    %v1736 = vcvt.s32.f32 %v1734
    %v1737 = vld [vmem:[#allocation6 + $0xf0] sm:$0xff]
    %v1738 = vld [vmem:[#allocation6 + $0xf8] sm:$0xff]
    %v1739 = vsub.f32 %v1647, %v1737
    %v1740 = vsub.f32 %v1648, %v1738
    %vm1741 = vcmp.ge.f32.partialorder %v1725, 0.0
    %vm1742 = vcmp.ge.f32.partialorder %v1726, 0.0
    %vm1743 = vcmp.lt.f32.partialorder %v1739, 0.0
    %vm1744 = vcmp.lt.f32.partialorder %v1740, 0.0
    %vm1745 = vmand %vm1741, %vm1743
    %vm1746 = vmand %vm1742, %vm1744
    %v1747 = vsel %vm1745, 1, 0
    %v1748 = vsel %vm1746, 1, 0
    %v1749 = vcvt.s32.f32 %v1747
    %v1750 = vcvt.s32.f32 %v1748
    %v1751 = vld [vmem:[#allocation6 + $0x110] sm:$0xff]
    %v1752 = vld [vmem:[#allocation6 + $0x118] sm:$0xff]
    %v1753 = vsub.f32 %v1647, %v1751
    %v1754 = vsub.f32 %v1648, %v1752
    %vm1755 = vcmp.ge.f32.partialorder %v1739, 0.0
    %vm1756 = vcmp.ge.f32.partialorder %v1740, 0.0
    %vm1757 = vcmp.lt.f32.partialorder %v1753, 0.0
    %vm1758 = vcmp.lt.f32.partialorder %v1754, 0.0
    %vm1759 = vmand %vm1755, %vm1757
    %vm1760 = vmand %vm1756, %vm1758
    %v1761 = vsel %vm1759, 1, 0
    %v1762 = vsel %vm1760, 1, 0
    %v1763 = vcvt.s32.f32 %v1761
    %v1764 = vcvt.s32.f32 %v1762
    %v1765 = vld [vmem:[#allocation6 + $0x130] sm:$0xff]
    %v1766 = vld [vmem:[#allocation6 + $0x138] sm:$0xff]
    %v1767 = vsub.f32 %v1647, %v1765
    %v1768 = vsub.f32 %v1648, %v1766
    %vm1769 = vcmp.ge.f32.partialorder %v1753, 0.0
    %vm1770 = vcmp.ge.f32.partialorder %v1754, 0.0
    %vm1771 = vcmp.lt.f32.partialorder %v1767, 0.0
    %vm1772 = vcmp.lt.f32.partialorder %v1768, 0.0
    %vm1773 = vmand %vm1769, %vm1771
    %vm1774 = vmand %vm1770, %vm1772
    %v1775 = vsel %vm1773, 1, 0
    %v1776 = vsel %vm1774, 1, 0
    %v1777 = vcvt.s32.f32 %v1775
    %v1778 = vcvt.s32.f32 %v1776
    %v1779 = vld [vmem:[#allocation6 + $0x150] sm:$0xff]
    %v1780 = vld [vmem:[#allocation6 + $0x158] sm:$0xff]
    %v1781 = vsub.f32 %v1647, %v1779
    %v1782 = vsub.f32 %v1648, %v1780
    %vm1783 = vcmp.ge.f32.partialorder %v1767, 0.0
    %vm1784 = vcmp.ge.f32.partialorder %v1768, 0.0
    %vm1785 = vcmp.lt.f32.partialorder %v1781, 0.0
    %vm1786 = vcmp.lt.f32.partialorder %v1782, 0.0
    %vm1787 = vmand %vm1783, %vm1785
    %vm1788 = vmand %vm1784, %vm1786
    %v1789 = vsel %vm1787, 1, 0
    %v1790 = vsel %vm1788, 1, 0
    %v1791 = vcvt.s32.f32 %v1789
    %v1792 = vcvt.s32.f32 %v1790
    %v1793 = vld [vmem:[#allocation6 + $0x170] sm:$0xff]
    %v1794 = vld [vmem:[#allocation6 + $0x178] sm:$0xff]
    %v1795 = vsub.f32 %v1647, %v1793
    %v1796 = vsub.f32 %v1648, %v1794
    %vm1797 = vcmp.ge.f32.partialorder %v1781, 0.0
    %vm1798 = vcmp.ge.f32.partialorder %v1782, 0.0
    %vm1799 = vcmp.lt.f32.partialorder %v1795, 0.0
    %vm1800 = vcmp.lt.f32.partialorder %v1796, 0.0
    %vm1801 = vmand %vm1797, %vm1799
    %vm1802 = vmand %vm1798, %vm1800
    %v1803 = vsel %vm1801, 1, 0
    %v1804 = vsel %vm1802, 1, 0
    %v1805 = vcvt.s32.f32 %v1803
    %v1806 = vcvt.s32.f32 %v1804
    %v1807 = vld [vmem:[#allocation6 + $0x190] sm:$0xff]
    %v1808 = vld [vmem:[#allocation6 + $0x198] sm:$0xff]
    %v1809 = vsub.f32 %v1647, %v1807
    %v1810 = vsub.f32 %v1648, %v1808
    %vm1811 = vcmp.ge.f32.partialorder %v1795, 0.0
    %vm1812 = vcmp.ge.f32.partialorder %v1796, 0.0
    %vm1813 = vcmp.lt.f32.partialorder %v1809, 0.0
    %vm1814 = vcmp.lt.f32.partialorder %v1810, 0.0
    %vm1815 = vmand %vm1811, %vm1813
    %vm1816 = vmand %vm1812, %vm1814
    %v1817 = vsel %vm1815, 1, 0
    %v1818 = vsel %vm1816, 1, 0
    %v1819 = vcvt.s32.f32 %v1817
    %v1820 = vcvt.s32.f32 %v1818
    %v1821 = vld [vmem:[#allocation6 + $0x1b0] sm:$0xff]
    %v1822 = vld [vmem:[#allocation6 + $0x1b8] sm:$0xff]
    %v1823 = vsub.f32 %v1647, %v1821
    %v1824 = vsub.f32 %v1648, %v1822
    %vm1825 = vcmp.ge.f32.partialorder %v1809, 0.0
    %vm1826 = vcmp.ge.f32.partialorder %v1810, 0.0
    %vm1827 = vcmp.lt.f32.partialorder %v1823, 0.0
    %vm1828 = vcmp.lt.f32.partialorder %v1824, 0.0
    %vm1829 = vmand %vm1825, %vm1827
    %vm1830 = vmand %vm1826, %vm1828
    %v1831 = vsel %vm1829, 1, 0
    %v1832 = vsel %vm1830, 1, 0
    %v1833 = vcvt.s32.f32 %v1831
    %v1834 = vcvt.s32.f32 %v1832
    %v1835 = vld [vmem:[#allocation6 + $0x1d0] sm:$0xff]
    %v1836 = vld [vmem:[#allocation6 + $0x1d8] sm:$0xff]
    %v1837 = vsub.f32 %v1647, %v1835
    %v1838 = vsub.f32 %v1648, %v1836
    %vm1839 = vcmp.ge.f32.partialorder %v1823, 0.0
    %vm1840 = vcmp.ge.f32.partialorder %v1824, 0.0
    %vm1841 = vcmp.lt.f32.partialorder %v1837, 0.0
    %vm1842 = vcmp.lt.f32.partialorder %v1838, 0.0
    %vm1843 = vmand %vm1839, %vm1841
    %vm1844 = vmand %vm1840, %vm1842
    %v1845 = vsel %vm1843, 1, 0
    %v1846 = vsel %vm1844, 1, 0
    %v1847 = vcvt.s32.f32 %v1845
    %v1848 = vcvt.s32.f32 %v1846
    %v1849 = vld [vmem:[#allocation6 + $0x1f0] sm:$0xff]
    %v1850 = vld [vmem:[#allocation6 + $0x1f8] sm:$0xff]
    %v1851 = vsub.f32 %v1647, %v1849
    %v1852 = vsub.f32 %v1648, %v1850
    %vm1853 = vcmp.ge.f32.partialorder %v1837, 0.0
    %vm1854 = vcmp.ge.f32.partialorder %v1838, 0.0
    %vm1855 = vcmp.lt.f32.partialorder %v1851, 0.0
    %vm1856 = vcmp.lt.f32.partialorder %v1852, 0.0
    %vm1857 = vmand %vm1853, %vm1855
    %vm1858 = vmand %vm1854, %vm1856
    %v1859 = vsel %vm1857, 1, 0
    %v1860 = vsel %vm1858, 1, 0
    %v1861 = vcvt.s32.f32 %v1859
    %v1862 = vcvt.s32.f32 %v1860
    %v1863 = vld [vmem:[#allocation6 + $0x210] sm:$0xff]
    %v1864 = vld [vmem:[#allocation6 + $0x218] sm:$0xff]
    %v1865 = vsub.f32 %v1647, %v1863
    %v1866 = vsub.f32 %v1648, %v1864
    %vm1867 = vcmp.ge.f32.partialorder %v1851, 0.0
    %vm1868 = vcmp.ge.f32.partialorder %v1852, 0.0
    %vm1869 = vcmp.lt.f32.partialorder %v1865, 0.0
    %vm1870 = vcmp.lt.f32.partialorder %v1866, 0.0
    %vm1871 = vmand %vm1867, %vm1869
    %vm1872 = vmand %vm1868, %vm1870
    %v1873 = vsel %vm1871, 1, 0
    %v1874 = vsel %vm1872, 1, 0
    %v1875 = vcvt.s32.f32 %v1873
    %v1876 = vcvt.s32.f32 %v1874
    %v1877 = vld [vmem:[#allocation6 + $0x230] sm:$0xff]
    %v1878 = vld [vmem:[#allocation6 + $0x238] sm:$0xff]
    %v1879 = vsub.f32 %v1647, %v1877
    %v1880 = vsub.f32 %v1648, %v1878
    %vm1881 = vcmp.ge.f32.partialorder %v1865, 0.0
    %vm1882 = vcmp.ge.f32.partialorder %v1866, 0.0
    %vm1883 = vcmp.lt.f32.partialorder %v1879, 0.0
    %vm1884 = vcmp.lt.f32.partialorder %v1880, 0.0
    %vm1885 = vmand %vm1881, %vm1883
    %vm1886 = vmand %vm1882, %vm1884
    %v1887 = vsel %vm1885, 1, 0
    %v1888 = vsel %vm1886, 1, 0
    %v1889 = vcvt.s32.f32 %v1887
    %v1890 = vcvt.s32.f32 %v1888
    %v1891 = vld [vmem:[#allocation6 + $0x250] sm:$0xff]
    %v1892 = vld [vmem:[#allocation6 + $0x258] sm:$0xff]
    %v1893 = vsub.f32 %v1647, %v1891
    %v1894 = vsub.f32 %v1648, %v1892
    %vm1895 = vcmp.ge.f32.partialorder %v1879, 0.0
    %vm1896 = vcmp.ge.f32.partialorder %v1880, 0.0
    %vm1897 = vcmp.lt.f32.partialorder %v1893, 0.0
    %vm1898 = vcmp.lt.f32.partialorder %v1894, 0.0
    %vm1899 = vmand %vm1895, %vm1897
    %vm1900 = vmand %vm1896, %vm1898
    %v1901 = vsel %vm1899, 1, 0
    %v1902 = vsel %vm1900, 1, 0
    %v1903 = vcvt.s32.f32 %v1901
    %v1904 = vcvt.s32.f32 %v1902
    %v1905 = vld [vmem:[#allocation6 + $0x270] sm:$0xff]
    %v1906 = vld [vmem:[#allocation6 + $0x278] sm:$0xff]
    %v1907 = vsub.f32 %v1647, %v1905
    %v1908 = vsub.f32 %v1648, %v1906
    %vm1909 = vcmp.ge.f32.partialorder %v1893, 0.0
    %vm1910 = vcmp.ge.f32.partialorder %v1894, 0.0
    %vm1911 = vcmp.lt.f32.partialorder %v1907, 0.0
    %vm1912 = vcmp.lt.f32.partialorder %v1908, 0.0
    %vm1913 = vmand %vm1909, %vm1911
    %vm1914 = vmand %vm1910, %vm1912
    %v1915 = vsel %vm1913, 1, 0
    %v1916 = vsel %vm1914, 1, 0
    %v1917 = vcvt.s32.f32 %v1915
    %v1918 = vcvt.s32.f32 %v1916
    %v1919 = vld [vmem:[#allocation6 + $0x290] sm:$0xff]
    %v1920 = vld [vmem:[#allocation6 + $0x298] sm:$0xff]
    %v1921 = vsub.f32 %v1647, %v1919
    %v1922 = vsub.f32 %v1648, %v1920
    %vm1923 = vcmp.ge.f32.partialorder %v1907, 0.0
    %vm1924 = vcmp.ge.f32.partialorder %v1908, 0.0
    %vm1925 = vcmp.lt.f32.partialorder %v1921, 0.0
    %vm1926 = vcmp.lt.f32.partialorder %v1922, 0.0
    %vm1927 = vmand %vm1923, %vm1925
    %vm1928 = vmand %vm1924, %vm1926
    %v1929 = vsel %vm1927, 1, 0
    %v1930 = vsel %vm1928, 1, 0
    %v1931 = vcvt.s32.f32 %v1929
    %v1932 = vcvt.s32.f32 %v1930
    %v1933 = vld [vmem:[#allocation8 + $0x10] sm:$0xff]
    %v1934 = vld [vmem:[#allocation8 + $0x18] sm:$0xff]
    %v1935 = vmul.f32 %v1651, %v1933
    %v1936 = vmul.f32 %v1652, %v1934
    %v1937 = vmul.f32 %v1935, %v1665
    %v1938 = vmul.f32 %v1936, %v1666
    %v1939 = vld [vmem:[#allocation9 + $0x10] sm:$0xff]
    %v1940 = vld [vmem:[#allocation9 + $0x18] sm:$0xff]
    %v1941 = vmul.f32 %v1669, %v1939
    %v1942 = vmul.f32 %v1670, %v1940
    %v1943 = vmul.f32 %v1941, %v1679
    %v1944 = vmul.f32 %v1942, %v1680
    %v1945 = vadd.f32 %v1937, %v1943
    %v1946 = vadd.f32 %v1938, %v1944
    %v1947 = vld [vmem:[#allocation8 + $0x30] sm:$0xff]
    %v1948 = vld [vmem:[#allocation8 + $0x38] sm:$0xff]
    %v1949 = vmul.f32 %v1655, %v1947
    %v1950 = vmul.f32 %v1656, %v1948
    %v1951 = vmul.f32 %v1949, %v1679
    %v1952 = vmul.f32 %v1950, %v1680
    %v1953 = vld [vmem:[#allocation9 + $0x30] sm:$0xff]
    %v1954 = vld [vmem:[#allocation9 + $0x38] sm:$0xff]
    %v1955 = vmul.f32 %v1683, %v1953
    %v1956 = vmul.f32 %v1684, %v1954
    %v1957 = vmul.f32 %v1955, %v1693
    %v1958 = vmul.f32 %v1956, %v1694
    %v1959 = vadd.f32 %v1951, %v1957
    %v1960 = vadd.f32 %v1952, %v1958
    %v1961 = vld [vmem:[#allocation8 + $0x50] sm:$0xff]
    %v1962 = vld [vmem:[#allocation8 + $0x58] sm:$0xff]
    %v1963 = vmul.f32 %v1669, %v1961
    %v1964 = vmul.f32 %v1670, %v1962
    %v1965 = vmul.f32 %v1963, %v1693
    %v1966 = vmul.f32 %v1964, %v1694
    %v1967 = vld [vmem:[#allocation9 + $0x50] sm:$0xff]
    %v1968 = vld [vmem:[#allocation9 + $0x58] sm:$0xff]
    %v1969 = vmul.f32 %v1697, %v1967
    %v1970 = vmul.f32 %v1698, %v1968
    %v1971 = vmul.f32 %v1969, %v1707
    %v1972 = vmul.f32 %v1970, %v1708
    %v1973 = vadd.f32 %v1965, %v1971
    %v1974 = vadd.f32 %v1966, %v1972
    %v1975 = vld [vmem:[#allocation8 + $0x70] sm:$0xff]
    %v1976 = vld [vmem:[#allocation8 + $0x78] sm:$0xff]
    %v1977 = vmul.f32 %v1683, %v1975
    %v1978 = vmul.f32 %v1684, %v1976
    %v1979 = vmul.f32 %v1977, %v1707
    %v1980 = vmul.f32 %v1978, %v1708
    %v1981 = vld [vmem:[#allocation9 + $0x70] sm:$0xff]
    %v1982 = vld [vmem:[#allocation9 + $0x78] sm:$0xff]
    %v1983 = vmul.f32 %v1711, %v1981
    %v1984 = vmul.f32 %v1712, %v1982
    %v1985 = vmul.f32 %v1983, %v1721
    %v1986 = vmul.f32 %v1984, %v1722
    %v1987 = vadd.f32 %v1979, %v1985
    %v1988 = vadd.f32 %v1980, %v1986
    %v1989 = vld [vmem:[#allocation8 + $0x90] sm:$0xff]
    %v1990 = vld [vmem:[#allocation8 + $0x98] sm:$0xff]
    %v1991 = vmul.f32 %v1697, %v1989
    %v1992 = vmul.f32 %v1698, %v1990
    %v1993 = vmul.f32 %v1991, %v1721
    %v1994 = vmul.f32 %v1992, %v1722
    %v1995 = vld [vmem:[#allocation9 + $0x90] sm:$0xff]
    %v1996 = vld [vmem:[#allocation9 + $0x98] sm:$0xff]
    %v1997 = vmul.f32 %v1725, %v1995
    %v1998 = vmul.f32 %v1726, %v1996
    %v1999 = vmul.f32 %v1997, %v1735
    %v2000 = vmul.f32 %v1998, %v1736
    %v2001 = vadd.f32 %v1993, %v1999
    %v2002 = vadd.f32 %v1994, %v2000
    %v2003 = vld [vmem:[#allocation8 + $0xb0] sm:$0xff]
    %v2004 = vld [vmem:[#allocation8 + $0xb8] sm:$0xff]
    %v2005 = vmul.f32 %v1711, %v2003
    %v2006 = vmul.f32 %v1712, %v2004
    %v2007 = vmul.f32 %v2005, %v1735
    %v2008 = vmul.f32 %v2006, %v1736
    %v2009 = vld [vmem:[#allocation9 + $0xb0] sm:$0xff]
    %v2010 = vld [vmem:[#allocation9 + $0xb8] sm:$0xff]
    %v2011 = vmul.f32 %v1739, %v2009
    %v2012 = vmul.f32 %v1740, %v2010
    %v2013 = vmul.f32 %v2011, %v1749
    %v2014 = vmul.f32 %v2012, %v1750
    %v2015 = vadd.f32 %v2007, %v2013
    %v2016 = vadd.f32 %v2008, %v2014
    %v2017 = vld [vmem:[#allocation8 + $0xd0] sm:$0xff]
    %v2018 = vld [vmem:[#allocation8 + $0xd8] sm:$0xff]
    %v2019 = vmul.f32 %v1725, %v2017
    %v2020 = vmul.f32 %v1726, %v2018
    %v2021 = vmul.f32 %v2019, %v1749
    %v2022 = vmul.f32 %v2020, %v1750
    %v2023 = vld [vmem:[#allocation9 + $0xd0] sm:$0xff]
    %v2024 = vld [vmem:[#allocation9 + $0xd8] sm:$0xff]
    %v2025 = vmul.f32 %v1753, %v2023
    %v2026 = vmul.f32 %v1754, %v2024
    %v2027 = vmul.f32 %v2025, %v1763
    %v2028 = vmul.f32 %v2026, %v1764
    %v2029 = vadd.f32 %v2021, %v2027
    %v2030 = vadd.f32 %v2022, %v2028
    %v2031 = vld [vmem:[#allocation8 + $0xf0] sm:$0xff]
    %v2032 = vld [vmem:[#allocation8 + $0xf8] sm:$0xff]
    %v2033 = vmul.f32 %v1739, %v2031
    %v2034 = vmul.f32 %v1740, %v2032
    %v2035 = vmul.f32 %v2033, %v1763
    %v2036 = vmul.f32 %v2034, %v1764
    %v2037 = vld [vmem:[#allocation9 + $0xf0] sm:$0xff]
    %v2038 = vld [vmem:[#allocation9 + $0xf8] sm:$0xff]
    %v2039 = vmul.f32 %v1767, %v2037
    %v2040 = vmul.f32 %v1768, %v2038
    %v2041 = vmul.f32 %v2039, %v1777
    %v2042 = vmul.f32 %v2040, %v1778
    %v2043 = vadd.f32 %v2035, %v2041
    %v2044 = vadd.f32 %v2036, %v2042
    %v2045 = vld [vmem:[#allocation8 + $0x110] sm:$0xff]
    %v2046 = vld [vmem:[#allocation8 + $0x118] sm:$0xff]
    %v2047 = vmul.f32 %v1753, %v2045
    %v2048 = vmul.f32 %v1754, %v2046
    %v2049 = vmul.f32 %v2047, %v1777
    %v2050 = vmul.f32 %v2048, %v1778
    %v2051 = vld [vmem:[#allocation9 + $0x110] sm:$0xff]
    %v2052 = vld [vmem:[#allocation9 + $0x118] sm:$0xff]
    %v2053 = vmul.f32 %v1781, %v2051
    %v2054 = vmul.f32 %v1782, %v2052
    %v2055 = vmul.f32 %v2053, %v1791
    %v2056 = vmul.f32 %v2054, %v1792
    %v2057 = vadd.f32 %v2049, %v2055
    %v2058 = vadd.f32 %v2050, %v2056
    %v2059 = vld [vmem:[#allocation8 + $0x130] sm:$0xff]
    %v2060 = vld [vmem:[#allocation8 + $0x138] sm:$0xff]
    %v2061 = vmul.f32 %v1767, %v2059
    %v2062 = vmul.f32 %v1768, %v2060
    %v2063 = vmul.f32 %v2061, %v1791
    %v2064 = vmul.f32 %v2062, %v1792
    %v2065 = vld [vmem:[#allocation9 + $0x130] sm:$0xff]
    %v2066 = vld [vmem:[#allocation9 + $0x138] sm:$0xff]
    %v2067 = vmul.f32 %v1795, %v2065
    %v2068 = vmul.f32 %v1796, %v2066
    %v2069 = vmul.f32 %v2067, %v1805
    %v2070 = vmul.f32 %v2068, %v1806
    %v2071 = vadd.f32 %v2063, %v2069
    %v2072 = vadd.f32 %v2064, %v2070
    %v2073 = vld [vmem:[#allocation8 + $0x150] sm:$0xff]
    %v2074 = vld [vmem:[#allocation8 + $0x158] sm:$0xff]
    %v2075 = vmul.f32 %v1781, %v2073
    %v2076 = vmul.f32 %v1782, %v2074
    %v2077 = vmul.f32 %v2075, %v1805
    %v2078 = vmul.f32 %v2076, %v1806
    %v2079 = vld [vmem:[#allocation9 + $0x150] sm:$0xff]
    %v2080 = vld [vmem:[#allocation9 + $0x158] sm:$0xff]
    %v2081 = vmul.f32 %v1809, %v2079
    %v2082 = vmul.f32 %v1810, %v2080
    %v2083 = vmul.f32 %v2081, %v1819
    %v2084 = vmul.f32 %v2082, %v1820
    %v2085 = vadd.f32 %v2077, %v2083
    %v2086 = vadd.f32 %v2078, %v2084
    %v2087 = vld [vmem:[#allocation8 + $0x170] sm:$0xff]
    %v2088 = vld [vmem:[#allocation8 + $0x178] sm:$0xff]
    %v2089 = vmul.f32 %v1795, %v2087
    %v2090 = vmul.f32 %v1796, %v2088
    %v2091 = vmul.f32 %v2089, %v1819
    %v2092 = vmul.f32 %v2090, %v1820
    %v2093 = vld [vmem:[#allocation9 + $0x170] sm:$0xff]
    %v2094 = vld [vmem:[#allocation9 + $0x178] sm:$0xff]
    %v2095 = vmul.f32 %v1823, %v2093
    %v2096 = vmul.f32 %v1824, %v2094
    %v2097 = vmul.f32 %v2095, %v1833
    %v2098 = vmul.f32 %v2096, %v1834
    %v2099 = vadd.f32 %v2091, %v2097
    %v2100 = vadd.f32 %v2092, %v2098
    %v2101 = vld [vmem:[#allocation8 + $0x190] sm:$0xff]
    %v2102 = vld [vmem:[#allocation8 + $0x198] sm:$0xff]
    %v2103 = vmul.f32 %v1809, %v2101
    %v2104 = vmul.f32 %v1810, %v2102
    %v2105 = vmul.f32 %v2103, %v1833
    %v2106 = vmul.f32 %v2104, %v1834
    %v2107 = vld [vmem:[#allocation9 + $0x190] sm:$0xff]
    %v2108 = vld [vmem:[#allocation9 + $0x198] sm:$0xff]
    %v2109 = vmul.f32 %v1837, %v2107
    %v2110 = vmul.f32 %v1838, %v2108
    %v2111 = vmul.f32 %v2109, %v1847
    %v2112 = vmul.f32 %v2110, %v1848
    %v2113 = vadd.f32 %v2105, %v2111
    %v2114 = vadd.f32 %v2106, %v2112
    %v2115 = vld [vmem:[#allocation8 + $0x1b0] sm:$0xff]
    %v2116 = vld [vmem:[#allocation8 + $0x1b8] sm:$0xff]
    %v2117 = vmul.f32 %v1823, %v2115
    %v2118 = vmul.f32 %v1824, %v2116
    %v2119 = vmul.f32 %v2117, %v1847
    %v2120 = vmul.f32 %v2118, %v1848
    %v2121 = vld [vmem:[#allocation9 + $0x1b0] sm:$0xff]
    %v2122 = vld [vmem:[#allocation9 + $0x1b8] sm:$0xff]
    %v2123 = vmul.f32 %v1851, %v2121
    %v2124 = vmul.f32 %v1852, %v2122
    %v2125 = vmul.f32 %v2123, %v1861
    %v2126 = vmul.f32 %v2124, %v1862
    %v2127 = vadd.f32 %v2119, %v2125
    %v2128 = vadd.f32 %v2120, %v2126
    %v2129 = vld [vmem:[#allocation8 + $0x1d0] sm:$0xff]
    %v2130 = vld [vmem:[#allocation8 + $0x1d8] sm:$0xff]
    %v2131 = vmul.f32 %v1837, %v2129
    %v2132 = vmul.f32 %v1838, %v2130
    %v2133 = vmul.f32 %v2131, %v1861
    %v2134 = vmul.f32 %v2132, %v1862
    %v2135 = vld [vmem:[#allocation9 + $0x1d0] sm:$0xff]
    %v2136 = vld [vmem:[#allocation9 + $0x1d8] sm:$0xff]
    %v2137 = vmul.f32 %v1865, %v2135
    %v2138 = vmul.f32 %v1866, %v2136
    %v2139 = vmul.f32 %v2137, %v1875
    %v2140 = vmul.f32 %v2138, %v1876
    %v2141 = vadd.f32 %v2133, %v2139
    %v2142 = vadd.f32 %v2134, %v2140
    %v2143 = vld [vmem:[#allocation8 + $0x1f0] sm:$0xff]
    %v2144 = vld [vmem:[#allocation8 + $0x1f8] sm:$0xff]
    %v2145 = vmul.f32 %v1851, %v2143
    %v2146 = vmul.f32 %v1852, %v2144
    %v2147 = vmul.f32 %v2145, %v1875
    %v2148 = vmul.f32 %v2146, %v1876
    %v2149 = vld [vmem:[#allocation9 + $0x1f0] sm:$0xff]
    %v2150 = vld [vmem:[#allocation9 + $0x1f8] sm:$0xff]
    %v2151 = vmul.f32 %v1879, %v2149
    %v2152 = vmul.f32 %v1880, %v2150
    %v2153 = vmul.f32 %v2151, %v1889
    %v2154 = vmul.f32 %v2152, %v1890
    %v2155 = vadd.f32 %v2147, %v2153
    %v2156 = vadd.f32 %v2148, %v2154
    %v2157 = vld [vmem:[#allocation8 + $0x210] sm:$0xff]
    %v2158 = vld [vmem:[#allocation8 + $0x218] sm:$0xff]
    %v2159 = vmul.f32 %v1865, %v2157
    %v2160 = vmul.f32 %v1866, %v2158
    %v2161 = vmul.f32 %v2159, %v1889
    %v2162 = vmul.f32 %v2160, %v1890
    %v2163 = vld [vmem:[#allocation9 + $0x210] sm:$0xff]
    %v2164 = vld [vmem:[#allocation9 + $0x218] sm:$0xff]
    %v2165 = vmul.f32 %v1893, %v2163
    %v2166 = vmul.f32 %v1894, %v2164
    %v2167 = vmul.f32 %v2165, %v1903
    %v2168 = vmul.f32 %v2166, %v1904
    %v2169 = vadd.f32 %v2161, %v2167
    %v2170 = vadd.f32 %v2162, %v2168
    %v2171 = vld [vmem:[#allocation8 + $0x230] sm:$0xff]
    %v2172 = vld [vmem:[#allocation8 + $0x238] sm:$0xff]
    %v2173 = vmul.f32 %v1879, %v2171
    %v2174 = vmul.f32 %v1880, %v2172
    %v2175 = vmul.f32 %v2173, %v1903
    %v2176 = vmul.f32 %v2174, %v1904
    %v2177 = vld [vmem:[#allocation9 + $0x230] sm:$0xff]
    %v2178 = vld [vmem:[#allocation9 + $0x238] sm:$0xff]
    %v2179 = vmul.f32 %v1907, %v2177
    %v2180 = vmul.f32 %v1908, %v2178
    %v2181 = vmul.f32 %v2179, %v1917
    %v2182 = vmul.f32 %v2180, %v1918
    %v2183 = vadd.f32 %v2175, %v2181
    %v2184 = vadd.f32 %v2176, %v2182
    %v2185 = vld [vmem:[#allocation8 + $0x250] sm:$0xff]
    %v2186 = vld [vmem:[#allocation8 + $0x258] sm:$0xff]
    %v2187 = vmul.f32 %v1893, %v2185
    %v2188 = vmul.f32 %v1894, %v2186
    %v2189 = vmul.f32 %v2187, %v1917
    %v2190 = vmul.f32 %v2188, %v1918
    %v2191 = vld [vmem:[#allocation9 + $0x250] sm:$0xff]
    %v2192 = vld [vmem:[#allocation9 + $0x258] sm:$0xff]
    %v2193 = vmul.f32 %v1921, %v2191
    %v2194 = vmul.f32 %v1922, %v2192
    %v2195 = vmul.f32 %v2193, %v1931
    %v2196 = vmul.f32 %v2194, %v1932
    %v2197 = vadd.f32 %v2189, %v2195
    %v2198 = vadd.f32 %v2190, %v2196
    %v2199 = vld [vmem:[#allocation8 + $0x270] sm:$0xff]
    %v2200 = vld [vmem:[#allocation8 + $0x278] sm:$0xff]
    %v2201 = vmul.f32 %v1651, %v2199
    %v2202 = vmul.f32 %v1652, %v2200
    %v2203 = vmul.f32 %v2201, %v1945
    %v2204 = vmul.f32 %v2202, %v1946
    %v2205 = vld [vmem:[#allocation9 + $0x270] sm:$0xff]
    %v2206 = vld [vmem:[#allocation9 + $0x278] sm:$0xff]
    %v2207 = vmul.f32 %v1683, %v2205
    %v2208 = vmul.f32 %v1684, %v2206
    %v2209 = vmul.f32 %v2207, %v1959
    %v2210 = vmul.f32 %v2208, %v1960
    %v2211 = vadd.f32 %v2203, %v2209
    %v2212 = vadd.f32 %v2204, %v2210
    %v2213 = vld [vmem:[#allocation8 + $0x290] sm:$0xff]
    %v2214 = vld [vmem:[#allocation8 + $0x298] sm:$0xff]
    %v2215 = vmul.f32 %v1655, %v2213
    %v2216 = vmul.f32 %v1656, %v2214
    %v2217 = vmul.f32 %v2215, %v1959
    %v2218 = vmul.f32 %v2216, %v1960
    %v2219 = vld [vmem:[#allocation9 + $0x290] sm:$0xff]
    %v2220 = vld [vmem:[#allocation9 + $0x298] sm:$0xff]
    %v2221 = vmul.f32 %v1697, %v2219
    %v2222 = vmul.f32 %v1698, %v2220
    %v2223 = vmul.f32 %v2221, %v1973
    %v2224 = vmul.f32 %v2222, %v1974
    %v2225 = vadd.f32 %v2217, %v2223
    %v2226 = vadd.f32 %v2218, %v2224
    %v2227 = vld [vmem:[#allocation8 + $0x2b0] sm:$0xff]
    %v2228 = vld [vmem:[#allocation8 + $0x2b8] sm:$0xff]
    %v2229 = vmul.f32 %v1669, %v2227
    %v2230 = vmul.f32 %v1670, %v2228
    %v2231 = vmul.f32 %v2229, %v1973
    %v2232 = vmul.f32 %v2230, %v1974
    %v2233 = vld [vmem:[#allocation9 + $0x2b0] sm:$0xff]
    %v2234 = vld [vmem:[#allocation9 + $0x2b8] sm:$0xff]
    %v2235 = vmul.f32 %v1711, %v2233
    %v2236 = vmul.f32 %v1712, %v2234
    %v2237 = vmul.f32 %v2235, %v1987
    %v2238 = vmul.f32 %v2236, %v1988
    %v2239 = vadd.f32 %v2231, %v2237
    %v2240 = vadd.f32 %v2232, %v2238
    %v2241 = vld [vmem:[#allocation8 + $0x2d0] sm:$0xff]
    %v2242 = vld [vmem:[#allocation8 + $0x2d8] sm:$0xff]
    %v2243 = vmul.f32 %v1683, %v2241
    %v2244 = vmul.f32 %v1684, %v2242
    %v2245 = vmul.f32 %v2243, %v1987
    %v2246 = vmul.f32 %v2244, %v1988
    %v2247 = vld [vmem:[#allocation9 + $0x2d0] sm:$0xff]
    %v2248 = vld [vmem:[#allocation9 + $0x2d8] sm:$0xff]
    %v2249 = vmul.f32 %v1725, %v2247
    %v2250 = vmul.f32 %v1726, %v2248
    %v2251 = vmul.f32 %v2249, %v2001
    %v2252 = vmul.f32 %v2250, %v2002
    %v2253 = vadd.f32 %v2245, %v2251
    %v2254 = vadd.f32 %v2246, %v2252
    %v2255 = vld [vmem:[#allocation8 + $0x2f0] sm:$0xff]
    %v2256 = vld [vmem:[#allocation8 + $0x2f8] sm:$0xff]
    %v2257 = vmul.f32 %v1697, %v2255
    %v2258 = vmul.f32 %v1698, %v2256
    %v2259 = vmul.f32 %v2257, %v2001
    %v2260 = vmul.f32 %v2258, %v2002
    %v2261 = vld [vmem:[#allocation9 + $0x2f0] sm:$0xff]
    %v2262 = vld [vmem:[#allocation9 + $0x2f8] sm:$0xff]
    %v2263 = vmul.f32 %v1739, %v2261
    %v2264 = vmul.f32 %v1740, %v2262
    %v2265 = vmul.f32 %v2263, %v2015
    %v2266 = vmul.f32 %v2264, %v2016
    %v2267 = vadd.f32 %v2259, %v2265
    %v2268 = vadd.f32 %v2260, %v2266
    %v2269 = vld [vmem:[#allocation8 + $0x310] sm:$0xff]
    %v2270 = vld [vmem:[#allocation8 + $0x318] sm:$0xff]
    %v2271 = vmul.f32 %v1711, %v2269
    %v2272 = vmul.f32 %v1712, %v2270
    %v2273 = vmul.f32 %v2271, %v2015
    %v2274 = vmul.f32 %v2272, %v2016
    %v2275 = vld [vmem:[#allocation9 + $0x310] sm:$0xff]
    %v2276 = vld [vmem:[#allocation9 + $0x318] sm:$0xff]
    %v2277 = vmul.f32 %v1753, %v2275
    %v2278 = vmul.f32 %v1754, %v2276
    %v2279 = vmul.f32 %v2277, %v2029
    %v2280 = vmul.f32 %v2278, %v2030
    %v2281 = vadd.f32 %v2273, %v2279
    %v2282 = vadd.f32 %v2274, %v2280
    %v2283 = vld [vmem:[#allocation8 + $0x330] sm:$0xff]
    %v2284 = vld [vmem:[#allocation8 + $0x338] sm:$0xff]
    %v2285 = vmul.f32 %v1725, %v2283
    %v2286 = vmul.f32 %v1726, %v2284
    %v2287 = vmul.f32 %v2285, %v2029
    %v2288 = vmul.f32 %v2286, %v2030
    %v2289 = vld [vmem:[#allocation9 + $0x330] sm:$0xff]
    %v2290 = vld [vmem:[#allocation9 + $0x338] sm:$0xff]
    %v2291 = vmul.f32 %v1767, %v2289
    %v2292 = vmul.f32 %v1768, %v2290
    %v2293 = vmul.f32 %v2291, %v2043
    %v2294 = vmul.f32 %v2292, %v2044
    %v2295 = vadd.f32 %v2287, %v2293
    %v2296 = vadd.f32 %v2288, %v2294
    %v2297 = vld [vmem:[#allocation8 + $0x350] sm:$0xff]
    %v2298 = vld [vmem:[#allocation8 + $0x358] sm:$0xff]
    %v2299 = vmul.f32 %v1739, %v2297
    %v2300 = vmul.f32 %v1740, %v2298
    %v2301 = vmul.f32 %v2299, %v2043
    %v2302 = vmul.f32 %v2300, %v2044
    %v2303 = vld [vmem:[#allocation9 + $0x350] sm:$0xff]
    %v2304 = vld [vmem:[#allocation9 + $0x358] sm:$0xff]
    %v2305 = vmul.f32 %v1781, %v2303
    %v2306 = vmul.f32 %v1782, %v2304
    %v2307 = vmul.f32 %v2305, %v2057
    %v2308 = vmul.f32 %v2306, %v2058
    %v2309 = vadd.f32 %v2301, %v2307
    %v2310 = vadd.f32 %v2302, %v2308
    %v2311 = vld [vmem:[#allocation8 + $0x370] sm:$0xff]
    %v2312 = vld [vmem:[#allocation8 + $0x378] sm:$0xff]
    %v2313 = vmul.f32 %v1753, %v2311
    %v2314 = vmul.f32 %v1754, %v2312
    %v2315 = vmul.f32 %v2313, %v2057
    %v2316 = vmul.f32 %v2314, %v2058
    %v2317 = vld [vmem:[#allocation9 + $0x370] sm:$0xff]
    %v2318 = vld [vmem:[#allocation9 + $0x378] sm:$0xff]
    %v2319 = vmul.f32 %v1795, %v2317
    %v2320 = vmul.f32 %v1796, %v2318
    %v2321 = vmul.f32 %v2319, %v2071
    %v2322 = vmul.f32 %v2320, %v2072
    %v2323 = vadd.f32 %v2315, %v2321
    %v2324 = vadd.f32 %v2316, %v2322
    %v2325 = vld [vmem:[#allocation8 + $0x390] sm:$0xff]
    %v2326 = vld [vmem:[#allocation8 + $0x398] sm:$0xff]
    %v2327 = vmul.f32 %v1767, %v2325
    %v2328 = vmul.f32 %v1768, %v2326
    %v2329 = vmul.f32 %v2327, %v2071
    %v2330 = vmul.f32 %v2328, %v2072
    %v2331 = vld [vmem:[#allocation9 + $0x390] sm:$0xff]
    %v2332 = vld [vmem:[#allocation9 + $0x398] sm:$0xff]
    %v2333 = vmul.f32 %v1809, %v2331
    %v2334 = vmul.f32 %v1810, %v2332
    %v2335 = vmul.f32 %v2333, %v2085
    %v2336 = vmul.f32 %v2334, %v2086
    %v2337 = vadd.f32 %v2329, %v2335
    %v2338 = vadd.f32 %v2330, %v2336
    %v2339 = vld [vmem:[#allocation8 + $0x3b0] sm:$0xff]
    %v2340 = vld [vmem:[#allocation8 + $0x3b8] sm:$0xff]
    %v2341 = vmul.f32 %v1781, %v2339
    %v2342 = vmul.f32 %v1782, %v2340
    %v2343 = vmul.f32 %v2341, %v2085
    %v2344 = vmul.f32 %v2342, %v2086
    %v2345 = vld [vmem:[#allocation9 + $0x3b0] sm:$0xff]
    %v2346 = vld [vmem:[#allocation9 + $0x3b8] sm:$0xff]
    %v2347 = vmul.f32 %v1823, %v2345
    %v2348 = vmul.f32 %v1824, %v2346
    %v2349 = vmul.f32 %v2347, %v2099
    %v2350 = vmul.f32 %v2348, %v2100
    %v2351 = vadd.f32 %v2343, %v2349
    %v2352 = vadd.f32 %v2344, %v2350
    %v2353 = vld [vmem:[#allocation8 + $0x3d0] sm:$0xff]
    %v2354 = vld [vmem:[#allocation8 + $0x3d8] sm:$0xff]
    %v2355 = vmul.f32 %v1795, %v2353
    %v2356 = vmul.f32 %v1796, %v2354
    %v2357 = vmul.f32 %v2355, %v2099
    %v2358 = vmul.f32 %v2356, %v2100
    %v2359 = vld [vmem:[#allocation9 + $0x3d0] sm:$0xff]
    %v2360 = vld [vmem:[#allocation9 + $0x3d8] sm:$0xff]
    %v2361 = vmul.f32 %v1837, %v2359
    %v2362 = vmul.f32 %v1838, %v2360
    %v2363 = vmul.f32 %v2361, %v2113
    %v2364 = vmul.f32 %v2362, %v2114
    %v2365 = vadd.f32 %v2357, %v2363
    %v2366 = vadd.f32 %v2358, %v2364
    %v2367 = vld [vmem:[#allocation8 + $0x3f0] sm:$0xff]
    %v2368 = vld [vmem:[#allocation8 + $0x3f8] sm:$0xff]
    %v2369 = vmul.f32 %v1809, %v2367
    %v2370 = vmul.f32 %v1810, %v2368
    %v2371 = vmul.f32 %v2369, %v2113
    %v2372 = vmul.f32 %v2370, %v2114
    %v2373 = vld [vmem:[#allocation9 + $0x3f0] sm:$0xff]
    %v2374 = vld [vmem:[#allocation9 + $0x3f8] sm:$0xff]
    %v2375 = vmul.f32 %v1851, %v2373
    %v2376 = vmul.f32 %v1852, %v2374
    %v2377 = vmul.f32 %v2375, %v2127
    %v2378 = vmul.f32 %v2376, %v2128
    %v2379 = vadd.f32 %v2371, %v2377
    %v2380 = vadd.f32 %v2372, %v2378
    %v2381 = vld [vmem:[#allocation8 + $0x410] sm:$0xff]
    %v2382 = vld [vmem:[#allocation8 + $0x418] sm:$0xff]
    %v2383 = vmul.f32 %v1823, %v2381
    %v2384 = vmul.f32 %v1824, %v2382
    %v2385 = vmul.f32 %v2383, %v2127
    %v2386 = vmul.f32 %v2384, %v2128
    %v2387 = vld [vmem:[#allocation9 + $0x410] sm:$0xff]
    %v2388 = vld [vmem:[#allocation9 + $0x418] sm:$0xff]
    %v2389 = vmul.f32 %v1865, %v2387
    %v2390 = vmul.f32 %v1866, %v2388
    %v2391 = vmul.f32 %v2389, %v2141
    %v2392 = vmul.f32 %v2390, %v2142
    %v2393 = vadd.f32 %v2385, %v2391
    %v2394 = vadd.f32 %v2386, %v2392
    %v2395 = vld [vmem:[#allocation8 + $0x430] sm:$0xff]
    %v2396 = vld [vmem:[#allocation8 + $0x438] sm:$0xff]
    %v2397 = vmul.f32 %v1837, %v2395
    %v2398 = vmul.f32 %v1838, %v2396
    %v2399 = vmul.f32 %v2397, %v2141
    %v2400 = vmul.f32 %v2398, %v2142
    %v2401 = vld [vmem:[#allocation9 + $0x430] sm:$0xff]
    %v2402 = vld [vmem:[#allocation9 + $0x438] sm:$0xff]
    %v2403 = vmul.f32 %v1879, %v2401
    %v2404 = vmul.f32 %v1880, %v2402
    %v2405 = vmul.f32 %v2403, %v2155
    %v2406 = vmul.f32 %v2404, %v2156
    %v2407 = vadd.f32 %v2399, %v2405
    %v2408 = vadd.f32 %v2400, %v2406
    %v2409 = vld [vmem:[#allocation8 + $0x450] sm:$0xff]
    %v2410 = vld [vmem:[#allocation8 + $0x458] sm:$0xff]
    %v2411 = vmul.f32 %v1851, %v2409
    %v2412 = vmul.f32 %v1852, %v2410
    %v2413 = vmul.f32 %v2411, %v2155
    %v2414 = vmul.f32 %v2412, %v2156
    %v2415 = vld [vmem:[#allocation9 + $0x450] sm:$0xff]
    %v2416 = vld [vmem:[#allocation9 + $0x458] sm:$0xff]
    %v2417 = vmul.f32 %v1893, %v2415
    %v2418 = vmul.f32 %v1894, %v2416
    %v2419 = vmul.f32 %v2417, %v2169
    %v2420 = vmul.f32 %v2418, %v2170
    %v2421 = vadd.f32 %v2413, %v2419
    %v2422 = vadd.f32 %v2414, %v2420
    %v2423 = vld [vmem:[#allocation8 + $0x470] sm:$0xff]
    %v2424 = vld [vmem:[#allocation8 + $0x478] sm:$0xff]
    %v2425 = vmul.f32 %v1865, %v2423
    %v2426 = vmul.f32 %v1866, %v2424
    %v2427 = vmul.f32 %v2425, %v2169
    %v2428 = vmul.f32 %v2426, %v2170
    %v2429 = vld [vmem:[#allocation9 + $0x470] sm:$0xff]
    %v2430 = vld [vmem:[#allocation9 + $0x478] sm:$0xff]
    %v2431 = vmul.f32 %v1907, %v2429
    %v2432 = vmul.f32 %v1908, %v2430
    %v2433 = vmul.f32 %v2431, %v2183
    %v2434 = vmul.f32 %v2432, %v2184
    %v2435 = vadd.f32 %v2427, %v2433
    %v2436 = vadd.f32 %v2428, %v2434
    %v2437 = vld [vmem:[#allocation8 + $0x490] sm:$0xff]
    %v2438 = vld [vmem:[#allocation8 + $0x498] sm:$0xff]
    %v2439 = vmul.f32 %v1879, %v2437
    %v2440 = vmul.f32 %v1880, %v2438
    %v2441 = vmul.f32 %v2439, %v2183
    %v2442 = vmul.f32 %v2440, %v2184
    %v2443 = vld [vmem:[#allocation9 + $0x490] sm:$0xff]
    %v2444 = vld [vmem:[#allocation9 + $0x498] sm:$0xff]
    %v2445 = vmul.f32 %v1921, %v2443
    %v2446 = vmul.f32 %v1922, %v2444
    %v2447 = vmul.f32 %v2445, %v2197
    %v2448 = vmul.f32 %v2446, %v2198
    %v2449 = vadd.f32 %v2441, %v2447
    %v2450 = vadd.f32 %v2442, %v2448
    %v2451 = vld [vmem:[#allocation8 + $0x4b0] sm:$0xff]
    %v2452 = vld [vmem:[#allocation8 + $0x4b8] sm:$0xff]
    %v2453 = vmul.f32 %v1651, %v2451
    %v2454 = vmul.f32 %v1652, %v2452
    %v2455 = vmul.f32 %v2453, %v2211
    %v2456 = vmul.f32 %v2454, %v2212
    %v2457 = vld [vmem:[#allocation9 + $0x4b0] sm:$0xff]
    %v2458 = vld [vmem:[#allocation9 + $0x4b8] sm:$0xff]
    %v2459 = vmul.f32 %v1697, %v2457
    %v2460 = vmul.f32 %v1698, %v2458
    %v2461 = vmul.f32 %v2459, %v2225
    %v2462 = vmul.f32 %v2460, %v2226
    %v2463 = vadd.f32 %v2455, %v2461
    %v2464 = vadd.f32 %v2456, %v2462
    %v2465 = vld [vmem:[#allocation8 + $0x4d0] sm:$0xff]
    %v2466 = vld [vmem:[#allocation8 + $0x4d8] sm:$0xff]
    %v2467 = vmul.f32 %v1655, %v2465
    %v2468 = vmul.f32 %v1656, %v2466
    %v2469 = vmul.f32 %v2467, %v2225
    %v2470 = vmul.f32 %v2468, %v2226
    %v2471 = vld [vmem:[#allocation9 + $0x4d0] sm:$0xff]
    %v2472 = vld [vmem:[#allocation9 + $0x4d8] sm:$0xff]
    %v2473 = vmul.f32 %v1711, %v2471
    %v2474 = vmul.f32 %v1712, %v2472
    %v2475 = vmul.f32 %v2473, %v2239
    %v2476 = vmul.f32 %v2474, %v2240
    %v2477 = vadd.f32 %v2469, %v2475
    %v2478 = vadd.f32 %v2470, %v2476
    %v2479 = vld [vmem:[#allocation8 + $0x4f0] sm:$0xff]
    %v2480 = vld [vmem:[#allocation8 + $0x4f8] sm:$0xff]
    %v2481 = vmul.f32 %v1669, %v2479
    %v2482 = vmul.f32 %v1670, %v2480
    %v2483 = vmul.f32 %v2481, %v2239
    %v2484 = vmul.f32 %v2482, %v2240
    %v2485 = vld [vmem:[#allocation9 + $0x4f0] sm:$0xff]
    %v2486 = vld [vmem:[#allocation9 + $0x4f8] sm:$0xff]
    %v2487 = vmul.f32 %v1725, %v2485
    %v2488 = vmul.f32 %v1726, %v2486
    %v2489 = vmul.f32 %v2487, %v2253
    %v2490 = vmul.f32 %v2488, %v2254
    %v2491 = vadd.f32 %v2483, %v2489
    %v2492 = vadd.f32 %v2484, %v2490
    %v2493 = vld [vmem:[#allocation8 + $0x510] sm:$0xff]
    %v2494 = vld [vmem:[#allocation8 + $0x518] sm:$0xff]
    %v2495 = vmul.f32 %v1683, %v2493
    %v2496 = vmul.f32 %v1684, %v2494
    %v2497 = vmul.f32 %v2495, %v2253
    %v2498 = vmul.f32 %v2496, %v2254
    %v2499 = vld [vmem:[#allocation9 + $0x510] sm:$0xff]
    %v2500 = vld [vmem:[#allocation9 + $0x518] sm:$0xff]
    %v2501 = vmul.f32 %v1739, %v2499
    %v2502 = vmul.f32 %v1740, %v2500
    %v2503 = vmul.f32 %v2501, %v2267
    %v2504 = vmul.f32 %v2502, %v2268
    %v2505 = vadd.f32 %v2497, %v2503
    %v2506 = vadd.f32 %v2498, %v2504
    %v2507 = vld [vmem:[#allocation8 + $0x530] sm:$0xff]
    %v2508 = vld [vmem:[#allocation8 + $0x538] sm:$0xff]
    %v2509 = vmul.f32 %v1697, %v2507
    %v2510 = vmul.f32 %v1698, %v2508
    %v2511 = vmul.f32 %v2509, %v2267
    %v2512 = vmul.f32 %v2510, %v2268
    %v2513 = vld [vmem:[#allocation9 + $0x530] sm:$0xff]
    %v2514 = vld [vmem:[#allocation9 + $0x538] sm:$0xff]
    %v2515 = vmul.f32 %v1753, %v2513
    %v2516 = vmul.f32 %v1754, %v2514
    %v2517 = vmul.f32 %v2515, %v2281
    %v2518 = vmul.f32 %v2516, %v2282
    %v2519 = vadd.f32 %v2511, %v2517
    %v2520 = vadd.f32 %v2512, %v2518
    %v2521 = vld [vmem:[#allocation8 + $0x550] sm:$0xff]
    %v2522 = vld [vmem:[#allocation8 + $0x558] sm:$0xff]
    %v2523 = vmul.f32 %v1711, %v2521
    %v2524 = vmul.f32 %v1712, %v2522
    %v2525 = vmul.f32 %v2523, %v2281
    %v2526 = vmul.f32 %v2524, %v2282
    %v2527 = vld [vmem:[#allocation9 + $0x550] sm:$0xff]
    %v2528 = vld [vmem:[#allocation9 + $0x558] sm:$0xff]
    %v2529 = vmul.f32 %v1767, %v2527
    %v2530 = vmul.f32 %v1768, %v2528
    %v2531 = vmul.f32 %v2529, %v2295
    %v2532 = vmul.f32 %v2530, %v2296
    %v2533 = vadd.f32 %v2525, %v2531
    %v2534 = vadd.f32 %v2526, %v2532
    %v2535 = vld [vmem:[#allocation8 + $0x570] sm:$0xff]
    %v2536 = vld [vmem:[#allocation8 + $0x578] sm:$0xff]
    %v2537 = vmul.f32 %v1725, %v2535
    %v2538 = vmul.f32 %v1726, %v2536
    %v2539 = vmul.f32 %v2537, %v2295
    %v2540 = vmul.f32 %v2538, %v2296
    %v2541 = vld [vmem:[#allocation9 + $0x570] sm:$0xff]
    %v2542 = vld [vmem:[#allocation9 + $0x578] sm:$0xff]
    %v2543 = vmul.f32 %v1781, %v2541
    %v2544 = vmul.f32 %v1782, %v2542
    %v2545 = vmul.f32 %v2543, %v2309
    %v2546 = vmul.f32 %v2544, %v2310
    %v2547 = vadd.f32 %v2539, %v2545
    %v2548 = vadd.f32 %v2540, %v2546
    %v2549 = vld [vmem:[#allocation8 + $0x590] sm:$0xff]
    %v2550 = vld [vmem:[#allocation8 + $0x598] sm:$0xff]
    %v2551 = vmul.f32 %v1739, %v2549
    %v2552 = vmul.f32 %v1740, %v2550
    %v2553 = vmul.f32 %v2551, %v2309
    %v2554 = vmul.f32 %v2552, %v2310
    %v2555 = vld [vmem:[#allocation9 + $0x590] sm:$0xff]
    %v2556 = vld [vmem:[#allocation9 + $0x598] sm:$0xff]
    %v2557 = vmul.f32 %v1795, %v2555
    %v2558 = vmul.f32 %v1796, %v2556
    %v2559 = vmul.f32 %v2557, %v2323
    %v2560 = vmul.f32 %v2558, %v2324
    %v2561 = vadd.f32 %v2553, %v2559
    %v2562 = vadd.f32 %v2554, %v2560
    %v2563 = vld [vmem:[#allocation8 + $0x5b0] sm:$0xff]
    %v2564 = vld [vmem:[#allocation8 + $0x5b8] sm:$0xff]
    %v2565 = vmul.f32 %v1753, %v2563
    %v2566 = vmul.f32 %v1754, %v2564
    %v2567 = vmul.f32 %v2565, %v2323
    %v2568 = vmul.f32 %v2566, %v2324
    %v2569 = vld [vmem:[#allocation9 + $0x5b0] sm:$0xff]
    %v2570 = vld [vmem:[#allocation9 + $0x5b8] sm:$0xff]
    %v2571 = vmul.f32 %v1809, %v2569
    %v2572 = vmul.f32 %v1810, %v2570
    %v2573 = vmul.f32 %v2571, %v2337
    %v2574 = vmul.f32 %v2572, %v2338
    %v2575 = vadd.f32 %v2567, %v2573
    %v2576 = vadd.f32 %v2568, %v2574
    %v2577 = vld [vmem:[#allocation8 + $0x5d0] sm:$0xff]
    %v2578 = vld [vmem:[#allocation8 + $0x5d8] sm:$0xff]
    %v2579 = vmul.f32 %v1767, %v2577
    %v2580 = vmul.f32 %v1768, %v2578
    %v2581 = vmul.f32 %v2579, %v2337
    %v2582 = vmul.f32 %v2580, %v2338
    %v2583 = vld [vmem:[#allocation9 + $0x5d0] sm:$0xff]
    %v2584 = vld [vmem:[#allocation9 + $0x5d8] sm:$0xff]
    %v2585 = vmul.f32 %v1823, %v2583
    %v2586 = vmul.f32 %v1824, %v2584
    %v2587 = vmul.f32 %v2585, %v2351
    %v2588 = vmul.f32 %v2586, %v2352
    %v2589 = vadd.f32 %v2581, %v2587
    %v2590 = vadd.f32 %v2582, %v2588
    %v2591 = vld [vmem:[#allocation8 + $0x5f0] sm:$0xff]
    %v2592 = vld [vmem:[#allocation8 + $0x5f8] sm:$0xff]
    %v2593 = vmul.f32 %v1781, %v2591
    %v2594 = vmul.f32 %v1782, %v2592
    %v2595 = vmul.f32 %v2593, %v2351
    %v2596 = vmul.f32 %v2594, %v2352
    %v2597 = vld [vmem:[#allocation9 + $0x5f0] sm:$0xff]
    %v2598 = vld [vmem:[#allocation9 + $0x5f8] sm:$0xff]
    %v2599 = vmul.f32 %v1837, %v2597
    %v2600 = vmul.f32 %v1838, %v2598
    %v2601 = vmul.f32 %v2599, %v2365
    %v2602 = vmul.f32 %v2600, %v2366
    %v2603 = vadd.f32 %v2595, %v2601
    %v2604 = vadd.f32 %v2596, %v2602
    %v2605 = vld [vmem:[#allocation8 + $0x610] sm:$0xff]
    %v2606 = vld [vmem:[#allocation8 + $0x618] sm:$0xff]
    %v2607 = vmul.f32 %v1795, %v2605
    %v2608 = vmul.f32 %v1796, %v2606
    %v2609 = vmul.f32 %v2607, %v2365
    %v2610 = vmul.f32 %v2608, %v2366
    %v2611 = vld [vmem:[#allocation9 + $0x610] sm:$0xff]
    %v2612 = vld [vmem:[#allocation9 + $0x618] sm:$0xff]
    %v2613 = vmul.f32 %v1851, %v2611
    %v2614 = vmul.f32 %v1852, %v2612
    %v2615 = vmul.f32 %v2613, %v2379
    %v2616 = vmul.f32 %v2614, %v2380
    %v2617 = vadd.f32 %v2609, %v2615
    %v2618 = vadd.f32 %v2610, %v2616
    %v2619 = vld [vmem:[#allocation8 + $0x630] sm:$0xff]
    %v2620 = vld [vmem:[#allocation8 + $0x638] sm:$0xff]
    %v2621 = vmul.f32 %v1809, %v2619
    %v2622 = vmul.f32 %v1810, %v2620
    %v2623 = vmul.f32 %v2621, %v2379
    %v2624 = vmul.f32 %v2622, %v2380
    %v2625 = vld [vmem:[#allocation9 + $0x630] sm:$0xff]
    %v2626 = vld [vmem:[#allocation9 + $0x638] sm:$0xff]
    %v2627 = vmul.f32 %v1865, %v2625
    %v2628 = vmul.f32 %v1866, %v2626
    %v2629 = vmul.f32 %v2627, %v2393
    %v2630 = vmul.f32 %v2628, %v2394
    %v2631 = vadd.f32 %v2623, %v2629
    %v2632 = vadd.f32 %v2624, %v2630
    %v2633 = vld [vmem:[#allocation8 + $0x650] sm:$0xff]
    %v2634 = vld [vmem:[#allocation8 + $0x658] sm:$0xff]
    %v2635 = vmul.f32 %v1823, %v2633
    %v2636 = vmul.f32 %v1824, %v2634
    %v2637 = vmul.f32 %v2635, %v2393
    %v2638 = vmul.f32 %v2636, %v2394
    %v2639 = vld [vmem:[#allocation9 + $0x650] sm:$0xff]
    %v2640 = vld [vmem:[#allocation9 + $0x658] sm:$0xff]
    %v2641 = vmul.f32 %v1879, %v2639
    %v2642 = vmul.f32 %v1880, %v2640
    %v2643 = vmul.f32 %v2641, %v2407
    %v2644 = vmul.f32 %v2642, %v2408
    %v2645 = vadd.f32 %v2637, %v2643
    %v2646 = vadd.f32 %v2638, %v2644
    %v2647 = vld [vmem:[#allocation8 + $0x670] sm:$0xff]
    %v2648 = vld [vmem:[#allocation8 + $0x678] sm:$0xff]
    %v2649 = vmul.f32 %v1837, %v2647
    %v2650 = vmul.f32 %v1838, %v2648
    %v2651 = vmul.f32 %v2649, %v2407
    %v2652 = vmul.f32 %v2650, %v2408
    %v2653 = vld [vmem:[#allocation9 + $0x670] sm:$0xff]
    %v2654 = vld [vmem:[#allocation9 + $0x678] sm:$0xff]
    %v2655 = vmul.f32 %v1893, %v2653
    %v2656 = vmul.f32 %v1894, %v2654
    %v2657 = vmul.f32 %v2655, %v2421
    %v2658 = vmul.f32 %v2656, %v2422
    %v2659 = vadd.f32 %v2651, %v2657
    %v2660 = vadd.f32 %v2652, %v2658
    %v2661 = vld [vmem:[#allocation8 + $0x690] sm:$0xff]
    %v2662 = vld [vmem:[#allocation8 + $0x698] sm:$0xff]
    %v2663 = vmul.f32 %v1851, %v2661
    %v2664 = vmul.f32 %v1852, %v2662
    %v2665 = vmul.f32 %v2663, %v2421
    %v2666 = vmul.f32 %v2664, %v2422
    %v2667 = vld [vmem:[#allocation9 + $0x690] sm:$0xff]
    %v2668 = vld [vmem:[#allocation9 + $0x698] sm:$0xff]
    %v2669 = vmul.f32 %v1907, %v2667
    %v2670 = vmul.f32 %v1908, %v2668
    %v2671 = vmul.f32 %v2669, %v2435
    %v2672 = vmul.f32 %v2670, %v2436
    %v2673 = vadd.f32 %v2665, %v2671
    %v2674 = vadd.f32 %v2666, %v2672
    %v2675 = vld [vmem:[#allocation8 + $0x6b0] sm:$0xff]
    %v2676 = vld [vmem:[#allocation8 + $0x6b8] sm:$0xff]
    %v2677 = vmul.f32 %v1865, %v2675
    %v2678 = vmul.f32 %v1866, %v2676
    %v2679 = vmul.f32 %v2677, %v2435
    %v2680 = vmul.f32 %v2678, %v2436
    %v2681 = vld [vmem:[#allocation9 + $0x6b0] sm:$0xff]
    %v2682 = vld [vmem:[#allocation9 + $0x6b8] sm:$0xff]
    %v2683 = vmul.f32 %v1921, %v2681
    %v2684 = vmul.f32 %v1922, %v2682
    %v2685 = vmul.f32 %v2683, %v2449
    %v2686 = vmul.f32 %v2684, %v2450
    %v2687 = vadd.f32 %v2679, %v2685
    %v2688 = vadd.f32 %v2680, %v2686
    %v2689 = vld [vmem:[#allocation8 + $0x6d0] sm:$0xff]
    %v2690 = vld [vmem:[#allocation8 + $0x6d8] sm:$0xff]
    %v2691 = vmul.f32 %v1651, %v2689
    %v2692 = vmul.f32 %v1652, %v2690
    %v2693 = vmul.f32 %v2691, %v2463
    %v2694 = vmul.f32 %v2692, %v2464
    %v2695 = vld [vmem:[#allocation9 + $0x6d0] sm:$0xff]
    %v2696 = vld [vmem:[#allocation9 + $0x6d8] sm:$0xff]
    %v2697 = vmul.f32 %v1711, %v2695
    %v2698 = vmul.f32 %v1712, %v2696
    %v2699 = vmul.f32 %v2697, %v2477
    %v2700 = vmul.f32 %v2698, %v2478
    %v2701 = vadd.f32 %v2693, %v2699
    %v2702 = vadd.f32 %v2694, %v2700
    %v2703 = vld [vmem:[#allocation8 + $0x6f0] sm:$0xff]
    %v2704 = vld [vmem:[#allocation8 + $0x6f8] sm:$0xff]
    %v2705 = vmul.f32 %v1655, %v2703
    %v2706 = vmul.f32 %v1656, %v2704
    %v2707 = vmul.f32 %v2705, %v2477
    %v2708 = vmul.f32 %v2706, %v2478
    %v2709 = vld [vmem:[#allocation9 + $0x6f0] sm:$0xff]
    %v2710 = vld [vmem:[#allocation9 + $0x6f8] sm:$0xff]
    %v2711 = vmul.f32 %v1725, %v2709
    %v2712 = vmul.f32 %v1726, %v2710
    %v2713 = vmul.f32 %v2711, %v2491
    %v2714 = vmul.f32 %v2712, %v2492
    %v2715 = vadd.f32 %v2707, %v2713
    %v2716 = vadd.f32 %v2708, %v2714
    %v2717 = vld [vmem:[#allocation8 + $0x710] sm:$0xff]
    %v2718 = vld [vmem:[#allocation8 + $0x718] sm:$0xff]
    %v2719 = vmul.f32 %v1669, %v2717
    %v2720 = vmul.f32 %v1670, %v2718
    %v2721 = vmul.f32 %v2719, %v2491
    %v2722 = vmul.f32 %v2720, %v2492
    %v2723 = vld [vmem:[#allocation9 + $0x710] sm:$0xff]
    %v2724 = vld [vmem:[#allocation9 + $0x718] sm:$0xff]
    %v2725 = vmul.f32 %v1739, %v2723
    %v2726 = vmul.f32 %v1740, %v2724
    %v2727 = vmul.f32 %v2725, %v2505
    %v2728 = vmul.f32 %v2726, %v2506
    %v2729 = vadd.f32 %v2721, %v2727
    %v2730 = vadd.f32 %v2722, %v2728
    %v2731 = vld [vmem:[#allocation8 + $0x730] sm:$0xff]
    %v2732 = vld [vmem:[#allocation8 + $0x738] sm:$0xff]
    %v2733 = vmul.f32 %v1683, %v2731
    %v2734 = vmul.f32 %v1684, %v2732
    %v2735 = vmul.f32 %v2733, %v2505
    %v2736 = vmul.f32 %v2734, %v2506
    %v2737 = vld [vmem:[#allocation9 + $0x730] sm:$0xff]
    %v2738 = vld [vmem:[#allocation9 + $0x738] sm:$0xff]
    %v2739 = vmul.f32 %v1753, %v2737
    %v2740 = vmul.f32 %v1754, %v2738
    %v2741 = vmul.f32 %v2739, %v2519
    %v2742 = vmul.f32 %v2740, %v2520
    %v2743 = vadd.f32 %v2735, %v2741
    %v2744 = vadd.f32 %v2736, %v2742
    %v2745 = vld [vmem:[#allocation8 + $0x750] sm:$0xff]
    %v2746 = vld [vmem:[#allocation8 + $0x758] sm:$0xff]
    %v2747 = vmul.f32 %v1697, %v2745
    %v2748 = vmul.f32 %v1698, %v2746
    %v2749 = vmul.f32 %v2747, %v2519
    %v2750 = vmul.f32 %v2748, %v2520
    %v2751 = vld [vmem:[#allocation9 + $0x750] sm:$0xff]
    %v2752 = vld [vmem:[#allocation9 + $0x758] sm:$0xff]
    %v2753 = vmul.f32 %v1767, %v2751
    %v2754 = vmul.f32 %v1768, %v2752
    %v2755 = vmul.f32 %v2753, %v2533
    %v2756 = vmul.f32 %v2754, %v2534
    %v2757 = vadd.f32 %v2749, %v2755
    %v2758 = vadd.f32 %v2750, %v2756
    %v2759 = vld [vmem:[#allocation8 + $0x770] sm:$0xff]
    %v2760 = vld [vmem:[#allocation8 + $0x778] sm:$0xff]
    %v2761 = vmul.f32 %v1711, %v2759
    %v2762 = vmul.f32 %v1712, %v2760
    %v2763 = vmul.f32 %v2761, %v2533
    %v2764 = vmul.f32 %v2762, %v2534
    %v2765 = vld [vmem:[#allocation9 + $0x770] sm:$0xff]
    %v2766 = vld [vmem:[#allocation9 + $0x778] sm:$0xff]
    %v2767 = vmul.f32 %v1781, %v2765
    %v2768 = vmul.f32 %v1782, %v2766
    %v2769 = vmul.f32 %v2767, %v2547
    %v2770 = vmul.f32 %v2768, %v2548
    %v2771 = vadd.f32 %v2763, %v2769
    %v2772 = vadd.f32 %v2764, %v2770
    %v2773 = vld [vmem:[#allocation8 + $0x790] sm:$0xff]
    %v2774 = vld [vmem:[#allocation8 + $0x798] sm:$0xff]
    %v2775 = vmul.f32 %v1725, %v2773
    %v2776 = vmul.f32 %v1726, %v2774
    %v2777 = vmul.f32 %v2775, %v2547
    %v2778 = vmul.f32 %v2776, %v2548
    %v2779 = vld [vmem:[#allocation9 + $0x790] sm:$0xff]
    %v2780 = vld [vmem:[#allocation9 + $0x798] sm:$0xff]
    %v2781 = vmul.f32 %v1795, %v2779
    %v2782 = vmul.f32 %v1796, %v2780
    %v2783 = vmul.f32 %v2781, %v2561
    %v2784 = vmul.f32 %v2782, %v2562
    %v2785 = vadd.f32 %v2777, %v2783
    %v2786 = vadd.f32 %v2778, %v2784
    %v2787 = vld [vmem:[#allocation8 + $0x7b0] sm:$0xff]
    %v2788 = vld [vmem:[#allocation8 + $0x7b8] sm:$0xff]
    %v2789 = vmul.f32 %v1739, %v2787
    %v2790 = vmul.f32 %v1740, %v2788
    %v2791 = vmul.f32 %v2789, %v2561
    %v2792 = vmul.f32 %v2790, %v2562
    %v2793 = vld [vmem:[#allocation9 + $0x7b0] sm:$0xff]
    %v2794 = vld [vmem:[#allocation9 + $0x7b8] sm:$0xff]
    %v2795 = vmul.f32 %v1809, %v2793
    %v2796 = vmul.f32 %v1810, %v2794
    %v2797 = vmul.f32 %v2795, %v2575
    %v2798 = vmul.f32 %v2796, %v2576
    %v2799 = vadd.f32 %v2791, %v2797
    %v2800 = vadd.f32 %v2792, %v2798
    %v2801 = vld [vmem:[#allocation8 + $0x7d0] sm:$0xff]
    %v2802 = vld [vmem:[#allocation8 + $0x7d8] sm:$0xff]
    %v2803 = vmul.f32 %v1753, %v2801
    %v2804 = vmul.f32 %v1754, %v2802
    %v2805 = vmul.f32 %v2803, %v2575
    %v2806 = vmul.f32 %v2804, %v2576
    %v2807 = vld [vmem:[#allocation9 + $0x7d0] sm:$0xff]
    %v2808 = vld [vmem:[#allocation9 + $0x7d8] sm:$0xff]
    %v2809 = vmul.f32 %v1823, %v2807
    %v2810 = vmul.f32 %v1824, %v2808
    %v2811 = vmul.f32 %v2809, %v2589
    %v2812 = vmul.f32 %v2810, %v2590
    %v2813 = vadd.f32 %v2805, %v2811
    %v2814 = vadd.f32 %v2806, %v2812
    %v2815 = vld [vmem:[#allocation8 + $0x7f0] sm:$0xff]
    %v2816 = vld [vmem:[#allocation8 + $0x7f8] sm:$0xff]
    %v2817 = vmul.f32 %v1767, %v2815
    %v2818 = vmul.f32 %v1768, %v2816
    %v2819 = vmul.f32 %v2817, %v2589
    %v2820 = vmul.f32 %v2818, %v2590
    %v2821 = vld [vmem:[#allocation9 + $0x7f0] sm:$0xff]
    %v2822 = vld [vmem:[#allocation9 + $0x7f8] sm:$0xff]
    %v2823 = vmul.f32 %v1837, %v2821
    %v2824 = vmul.f32 %v1838, %v2822
    %v2825 = vmul.f32 %v2823, %v2603
    %v2826 = vmul.f32 %v2824, %v2604
    %v2827 = vadd.f32 %v2819, %v2825
    %v2828 = vadd.f32 %v2820, %v2826
    %v2829 = vld [vmem:[#allocation8 + $0x810] sm:$0xff]
    %v2830 = vld [vmem:[#allocation8 + $0x818] sm:$0xff]
    %v2831 = vmul.f32 %v1781, %v2829
    %v2832 = vmul.f32 %v1782, %v2830
    %v2833 = vmul.f32 %v2831, %v2603
    %v2834 = vmul.f32 %v2832, %v2604
    %v2835 = vld [vmem:[#allocation9 + $0x810] sm:$0xff]
    %v2836 = vld [vmem:[#allocation9 + $0x818] sm:$0xff]
    %v2837 = vmul.f32 %v1851, %v2835
    %v2838 = vmul.f32 %v1852, %v2836
    %v2839 = vmul.f32 %v2837, %v2617
    %v2840 = vmul.f32 %v2838, %v2618
    %v2841 = vadd.f32 %v2833, %v2839
    %v2842 = vadd.f32 %v2834, %v2840
    %v2843 = vld [vmem:[#allocation8 + $0x830] sm:$0xff]
    %v2844 = vld [vmem:[#allocation8 + $0x838] sm:$0xff]
    %v2845 = vmul.f32 %v1795, %v2843
    %v2846 = vmul.f32 %v1796, %v2844
    %v2847 = vmul.f32 %v2845, %v2617
    %v2848 = vmul.f32 %v2846, %v2618
    %v2849 = vld [vmem:[#allocation9 + $0x830] sm:$0xff]
    %v2850 = vld [vmem:[#allocation9 + $0x838] sm:$0xff]
    %v2851 = vmul.f32 %v1865, %v2849
    %v2852 = vmul.f32 %v1866, %v2850
    %v2853 = vmul.f32 %v2851, %v2631
    %v2854 = vmul.f32 %v2852, %v2632
    %v2855 = vadd.f32 %v2847, %v2853
    %v2856 = vadd.f32 %v2848, %v2854
    %v2857 = vld [vmem:[#allocation8 + $0x850] sm:$0xff]
    %v2858 = vld [vmem:[#allocation8 + $0x858] sm:$0xff]
    %v2859 = vmul.f32 %v1809, %v2857
    %v2860 = vmul.f32 %v1810, %v2858
    %v2861 = vmul.f32 %v2859, %v2631
    %v2862 = vmul.f32 %v2860, %v2632
    %v2863 = vld [vmem:[#allocation9 + $0x850] sm:$0xff]
    %v2864 = vld [vmem:[#allocation9 + $0x858] sm:$0xff]
    %v2865 = vmul.f32 %v1879, %v2863
    %v2866 = vmul.f32 %v1880, %v2864
    %v2867 = vmul.f32 %v2865, %v2645
    %v2868 = vmul.f32 %v2866, %v2646
    %v2869 = vadd.f32 %v2861, %v2867
    %v2870 = vadd.f32 %v2862, %v2868
    %v2871 = vld [vmem:[#allocation8 + $0x870] sm:$0xff]
    %v2872 = vld [vmem:[#allocation8 + $0x878] sm:$0xff]
    %v2873 = vmul.f32 %v1823, %v2871
    %v2874 = vmul.f32 %v1824, %v2872
    %v2875 = vmul.f32 %v2873, %v2645
    %v2876 = vmul.f32 %v2874, %v2646
    %v2877 = vld [vmem:[#allocation9 + $0x870] sm:$0xff]
    %v2878 = vld [vmem:[#allocation9 + $0x878] sm:$0xff]
    %v2879 = vmul.f32 %v1893, %v2877
    %v2880 = vmul.f32 %v1894, %v2878
    %v2881 = vmul.f32 %v2879, %v2659
    %v2882 = vmul.f32 %v2880, %v2660
    %v2883 = vadd.f32 %v2875, %v2881
    %v2884 = vadd.f32 %v2876, %v2882
    %v2885 = vld [vmem:[#allocation8 + $0x890] sm:$0xff]
    %v2886 = vld [vmem:[#allocation8 + $0x898] sm:$0xff]
    %v2887 = vmul.f32 %v1837, %v2885
    %v2888 = vmul.f32 %v1838, %v2886
    %v2889 = vmul.f32 %v2887, %v2659
    %v2890 = vmul.f32 %v2888, %v2660
    %v2891 = vld [vmem:[#allocation9 + $0x890] sm:$0xff]
    %v2892 = vld [vmem:[#allocation9 + $0x898] sm:$0xff]
    %v2893 = vmul.f32 %v1907, %v2891
    %v2894 = vmul.f32 %v1908, %v2892
    %v2895 = vmul.f32 %v2893, %v2673
    %v2896 = vmul.f32 %v2894, %v2674
    %v2897 = vadd.f32 %v2889, %v2895
    %v2898 = vadd.f32 %v2890, %v2896
    %v2899 = vld [vmem:[#allocation8 + $0x8b0] sm:$0xff]
    %v2900 = vld [vmem:[#allocation8 + $0x8b8] sm:$0xff]
    %v2901 = vmul.f32 %v1851, %v2899
    %v2902 = vmul.f32 %v1852, %v2900
    %v2903 = vmul.f32 %v2901, %v2673
    %v2904 = vmul.f32 %v2902, %v2674
    %v2905 = vld [vmem:[#allocation9 + $0x8b0] sm:$0xff]
    %v2906 = vld [vmem:[#allocation9 + $0x8b8] sm:$0xff]
    %v2907 = vmul.f32 %v1921, %v2905
    %v2908 = vmul.f32 %v1922, %v2906
    %v2909 = vmul.f32 %v2907, %v2687
    %v2910 = vmul.f32 %v2908, %v2688
    %v2911 = vadd.f32 %v2903, %v2909
    %v2912 = vadd.f32 %v2904, %v2910
    %v2913 = vld [vmem:[#allocation8 + $0x8d0] sm:$0xff]
    %v2914 = vld [vmem:[#allocation8 + $0x8d8] sm:$0xff]
    %v2915 = vmul.f32 %v1651, %v2913
    %v2916 = vmul.f32 %v1652, %v2914
    %v2917 = vmul.f32 %v2915, %v2701
    %v2918 = vmul.f32 %v2916, %v2702
    %v2919 = vld [vmem:[#allocation9 + $0x8d0] sm:$0xff]
    %v2920 = vld [vmem:[#allocation9 + $0x8d8] sm:$0xff]
    %v2921 = vmul.f32 %v1725, %v2919
    %v2922 = vmul.f32 %v1726, %v2920
    %v2923 = vmul.f32 %v2921, %v2715
    %v2924 = vmul.f32 %v2922, %v2716
    %v2925 = vadd.f32 %v2917, %v2923
    %v2926 = vadd.f32 %v2918, %v2924
    %v2927 = vld [vmem:[#allocation8 + $0x8f0] sm:$0xff]
    %v2928 = vld [vmem:[#allocation8 + $0x8f8] sm:$0xff]
    %v2929 = vmul.f32 %v1655, %v2927
    %v2930 = vmul.f32 %v1656, %v2928
    %v2931 = vmul.f32 %v2929, %v2715
    %v2932 = vmul.f32 %v2930, %v2716
    %v2933 = vld [vmem:[#allocation9 + $0x8f0] sm:$0xff]
    %v2934 = vld [vmem:[#allocation9 + $0x8f8] sm:$0xff]
    %v2935 = vmul.f32 %v1739, %v2933
    %v2936 = vmul.f32 %v1740, %v2934
    %v2937 = vmul.f32 %v2935, %v2729
    %v2938 = vmul.f32 %v2936, %v2730
    %v2939 = vadd.f32 %v2931, %v2937
    %v2940 = vadd.f32 %v2932, %v2938
    %v2941 = vld [vmem:[#allocation8 + $0x910] sm:$0xff]
    %v2942 = vld [vmem:[#allocation8 + $0x918] sm:$0xff]
    %v2943 = vmul.f32 %v1669, %v2941
    %v2944 = vmul.f32 %v1670, %v2942
    %v2945 = vmul.f32 %v2943, %v2729
    %v2946 = vmul.f32 %v2944, %v2730
    %v2947 = vld [vmem:[#allocation9 + $0x910] sm:$0xff]
    %v2948 = vld [vmem:[#allocation9 + $0x918] sm:$0xff]
    %v2949 = vmul.f32 %v1753, %v2947
    %v2950 = vmul.f32 %v1754, %v2948
    %v2951 = vmul.f32 %v2949, %v2743
    %v2952 = vmul.f32 %v2950, %v2744
    %v2953 = vadd.f32 %v2945, %v2951
    %v2954 = vadd.f32 %v2946, %v2952
    %v2955 = vld [vmem:[#allocation8 + $0x930] sm:$0xff]
    %v2956 = vld [vmem:[#allocation8 + $0x938] sm:$0xff]
    %v2957 = vmul.f32 %v1683, %v2955
    %v2958 = vmul.f32 %v1684, %v2956
    %v2959 = vmul.f32 %v2957, %v2743
    %v2960 = vmul.f32 %v2958, %v2744
    %v2961 = vld [vmem:[#allocation9 + $0x930] sm:$0xff]
    %v2962 = vld [vmem:[#allocation9 + $0x938] sm:$0xff]
    %v2963 = vmul.f32 %v1767, %v2961
    %v2964 = vmul.f32 %v1768, %v2962
    %v2965 = vmul.f32 %v2963, %v2757
    %v2966 = vmul.f32 %v2964, %v2758
    %v2967 = vadd.f32 %v2959, %v2965
    %v2968 = vadd.f32 %v2960, %v2966
    %v2969 = vld [vmem:[#allocation8 + $0x950] sm:$0xff]
    %v2970 = vld [vmem:[#allocation8 + $0x958] sm:$0xff]
    %v2971 = vmul.f32 %v1697, %v2969
    %v2972 = vmul.f32 %v1698, %v2970
    %v2973 = vmul.f32 %v2971, %v2757
    %v2974 = vmul.f32 %v2972, %v2758
    %v2975 = vld [vmem:[#allocation9 + $0x950] sm:$0xff]
    %v2976 = vld [vmem:[#allocation9 + $0x958] sm:$0xff]
    %v2977 = vmul.f32 %v1781, %v2975
    %v2978 = vmul.f32 %v1782, %v2976
    %v2979 = vmul.f32 %v2977, %v2771
    %v2980 = vmul.f32 %v2978, %v2772
    %v2981 = vadd.f32 %v2973, %v2979
    %v2982 = vadd.f32 %v2974, %v2980
    %v2983 = vld [vmem:[#allocation8 + $0x970] sm:$0xff]
    %v2984 = vld [vmem:[#allocation8 + $0x978] sm:$0xff]
    %v2985 = vmul.f32 %v1711, %v2983
    %v2986 = vmul.f32 %v1712, %v2984
    %v2987 = vmul.f32 %v2985, %v2771
    %v2988 = vmul.f32 %v2986, %v2772
    %v2989 = vld [vmem:[#allocation9 + $0x970] sm:$0xff]
    %v2990 = vld [vmem:[#allocation9 + $0x978] sm:$0xff]
    %v2991 = vmul.f32 %v1795, %v2989
    %v2992 = vmul.f32 %v1796, %v2990
    %v2993 = vmul.f32 %v2991, %v2785
    %v2994 = vmul.f32 %v2992, %v2786
    %v2995 = vadd.f32 %v2987, %v2993
    %v2996 = vadd.f32 %v2988, %v2994
    %v2997 = vld [vmem:[#allocation8 + $0x990] sm:$0xff]
    %v2998 = vld [vmem:[#allocation8 + $0x998] sm:$0xff]
    %v2999 = vmul.f32 %v1725, %v2997
    %v3000 = vmul.f32 %v1726, %v2998
    %v3001 = vmul.f32 %v2999, %v2785
    %v3002 = vmul.f32 %v3000, %v2786
    %v3003 = vld [vmem:[#allocation9 + $0x990] sm:$0xff]
    %v3004 = vld [vmem:[#allocation9 + $0x998] sm:$0xff]
    %v3005 = vmul.f32 %v1809, %v3003
    %v3006 = vmul.f32 %v1810, %v3004
    %v3007 = vmul.f32 %v3005, %v2799
    %v3008 = vmul.f32 %v3006, %v2800
    %v3009 = vadd.f32 %v3001, %v3007
    %v3010 = vadd.f32 %v3002, %v3008
    %v3011 = vld [vmem:[#allocation8 + $0x9b0] sm:$0xff]
    %v3012 = vld [vmem:[#allocation8 + $0x9b8] sm:$0xff]
    %v3013 = vmul.f32 %v1739, %v3011
    %v3014 = vmul.f32 %v1740, %v3012
    %v3015 = vmul.f32 %v3013, %v2799
    %v3016 = vmul.f32 %v3014, %v2800
    %v3017 = vld [vmem:[#allocation9 + $0x9b0] sm:$0xff]
    %v3018 = vld [vmem:[#allocation9 + $0x9b8] sm:$0xff]
    %v3019 = vmul.f32 %v1823, %v3017
    %v3020 = vmul.f32 %v1824, %v3018
    %v3021 = vmul.f32 %v3019, %v2813
    %v3022 = vmul.f32 %v3020, %v2814
    %v3023 = vadd.f32 %v3015, %v3021
    %v3024 = vadd.f32 %v3016, %v3022
    %v3025 = vld [vmem:[#allocation8 + $0x9d0] sm:$0xff]
    %v3026 = vld [vmem:[#allocation8 + $0x9d8] sm:$0xff]
    %v3027 = vmul.f32 %v1753, %v3025
    %v3028 = vmul.f32 %v1754, %v3026
    %v3029 = vmul.f32 %v3027, %v2813
    %v3030 = vmul.f32 %v3028, %v2814
    %v3031 = vld [vmem:[#allocation9 + $0x9d0] sm:$0xff]
    %v3032 = vld [vmem:[#allocation9 + $0x9d8] sm:$0xff]
    %v3033 = vmul.f32 %v1837, %v3031
    %v3034 = vmul.f32 %v1838, %v3032
    %v3035 = vmul.f32 %v3033, %v2827
    %v3036 = vmul.f32 %v3034, %v2828
    %v3037 = vadd.f32 %v3029, %v3035
    %v3038 = vadd.f32 %v3030, %v3036
    %v3039 = vld [vmem:[#allocation8 + $0x9f0] sm:$0xff]
    %v3040 = vld [vmem:[#allocation8 + $0x9f8] sm:$0xff]
    %v3041 = vmul.f32 %v1767, %v3039
    %v3042 = vmul.f32 %v1768, %v3040
    %v3043 = vmul.f32 %v3041, %v2827
    %v3044 = vmul.f32 %v3042, %v2828
    %v3045 = vld [vmem:[#allocation9 + $0x9f0] sm:$0xff]
    %v3046 = vld [vmem:[#allocation9 + $0x9f8] sm:$0xff]
    %v3047 = vmul.f32 %v1851, %v3045
    %v3048 = vmul.f32 %v1852, %v3046
    %v3049 = vmul.f32 %v3047, %v2841
    %v3050 = vmul.f32 %v3048, %v2842
    %v3051 = vadd.f32 %v3043, %v3049
    %v3052 = vadd.f32 %v3044, %v3050
    %v3053 = vld [vmem:[#allocation8 + $0xa10] sm:$0xff]
    %v3054 = vld [vmem:[#allocation8 + $0xa18] sm:$0xff]
    %v3055 = vmul.f32 %v1781, %v3053
    %v3056 = vmul.f32 %v1782, %v3054
    %v3057 = vmul.f32 %v3055, %v2841
    %v3058 = vmul.f32 %v3056, %v2842
    %v3059 = vld [vmem:[#allocation9 + $0xa10] sm:$0xff]
    %v3060 = vld [vmem:[#allocation9 + $0xa18] sm:$0xff]
    %v3061 = vmul.f32 %v1865, %v3059
    %v3062 = vmul.f32 %v1866, %v3060
    %v3063 = vmul.f32 %v3061, %v2855
    %v3064 = vmul.f32 %v3062, %v2856
    %v3065 = vadd.f32 %v3057, %v3063
    %v3066 = vadd.f32 %v3058, %v3064
    %v3067 = vld [vmem:[#allocation8 + $0xa30] sm:$0xff]
    %v3068 = vld [vmem:[#allocation8 + $0xa38] sm:$0xff]
    %v3069 = vmul.f32 %v1795, %v3067
    %v3070 = vmul.f32 %v1796, %v3068
    %v3071 = vmul.f32 %v3069, %v2855
    %v3072 = vmul.f32 %v3070, %v2856
    %v3073 = vld [vmem:[#allocation9 + $0xa30] sm:$0xff]
    %v3074 = vld [vmem:[#allocation9 + $0xa38] sm:$0xff]
    %v3075 = vmul.f32 %v1879, %v3073
    %v3076 = vmul.f32 %v1880, %v3074
    %v3077 = vmul.f32 %v3075, %v2869
    %v3078 = vmul.f32 %v3076, %v2870
    %v3079 = vadd.f32 %v3071, %v3077
    %v3080 = vadd.f32 %v3072, %v3078
    %v3081 = vld [vmem:[#allocation8 + $0xa50] sm:$0xff]
    %v3082 = vld [vmem:[#allocation8 + $0xa58] sm:$0xff]
    %v3083 = vmul.f32 %v1809, %v3081
    %v3084 = vmul.f32 %v1810, %v3082
    %v3085 = vmul.f32 %v3083, %v2869
    %v3086 = vmul.f32 %v3084, %v2870
    %v3087 = vld [vmem:[#allocation9 + $0xa50] sm:$0xff]
    %v3088 = vld [vmem:[#allocation9 + $0xa58] sm:$0xff]
    %v3089 = vmul.f32 %v1893, %v3087
    %v3090 = vmul.f32 %v1894, %v3088
    %v3091 = vmul.f32 %v3089, %v2883
    %v3092 = vmul.f32 %v3090, %v2884
    %v3093 = vadd.f32 %v3085, %v3091
    %v3094 = vadd.f32 %v3086, %v3092
    %v3095 = vld [vmem:[#allocation8 + $0xa70] sm:$0xff]
    %v3096 = vld [vmem:[#allocation8 + $0xa78] sm:$0xff]
    %v3097 = vmul.f32 %v1823, %v3095
    %v3098 = vmul.f32 %v1824, %v3096
    %v3099 = vmul.f32 %v3097, %v2883
    %v3100 = vmul.f32 %v3098, %v2884
    %v3101 = vld [vmem:[#allocation9 + $0xa70] sm:$0xff]
    %v3102 = vld [vmem:[#allocation9 + $0xa78] sm:$0xff]
    %v3103 = vmul.f32 %v1907, %v3101
    %v3104 = vmul.f32 %v1908, %v3102
    %v3105 = vmul.f32 %v3103, %v2897
    %v3106 = vmul.f32 %v3104, %v2898
    %v3107 = vadd.f32 %v3099, %v3105
    %v3108 = vadd.f32 %v3100, %v3106
    %v3109 = vld [vmem:[#allocation8 + $0xa90] sm:$0xff]
    %v3110 = vld [vmem:[#allocation8 + $0xa98] sm:$0xff]
    %v3111 = vmul.f32 %v1837, %v3109
    %v3112 = vmul.f32 %v1838, %v3110
    %v3113 = vmul.f32 %v3111, %v2897
    %v3114 = vmul.f32 %v3112, %v2898
    %v3115 = vld [vmem:[#allocation9 + $0xa90] sm:$0xff]
    %v3116 = vld [vmem:[#allocation9 + $0xa98] sm:$0xff]
    %v3117 = vmul.f32 %v1921, %v3115
    %v3118 = vmul.f32 %v1922, %v3116
    %v3119 = vmul.f32 %v3117, %v2911
    %v3120 = vmul.f32 %v3118, %v2912
    %v3121 = vadd.f32 %v3113, %v3119
    %v3122 = vadd.f32 %v3114, %v3120
    %v3123 = vxor.u32 %v1647, 2147483648
    %v3124 = vxor.u32 %v1648, 2147483648
    %v3125 = vmul.f32 %v3123, 1.442695
    %v3126 = vpow.pop %v3125
    %v3127 = vmul.f32 %v3124, 1.442695
    %v3128 = vpow.pop %v3127
    %v3129 = vadd.f32 %v3126, 1.0
    %v3130 = vadd.f32 %v3128, 1.0
    %v3131 = vrcp.pop %v3129
    %v3132 = vmul.f32 %v3129, %v3131
    %v3133 = vsub.f32 1.0, %v3132
    %v3134 = vmul.f32 %v3131, %v3133
    %v3135 = vadd.f32 %v3131, %v3134
    %vm3136 = vweird.f32 %v3129
    %vm3137 = vweird.f32 %v3131
    %vm3138 = vmor %vm3136, %vm3137
    %v3139 = vsel %vm3138, %v3131, %v3135
    %v3140 = vand.u32 2147483647, %v3129
    %vm3141 = vcmp.eq.f32.partialorder %v3140, 8.507059e+37
    %v3142 = vand.u32 %v3129, 2147483648
    %v3143 = vor.u32 1.1754944e-38, %v3142
    %v3144 = vsel %vm3141, %v3143, %v3139
    %v3145 = vmul.f32 1.0, %v3144
    %v3146 = vrcp.pop %v3130
    %v3147 = vmul.f32 %v3130, %v3146
    %v3148 = vsub.f32 1.0, %v3147
    %v3149 = vmul.f32 %v3146, %v3148
    %v3150 = vadd.f32 %v3146, %v3149
    %vm3151 = vweird.f32 %v3130
    %vm3152 = vweird.f32 %v3146
    %vm3153 = vmor %vm3151, %vm3152
    %v3154 = vsel %vm3153, %v3146, %v3150
    %v3155 = vand.u32 2147483647, %v3130
    %vm3156 = vcmp.eq.f32.partialorder %v3155, 8.507059e+37
    %v3157 = vand.u32 %v3130, 2147483648
    %v3158 = vor.u32 1.1754944e-38, %v3157
    %v3159 = vsel %vm3156, %v3158, %v3154
    %v3160 = vmul.f32 1.0, %v3159
    %v3161 = vmul.f32 %v1647, %v3145
    %v3162 = vmul.f32 %v1648, %v3160
    %3163 = vst [vmem:[#allocation2 + $0x10] sm:$0xff] %v3161
    %3164 = vst [vmem:[#allocation2 + $0x18] sm:$0xff] %v3162
    %3165 = vst [vmem:[#allocation2 + $0x30] sm:$0xff] %v2925
    %3166 = vst [vmem:[#allocation2 + $0x38] sm:$0xff] %v2926
    %3167 = vst [vmem:[#allocation2 + $0x50] sm:$0xff] %v2939
    %3168 = vst [vmem:[#allocation2 + $0x58] sm:$0xff] %v2940
    %3169 = vst [vmem:[#allocation2 + $0x70] sm:$0xff] %v2953
    %3170 = vst [vmem:[#allocation2 + $0x78] sm:$0xff] %v2954
    %3171 = vst [vmem:[#allocation2 + $0x90] sm:$0xff] %v2967
    %3172 = vst [vmem:[#allocation2 + $0x98] sm:$0xff] %v2968
    %3173 = vst [vmem:[#allocation2 + $0xb0] sm:$0xff] %v2981
    %3174 = vst [vmem:[#allocation2 + $0xb8] sm:$0xff] %v2982
    %3175 = vst [vmem:[#allocation2 + $0xd0] sm:$0xff] %v2995
    %3176 = vst [vmem:[#allocation2 + $0xd8] sm:$0xff] %v2996
    %3177 = vst [vmem:[#allocation2 + $0xf0] sm:$0xff] %v3009
    %3178 = vst [vmem:[#allocation2 + $0xf8] sm:$0xff] %v3010
    %3179 = vst [vmem:[#allocation2 + $0x110] sm:$0xff] %v3023
    %3180 = vst [vmem:[#allocation2 + $0x118] sm:$0xff] %v3024
    %3181 = vst [vmem:[#allocation2 + $0x130] sm:$0xff] %v3037
    %3182 = vst [vmem:[#allocation2 + $0x138] sm:$0xff] %v3038
    %3183 = vst [vmem:[#allocation2 + $0x150] sm:$0xff] %v3051
    %3184 = vst [vmem:[#allocation2 + $0x158] sm:$0xff] %v3052
    %3185 = vst [vmem:[#allocation2 + $0x170] sm:$0xff] %v3065
    %3186 = vst [vmem:[#allocation2 + $0x178] sm:$0xff] %v3066
    %3187 = vst [vmem:[#allocation2 + $0x190] sm:$0xff] %v3079
    %3188 = vst [vmem:[#allocation2 + $0x198] sm:$0xff] %v3080
    %3189 = vst [vmem:[#allocation2 + $0x1b0] sm:$0xff] %v3093
    %3190 = vst [vmem:[#allocation2 + $0x1b8] sm:$0xff] %v3094
    %3191 = vst [vmem:[#allocation2 + $0x1d0] sm:$0xff] %v3107
    %3192 = vst [vmem:[#allocation2 + $0x1d8] sm:$0xff] %v3108
    %3193 = vst [vmem:[#allocation2 + $0x1f0] sm:$0xff] %v3121
    %3194 = vst [vmem:[#allocation2 + $0x1f8] sm:$0xff] %v3122
    %v3195 = vld [vmem:[#allocation11] sm:$0xff]
    %v3196 = vld [vmem:[#allocation11 + $0x8] sm:$0xff]
    %v3197 = vld [vmem:[#allocation11 + $0x10] sm:$0xff]
    %v3198 = vld [vmem:[#allocation11 + $0x18] sm:$0xff]
    %v3199 = vld [vmem:[#allocation11 + $0x20] sm:$0xff]
    %v3200 = vld [vmem:[#allocation11 + $0x28] sm:$0xff]
    %v3201 = vld [vmem:[#allocation11 + $0x30] sm:$0xff]
    %v3202 = vld [vmem:[#allocation11 + $0x38] sm:$0xff]
    %v3203 = vld [vmem:[#allocation11 + $0x40] sm:$0xff]
    %v3204 = vld [vmem:[#allocation11 + $0x48] sm:$0xff]
    %v3205 = vld [vmem:[#allocation11 + $0x50] sm:$0xff]
    %v3206 = vld [vmem:[#allocation11 + $0x58] sm:$0xff]
    %v3207 = vld [vmem:[#allocation11 + $0x60] sm:$0xff]
    %v3208 = vld [vmem:[#allocation11 + $0x68] sm:$0xff]
    %v3209 = vld [vmem:[#allocation11 + $0x70] sm:$0xff]
    %v3210 = vld [vmem:[#allocation11 + $0x78] sm:$0xff]
    %v3211 = vld [vmem:[#allocation2] sm:$0xff]
    %v3212 = vld [vmem:[#allocation2 + $0x8] sm:$0xff]
    %v3213 = vld [vmem:[#allocation2 + $0x10] sm:$0xff]
    %v3214 = vld [vmem:[#allocation2 + $0x18] sm:$0xff]
    %v3215 = vld [vmem:[#allocation2 + $0x20] sm:$0xff]
    %v3216 = vld [vmem:[#allocation2 + $0x28] sm:$0xff]
    %v3217 = vld [vmem:[#allocation2 + $0x30] sm:$0xff]
    %v3218 = vld [vmem:[#allocation2 + $0x38] sm:$0xff]
    %v3219 = vld [vmem:[#allocation2 + $0x40] sm:$0xff]
    %v3220 = vld [vmem:[#allocation2 + $0x48] sm:$0xff]
    %v3221 = vld [vmem:[#allocation2 + $0x50] sm:$0xff]
    %v3222 = vld [vmem:[#allocation2 + $0x58] sm:$0xff]
    %v3223 = vld [vmem:[#allocation2 + $0x60] sm:$0xff]
    %v3224 = vld [vmem:[#allocation2 + $0x68] sm:$0xff]
    %v3225 = vld [vmem:[#allocation2 + $0x70] sm:$0xff]
    %v3226 = vld [vmem:[#allocation2 + $0x78] sm:$0xff]
    %v3227 = vld [vmem:[#allocation2 + $0x80] sm:$0xff]
    %v3228 = vld [vmem:[#allocation2 + $0x88] sm:$0xff]
    %v3229 = vld [vmem:[#allocation2 + $0x90] sm:$0xff]
    %v3230 = vld [vmem:[#allocation2 + $0x98] sm:$0xff]
    %v3231 = vld [vmem:[#allocation2 + $0xa0] sm:$0xff]
    %v3232 = vld [vmem:[#allocation2 + $0xa8] sm:$0xff]
    %v3233 = vld [vmem:[#allocation2 + $0xb0] sm:$0xff]
    %v3234 = vld [vmem:[#allocation2 + $0xb8] sm:$0xff]
    %v3235 = vld [vmem:[#allocation2 + $0xc0] sm:$0xff]
    %v3236 = vld [vmem:[#allocation2 + $0xc8] sm:$0xff]
    %v3237 = vld [vmem:[#allocation2 + $0xd0] sm:$0xff]
    %v3238 = vld [vmem:[#allocation2 + $0xd8] sm:$0xff]
    %v3239 = vld [vmem:[#allocation2 + $0xe0] sm:$0xff]
    %v3240 = vld [vmem:[#allocation2 + $0xe8] sm:$0xff]
    %v3241 = vld [vmem:[#allocation2 + $0xf0] sm:$0xff]
    %v3242 = vld [vmem:[#allocation2 + $0xf8] sm:$0xff]
    %v3243 = vld [vmem:[#allocation2 + $0x100] sm:$0xff]
    %v3244 = vld [vmem:[#allocation2 + $0x108] sm:$0xff]
    %v3245 = vld [vmem:[#allocation2 + $0x110] sm:$0xff]
    %v3246 = vld [vmem:[#allocation2 + $0x118] sm:$0xff]
    %v3247 = vld [vmem:[#allocation2 + $0x120] sm:$0xff]
    %v3248 = vld [vmem:[#allocation2 + $0x128] sm:$0xff]
    %v3249 = vld [vmem:[#allocation2 + $0x130] sm:$0xff]
    %v3250 = vld [vmem:[#allocation2 + $0x138] sm:$0xff]
    %v3251 = vld [vmem:[#allocation2 + $0x140] sm:$0xff]
    %v3252 = vld [vmem:[#allocation2 + $0x148] sm:$0xff]
    %v3253 = vld [vmem:[#allocation2 + $0x150] sm:$0xff]
    %v3254 = vld [vmem:[#allocation2 + $0x158] sm:$0xff]
    %v3255 = vld [vmem:[#allocation2 + $0x160] sm:$0xff]
    %v3256 = vld [vmem:[#allocation2 + $0x168] sm:$0xff]
    %v3257 = vld [vmem:[#allocation2 + $0x170] sm:$0xff]
    %v3258 = vld [vmem:[#allocation2 + $0x178] sm:$0xff]
    %v3259 = vld [vmem:[#allocation2 + $0x180] sm:$0xff]
    %v3260 = vld [vmem:[#allocation2 + $0x188] sm:$0xff]
    %v3261 = vld [vmem:[#allocation2 + $0x190] sm:$0xff]
    %v3262 = vld [vmem:[#allocation2 + $0x198] sm:$0xff]
    %v3263 = vld [vmem:[#allocation2 + $0x1a0] sm:$0xff]
    %v3264 = vld [vmem:[#allocation2 + $0x1a8] sm:$0xff]
    %v3265 = vld [vmem:[#allocation2 + $0x1b0] sm:$0xff]
    %v3266 = vld [vmem:[#allocation2 + $0x1b8] sm:$0xff]
    %v3267 = vld [vmem:[#allocation2 + $0x1c0] sm:$0xff]
    %v3268 = vld [vmem:[#allocation2 + $0x1c8] sm:$0xff]
    %v3269 = vld [vmem:[#allocation2 + $0x1d0] sm:$0xff]
    %v3270 = vld [vmem:[#allocation2 + $0x1d8] sm:$0xff]
    %v3271 = vld [vmem:[#allocation2 + $0x1e0] sm:$0xff]
    %v3272 = vld [vmem:[#allocation2 + $0x1e8] sm:$0xff]
    %v3273 = vld [vmem:[#allocation2 + $0x1f0] sm:$0xff]
    %v3274 = vld [vmem:[#allocation2 + $0x1f8] sm:$0xff]
    %3275 = vmatpush.msra.mxu0 %v3226
    %3276 = vmatpush.msra.mxu0 %v3225
    %3277 = vmatpush.msra.mxu0 %v3224
    %3278 = vmatpush.msra.mxu0 %v3223
    %3279 = vmatpush.msra.mxu0 %v3222
    %3280 = vmatpush.msra.mxu0 %v3221
    %3281 = vmatpush.msra.mxu0 %v3220
    %3282 = vmatpush.msra.mxu0 %v3219
    %3283 = vmatpush.msra.mxu0 %v3218
    %3284 = vmatpush.msra.mxu0 %v3217
    %3285 = vmatpush.msra.mxu0 %v3216
    %3286 = vmatpush.msra.mxu0 %v3215
    %3287 = vmatpush.msra.mxu0 %v3214
    %3288 = vmatpush.msra.mxu0 %v3213
    %3289 = vmatpush.msra.mxu0 %v3212
    %3290 = vmatpush.msra.mxu0 %v3211
    %3291 = vmatmul.f32.gmra.mxu0 %v3195
    %v3292 = vpop.f32.mrf.mxu0
    %v3293 = vadd.f32 0.0, %v3292
    %3294 = vmatmul.f32.gmra.mxu0 %v3199
    %v3295 = vpop.f32.mrf.mxu0
    %v3296 = vadd.f32 0.0, %v3295
    %3297 = vmatmul.f32.gmra.mxu0 %v3203
    %v3298 = vpop.f32.mrf.mxu0
    %v3299 = vadd.f32 0.0, %v3298
    %3300 = vmatmul.f32.gmra.mxu0 %v3207
    %v3301 = vpop.f32.mrf.mxu0
    %v3302 = vadd.f32 0.0, %v3301
    %3303 = vdwg.mxu0
    %3304 = vmatpush.msra.mxu0 %v3242
    %3305 = vmatpush.msra.mxu0 %v3241
    %3306 = vmatpush.msra.mxu0 %v3240
    %3307 = vmatpush.msra.mxu0 %v3239
    %3308 = vmatpush.msra.mxu0 %v3238
    %3309 = vmatpush.msra.mxu0 %v3237
    %3310 = vmatpush.msra.mxu0 %v3236
    %3311 = vmatpush.msra.mxu0 %v3235
    %3312 = vmatpush.msra.mxu0 %v3234
    %3313 = vmatpush.msra.mxu0 %v3233
    %3314 = vmatpush.msra.mxu0 %v3232
    %3315 = vmatpush.msra.mxu0 %v3231
    %3316 = vmatpush.msra.mxu0 %v3230
    %3317 = vmatpush.msra.mxu0 %v3229
    %3318 = vmatpush.msra.mxu0 %v3228
    %3319 = vmatpush.msra.mxu0 %v3227
    %3320 = vmatmul.f32.gmra.mxu0 %v3196
    %v3321 = vpop.f32.mrf.mxu0
    %v3322 = vadd.f32 %v3293, %v3321
    %3323 = vmatmul.f32.gmra.mxu0 %v3200
    %v3324 = vpop.f32.mrf.mxu0
    %v3325 = vadd.f32 %v3296, %v3324
    %3326 = vmatmul.f32.gmra.mxu0 %v3204
    %v3327 = vpop.f32.mrf.mxu0
    %v3328 = vadd.f32 %v3299, %v3327
    %3329 = vmatmul.f32.gmra.mxu0 %v3208
    %v3330 = vpop.f32.mrf.mxu0
    %v3331 = vadd.f32 %v3302, %v3330
    %3332 = vdwg.mxu0
    %3333 = vmatpush.msra.mxu0 %v3258
    %3334 = vmatpush.msra.mxu0 %v3257
    %3335 = vmatpush.msra.mxu0 %v3256
    %3336 = vmatpush.msra.mxu0 %v3255
    %3337 = vmatpush.msra.mxu0 %v3254
    %3338 = vmatpush.msra.mxu0 %v3253
    %3339 = vmatpush.msra.mxu0 %v3252
    %3340 = vmatpush.msra.mxu0 %v3251
    %3341 = vmatpush.msra.mxu0 %v3250
    %3342 = vmatpush.msra.mxu0 %v3249
    %3343 = vmatpush.msra.mxu0 %v3248
    %3344 = vmatpush.msra.mxu0 %v3247
    %3345 = vmatpush.msra.mxu0 %v3246
    %3346 = vmatpush.msra.mxu0 %v3245
    %3347 = vmatpush.msra.mxu0 %v3244
    %3348 = vmatpush.msra.mxu0 %v3243
    %3349 = vmatmul.f32.gmra.mxu0 %v3197
    %v3350 = vpop.f32.mrf.mxu0
    %v3351 = vadd.f32 %v3322, %v3350
    %3352 = vmatmul.f32.gmra.mxu0 %v3201
    %v3353 = vpop.f32.mrf.mxu0
    %v3354 = vadd.f32 %v3325, %v3353
    %3355 = vmatmul.f32.gmra.mxu0 %v3205
    %v3356 = vpop.f32.mrf.mxu0
    %v3357 = vadd.f32 %v3328, %v3356
    %3358 = vmatmul.f32.gmra.mxu0 %v3209
    %v3359 = vpop.f32.mrf.mxu0
    %v3360 = vadd.f32 %v3331, %v3359
    %3361 = vdwg.mxu0
    %3362 = vmatpush.msra.mxu0 %v3274
    %3363 = vmatpush.msra.mxu0 %v3273
    %3364 = vmatpush.msra.mxu0 %v3272
    %3365 = vmatpush.msra.mxu0 %v3271
    %3366 = vmatpush.msra.mxu0 %v3270
    %3367 = vmatpush.msra.mxu0 %v3269
    %3368 = vmatpush.msra.mxu0 %v3268
    %3369 = vmatpush.msra.mxu0 %v3267
    %3370 = vmatpush.msra.mxu0 %v3266
    %3371 = vmatpush.msra.mxu0 %v3265
    %3372 = vmatpush.msra.mxu0 %v3264
    %3373 = vmatpush.msra.mxu0 %v3263
    %3374 = vmatpush.msra.mxu0 %v3262
    %3375 = vmatpush.msra.mxu0 %v3261
    %3376 = vmatpush.msra.mxu0 %v3260
    %3377 = vmatpush.msra.mxu0 %v3259
    %3378 = vmatmul.f32.gmra.mxu0 %v3198
    %v3379 = vpop.f32.mrf.mxu0
    %v3380 = vadd.f32 %v3351, %v3379
    %3381 = vmatmul.f32.gmra.mxu0 %v3202
    %v3382 = vpop.f32.mrf.mxu0
    %v3383 = vadd.f32 %v3354, %v3382
    %3384 = vmatmul.f32.gmra.mxu0 %v3206
    %v3385 = vpop.f32.mrf.mxu0
    %v3386 = vadd.f32 %v3357, %v3385
    %3387 = vmatmul.f32.gmra.mxu0 %v3210
    %v3388 = vpop.f32.mrf.mxu0
    %v3389 = vadd.f32 %v3360, %v3388
    %3390 = vdwg.mxu0
    %3391 = vst [vmem:[#allocation12] sm:$0xff] %v3380
    %3392 = vst [vmem:[#allocation12 + $0x8] sm:$0xff] %v3383
    %3393 = vst [vmem:[#allocation12 + $0x10] sm:$0xff] %v3386
    %3394 = vst [vmem:[#allocation12 + $0x18] sm:$0xff] %v3389
    // Predicated region
    $region42: #{tpu_custom_call.1} parent=1 // pred_check
      _
    $region43: #{tpu_custom_call.1} parent=1 // pred_check_branch
      %3396 = sbr.rel (0) target = $region45
    $region44: #{tpu_custom_call.1} parent=1 // pred_region
      %3398 = vsyncadd [#allocation5], 0
      %s3399 = sshll.u32 [#allocation12], 4
      %s3400 = int_to_ptr.vmem [resolvable:$true] %s3399
      %s3401 = sshll.u32 %s5, 4
      %s3402 = int_to_ptr.hbm [resolvable:$true] %s3401
      %3407 = dma.vmem_to_hbm [thread:$0]  %s3400, 512, %s3402, [#allocation5], 128, 128, 8
    $region45: #{tpu_custom_call.1} parent=1 // pred_fallthru
      _
    // Predicated region
    $region46: #{tpu_custom_call.1} parent=1 // pred_check
      _
    $region47: #{tpu_custom_call.1} parent=1 // pred_check_branch
      %3409 = sbr.rel (0) target = $region49
    $region48: #{tpu_custom_call.1} parent=1 // pred_region
      %3411 = dma.done [#allocation5], 512
    $region49: #{tpu_custom_call.1} parent=1 // pred_fallthru
      _
    %3412 = vsyncpa [#allocation4], 1
    %3413 = vsyncpa [#allocation7], 1
    %3414 = vsyncpa [#allocation10], 1
    %3415 = vsyncpa [#allocation5], 1

</llo_original>
